<compile_context>
chip_gen: v6e
topology: v6e:2x2x1
jax: 0.10.0
libtpu: 0.0.40
codegen_flags: <defaults>
</compile_context>

<pallas_src>
import jax
import jax.numpy as jnp
from jax.experimental import pallas as pl
from jax.experimental.pallas import tpu as pltpu


# ---------------------------------------------------------------------------
# Model configuration (small, deterministic)
# ---------------------------------------------------------------------------
FIELD_DIMS = (6, 7, 9, 10)          # 4 fields, vocab sizes
EMBED_DIM = 16
NUM_FIELDS = len(FIELD_DIMS)
EMBED_OUT_DIM = NUM_FIELDS * EMBED_DIM     # 64
CN_LAYERS = 3
MLP_LAYERS = (128, 128, 128)
BATCH = 8

_PROJ_W = 128                       # lane-padded width of the cross projections


def _round_up(a, m):
    return ((a + m - 1) // m) * m


# ---------------------------------------------------------------------------
# Pallas kernel: cross-network (reassociated) + MLP(+folded BN) + final FC
# ---------------------------------------------------------------------------
def dcn_kernel(x_ref,                       # (TB, D)   embedded features, f32
               vproj_ref,                   # (D, 128)  [w_0..w_2, fcw_cross, 0...] f32
               cproj_ref,                   # (CN, 128) c[k,j] = b_k . V_j        f32
               w1_ref, b1_ref,              # (D,  H1) bf16, (1, H1) f32
               w2_ref, b2_ref,              # (H1, H2) bf16, (1, H2) f32
               w3_ref, b3_ref,              # (H2, H3) bf16, (1, H3) f32
               fcw_mlp_ref,                 # (1, H3) f32  (final FC, MLP half)
               fcb_ref,                     # (1, 1) f32 in SMEM
               o_ref):                      # (TB//128, 128) f32, lane-dense
    x0 = x_ref[...]                                             # (TB, D) f32

    # ---- CrossNetwork, exact reassociation -------------------------------
    # p[:, j] = x_k . V_j with V = [w_0, w_1, w_2, fcw_cross] (lane padded).
    # x_{k+1}.V_j = (x0.V_j) * (x_k.w_k) + b_k.V_j + x_k.V_j
    p0 = jnp.dot(x0, vproj_ref[...], preferred_element_type=jnp.float32)
    p = p0
    for k in range(CN_LAYERS):
        s_k = p[:, k:k + 1]                                     # (TB, 1) = x_k . w_k
        p = p0 * s_k + cproj_ref[k:k + 1, :] + p
    cross = p[:, CN_LAYERS:CN_LAYERS + 1]                       # (TB, 1) = x_L . fcw_cross

    # ---- MLP: (Linear[BN folded] -> ReLU -> Dropout[id]) x3 ----------------
    # bf16 operands on the MXU, f32 accumulation; activations kept bf16.
    h = x0.astype(jnp.bfloat16)
    for w_r, b_r in ((w1_ref, b1_ref), (w2_ref, b2_ref), (w3_ref, b3_ref)):
        acc = jnp.dot(h, w_r[...], preferred_element_type=jnp.float32) + b_r[...]
        h = jnp.maximum(acc, 0.0).astype(jnp.bfloat16)

    # ---- Final FC: cross scalar + (h . fcw_mlp) + bias ---------------------
    mlp = jnp.sum(h * fcw_mlp_ref[...], axis=-1, keepdims=True)  # (TB, 1) f32
    out = cross + mlp + fcb_ref[0, 0]                            # (TB, 1)
    # Lane-dense store: relayout (TB,1) -> (TB//128, 128) once per tile.
    o_ref[...] = out.reshape(o_ref.shape).astype(o_ref.dtype)


def dcn_forward(x_emb, kparams, *, block_b=2048):
    """x_emb: (B, EMBED_OUT_DIM) float32.  Returns (B, 1) float32.

    block_b: batch tile (rounded to a multiple of 1024).  Larger tiles
    amortize per-grid-step overhead; VMEM limit is raised automatically.
    """
    B, D = x_emb.shape

    b_rounded = _round_up(max(B, 1), 1024)
    tb = min(_round_up(max(block_b, 1024), 1024), b_rounded)
    # Keep >= 2 grid steps when the batch allows it (uses both TCs on v7x).
    if b_rounded >= 2048:
        tb = min(tb, ((b_rounded // 2) // 1024) * 1024)
    Bp = _round_up(B, tb)
    if Bp != B:
        x_emb = jnp.pad(x_emb, ((0, Bp - B), (0, 0)))
    grid = (Bp // tb,)

    def resident(shape):                    # VMEM-resident across the grid
        n = len(shape)
        return pl.BlockSpec(shape, lambda i, _n=n: (0,) * _n)

    args = (x_emb,
            kparams["vproj"], kparams["cproj"],
            kparams["w1"], kparams["b1"],
            kparams["w2"], kparams["b2"],
            kparams["w3"], kparams["b3"],
            kparams["fcw_mlp"], kparams["fc_b"])

    in_specs = ([pl.BlockSpec((tb, D), lambda i: (i, 0))]        # batch-tiled x
                + [resident(a.shape) for a in args[1:-1]]
                + [pl.BlockSpec(memory_space=pltpu.MemorySpace.SMEM)])  # fc_b scalar

    # Rough per-step VMEM need: double-buffered x + f32 intermediates.
    # Default tiles (<=2048 rows) stay well under the 16 MiB scoped default
    # (v5e); only raise the limit when a big tile is requested.
    est = tb * (D * 4 * 2 + 8) + tb * 3200 + (2 << 20)
    vmem_limit = int(min(est + (8 << 20), 56 << 20)) if est > (14 << 20) else None

    out2d = pl.pallas_call(
        dcn_kernel,
        out_shape=jax.ShapeDtypeStruct((Bp // 128, 128), jnp.float32),
        grid_spec=pltpu.PrefetchScalarGridSpec(
            num_scalar_prefetch=0,
            grid=grid,
            in_specs=in_specs,
            out_specs=pl.BlockSpec((tb // 128, 128), lambda i: (i, 0)),
        ),
        compiler_params=pltpu.CompilerParams(
            dimension_semantics=("parallel",),
            vmem_limit_bytes=vmem_limit),
    )(*args)
    return out2d.reshape(-1, 1)[:B]


# ---------------------------------------------------------------------------
# Deterministic parameter init, BN folding, embedding glue, pure-JAX reference
# ---------------------------------------------------------------------------
def init_params(key):
    ks = jax.random.split(key, 12)
    d = EMBED_OUT_DIM
    h1, h2, h3 = MLP_LAYERS

    def lin_w(k, fan_in, fan_out):
        bound = 1.0 / jnp.sqrt(fan_in)
        return jax.random.uniform(k, (fan_in, fan_out), jnp.float32, -bound, bound)

    def lin_b(k, fan_in, fan_out):
        bound = 1.0 / jnp.sqrt(fan_in)
        return jax.random.uniform(k, (1, fan_out), jnp.float32, -bound, bound)

    def bn(n):          # BatchNorm1d default (eval) running stats / affine
        return dict(gamma=jnp.ones((n,), jnp.float32),
                    beta=jnp.zeros((n,), jnp.float32),
                    mean=jnp.zeros((n,), jnp.float32),
                    var=jnp.ones((n,), jnp.float32))

    return {
        "emb": jax.random.uniform(ks[0], (sum(FIELD_DIMS), EMBED_DIM),
                                  jnp.float32, -0.1, 0.1),
        # cross network: Linear(d, 1, bias=False) weights stored as rows
        "cn_w": jax.random.uniform(ks[1], (CN_LAYERS, d), jnp.float32,
                                   -1.0 / jnp.sqrt(d), 1.0 / jnp.sqrt(d)),
        # module inits these to zero; use small random values so the bias
        # path of the reassociated cross recurrence is actually exercised.
        "cn_b": jax.random.uniform(ks[10], (CN_LAYERS, d), jnp.float32, -0.05, 0.05),
        # MLP linears stored pre-transposed: (in, out)
        "w1": lin_w(ks[2], d, h1),  "b1": lin_b(ks[3], d, h1),  "bn1": bn(h1),
        "w2": lin_w(ks[4], h1, h2), "b2": lin_b(ks[5], h1, h2), "bn2": bn(h2),
        "w3": lin_w(ks[6], h2, h3), "b3": lin_b(ks[7], h2, h3), "bn3": bn(h3),
        # final fc over concat([cross (d), mlp (h3)])
        "fc_w": lin_w(ks[8], d + h3, 1),
        "fc_b": lin_b(ks[9], d + h3, 1),
    }


def prepare_kernel_params(p, eps=1e-5):
    """One-time prep: fold eval-mode BN into the linears (bf16 MXU weights)
    and build the cross-network projection constants (exact reassociation)."""
    d = EMBED_OUT_DIM

    def fold(w, b, bn):
        s = bn["gamma"] / jnp.sqrt(bn["var"] + eps)            # (H,)
        t = bn["beta"] - bn["mean"] * s                        # (H,)
        w_f = (w * s[None, :]).astype(jnp.bfloat16)            # MXU path: bf16
        b_f = (b * s[None, :] + t[None, :]).astype(jnp.float32)
        return w_f, b_f

    w1, b1 = fold(p["w1"], p["b1"], p["bn1"])
    w2, b2 = fold(p["w2"], p["b2"], p["bn2"])
    w3, b3 = fold(p["w3"], p["b3"], p["bn3"])

    fc_w = p["fc_w"]                                           # (d + H3, 1)
    fcw_cross = fc_w[:d, :]                                    # (d, 1)
    fcw_mlp = fc_w[d:, :].reshape(1, -1)                       # (1, H3)

    # V = [w_0, ..., w_{L-1}, fcw_cross], lane-padded to 128; cproj[k] = b_k @ V.
    v = jnp.concatenate([p["cn_w"].T, fcw_cross], axis=1)      # (d, L+1)
    vproj = jnp.zeros((d, _PROJ_W), jnp.float32).at[:, :CN_LAYERS + 1].set(v)
    c = p["cn_b"] @ v                                          # (L, L+1)
    cproj = jnp.zeros((CN_LAYERS, _PROJ_W), jnp.float32).at[:, :CN_LAYERS + 1].set(c)

    return {
        "vproj": vproj, "cproj": cproj,
        "w1": w1, "b1": b1, "w2": w2, "b2": b2, "w3": w3, "b3": b3,
        "fcw_mlp": fcw_mlp,
        "fc_b": p["fc_b"].reshape(1, 1),                       # scalar, SMEM
    }


def embed(x_idx, params):
    """FeaturesEmbedding glue: x_idx (B, NUM_FIELDS) int32 -> (B, D) f32."""
    offsets = jnp.asarray(
        (0,) + tuple(jnp.cumsum(jnp.asarray(FIELD_DIMS))[:-1].tolist()),
        dtype=jnp.int32)
    emb = params["emb"][x_idx + offsets[None, :]]              # (B, F, E)
    return emb.reshape(x_idx.shape[0], EMBED_OUT_DIM)


def reference_forward(x_emb, p, eps=1e-5):
    x0 = x_emb
    x = x0
    for i in range(CN_LAYERS):
        xw = jnp.sum(x * p["cn_w"][i][None, :], axis=-1, keepdims=True)
        x = x0 * xw + p["cn_b"][i][None, :] + x
    h = x0
    for wk, bk, bnk in (("w1", "b1", "bn1"),
                        ("w2", "b2", "bn2"),
                        ("w3", "b3", "bn3")):
        bn = p[bnk]
        h = h @ p[wk] + p[bk]
        h = (h - bn["mean"]) / jnp.sqrt(bn["var"] + eps) * bn["gamma"] + bn["beta"]
        h = jnp.maximum(h, 0.0)
    cat = jnp.concatenate([x, h], axis=1)
    return cat @ p["fc_w"] + p["fc_b"][0, 0]


# ---------------------------------------------------------------------------
if __name__ == "__main__":
    key = jax.random.PRNGKey(0)
    k_param, k_data = jax.random.split(key)
    raw_params = init_params(k_param)
    kparams = prepare_kernel_params(raw_params)

    maxvals = jnp.asarray(FIELD_DIMS, dtype=jnp.int32)

    # --- small correctness check (single tile) ------------------------------
    x_idx = (jax.random.randint(k_data, (BATCH, NUM_FIELDS), 0, 10**6)
             % maxvals[None, :]).astype(jnp.int32)
    x_emb = embed(x_idx, raw_params)                 # (8, 64) glue in plain JAX

    y = jax.block_until_ready(dcn_forward(x_emb, kparams))
    y_ref = reference_forward(x_emb, raw_params)
    assert y.shape == (BATCH, 1)
    # bf16 MXU path => loosened tolerance vs the f32 reference.
    assert jnp.allclose(y, y_ref, atol=1e-2, rtol=1e-2), (y, y_ref)

    # --- batch-tiled path (grid > 1, padded batch, resident weights) --------
    B2 = 2500
    x_idx2 = (jax.random.randint(jax.random.PRNGKey(1), (B2, NUM_FIELDS), 0, 10**6)
              % maxvals[None, :]).astype(jnp.int32)
    x_emb2 = embed(x_idx2, raw_params)
    y2 = jax.block_until_ready(dcn_forward(x_emb2, kparams, block_b=1024))
    y2_ref = reference_forward(x_emb2, raw_params)
    assert y2.shape == (B2, 1)
    assert jnp.allclose(y2, y2_ref, atol=1e-2, rtol=1e-2), (y2, y2_ref)

    print("KERNEL_OK")
</pallas_src>

<mosaic_0001>
module attributes {stable_mosaic.version = 11 : i64} {
  func.func @dcn_kernel(%arg0: i32, %arg1: memref<1024x64xf32, #tpu.memory_space<vmem>>, %arg2: memref<64x128xf32, #tpu.memory_space<vmem>>, %arg3: memref<3x128xf32, #tpu.memory_space<vmem>>, %arg4: memref<64x128xbf16, #tpu.memory_space<vmem>>, %arg5: memref<1x128xf32, #tpu.memory_space<vmem>>, %arg6: memref<128x128xbf16, #tpu.memory_space<vmem>>, %arg7: memref<1x128xf32, #tpu.memory_space<vmem>>, %arg8: memref<128x128xbf16, #tpu.memory_space<vmem>>, %arg9: memref<1x128xf32, #tpu.memory_space<vmem>>, %arg10: memref<1x128xf32, #tpu.memory_space<vmem>>, %arg11: memref<1x1xf32, #tpu.memory_space<smem>>, %arg12: memref<8x128xf32, #tpu.memory_space<vmem>>) attributes {dimension_semantics = [#tpu.dimension_semantics<parallel>], iteration_bounds = array<i64: 1>, scalar_prefetch = 0 : i64, scratch_operands = 0 : i64, tpu.core_type = #tpu.core_type<tc>, window_params = [{transform_indices = @transform_0, window_bounds = array<i64: 1024, 64>}, {pipeline_mode = #tpu.pipeline_mode<synchronous>, transform_indices = @transform_1, window_bounds = array<i64: 64, 128>}, {pipeline_mode = #tpu.pipeline_mode<synchronous>, transform_indices = @transform_2, window_bounds = array<i64: 3, 128>}, {pipeline_mode = #tpu.pipeline_mode<synchronous>, transform_indices = @transform_3, window_bounds = array<i64: 64, 128>}, {pipeline_mode = #tpu.pipeline_mode<synchronous>, transform_indices = @transform_4, window_bounds = array<i64: 1, 128>}, {pipeline_mode = #tpu.pipeline_mode<synchronous>, transform_indices = @transform_5, window_bounds = array<i64: 128, 128>}, {pipeline_mode = #tpu.pipeline_mode<synchronous>, transform_indices = @transform_6, window_bounds = array<i64: 1, 128>}, {pipeline_mode = #tpu.pipeline_mode<synchronous>, transform_indices = @transform_7, window_bounds = array<i64: 128, 128>}, {pipeline_mode = #tpu.pipeline_mode<synchronous>, transform_indices = @transform_8, window_bounds = array<i64: 1, 128>}, {pipeline_mode = #tpu.pipeline_mode<synchronous>, transform_indices = @transform_9, window_bounds = array<i64: 1, 128>}, {transform_indices = @transform_10, window_bounds = array<i64: 1, 1>}, {transform_indices = @transform_11, window_bounds = array<i64: 8, 128>}]} {
    %c0 = arith.constant 0 : index
    %c0_0 = arith.constant 0 : index
    %0 = vector.load %arg1[%c0, %c0_0] : memref<1024x64xf32, #tpu.memory_space<vmem>>, vector<1024x64xf32>
    %c0_1 = arith.constant 0 : index
    %c0_2 = arith.constant 0 : index
    %1 = vector.load %arg2[%c0_1, %c0_2] : memref<64x128xf32, #tpu.memory_space<vmem>>, vector<64x128xf32>
    %cst = arith.constant dense<0.000000e+00> : vector<1024x128xf32>
    %2 = tpu.matmul %0, %1, %cst {dimension_numbers = #tpu.dot_dimension_numbers<[1], [0], [0], [1], [0, 0, 1, 1], [], []>} : vector<1024x64xf32>, vector<64x128xf32>, vector<1024x128xf32> -> vector<1024x128xf32>
    %3 = vector.extract_strided_slice %2 {offsets = [0, 0], sizes = [1024, 1], strides = [1, 1]} : vector<1024x128xf32> to vector<1024x1xf32>
    %4 = vector.broadcast %3 : vector<1024x1xf32> to vector<1024x128xf32>
    %5 = arith.mulf %2, %4 : vector<1024x128xf32>
    %c0_3 = arith.constant 0 : index
    %c0_4 = arith.constant 0 : index
    %6 = vector.load %arg3[%c0_3, %c0_4] : memref<3x128xf32, #tpu.memory_space<vmem>>, vector<1x128xf32>
    %7 = vector.broadcast %6 : vector<1x128xf32> to vector<1024x128xf32>
    %8 = arith.addf %5, %7 : vector<1024x128xf32>
    %9 = arith.addf %8, %2 : vector<1024x128xf32>
    %10 = vector.extract_strided_slice %9 {offsets = [0, 1], sizes = [1024, 1], strides = [1, 1]} : vector<1024x128xf32> to vector<1024x1xf32>
    %11 = vector.broadcast %10 : vector<1024x1xf32> to vector<1024x128xf32>
    %12 = arith.mulf %2, %11 : vector<1024x128xf32>
    %c1 = arith.constant 1 : index
    %c0_5 = arith.constant 0 : index
    %13 = vector.load %arg3[%c1, %c0_5] : memref<3x128xf32, #tpu.memory_space<vmem>>, vector<1x128xf32>
    %14 = vector.broadcast %13 : vector<1x128xf32> to vector<1024x128xf32>
    %15 = arith.addf %12, %14 : vector<1024x128xf32>
    %16 = arith.addf %15, %9 : vector<1024x128xf32>
    %17 = vector.extract_strided_slice %16 {offsets = [0, 2], sizes = [1024, 1], strides = [1, 1]} : vector<1024x128xf32> to vector<1024x1xf32>
    %18 = vector.broadcast %17 : vector<1024x1xf32> to vector<1024x128xf32>
    %19 = arith.mulf %2, %18 : vector<1024x128xf32>
    %c2 = arith.constant 2 : index
    %c0_6 = arith.constant 0 : index
    %20 = vector.load %arg3[%c2, %c0_6] : memref<3x128xf32, #tpu.memory_space<vmem>>, vector<1x128xf32>
    %21 = vector.broadcast %20 : vector<1x128xf32> to vector<1024x128xf32>
    %22 = arith.addf %19, %21 : vector<1024x128xf32>
    %23 = arith.addf %22, %16 : vector<1024x128xf32>
    %24 = vector.extract_strided_slice %23 {offsets = [0, 3], sizes = [1024, 1], strides = [1, 1]} : vector<1024x128xf32> to vector<1024x1xf32>
    %25 = arith.truncf %0 : vector<1024x64xf32> to vector<1024x64xbf16>
    %c0_7 = arith.constant 0 : index
    %c0_8 = arith.constant 0 : index
    %26 = vector.load %arg4[%c0_7, %c0_8] : memref<64x128xbf16, #tpu.memory_space<vmem>>, vector<64x128xbf16>
    %cst_9 = arith.constant dense<0.000000e+00> : vector<1024x128xf32>
    %27 = tpu.matmul %25, %26, %cst_9 {dimension_numbers = #tpu.dot_dimension_numbers<[1], [0], [0], [1], [0, 0, 1, 1], [], []>} : vector<1024x64xbf16>, vector<64x128xbf16>, vector<1024x128xf32> -> vector<1024x128xf32>
    %c0_10 = arith.constant 0 : index
    %c0_11 = arith.constant 0 : index
    %28 = vector.load %arg5[%c0_10, %c0_11] : memref<1x128xf32, #tpu.memory_space<vmem>>, vector<1x128xf32>
    %29 = vector.broadcast %28 : vector<1x128xf32> to vector<1024x128xf32>
    %30 = arith.addf %27, %29 : vector<1024x128xf32>
    %cst_12 = arith.constant 0.000000e+00 : f32
    %31 = vector.broadcast %cst_12 : f32 to vector<1024x128xf32>
    %32 = arith.maximumf %30, %31 : vector<1024x128xf32>
    %33 = arith.truncf %32 : vector<1024x128xf32> to vector<1024x128xbf16>
    %c0_13 = arith.constant 0 : index
    %c0_14 = arith.constant 0 : index
    %34 = vector.load %arg6[%c0_13, %c0_14] : memref<128x128xbf16, #tpu.memory_space<vmem>>, vector<128x128xbf16>
    %cst_15 = arith.constant dense<0.000000e+00> : vector<1024x128xf32>
    %35 = tpu.matmul %33, %34, %cst_15 {dimension_numbers = #tpu.dot_dimension_numbers<[1], [0], [0], [1], [0, 0, 1, 1], [], []>} : vector<1024x128xbf16>, vector<128x128xbf16>, vector<1024x128xf32> -> vector<1024x128xf32>
    %c0_16 = arith.constant 0 : index
    %c0_17 = arith.constant 0 : index
    %36 = vector.load %arg7[%c0_16, %c0_17] : memref<1x128xf32, #tpu.memory_space<vmem>>, vector<1x128xf32>
    %37 = vector.broadcast %36 : vector<1x128xf32> to vector<1024x128xf32>
    %38 = arith.addf %35, %37 : vector<1024x128xf32>
    %cst_18 = arith.constant 0.000000e+00 : f32
    %39 = vector.broadcast %cst_18 : f32 to vector<1024x128xf32>
    %40 = arith.maximumf %38, %39 : vector<1024x128xf32>
    %41 = arith.truncf %40 : vector<1024x128xf32> to vector<1024x128xbf16>
    %c0_19 = arith.constant 0 : index
    %c0_20 = arith.constant 0 : index
    %42 = vector.load %arg8[%c0_19, %c0_20] : memref<128x128xbf16, #tpu.memory_space<vmem>>, vector<128x128xbf16>
    %cst_21 = arith.constant dense<0.000000e+00> : vector<1024x128xf32>
    %43 = tpu.matmul %41, %42, %cst_21 {dimension_numbers = #tpu.dot_dimension_numbers<[1], [0], [0], [1], [0, 0, 1, 1], [], []>} : vector<1024x128xbf16>, vector<128x128xbf16>, vector<1024x128xf32> -> vector<1024x128xf32>
    %c0_22 = arith.constant 0 : index
    %c0_23 = arith.constant 0 : index
    %44 = vector.load %arg9[%c0_22, %c0_23] : memref<1x128xf32, #tpu.memory_space<vmem>>, vector<1x128xf32>
    %45 = vector.broadcast %44 : vector<1x128xf32> to vector<1024x128xf32>
    %46 = arith.addf %43, %45 : vector<1024x128xf32>
    %cst_24 = arith.constant 0.000000e+00 : f32
    %47 = vector.broadcast %cst_24 : f32 to vector<1024x128xf32>
    %48 = arith.maximumf %46, %47 : vector<1024x128xf32>
    %49 = arith.truncf %48 : vector<1024x128xf32> to vector<1024x128xbf16>
    %c0_25 = arith.constant 0 : index
    %c0_26 = arith.constant 0 : index
    %50 = vector.load %arg10[%c0_25, %c0_26] : memref<1x128xf32, #tpu.memory_space<vmem>>, vector<1x128xf32>
    %51 = arith.extf %49 : vector<1024x128xbf16> to vector<1024x128xf32>
    %52 = vector.broadcast %50 : vector<1x128xf32> to vector<1024x128xf32>
    %53 = arith.mulf %51, %52 : vector<1024x128xf32>
    %cst_27 = arith.constant dense<0.000000e+00> : vector<1024xf32>
    %54 = vector.multi_reduction <add>, %53, %cst_27 [1] : vector<1024x128xf32> to vector<1024xf32>
    %55 = vector.shape_cast %54 : vector<1024xf32> to vector<1024x1xf32>
    %56 = arith.addf %24, %55 : vector<1024x1xf32>
    %c0_28 = arith.constant 0 : index
    %c0_29 = arith.constant 0 : index
    %57 = memref.load %arg11[%c0_28, %c0_29] : memref<1x1xf32, #tpu.memory_space<smem>>
    %58 = vector.broadcast %57 : f32 to vector<1024x1xf32>
    %59 = arith.addf %56, %58 : vector<1024x1xf32>
    %60 = vector.shape_cast %59 : vector<1024x1xf32> to vector<8x128xf32>
    %c0_30 = arith.constant 0 : index
    %c0_31 = arith.constant 0 : index
    %61 = vector.load %arg12[%c0_30, %c0_31] : memref<8x128xf32, #tpu.memory_space<vmem>>, vector<8x128xf32>
    tpu.vector_store %arg12[%c0_30, %c0_31], %60 {strides = array<i32>} : memref<8x128xf32, #tpu.memory_space<vmem>>, vector<8x128xf32>,
    return
  }
  func.func @transform_0(%arg0: i32) -> (i32, i32) {
    %c0_i32 = arith.constant 0 : i32
    %c0_i32_0 = arith.constant 0 : i32
    return %arg0, %c0_i32 : i32, i32
  }
  func.func @transform_1(%arg0: i32) -> (i32, i32) {
    %c0_i32 = arith.constant 0 : i32
    %c0_i32_0 = arith.constant 0 : i32
    %c0_i32_1 = arith.constant 0 : i32
    return %c0_i32, %c0_i32_0 : i32, i32
  }
  func.func @transform_2(%arg0: i32) -> (i32, i32) {
    %c0_i32 = arith.constant 0 : i32
    %c0_i32_0 = arith.constant 0 : i32
    %c0_i32_1 = arith.constant 0 : i32
    return %c0_i32, %c0_i32_0 : i32, i32
  }
  func.func @transform_3(%arg0: i32) -> (i32, i32) {
    %c0_i32 = arith.constant 0 : i32
    %c0_i32_0 = arith.constant 0 : i32
    %c0_i32_1 = arith.constant 0 : i32
    return %c0_i32, %c0_i32_0 : i32, i32
  }
  func.func @transform_4(%arg0: i32) -> (i32, i32) {
    %c0_i32 = arith.constant 0 : i32
    %c0_i32_0 = arith.constant 0 : i32
    %c0_i32_1 = arith.constant 0 : i32
    return %c0_i32, %c0_i32_0 : i32, i32
  }
  func.func @transform_5(%arg0: i32) -> (i32, i32) {
    %c0_i32 = arith.constant 0 : i32
    %c0_i32_0 = arith.constant 0 : i32
    %c0_i32_1 = arith.constant 0 : i32
    return %c0_i32, %c0_i32_0 : i32, i32
  }
  func.func @transform_6(%arg0: i32) -> (i32, i32) {
    %c0_i32 = arith.constant 0 : i32
    %c0_i32_0 = arith.constant 0 : i32
    %c0_i32_1 = arith.constant 0 : i32
    return %c0_i32, %c0_i32_0 : i32, i32
  }
  func.func @transform_7(%arg0: i32) -> (i32, i32) {
    %c0_i32 = arith.constant 0 : i32
    %c0_i32_0 = arith.constant 0 : i32
    %c0_i32_1 = arith.constant 0 : i32
    return %c0_i32, %c0_i32_0 : i32, i32
  }
  func.func @transform_8(%arg0: i32) -> (i32, i32) {
    %c0_i32 = arith.constant 0 : i32
    %c0_i32_0 = arith.constant 0 : i32
    %c0_i32_1 = arith.constant 0 : i32
    return %c0_i32, %c0_i32_0 : i32, i32
  }
  func.func @transform_9(%arg0: i32) -> (i32, i32) {
    %c0_i32 = arith.constant 0 : i32
    %c0_i32_0 = arith.constant 0 : i32
    %c0_i32_1 = arith.constant 0 : i32
    return %c0_i32, %c0_i32_0 : i32, i32
  }
  func.func @transform_10(%arg0: i32) -> (i32, i32) {
    %c0_i32 = arith.constant 0 : i32
    %c0_i32_0 = arith.constant 0 : i32
    %c0_i32_1 = arith.constant 0 : i32
    return %c0_i32, %c0_i32_0 : i32, i32
  }
  func.func @transform_11(%arg0: i32) -> (i32, i32) {
    %c0_i32 = arith.constant 0 : i32
    %c0_i32_0 = arith.constant 0 : i32
    return %arg0, %c0_i32 : i32, i32
  }
}

</mosaic_0001>

<llo_original>
// kernel: tpu_custom_call.1
$region0: #{tpu_custom_call.1}
  #allocation0 [shape = 'u32[]', space=smem, size = 0x4, offset = 0x4, fixed_abs, tag = 'smem constant byte address 0x4 - core index']
  #allocation1 [shape = 'u32[144,128]{1,0:T(1,128)}', space=vmem, size = 0x12000, scoped, tag = 'internal scratch']
  #allocation2 [shape = 'f32[1,1]{1,0:T(1,128)S(6)}', space=smem, size = 0x200, scoped, tag = 'scoped memory for tpu_custom_call.1']
  %s0 = inlined_call_operand.vmem [shape: f32[1024,64], index: 0, kind: input, shape index: {}]
  %s1 = inlined_call_operand.vmem [shape: f32[64,128], index: 1, kind: input, shape index: {}]
  %s2 = inlined_call_operand.vmem [shape: f32[3,128], index: 2, kind: input, shape index: {}]
  %s3 = inlined_call_operand.vmem [shape: bf16[64,128], index: 3, kind: input, shape index: {}]
  %s4 = inlined_call_operand.vmem [shape: f32[1,128], index: 4, kind: input, shape index: {}]
  %s5 = inlined_call_operand.vmem [shape: bf16[128,128], index: 5, kind: input, shape index: {}]
  %s6 = inlined_call_operand.vmem [shape: f32[1,128], index: 6, kind: input, shape index: {}]
  %s7 = inlined_call_operand.vmem [shape: bf16[128,128], index: 7, kind: input, shape index: {}]
  %s8 = inlined_call_operand.vmem [shape: f32[1,128], index: 8, kind: input, shape index: {}]
  %s9 = inlined_call_operand.vmem [shape: f32[1,128], index: 9, kind: input, shape index: {}]
  %s10 = inlined_call_operand.<no memory space> [shape: f32[1,1], index: 10, kind: input, shape index: {}]
  %s11 = inlined_call_operand.hbm [shape: f32[8,128], index: 11, kind: output, shape index: {}]
  %s12 = sld [smem:[#allocation0]]
  $region54: #{tpu_custom_call.1} parent=0
    _
  %s14 = ssub.s32 1, %s12
  %s15 = scalar_select 0, %s14, %s12
  %16 = sst [smem:[#allocation2]] %s10
  $region1: #{tpu_custom_call.1} parent=0
    #allocation3 [shape = 'u8[4096]{0}', space=vmem, size = 0x1000, scoped, tag = 'output window, operand 0, single buffered']
    #allocation4 [shape = 's32[1]{0}', space=sflag, size = 0x4, scoped, tag = 'scoped memory for tpu_custom_call.1']
    %17 = vsyncpa [#allocation4], 0
    // Predicated region
    $region2: #{tpu_custom_call.1} parent=1 // pred_check
      _
    $region3: #{tpu_custom_call.1} parent=1 // pred_check_branch
      %19 = sbr.rel (0) target = $region5
    $region4: #{tpu_custom_call.1} parent=1 // pred_region
      _
    $region5: #{tpu_custom_call.1} parent=1 // pred_fallthru
      _
    // Predicated region
    $region6: #{tpu_custom_call.1} parent=1 // pred_check
      _
    $region7: #{tpu_custom_call.1} parent=1 // pred_check_branch
      %21 = sbr.rel (0) target = $region9
    $region8: #{tpu_custom_call.1} parent=1 // pred_region
      _
    $region9: #{tpu_custom_call.1} parent=1 // pred_fallthru
      _
    // Predicated region
    $region10: #{tpu_custom_call.1} parent=1 // pred_check
      _
    $region11: #{tpu_custom_call.1} parent=1 // pred_check_branch
      %23 = sbr.rel (0) target = $region13
    $region12: #{tpu_custom_call.1} parent=1 // pred_region
      _
    $region13: #{tpu_custom_call.1} parent=1 // pred_fallthru
      _
    // Predicated region
    $region14: #{tpu_custom_call.1} parent=1 // pred_check
      _
    $region15: #{tpu_custom_call.1} parent=1 // pred_check_branch
      %25 = sbr.rel (0) target = $region17
    $region16: #{tpu_custom_call.1} parent=1 // pred_region
      _
    $region17: #{tpu_custom_call.1} parent=1 // pred_fallthru
      _
    // Predicated region
    $region18: #{tpu_custom_call.1} parent=1 // pred_check
      _
    $region19: #{tpu_custom_call.1} parent=1 // pred_check_branch
      %27 = sbr.rel (0) target = $region21
    $region20: #{tpu_custom_call.1} parent=1 // pred_region
      _
    $region21: #{tpu_custom_call.1} parent=1 // pred_fallthru
      _
    // Predicated region
    $region22: #{tpu_custom_call.1} parent=1 // pred_check
      _
    $region23: #{tpu_custom_call.1} parent=1 // pred_check_branch
      %29 = sbr.rel (0) target = $region25
    $region24: #{tpu_custom_call.1} parent=1 // pred_region
      _
    $region25: #{tpu_custom_call.1} parent=1 // pred_fallthru
      _
    // Predicated region
    $region26: #{tpu_custom_call.1} parent=1 // pred_check
      _
    $region27: #{tpu_custom_call.1} parent=1 // pred_check_branch
      %31 = sbr.rel (0) target = $region29
    $region28: #{tpu_custom_call.1} parent=1 // pred_region
      _
    $region29: #{tpu_custom_call.1} parent=1 // pred_fallthru
      _
    // Predicated region
    $region30: #{tpu_custom_call.1} parent=1 // pred_check
      _
    $region31: #{tpu_custom_call.1} parent=1 // pred_check_branch
      %33 = sbr.rel (0) target = $region33
    $region32: #{tpu_custom_call.1} parent=1 // pred_region
      _
    $region33: #{tpu_custom_call.1} parent=1 // pred_fallthru
      _
    // Predicated region
    $region34: #{tpu_custom_call.1} parent=1 // pred_check
      _
    $region35: #{tpu_custom_call.1} parent=1 // pred_check_branch
      %35 = sbr.rel (0) target = $region37
    $region36: #{tpu_custom_call.1} parent=1 // pred_region
      _
    $region37: #{tpu_custom_call.1} parent=1 // pred_fallthru
      _
    // Predicated region
    $region38: #{tpu_custom_call.1} parent=1 // pred_check
      _
    $region39: #{tpu_custom_call.1} parent=1 // pred_check_branch
      %37 = sbr.rel (0) target = $region41
    $region40: #{tpu_custom_call.1} parent=1 // pred_region
      _
    $region41: #{tpu_custom_call.1} parent=1 // pred_fallthru
      _
    // Predicated region
    $region42: #{tpu_custom_call.1} parent=1 // pred_check
      _
    $region43: #{tpu_custom_call.1} parent=1 // pred_check_branch
      %39 = sbr.rel (0) target = $region45
    $region44: #{tpu_custom_call.1} parent=1 // pred_region
      _
    $region45: #{tpu_custom_call.1} parent=1 // pred_fallthru
      _
    %v41 = vld [vmem:[%s0] sm:$0xff]
    %v42 = vld [vmem:[%s0 + $0x8] sm:$0xff]
    %v43 = vld [vmem:[%s0 + $0x10] sm:$0xff]
    %v44 = vld [vmem:[%s0 + $0x18] sm:$0xff]
    %v45 = vld [vmem:[%s0 + $0x20] sm:$0xff]
    %v46 = vld [vmem:[%s0 + $0x28] sm:$0xff]
    %v47 = vld [vmem:[%s0 + $0x30] sm:$0xff]
    %v48 = vld [vmem:[%s0 + $0x38] sm:$0xff]
    %v49 = vld [vmem:[%s0 + $0x40] sm:$0xff]
    %v50 = vld [vmem:[%s0 + $0x48] sm:$0xff]
    %v51 = vld [vmem:[%s0 + $0x50] sm:$0xff]
    %v52 = vld [vmem:[%s0 + $0x58] sm:$0xff]
    %v53 = vld [vmem:[%s0 + $0x60] sm:$0xff]
    %v54 = vld [vmem:[%s0 + $0x68] sm:$0xff]
    %v55 = vld [vmem:[%s0 + $0x70] sm:$0xff]
    %v56 = vld [vmem:[%s0 + $0x78] sm:$0xff]
    %v57 = vld [vmem:[%s0 + $0x80] sm:$0xff]
    %v58 = vld [vmem:[%s0 + $0x88] sm:$0xff]
    %v59 = vld [vmem:[%s0 + $0x90] sm:$0xff]
    %v60 = vld [vmem:[%s0 + $0x98] sm:$0xff]
    %v61 = vld [vmem:[%s0 + $0xa0] sm:$0xff]
    %v62 = vld [vmem:[%s0 + $0xa8] sm:$0xff]
    %v63 = vld [vmem:[%s0 + $0xb0] sm:$0xff]
    %v64 = vld [vmem:[%s0 + $0xb8] sm:$0xff]
    %v65 = vld [vmem:[%s0 + $0xc0] sm:$0xff]
    %v66 = vld [vmem:[%s0 + $0xc8] sm:$0xff]
    %v67 = vld [vmem:[%s0 + $0xd0] sm:$0xff]
    %v68 = vld [vmem:[%s0 + $0xd8] sm:$0xff]
    %v69 = vld [vmem:[%s0 + $0xe0] sm:$0xff]
    %v70 = vld [vmem:[%s0 + $0xe8] sm:$0xff]
    %v71 = vld [vmem:[%s0 + $0xf0] sm:$0xff]
    %v72 = vld [vmem:[%s0 + $0xf8] sm:$0xff]
    %v73 = vld [vmem:[%s0 + $0x100] sm:$0xff]
    %v74 = vld [vmem:[%s0 + $0x108] sm:$0xff]
    %v75 = vld [vmem:[%s0 + $0x110] sm:$0xff]
    %v76 = vld [vmem:[%s0 + $0x118] sm:$0xff]
    %v77 = vld [vmem:[%s0 + $0x120] sm:$0xff]
    %v78 = vld [vmem:[%s0 + $0x128] sm:$0xff]
    %v79 = vld [vmem:[%s0 + $0x130] sm:$0xff]
    %v80 = vld [vmem:[%s0 + $0x138] sm:$0xff]
    %v81 = vld [vmem:[%s0 + $0x140] sm:$0xff]
    %v82 = vld [vmem:[%s0 + $0x148] sm:$0xff]
    %v83 = vld [vmem:[%s0 + $0x150] sm:$0xff]
    %v84 = vld [vmem:[%s0 + $0x158] sm:$0xff]
    %v85 = vld [vmem:[%s0 + $0x160] sm:$0xff]
    %v86 = vld [vmem:[%s0 + $0x168] sm:$0xff]
    %v87 = vld [vmem:[%s0 + $0x170] sm:$0xff]
    %v88 = vld [vmem:[%s0 + $0x178] sm:$0xff]
    %v89 = vld [vmem:[%s0 + $0x180] sm:$0xff]
    %v90 = vld [vmem:[%s0 + $0x188] sm:$0xff]
    %v91 = vld [vmem:[%s0 + $0x190] sm:$0xff]
    %v92 = vld [vmem:[%s0 + $0x198] sm:$0xff]
    %v93 = vld [vmem:[%s0 + $0x1a0] sm:$0xff]
    %v94 = vld [vmem:[%s0 + $0x1a8] sm:$0xff]
    %v95 = vld [vmem:[%s0 + $0x1b0] sm:$0xff]
    %v96 = vld [vmem:[%s0 + $0x1b8] sm:$0xff]
    %v97 = vld [vmem:[%s0 + $0x1c0] sm:$0xff]
    %v98 = vld [vmem:[%s0 + $0x1c8] sm:$0xff]
    %v99 = vld [vmem:[%s0 + $0x1d0] sm:$0xff]
    %v100 = vld [vmem:[%s0 + $0x1d8] sm:$0xff]
    %v101 = vld [vmem:[%s0 + $0x1e0] sm:$0xff]
    %v102 = vld [vmem:[%s0 + $0x1e8] sm:$0xff]
    %v103 = vld [vmem:[%s0 + $0x1f0] sm:$0xff]
    %v104 = vld [vmem:[%s0 + $0x1f8] sm:$0xff]
    %v105 = vld [vmem:[%s0 + $0x200] sm:$0xff]
    %v106 = vld [vmem:[%s0 + $0x208] sm:$0xff]
    %v107 = vld [vmem:[%s0 + $0x210] sm:$0xff]
    %v108 = vld [vmem:[%s0 + $0x218] sm:$0xff]
    %v109 = vld [vmem:[%s0 + $0x220] sm:$0xff]
    %v110 = vld [vmem:[%s0 + $0x228] sm:$0xff]
    %v111 = vld [vmem:[%s0 + $0x230] sm:$0xff]
    %v112 = vld [vmem:[%s0 + $0x238] sm:$0xff]
    %v113 = vld [vmem:[%s0 + $0x240] sm:$0xff]
    %v114 = vld [vmem:[%s0 + $0x248] sm:$0xff]
    %v115 = vld [vmem:[%s0 + $0x250] sm:$0xff]
    %v116 = vld [vmem:[%s0 + $0x258] sm:$0xff]
    %v117 = vld [vmem:[%s0 + $0x260] sm:$0xff]
    %v118 = vld [vmem:[%s0 + $0x268] sm:$0xff]
    %v119 = vld [vmem:[%s0 + $0x270] sm:$0xff]
    %v120 = vld [vmem:[%s0 + $0x278] sm:$0xff]
    %v121 = vld [vmem:[%s0 + $0x280] sm:$0xff]
    %v122 = vld [vmem:[%s0 + $0x288] sm:$0xff]
    %v123 = vld [vmem:[%s0 + $0x290] sm:$0xff]
    %v124 = vld [vmem:[%s0 + $0x298] sm:$0xff]
    %v125 = vld [vmem:[%s0 + $0x2a0] sm:$0xff]
    %v126 = vld [vmem:[%s0 + $0x2a8] sm:$0xff]
    %v127 = vld [vmem:[%s0 + $0x2b0] sm:$0xff]
    %v128 = vld [vmem:[%s0 + $0x2b8] sm:$0xff]
    %v129 = vld [vmem:[%s0 + $0x2c0] sm:$0xff]
    %v130 = vld [vmem:[%s0 + $0x2c8] sm:$0xff]
    %v131 = vld [vmem:[%s0 + $0x2d0] sm:$0xff]
    %v132 = vld [vmem:[%s0 + $0x2d8] sm:$0xff]
    %v133 = vld [vmem:[%s0 + $0x2e0] sm:$0xff]
    %v134 = vld [vmem:[%s0 + $0x2e8] sm:$0xff]
    %v135 = vld [vmem:[%s0 + $0x2f0] sm:$0xff]
    %v136 = vld [vmem:[%s0 + $0x2f8] sm:$0xff]
    %v137 = vld [vmem:[%s0 + $0x300] sm:$0xff]
    %v138 = vld [vmem:[%s0 + $0x308] sm:$0xff]
    %v139 = vld [vmem:[%s0 + $0x310] sm:$0xff]
    %v140 = vld [vmem:[%s0 + $0x318] sm:$0xff]
    %v141 = vld [vmem:[%s0 + $0x320] sm:$0xff]
    %v142 = vld [vmem:[%s0 + $0x328] sm:$0xff]
    %v143 = vld [vmem:[%s0 + $0x330] sm:$0xff]
    %v144 = vld [vmem:[%s0 + $0x338] sm:$0xff]
    %v145 = vld [vmem:[%s0 + $0x340] sm:$0xff]
    %v146 = vld [vmem:[%s0 + $0x348] sm:$0xff]
    %v147 = vld [vmem:[%s0 + $0x350] sm:$0xff]
    %v148 = vld [vmem:[%s0 + $0x358] sm:$0xff]
    %v149 = vld [vmem:[%s0 + $0x360] sm:$0xff]
    %v150 = vld [vmem:[%s0 + $0x368] sm:$0xff]
    %v151 = vld [vmem:[%s0 + $0x370] sm:$0xff]
    %v152 = vld [vmem:[%s0 + $0x378] sm:$0xff]
    %v153 = vld [vmem:[%s0 + $0x380] sm:$0xff]
    %v154 = vld [vmem:[%s0 + $0x388] sm:$0xff]
    %v155 = vld [vmem:[%s0 + $0x390] sm:$0xff]
    %v156 = vld [vmem:[%s0 + $0x398] sm:$0xff]
    %v157 = vld [vmem:[%s0 + $0x3a0] sm:$0xff]
    %v158 = vld [vmem:[%s0 + $0x3a8] sm:$0xff]
    %v159 = vld [vmem:[%s0 + $0x3b0] sm:$0xff]
    %v160 = vld [vmem:[%s0 + $0x3b8] sm:$0xff]
    %v161 = vld [vmem:[%s0 + $0x3c0] sm:$0xff]
    %v162 = vld [vmem:[%s0 + $0x3c8] sm:$0xff]
    %v163 = vld [vmem:[%s0 + $0x3d0] sm:$0xff]
    %v164 = vld [vmem:[%s0 + $0x3d8] sm:$0xff]
    %v165 = vld [vmem:[%s0 + $0x3e0] sm:$0xff]
    %v166 = vld [vmem:[%s0 + $0x3e8] sm:$0xff]
    %v167 = vld [vmem:[%s0 + $0x3f0] sm:$0xff]
    %v168 = vld [vmem:[%s0 + $0x3f8] sm:$0xff]
    %v169 = vld [vmem:[%s1] sm:$0xff]
    %v170 = vld [vmem:[%s1 + $0x8] sm:$0xff]
    %v171 = vld [vmem:[%s1 + $0x10] sm:$0xff]
    %v172 = vld [vmem:[%s1 + $0x18] sm:$0xff]
    %v173 = vld [vmem:[%s1 + $0x20] sm:$0xff]
    %v174 = vld [vmem:[%s1 + $0x28] sm:$0xff]
    %v175 = vld [vmem:[%s1 + $0x30] sm:$0xff]
    %v176 = vld [vmem:[%s1 + $0x38] sm:$0xff]
    %vm177 = vcmask 523264
    %v179 = vsel %vm177, %v41, 0
    %v182 = vsel %vm177, %v42, 0
    %v185 = vsel %vm177, %v43, 0
    %v188 = vsel %vm177, %v44, 0
    %v191 = vsel %vm177, %v45, 0
    %v194 = vsel %vm177, %v46, 0
    %v197 = vsel %vm177, %v47, 0
    %v200 = vsel %vm177, %v48, 0
    %v203 = vsel %vm177, %v49, 0
    %v206 = vsel %vm177, %v50, 0
    %v209 = vsel %vm177, %v51, 0
    %v212 = vsel %vm177, %v52, 0
    %v215 = vsel %vm177, %v53, 0
    %v218 = vsel %vm177, %v54, 0
    %v221 = vsel %vm177, %v55, 0
    %v224 = vsel %vm177, %v56, 0
    %v227 = vsel %vm177, %v57, 0
    %v230 = vsel %vm177, %v58, 0
    %v233 = vsel %vm177, %v59, 0
    %v236 = vsel %vm177, %v60, 0
    %v239 = vsel %vm177, %v61, 0
    %v242 = vsel %vm177, %v62, 0
    %v245 = vsel %vm177, %v63, 0
    %v248 = vsel %vm177, %v64, 0
    %v251 = vsel %vm177, %v65, 0
    %v254 = vsel %vm177, %v66, 0
    %v257 = vsel %vm177, %v67, 0
    %v260 = vsel %vm177, %v68, 0
    %v263 = vsel %vm177, %v69, 0
    %v266 = vsel %vm177, %v70, 0
    %v269 = vsel %vm177, %v71, 0
    %v272 = vsel %vm177, %v72, 0
    %v275 = vsel %vm177, %v73, 0
    %v278 = vsel %vm177, %v74, 0
    %v281 = vsel %vm177, %v75, 0
    %v284 = vsel %vm177, %v76, 0
    %v287 = vsel %vm177, %v77, 0
    %v290 = vsel %vm177, %v78, 0
    %v293 = vsel %vm177, %v79, 0
    %v296 = vsel %vm177, %v80, 0
    %v299 = vsel %vm177, %v81, 0
    %v302 = vsel %vm177, %v82, 0
    %v305 = vsel %vm177, %v83, 0
    %v308 = vsel %vm177, %v84, 0
    %v311 = vsel %vm177, %v85, 0
    %v314 = vsel %vm177, %v86, 0
    %v317 = vsel %vm177, %v87, 0
    %v320 = vsel %vm177, %v88, 0
    %v323 = vsel %vm177, %v89, 0
    %v326 = vsel %vm177, %v90, 0
    %v329 = vsel %vm177, %v91, 0
    %v332 = vsel %vm177, %v92, 0
    %v335 = vsel %vm177, %v93, 0
    %v338 = vsel %vm177, %v94, 0
    %v341 = vsel %vm177, %v95, 0
    %v344 = vsel %vm177, %v96, 0
    %v347 = vsel %vm177, %v97, 0
    %v350 = vsel %vm177, %v98, 0
    %v353 = vsel %vm177, %v99, 0
    %v356 = vsel %vm177, %v100, 0
    %v359 = vsel %vm177, %v101, 0
    %v362 = vsel %vm177, %v102, 0
    %v365 = vsel %vm177, %v103, 0
    %v368 = vsel %vm177, %v104, 0
    %v371 = vsel %vm177, %v105, 0
    %v374 = vsel %vm177, %v106, 0
    %v377 = vsel %vm177, %v107, 0
    %v380 = vsel %vm177, %v108, 0
    %v383 = vsel %vm177, %v109, 0
    %v386 = vsel %vm177, %v110, 0
    %v389 = vsel %vm177, %v111, 0
    %v392 = vsel %vm177, %v112, 0
    %v395 = vsel %vm177, %v113, 0
    %v398 = vsel %vm177, %v114, 0
    %v401 = vsel %vm177, %v115, 0
    %v404 = vsel %vm177, %v116, 0
    %v407 = vsel %vm177, %v117, 0
    %v410 = vsel %vm177, %v118, 0
    %v413 = vsel %vm177, %v119, 0
    %v416 = vsel %vm177, %v120, 0
    %v419 = vsel %vm177, %v121, 0
    %v422 = vsel %vm177, %v122, 0
    %v425 = vsel %vm177, %v123, 0
    %v428 = vsel %vm177, %v124, 0
    %v431 = vsel %vm177, %v125, 0
    %v434 = vsel %vm177, %v126, 0
    %v437 = vsel %vm177, %v127, 0
    %v440 = vsel %vm177, %v128, 0
    %v443 = vsel %vm177, %v129, 0
    %v446 = vsel %vm177, %v130, 0
    %v449 = vsel %vm177, %v131, 0
    %v452 = vsel %vm177, %v132, 0
    %v455 = vsel %vm177, %v133, 0
    %v458 = vsel %vm177, %v134, 0
    %v461 = vsel %vm177, %v135, 0
    %v464 = vsel %vm177, %v136, 0
    %v467 = vsel %vm177, %v137, 0
    %v470 = vsel %vm177, %v138, 0
    %v473 = vsel %vm177, %v139, 0
    %v476 = vsel %vm177, %v140, 0
    %v479 = vsel %vm177, %v141, 0
    %v482 = vsel %vm177, %v142, 0
    %v485 = vsel %vm177, %v143, 0
    %v488 = vsel %vm177, %v144, 0
    %v491 = vsel %vm177, %v145, 0
    %v494 = vsel %vm177, %v146, 0
    %v497 = vsel %vm177, %v147, 0
    %v500 = vsel %vm177, %v148, 0
    %v503 = vsel %vm177, %v149, 0
    %v506 = vsel %vm177, %v150, 0
    %v509 = vsel %vm177, %v151, 0
    %v512 = vsel %vm177, %v152, 0
    %v515 = vsel %vm177, %v153, 0
    %v518 = vsel %vm177, %v154, 0
    %v521 = vsel %vm177, %v155, 0
    %v524 = vsel %vm177, %v156, 0
    %v527 = vsel %vm177, %v157, 0
    %v530 = vsel %vm177, %v158, 0
    %v533 = vsel %vm177, %v159, 0
    %v536 = vsel %vm177, %v160, 0
    %v539 = vsel %vm177, %v161, 0
    %v542 = vsel %vm177, %v162, 0
    %v545 = vsel %vm177, %v163, 0
    %v548 = vsel %vm177, %v164, 0
    %v551 = vsel %vm177, %v165, 0
    %v554 = vsel %vm177, %v166, 0
    %v557 = vsel %vm177, %v167, 0
    %v560 = vsel %vm177, %v168, 0
    %562 = vmatprep.subr.mxu0 0.0
    %563 = vmatpush1.msra.mxu0 0.0
    %564 = vmatprep.subr.mxu0 0.0
    %565 = vmatpush1.msra.mxu0 0.0
    %566 = vmatprep.subr.mxu0 0.0
    %567 = vmatpush1.msra.mxu0 0.0
    %568 = vmatprep.subr.mxu0 0.0
    %569 = vmatpush1.msra.mxu0 0.0
    %570 = vmatprep.subr.mxu0 0.0
    %571 = vmatpush1.msra.mxu0 0.0
    %572 = vmatprep.subr.mxu0 0.0
    %573 = vmatpush1.msra.mxu0 0.0
    %574 = vmatprep.subr.mxu0 0.0
    %575 = vmatpush1.msra.mxu0 0.0
    %576 = vmatprep.subr.mxu0 0.0
    %577 = vmatpush1.msra.mxu0 0.0
    %578 = vmatprep.subr.mxu0 0.0
    %579 = vmatpush1.msra.mxu0 %v176
    %580 = vmatprep.subr.mxu0 0.0
    %581 = vmatpush1.msra.mxu0 %v175
    %582 = vmatprep.subr.mxu0 0.0
    %583 = vmatpush1.msra.mxu0 %v174
    %584 = vmatprep.subr.mxu0 0.0
    %585 = vmatpush1.msra.mxu0 %v173
    %586 = vmatprep.subr.mxu0 0.0
    %587 = vmatpush1.msra.mxu0 %v172
    %588 = vmatprep.subr.mxu0 0.0
    %589 = vmatpush1.msra.mxu0 %v171
    %590 = vmatprep.subr.mxu0 0.0
    %591 = vmatpush1.msra.mxu0 %v170
    %592 = vmatprep.subr.mxu0 0.0
    %593 = vmatpush1.msra.mxu0 %v169
    %594 = vmatprep.subr.mxu0 0.0
    %595 = vmatpush2.msra.mxu0 0.0
    %596 = vmatprep.subr.mxu0 0.0
    %597 = vmatpush2.msra.mxu0 0.0
    %598 = vmatprep.subr.mxu0 0.0
    %599 = vmatpush2.msra.mxu0 0.0
    %600 = vmatprep.subr.mxu0 0.0
    %601 = vmatpush2.msra.mxu0 0.0
    %602 = vmatprep.subr.mxu0 0.0
    %603 = vmatpush2.msra.mxu0 0.0
    %604 = vmatprep.subr.mxu0 0.0
    %605 = vmatpush2.msra.mxu0 0.0
    %606 = vmatprep.subr.mxu0 0.0
    %607 = vmatpush2.msra.mxu0 0.0
    %608 = vmatprep.subr.mxu0 0.0
    %609 = vmatpush2.msra.mxu0 0.0
    %610 = vmatprep.subr.mxu0 0.0
    %611 = vmatpush2.msra.mxu0 0.0
    %612 = vmatprep.subr.mxu0 0.0
    %613 = vmatpush2.msra.mxu0 0.0
    %614 = vmatprep.subr.mxu0 0.0
    %615 = vmatpush2.msra.mxu0 0.0
    %616 = vmatprep.subr.mxu0 0.0
    %617 = vmatpush2.msra.mxu0 0.0
    %618 = vmatprep.subr.mxu0 0.0
    %619 = vmatpush2.msra.mxu0 0.0
    %620 = vmatprep.subr.mxu0 0.0
    %621 = vmatpush2.msra.mxu0 0.0
    %622 = vmatprep.subr.mxu0 0.0
    %623 = vmatpush2.msra.mxu0 0.0
    %624 = vmatprep.subr.mxu0 0.0
    %625 = vmatpush2.msra.mxu0 0.0
    %626 = vmatprep.mubr.f32.mxu0 0.0
    %627 = vmatmul.mubr.f32.gmra.mxu0 %v179
    %v628 = vpop.f32.mrf.mxu0
    %v629 = vadd.f32 0.0, %v628
    %v630 = vpop.f32.mrf.mxu0
    %631 = vmatprep.mubr.f32.mxu0 0.0
    %632 = vmatmul.mubr.f32.gmra.mxu0 %v182
    %v633 = vpop.f32.mrf.mxu0
    %v634 = vadd.f32 0.0, %v633
    %v635 = vpop.f32.mrf.mxu0
    %636 = vmatprep.mubr.f32.mxu0 0.0
    %637 = vmatmul.mubr.f32.gmra.mxu0 %v185
    %v638 = vpop.f32.mrf.mxu0
    %v639 = vadd.f32 0.0, %v638
    %v640 = vpop.f32.mrf.mxu0
    %641 = vmatprep.mubr.f32.mxu0 0.0
    %642 = vmatmul.mubr.f32.gmra.mxu0 %v188
    %v643 = vpop.f32.mrf.mxu0
    %v644 = vadd.f32 0.0, %v643
    %v645 = vpop.f32.mrf.mxu0
    %646 = vmatprep.mubr.f32.mxu0 0.0
    %647 = vmatmul.mubr.f32.gmra.mxu0 %v191
    %v648 = vpop.f32.mrf.mxu0
    %v649 = vadd.f32 0.0, %v648
    %v650 = vpop.f32.mrf.mxu0
    %651 = vmatprep.mubr.f32.mxu0 0.0
    %652 = vmatmul.mubr.f32.gmra.mxu0 %v194
    %v653 = vpop.f32.mrf.mxu0
    %v654 = vadd.f32 0.0, %v653
    %v655 = vpop.f32.mrf.mxu0
    %656 = vmatprep.mubr.f32.mxu0 0.0
    %657 = vmatmul.mubr.f32.gmra.mxu0 %v197
    %v658 = vpop.f32.mrf.mxu0
    %v659 = vadd.f32 0.0, %v658
    %v660 = vpop.f32.mrf.mxu0
    %661 = vmatprep.mubr.f32.mxu0 0.0
    %662 = vmatmul.mubr.f32.gmra.mxu0 %v200
    %v663 = vpop.f32.mrf.mxu0
    %v664 = vadd.f32 0.0, %v663
    %v665 = vpop.f32.mrf.mxu0
    %666 = vmatprep.mubr.f32.mxu0 0.0
    %667 = vmatmul.mubr.f32.gmra.mxu0 %v203
    %v668 = vpop.f32.mrf.mxu0
    %v669 = vadd.f32 0.0, %v668
    %v670 = vpop.f32.mrf.mxu0
    %671 = vmatprep.mubr.f32.mxu0 0.0
    %672 = vmatmul.mubr.f32.gmra.mxu0 %v206
    %v673 = vpop.f32.mrf.mxu0
    %v674 = vadd.f32 0.0, %v673
    %v675 = vpop.f32.mrf.mxu0
    %676 = vmatprep.mubr.f32.mxu0 0.0
    %677 = vmatmul.mubr.f32.gmra.mxu0 %v209
    %v678 = vpop.f32.mrf.mxu0
    %v679 = vadd.f32 0.0, %v678
    %v680 = vpop.f32.mrf.mxu0
    %681 = vmatprep.mubr.f32.mxu0 0.0
    %682 = vmatmul.mubr.f32.gmra.mxu0 %v212
    %v683 = vpop.f32.mrf.mxu0
    %v684 = vadd.f32 0.0, %v683
    %v685 = vpop.f32.mrf.mxu0
    %686 = vmatprep.mubr.f32.mxu0 0.0
    %687 = vmatmul.mubr.f32.gmra.mxu0 %v215
    %v688 = vpop.f32.mrf.mxu0
    %v689 = vadd.f32 0.0, %v688
    %v690 = vpop.f32.mrf.mxu0
    %691 = vmatprep.mubr.f32.mxu0 0.0
    %692 = vmatmul.mubr.f32.gmra.mxu0 %v218
    %v693 = vpop.f32.mrf.mxu0
    %v694 = vadd.f32 0.0, %v693
    %v695 = vpop.f32.mrf.mxu0
    %696 = vmatprep.mubr.f32.mxu0 0.0
    %697 = vmatmul.mubr.f32.gmra.mxu0 %v221
    %v698 = vpop.f32.mrf.mxu0
    %v699 = vadd.f32 0.0, %v698
    %v700 = vpop.f32.mrf.mxu0
    %701 = vmatprep.mubr.f32.mxu0 0.0
    %702 = vmatmul.mubr.f32.gmra.mxu0 %v224
    %v703 = vpop.f32.mrf.mxu0
    %v704 = vadd.f32 0.0, %v703
    %v705 = vpop.f32.mrf.mxu0
    %706 = vmatprep.mubr.f32.mxu0 0.0
    %707 = vmatmul.mubr.f32.gmra.mxu0 %v227
    %v708 = vpop.f32.mrf.mxu0
    %v709 = vadd.f32 0.0, %v708
    %v710 = vpop.f32.mrf.mxu0
    %711 = vmatprep.mubr.f32.mxu0 0.0
    %712 = vmatmul.mubr.f32.gmra.mxu0 %v230
    %v713 = vpop.f32.mrf.mxu0
    %v714 = vadd.f32 0.0, %v713
    %v715 = vpop.f32.mrf.mxu0
    %716 = vmatprep.mubr.f32.mxu0 0.0
    %717 = vmatmul.mubr.f32.gmra.mxu0 %v233
    %v718 = vpop.f32.mrf.mxu0
    %v719 = vadd.f32 0.0, %v718
    %v720 = vpop.f32.mrf.mxu0
    %721 = vmatprep.mubr.f32.mxu0 0.0
    %722 = vmatmul.mubr.f32.gmra.mxu0 %v236
    %v723 = vpop.f32.mrf.mxu0
    %v724 = vadd.f32 0.0, %v723
    %v725 = vpop.f32.mrf.mxu0
    %726 = vmatprep.mubr.f32.mxu0 0.0
    %727 = vmatmul.mubr.f32.gmra.mxu0 %v239
    %v728 = vpop.f32.mrf.mxu0
    %v729 = vadd.f32 0.0, %v728
    %v730 = vpop.f32.mrf.mxu0
    %731 = vmatprep.mubr.f32.mxu0 0.0
    %732 = vmatmul.mubr.f32.gmra.mxu0 %v242
    %v733 = vpop.f32.mrf.mxu0
    %v734 = vadd.f32 0.0, %v733
    %v735 = vpop.f32.mrf.mxu0
    %736 = vmatprep.mubr.f32.mxu0 0.0
    %737 = vmatmul.mubr.f32.gmra.mxu0 %v245
    %v738 = vpop.f32.mrf.mxu0
    %v739 = vadd.f32 0.0, %v738
    %v740 = vpop.f32.mrf.mxu0
    %741 = vmatprep.mubr.f32.mxu0 0.0
    %742 = vmatmul.mubr.f32.gmra.mxu0 %v248
    %v743 = vpop.f32.mrf.mxu0
    %v744 = vadd.f32 0.0, %v743
    %v745 = vpop.f32.mrf.mxu0
    %746 = vmatprep.mubr.f32.mxu0 0.0
    %747 = vmatmul.mubr.f32.gmra.mxu0 %v251
    %v748 = vpop.f32.mrf.mxu0
    %v749 = vadd.f32 0.0, %v748
    %v750 = vpop.f32.mrf.mxu0
    %751 = vmatprep.mubr.f32.mxu0 0.0
    %752 = vmatmul.mubr.f32.gmra.mxu0 %v254
    %v753 = vpop.f32.mrf.mxu0
    %v754 = vadd.f32 0.0, %v753
    %v755 = vpop.f32.mrf.mxu0
    %756 = vmatprep.mubr.f32.mxu0 0.0
    %757 = vmatmul.mubr.f32.gmra.mxu0 %v257
    %v758 = vpop.f32.mrf.mxu0
    %v759 = vadd.f32 0.0, %v758
    %v760 = vpop.f32.mrf.mxu0
    %761 = vmatprep.mubr.f32.mxu0 0.0
    %762 = vmatmul.mubr.f32.gmra.mxu0 %v260
    %v763 = vpop.f32.mrf.mxu0
    %v764 = vadd.f32 0.0, %v763
    %v765 = vpop.f32.mrf.mxu0
    %766 = vmatprep.mubr.f32.mxu0 0.0
    %767 = vmatmul.mubr.f32.gmra.mxu0 %v263
    %v768 = vpop.f32.mrf.mxu0
    %v769 = vadd.f32 0.0, %v768
    %v770 = vpop.f32.mrf.mxu0
    %771 = vmatprep.mubr.f32.mxu0 0.0
    %772 = vmatmul.mubr.f32.gmra.mxu0 %v266
    %v773 = vpop.f32.mrf.mxu0
    %v774 = vadd.f32 0.0, %v773
    %v775 = vpop.f32.mrf.mxu0
    %776 = vmatprep.mubr.f32.mxu0 0.0
    %777 = vmatmul.mubr.f32.gmra.mxu0 %v269
    %v778 = vpop.f32.mrf.mxu0
    %v779 = vadd.f32 0.0, %v778
    %v780 = vpop.f32.mrf.mxu0
    %781 = vmatprep.mubr.f32.mxu0 0.0
    %782 = vmatmul.mubr.f32.gmra.mxu0 %v272
    %v783 = vpop.f32.mrf.mxu0
    %v784 = vadd.f32 0.0, %v783
    %v785 = vpop.f32.mrf.mxu0
    %786 = vmatprep.mubr.f32.mxu0 0.0
    %787 = vmatmul.mubr.f32.gmra.mxu0 %v275
    %v788 = vpop.f32.mrf.mxu0
    %v789 = vadd.f32 0.0, %v788
    %v790 = vpop.f32.mrf.mxu0
    %791 = vmatprep.mubr.f32.mxu0 0.0
    %792 = vmatmul.mubr.f32.gmra.mxu0 %v278
    %v793 = vpop.f32.mrf.mxu0
    %v794 = vadd.f32 0.0, %v793
    %v795 = vpop.f32.mrf.mxu0
    %796 = vmatprep.mubr.f32.mxu0 0.0
    %797 = vmatmul.mubr.f32.gmra.mxu0 %v281
    %v798 = vpop.f32.mrf.mxu0
    %v799 = vadd.f32 0.0, %v798
    %v800 = vpop.f32.mrf.mxu0
    %801 = vmatprep.mubr.f32.mxu0 0.0
    %802 = vmatmul.mubr.f32.gmra.mxu0 %v284
    %v803 = vpop.f32.mrf.mxu0
    %v804 = vadd.f32 0.0, %v803
    %v805 = vpop.f32.mrf.mxu0
    %806 = vmatprep.mubr.f32.mxu0 0.0
    %807 = vmatmul.mubr.f32.gmra.mxu0 %v287
    %v808 = vpop.f32.mrf.mxu0
    %v809 = vadd.f32 0.0, %v808
    %v810 = vpop.f32.mrf.mxu0
    %811 = vmatprep.mubr.f32.mxu0 0.0
    %812 = vmatmul.mubr.f32.gmra.mxu0 %v290
    %v813 = vpop.f32.mrf.mxu0
    %v814 = vadd.f32 0.0, %v813
    %v815 = vpop.f32.mrf.mxu0
    %816 = vmatprep.mubr.f32.mxu0 0.0
    %817 = vmatmul.mubr.f32.gmra.mxu0 %v293
    %v818 = vpop.f32.mrf.mxu0
    %v819 = vadd.f32 0.0, %v818
    %v820 = vpop.f32.mrf.mxu0
    %821 = vmatprep.mubr.f32.mxu0 0.0
    %822 = vmatmul.mubr.f32.gmra.mxu0 %v296
    %v823 = vpop.f32.mrf.mxu0
    %v824 = vadd.f32 0.0, %v823
    %v825 = vpop.f32.mrf.mxu0
    %826 = vmatprep.mubr.f32.mxu0 0.0
    %827 = vmatmul.mubr.f32.gmra.mxu0 %v299
    %v828 = vpop.f32.mrf.mxu0
    %v829 = vadd.f32 0.0, %v828
    %v830 = vpop.f32.mrf.mxu0
    %831 = vmatprep.mubr.f32.mxu0 0.0
    %832 = vmatmul.mubr.f32.gmra.mxu0 %v302
    %v833 = vpop.f32.mrf.mxu0
    %v834 = vadd.f32 0.0, %v833
    %v835 = vpop.f32.mrf.mxu0
    %836 = vmatprep.mubr.f32.mxu0 0.0
    %837 = vmatmul.mubr.f32.gmra.mxu0 %v305
    %v838 = vpop.f32.mrf.mxu0
    %v839 = vadd.f32 0.0, %v838
    %v840 = vpop.f32.mrf.mxu0
    %841 = vmatprep.mubr.f32.mxu0 0.0
    %842 = vmatmul.mubr.f32.gmra.mxu0 %v308
    %v843 = vpop.f32.mrf.mxu0
    %v844 = vadd.f32 0.0, %v843
    %v845 = vpop.f32.mrf.mxu0
    %846 = vmatprep.mubr.f32.mxu0 0.0
    %847 = vmatmul.mubr.f32.gmra.mxu0 %v311
    %v848 = vpop.f32.mrf.mxu0
    %v849 = vadd.f32 0.0, %v848
    %v850 = vpop.f32.mrf.mxu0
    %851 = vmatprep.mubr.f32.mxu0 0.0
    %852 = vmatmul.mubr.f32.gmra.mxu0 %v314
    %v853 = vpop.f32.mrf.mxu0
    %v854 = vadd.f32 0.0, %v853
    %v855 = vpop.f32.mrf.mxu0
    %856 = vmatprep.mubr.f32.mxu0 0.0
    %857 = vmatmul.mubr.f32.gmra.mxu0 %v317
    %v858 = vpop.f32.mrf.mxu0
    %v859 = vadd.f32 0.0, %v858
    %v860 = vpop.f32.mrf.mxu0
    %861 = vmatprep.mubr.f32.mxu0 0.0
    %862 = vmatmul.mubr.f32.gmra.mxu0 %v320
    %v863 = vpop.f32.mrf.mxu0
    %v864 = vadd.f32 0.0, %v863
    %v865 = vpop.f32.mrf.mxu0
    %866 = vmatprep.mubr.f32.mxu0 0.0
    %867 = vmatmul.mubr.f32.gmra.mxu0 %v323
    %v868 = vpop.f32.mrf.mxu0
    %v869 = vadd.f32 0.0, %v868
    %v870 = vpop.f32.mrf.mxu0
    %871 = vmatprep.mubr.f32.mxu0 0.0
    %872 = vmatmul.mubr.f32.gmra.mxu0 %v326
    %v873 = vpop.f32.mrf.mxu0
    %v874 = vadd.f32 0.0, %v873
    %v875 = vpop.f32.mrf.mxu0
    %876 = vmatprep.mubr.f32.mxu0 0.0
    %877 = vmatmul.mubr.f32.gmra.mxu0 %v329
    %v878 = vpop.f32.mrf.mxu0
    %v879 = vadd.f32 0.0, %v878
    %v880 = vpop.f32.mrf.mxu0
    %881 = vmatprep.mubr.f32.mxu0 0.0
    %882 = vmatmul.mubr.f32.gmra.mxu0 %v332
    %v883 = vpop.f32.mrf.mxu0
    %v884 = vadd.f32 0.0, %v883
    %v885 = vpop.f32.mrf.mxu0
    %886 = vmatprep.mubr.f32.mxu0 0.0
    %887 = vmatmul.mubr.f32.gmra.mxu0 %v335
    %v888 = vpop.f32.mrf.mxu0
    %v889 = vadd.f32 0.0, %v888
    %v890 = vpop.f32.mrf.mxu0
    %891 = vmatprep.mubr.f32.mxu0 0.0
    %892 = vmatmul.mubr.f32.gmra.mxu0 %v338
    %v893 = vpop.f32.mrf.mxu0
    %v894 = vadd.f32 0.0, %v893
    %v895 = vpop.f32.mrf.mxu0
    %896 = vmatprep.mubr.f32.mxu0 0.0
    %897 = vmatmul.mubr.f32.gmra.mxu0 %v341
    %v898 = vpop.f32.mrf.mxu0
    %v899 = vadd.f32 0.0, %v898
    %v900 = vpop.f32.mrf.mxu0
    %901 = vmatprep.mubr.f32.mxu0 0.0
    %902 = vmatmul.mubr.f32.gmra.mxu0 %v344
    %v903 = vpop.f32.mrf.mxu0
    %v904 = vadd.f32 0.0, %v903
    %v905 = vpop.f32.mrf.mxu0
    %906 = vmatprep.mubr.f32.mxu0 0.0
    %907 = vmatmul.mubr.f32.gmra.mxu0 %v347
    %v908 = vpop.f32.mrf.mxu0
    %v909 = vadd.f32 0.0, %v908
    %v910 = vpop.f32.mrf.mxu0
    %911 = vmatprep.mubr.f32.mxu0 0.0
    %912 = vmatmul.mubr.f32.gmra.mxu0 %v350
    %v913 = vpop.f32.mrf.mxu0
    %v914 = vadd.f32 0.0, %v913
    %v915 = vpop.f32.mrf.mxu0
    %916 = vmatprep.mubr.f32.mxu0 0.0
    %917 = vmatmul.mubr.f32.gmra.mxu0 %v353
    %v918 = vpop.f32.mrf.mxu0
    %v919 = vadd.f32 0.0, %v918
    %v920 = vpop.f32.mrf.mxu0
    %921 = vmatprep.mubr.f32.mxu0 0.0
    %922 = vmatmul.mubr.f32.gmra.mxu0 %v356
    %v923 = vpop.f32.mrf.mxu0
    %v924 = vadd.f32 0.0, %v923
    %v925 = vpop.f32.mrf.mxu0
    %926 = vmatprep.mubr.f32.mxu0 0.0
    %927 = vmatmul.mubr.f32.gmra.mxu0 %v359
    %v928 = vpop.f32.mrf.mxu0
    %v929 = vadd.f32 0.0, %v928
    %v930 = vpop.f32.mrf.mxu0
    %931 = vmatprep.mubr.f32.mxu0 0.0
    %932 = vmatmul.mubr.f32.gmra.mxu0 %v362
    %v933 = vpop.f32.mrf.mxu0
    %v934 = vadd.f32 0.0, %v933
    %v935 = vpop.f32.mrf.mxu0
    %936 = vmatprep.mubr.f32.mxu0 0.0
    %937 = vmatmul.mubr.f32.gmra.mxu0 %v365
    %v938 = vpop.f32.mrf.mxu0
    %v939 = vadd.f32 0.0, %v938
    %v940 = vpop.f32.mrf.mxu0
    %941 = vmatprep.mubr.f32.mxu0 0.0
    %942 = vmatmul.mubr.f32.gmra.mxu0 %v368
    %v943 = vpop.f32.mrf.mxu0
    %v944 = vadd.f32 0.0, %v943
    %v945 = vpop.f32.mrf.mxu0
    %946 = vmatprep.mubr.f32.mxu0 0.0
    %947 = vmatmul.mubr.f32.gmra.mxu0 %v371
    %v948 = vpop.f32.mrf.mxu0
    %v949 = vadd.f32 0.0, %v948
    %v950 = vpop.f32.mrf.mxu0
    %951 = vmatprep.mubr.f32.mxu0 0.0
    %952 = vmatmul.mubr.f32.gmra.mxu0 %v374
    %v953 = vpop.f32.mrf.mxu0
    %v954 = vadd.f32 0.0, %v953
    %v955 = vpop.f32.mrf.mxu0
    %956 = vmatprep.mubr.f32.mxu0 0.0
    %957 = vmatmul.mubr.f32.gmra.mxu0 %v377
    %v958 = vpop.f32.mrf.mxu0
    %v959 = vadd.f32 0.0, %v958
    %v960 = vpop.f32.mrf.mxu0
    %961 = vmatprep.mubr.f32.mxu0 0.0
    %962 = vmatmul.mubr.f32.gmra.mxu0 %v380
    %v963 = vpop.f32.mrf.mxu0
    %v964 = vadd.f32 0.0, %v963
    %v965 = vpop.f32.mrf.mxu0
    %966 = vmatprep.mubr.f32.mxu0 0.0
    %967 = vmatmul.mubr.f32.gmra.mxu0 %v383
    %v968 = vpop.f32.mrf.mxu0
    %v969 = vadd.f32 0.0, %v968
    %v970 = vpop.f32.mrf.mxu0
    %971 = vmatprep.mubr.f32.mxu0 0.0
    %972 = vmatmul.mubr.f32.gmra.mxu0 %v386
    %v973 = vpop.f32.mrf.mxu0
    %v974 = vadd.f32 0.0, %v973
    %v975 = vpop.f32.mrf.mxu0
    %976 = vmatprep.mubr.f32.mxu0 0.0
    %977 = vmatmul.mubr.f32.gmra.mxu0 %v389
    %v978 = vpop.f32.mrf.mxu0
    %v979 = vadd.f32 0.0, %v978
    %v980 = vpop.f32.mrf.mxu0
    %981 = vmatprep.mubr.f32.mxu0 0.0
    %982 = vmatmul.mubr.f32.gmra.mxu0 %v392
    %v983 = vpop.f32.mrf.mxu0
    %v984 = vadd.f32 0.0, %v983
    %v985 = vpop.f32.mrf.mxu0
    %986 = vmatprep.mubr.f32.mxu0 0.0
    %987 = vmatmul.mubr.f32.gmra.mxu0 %v395
    %v988 = vpop.f32.mrf.mxu0
    %v989 = vadd.f32 0.0, %v988
    %v990 = vpop.f32.mrf.mxu0
    %991 = vmatprep.mubr.f32.mxu0 0.0
    %992 = vmatmul.mubr.f32.gmra.mxu0 %v398
    %v993 = vpop.f32.mrf.mxu0
    %v994 = vadd.f32 0.0, %v993
    %v995 = vpop.f32.mrf.mxu0
    %996 = vmatprep.mubr.f32.mxu0 0.0
    %997 = vmatmul.mubr.f32.gmra.mxu0 %v401
    %v998 = vpop.f32.mrf.mxu0
    %v999 = vadd.f32 0.0, %v998
    %v1000 = vpop.f32.mrf.mxu0
    %1001 = vmatprep.mubr.f32.mxu0 0.0
    %1002 = vmatmul.mubr.f32.gmra.mxu0 %v404
    %v1003 = vpop.f32.mrf.mxu0
    %v1004 = vadd.f32 0.0, %v1003
    %v1005 = vpop.f32.mrf.mxu0
    %1006 = vmatprep.mubr.f32.mxu0 0.0
    %1007 = vmatmul.mubr.f32.gmra.mxu0 %v407
    %v1008 = vpop.f32.mrf.mxu0
    %v1009 = vadd.f32 0.0, %v1008
    %v1010 = vpop.f32.mrf.mxu0
    %1011 = vmatprep.mubr.f32.mxu0 0.0
    %1012 = vmatmul.mubr.f32.gmra.mxu0 %v410
    %v1013 = vpop.f32.mrf.mxu0
    %v1014 = vadd.f32 0.0, %v1013
    %v1015 = vpop.f32.mrf.mxu0
    %1016 = vmatprep.mubr.f32.mxu0 0.0
    %1017 = vmatmul.mubr.f32.gmra.mxu0 %v413
    %v1018 = vpop.f32.mrf.mxu0
    %v1019 = vadd.f32 0.0, %v1018
    %v1020 = vpop.f32.mrf.mxu0
    %1021 = vmatprep.mubr.f32.mxu0 0.0
    %1022 = vmatmul.mubr.f32.gmra.mxu0 %v416
    %v1023 = vpop.f32.mrf.mxu0
    %v1024 = vadd.f32 0.0, %v1023
    %v1025 = vpop.f32.mrf.mxu0
    %1026 = vmatprep.mubr.f32.mxu0 0.0
    %1027 = vmatmul.mubr.f32.gmra.mxu0 %v419
    %v1028 = vpop.f32.mrf.mxu0
    %v1029 = vadd.f32 0.0, %v1028
    %v1030 = vpop.f32.mrf.mxu0
    %1031 = vmatprep.mubr.f32.mxu0 0.0
    %1032 = vmatmul.mubr.f32.gmra.mxu0 %v422
    %v1033 = vpop.f32.mrf.mxu0
    %v1034 = vadd.f32 0.0, %v1033
    %v1035 = vpop.f32.mrf.mxu0
    %1036 = vmatprep.mubr.f32.mxu0 0.0
    %1037 = vmatmul.mubr.f32.gmra.mxu0 %v425
    %v1038 = vpop.f32.mrf.mxu0
    %v1039 = vadd.f32 0.0, %v1038
    %v1040 = vpop.f32.mrf.mxu0
    %1041 = vmatprep.mubr.f32.mxu0 0.0
    %1042 = vmatmul.mubr.f32.gmra.mxu0 %v428
    %v1043 = vpop.f32.mrf.mxu0
    %v1044 = vadd.f32 0.0, %v1043
    %v1045 = vpop.f32.mrf.mxu0
    %1046 = vmatprep.mubr.f32.mxu0 0.0
    %1047 = vmatmul.mubr.f32.gmra.mxu0 %v431
    %v1048 = vpop.f32.mrf.mxu0
    %v1049 = vadd.f32 0.0, %v1048
    %v1050 = vpop.f32.mrf.mxu0
    %1051 = vmatprep.mubr.f32.mxu0 0.0
    %1052 = vmatmul.mubr.f32.gmra.mxu0 %v434
    %v1053 = vpop.f32.mrf.mxu0
    %v1054 = vadd.f32 0.0, %v1053
    %v1055 = vpop.f32.mrf.mxu0
    %1056 = vmatprep.mubr.f32.mxu0 0.0
    %1057 = vmatmul.mubr.f32.gmra.mxu0 %v437
    %v1058 = vpop.f32.mrf.mxu0
    %v1059 = vadd.f32 0.0, %v1058
    %v1060 = vpop.f32.mrf.mxu0
    %1061 = vmatprep.mubr.f32.mxu0 0.0
    %1062 = vmatmul.mubr.f32.gmra.mxu0 %v440
    %v1063 = vpop.f32.mrf.mxu0
    %v1064 = vadd.f32 0.0, %v1063
    %v1065 = vpop.f32.mrf.mxu0
    %1066 = vmatprep.mubr.f32.mxu0 0.0
    %1067 = vmatmul.mubr.f32.gmra.mxu0 %v443
    %v1068 = vpop.f32.mrf.mxu0
    %v1069 = vadd.f32 0.0, %v1068
    %v1070 = vpop.f32.mrf.mxu0
    %1071 = vmatprep.mubr.f32.mxu0 0.0
    %1072 = vmatmul.mubr.f32.gmra.mxu0 %v446
    %v1073 = vpop.f32.mrf.mxu0
    %v1074 = vadd.f32 0.0, %v1073
    %v1075 = vpop.f32.mrf.mxu0
    %1076 = vmatprep.mubr.f32.mxu0 0.0
    %1077 = vmatmul.mubr.f32.gmra.mxu0 %v449
    %v1078 = vpop.f32.mrf.mxu0
    %v1079 = vadd.f32 0.0, %v1078
    %v1080 = vpop.f32.mrf.mxu0
    %1081 = vmatprep.mubr.f32.mxu0 0.0
    %1082 = vmatmul.mubr.f32.gmra.mxu0 %v452
    %v1083 = vpop.f32.mrf.mxu0
    %v1084 = vadd.f32 0.0, %v1083
    %v1085 = vpop.f32.mrf.mxu0
    %1086 = vmatprep.mubr.f32.mxu0 0.0
    %1087 = vmatmul.mubr.f32.gmra.mxu0 %v455
    %v1088 = vpop.f32.mrf.mxu0
    %v1089 = vadd.f32 0.0, %v1088
    %v1090 = vpop.f32.mrf.mxu0
    %1091 = vmatprep.mubr.f32.mxu0 0.0
    %1092 = vmatmul.mubr.f32.gmra.mxu0 %v458
    %v1093 = vpop.f32.mrf.mxu0
    %v1094 = vadd.f32 0.0, %v1093
    %v1095 = vpop.f32.mrf.mxu0
    %1096 = vmatprep.mubr.f32.mxu0 0.0
    %1097 = vmatmul.mubr.f32.gmra.mxu0 %v461
    %v1098 = vpop.f32.mrf.mxu0
    %v1099 = vadd.f32 0.0, %v1098
    %v1100 = vpop.f32.mrf.mxu0
    %1101 = vmatprep.mubr.f32.mxu0 0.0
    %1102 = vmatmul.mubr.f32.gmra.mxu0 %v464
    %v1103 = vpop.f32.mrf.mxu0
    %v1104 = vadd.f32 0.0, %v1103
    %v1105 = vpop.f32.mrf.mxu0
    %1106 = vmatprep.mubr.f32.mxu0 0.0
    %1107 = vmatmul.mubr.f32.gmra.mxu0 %v467
    %v1108 = vpop.f32.mrf.mxu0
    %v1109 = vadd.f32 0.0, %v1108
    %v1110 = vpop.f32.mrf.mxu0
    %1111 = vmatprep.mubr.f32.mxu0 0.0
    %1112 = vmatmul.mubr.f32.gmra.mxu0 %v470
    %v1113 = vpop.f32.mrf.mxu0
    %v1114 = vadd.f32 0.0, %v1113
    %v1115 = vpop.f32.mrf.mxu0
    %1116 = vmatprep.mubr.f32.mxu0 0.0
    %1117 = vmatmul.mubr.f32.gmra.mxu0 %v473
    %v1118 = vpop.f32.mrf.mxu0
    %v1119 = vadd.f32 0.0, %v1118
    %v1120 = vpop.f32.mrf.mxu0
    %1121 = vmatprep.mubr.f32.mxu0 0.0
    %1122 = vmatmul.mubr.f32.gmra.mxu0 %v476
    %v1123 = vpop.f32.mrf.mxu0
    %v1124 = vadd.f32 0.0, %v1123
    %v1125 = vpop.f32.mrf.mxu0
    %1126 = vmatprep.mubr.f32.mxu0 0.0
    %1127 = vmatmul.mubr.f32.gmra.mxu0 %v479
    %v1128 = vpop.f32.mrf.mxu0
    %v1129 = vadd.f32 0.0, %v1128
    %v1130 = vpop.f32.mrf.mxu0
    %1131 = vmatprep.mubr.f32.mxu0 0.0
    %1132 = vmatmul.mubr.f32.gmra.mxu0 %v482
    %v1133 = vpop.f32.mrf.mxu0
    %v1134 = vadd.f32 0.0, %v1133
    %v1135 = vpop.f32.mrf.mxu0
    %1136 = vmatprep.mubr.f32.mxu0 0.0
    %1137 = vmatmul.mubr.f32.gmra.mxu0 %v485
    %v1138 = vpop.f32.mrf.mxu0
    %v1139 = vadd.f32 0.0, %v1138
    %v1140 = vpop.f32.mrf.mxu0
    %1141 = vmatprep.mubr.f32.mxu0 0.0
    %1142 = vmatmul.mubr.f32.gmra.mxu0 %v488
    %v1143 = vpop.f32.mrf.mxu0
    %v1144 = vadd.f32 0.0, %v1143
    %v1145 = vpop.f32.mrf.mxu0
    %1146 = vmatprep.mubr.f32.mxu0 0.0
    %1147 = vmatmul.mubr.f32.gmra.mxu0 %v491
    %v1148 = vpop.f32.mrf.mxu0
    %v1149 = vadd.f32 0.0, %v1148
    %v1150 = vpop.f32.mrf.mxu0
    %1151 = vmatprep.mubr.f32.mxu0 0.0
    %1152 = vmatmul.mubr.f32.gmra.mxu0 %v494
    %v1153 = vpop.f32.mrf.mxu0
    %v1154 = vadd.f32 0.0, %v1153
    %v1155 = vpop.f32.mrf.mxu0
    %1156 = vmatprep.mubr.f32.mxu0 0.0
    %1157 = vmatmul.mubr.f32.gmra.mxu0 %v497
    %v1158 = vpop.f32.mrf.mxu0
    %v1159 = vadd.f32 0.0, %v1158
    %v1160 = vpop.f32.mrf.mxu0
    %1161 = vmatprep.mubr.f32.mxu0 0.0
    %1162 = vmatmul.mubr.f32.gmra.mxu0 %v500
    %v1163 = vpop.f32.mrf.mxu0
    %v1164 = vadd.f32 0.0, %v1163
    %v1165 = vpop.f32.mrf.mxu0
    %1166 = vmatprep.mubr.f32.mxu0 0.0
    %1167 = vmatmul.mubr.f32.gmra.mxu0 %v503
    %v1168 = vpop.f32.mrf.mxu0
    %v1169 = vadd.f32 0.0, %v1168
    %v1170 = vpop.f32.mrf.mxu0
    %1171 = vmatprep.mubr.f32.mxu0 0.0
    %1172 = vmatmul.mubr.f32.gmra.mxu0 %v506
    %v1173 = vpop.f32.mrf.mxu0
    %v1174 = vadd.f32 0.0, %v1173
    %v1175 = vpop.f32.mrf.mxu0
    %1176 = vmatprep.mubr.f32.mxu0 0.0
    %1177 = vmatmul.mubr.f32.gmra.mxu0 %v509
    %v1178 = vpop.f32.mrf.mxu0
    %v1179 = vadd.f32 0.0, %v1178
    %v1180 = vpop.f32.mrf.mxu0
    %1181 = vmatprep.mubr.f32.mxu0 0.0
    %1182 = vmatmul.mubr.f32.gmra.mxu0 %v512
    %v1183 = vpop.f32.mrf.mxu0
    %v1184 = vadd.f32 0.0, %v1183
    %v1185 = vpop.f32.mrf.mxu0
    %1186 = vmatprep.mubr.f32.mxu0 0.0
    %1187 = vmatmul.mubr.f32.gmra.mxu0 %v515
    %v1188 = vpop.f32.mrf.mxu0
    %v1189 = vadd.f32 0.0, %v1188
    %v1190 = vpop.f32.mrf.mxu0
    %1191 = vmatprep.mubr.f32.mxu0 0.0
    %1192 = vmatmul.mubr.f32.gmra.mxu0 %v518
    %v1193 = vpop.f32.mrf.mxu0
    %v1194 = vadd.f32 0.0, %v1193
    %v1195 = vpop.f32.mrf.mxu0
    %1196 = vmatprep.mubr.f32.mxu0 0.0
    %1197 = vmatmul.mubr.f32.gmra.mxu0 %v521
    %v1198 = vpop.f32.mrf.mxu0
    %v1199 = vadd.f32 0.0, %v1198
    %v1200 = vpop.f32.mrf.mxu0
    %1201 = vmatprep.mubr.f32.mxu0 0.0
    %1202 = vmatmul.mubr.f32.gmra.mxu0 %v524
    %v1203 = vpop.f32.mrf.mxu0
    %v1204 = vadd.f32 0.0, %v1203
    %v1205 = vpop.f32.mrf.mxu0
    %1206 = vmatprep.mubr.f32.mxu0 0.0
    %1207 = vmatmul.mubr.f32.gmra.mxu0 %v527
    %v1208 = vpop.f32.mrf.mxu0
    %v1209 = vadd.f32 0.0, %v1208
    %v1210 = vpop.f32.mrf.mxu0
    %1211 = vmatprep.mubr.f32.mxu0 0.0
    %1212 = vmatmul.mubr.f32.gmra.mxu0 %v530
    %v1213 = vpop.f32.mrf.mxu0
    %v1214 = vadd.f32 0.0, %v1213
    %v1215 = vpop.f32.mrf.mxu0
    %1216 = vmatprep.mubr.f32.mxu0 0.0
    %1217 = vmatmul.mubr.f32.gmra.mxu0 %v533
    %v1218 = vpop.f32.mrf.mxu0
    %v1219 = vadd.f32 0.0, %v1218
    %v1220 = vpop.f32.mrf.mxu0
    %1221 = vmatprep.mubr.f32.mxu0 0.0
    %1222 = vmatmul.mubr.f32.gmra.mxu0 %v536
    %v1223 = vpop.f32.mrf.mxu0
    %v1224 = vadd.f32 0.0, %v1223
    %v1225 = vpop.f32.mrf.mxu0
    %1226 = vmatprep.mubr.f32.mxu0 0.0
    %1227 = vmatmul.mubr.f32.gmra.mxu0 %v539
    %v1228 = vpop.f32.mrf.mxu0
    %v1229 = vadd.f32 0.0, %v1228
    %v1230 = vpop.f32.mrf.mxu0
    %1231 = vmatprep.mubr.f32.mxu0 0.0
    %1232 = vmatmul.mubr.f32.gmra.mxu0 %v542
    %v1233 = vpop.f32.mrf.mxu0
    %v1234 = vadd.f32 0.0, %v1233
    %v1235 = vpop.f32.mrf.mxu0
    %1236 = vmatprep.mubr.f32.mxu0 0.0
    %1237 = vmatmul.mubr.f32.gmra.mxu0 %v545
    %v1238 = vpop.f32.mrf.mxu0
    %v1239 = vadd.f32 0.0, %v1238
    %v1240 = vpop.f32.mrf.mxu0
    %1241 = vmatprep.mubr.f32.mxu0 0.0
    %1242 = vmatmul.mubr.f32.gmra.mxu0 %v548
    %v1243 = vpop.f32.mrf.mxu0
    %v1244 = vadd.f32 0.0, %v1243
    %v1245 = vpop.f32.mrf.mxu0
    %1246 = vmatprep.mubr.f32.mxu0 0.0
    %1247 = vmatmul.mubr.f32.gmra.mxu0 %v551
    %v1248 = vpop.f32.mrf.mxu0
    %v1249 = vadd.f32 0.0, %v1248
    %v1250 = vpop.f32.mrf.mxu0
    %1251 = vmatprep.mubr.f32.mxu0 0.0
    %1252 = vmatmul.mubr.f32.gmra.mxu0 %v554
    %v1253 = vpop.f32.mrf.mxu0
    %v1254 = vadd.f32 0.0, %v1253
    %v1255 = vpop.f32.mrf.mxu0
    %1256 = vmatprep.mubr.f32.mxu0 0.0
    %1257 = vmatmul.mubr.f32.gmra.mxu0 %v557
    %v1258 = vpop.f32.mrf.mxu0
    %v1259 = vadd.f32 0.0, %v1258
    %v1260 = vpop.f32.mrf.mxu0
    %1261 = vmatprep.mubr.f32.mxu0 0.0
    %1262 = vmatmul.mubr.f32.gmra.mxu0 %v560
    %v1263 = vpop.f32.mrf.mxu0
    %v1264 = vadd.f32 0.0, %v1263
    %v1265 = vpop.f32.mrf.mxu0
    %1266 = vdwg.mxu0
    %1268 = vset.pattern.permute.xlu0 0
    %1269 = vperm.xlu0 %1268, %v629
    %v1270 = vpop.permute.xlu0 %1269
    %1273 = vset.pattern.permute.xlu0 0
    %1274 = vperm.xlu0 %1273, %v634
    %v1275 = vpop.permute.xlu0 %1274
    %1278 = vset.pattern.permute.xlu0 0
    %1279 = vperm.xlu0 %1278, %v639
    %v1280 = vpop.permute.xlu0 %1279
    %1283 = vset.pattern.permute.xlu0 0
    %1284 = vperm.xlu0 %1283, %v644
    %v1285 = vpop.permute.xlu0 %1284
    %1288 = vset.pattern.permute.xlu0 0
    %1289 = vperm.xlu0 %1288, %v649
    %v1290 = vpop.permute.xlu0 %1289
    %1293 = vset.pattern.permute.xlu0 0
    %1294 = vperm.xlu0 %1293, %v654
    %v1295 = vpop.permute.xlu0 %1294
    %1298 = vset.pattern.permute.xlu0 0
    %1299 = vperm.xlu0 %1298, %v659
    %v1300 = vpop.permute.xlu0 %1299
    %1303 = vset.pattern.permute.xlu0 0
    %1304 = vperm.xlu0 %1303, %v664
    %v1305 = vpop.permute.xlu0 %1304
    %1308 = vset.pattern.permute.xlu0 0
    %1309 = vperm.xlu0 %1308, %v669
    %v1310 = vpop.permute.xlu0 %1309
    %1313 = vset.pattern.permute.xlu0 0
    %1314 = vperm.xlu0 %1313, %v674
    %v1315 = vpop.permute.xlu0 %1314
    %1318 = vset.pattern.permute.xlu0 0
    %1319 = vperm.xlu0 %1318, %v679
    %v1320 = vpop.permute.xlu0 %1319
    %1323 = vset.pattern.permute.xlu0 0
    %1324 = vperm.xlu0 %1323, %v684
    %v1325 = vpop.permute.xlu0 %1324
    %1328 = vset.pattern.permute.xlu0 0
    %1329 = vperm.xlu0 %1328, %v689
    %v1330 = vpop.permute.xlu0 %1329
    %1333 = vset.pattern.permute.xlu0 0
    %1334 = vperm.xlu0 %1333, %v694
    %v1335 = vpop.permute.xlu0 %1334
    %1338 = vset.pattern.permute.xlu0 0
    %1339 = vperm.xlu0 %1338, %v699
    %v1340 = vpop.permute.xlu0 %1339
    %1343 = vset.pattern.permute.xlu0 0
    %1344 = vperm.xlu0 %1343, %v704
    %v1345 = vpop.permute.xlu0 %1344
    %1348 = vset.pattern.permute.xlu0 0
    %1349 = vperm.xlu0 %1348, %v709
    %v1350 = vpop.permute.xlu0 %1349
    %1353 = vset.pattern.permute.xlu0 0
    %1354 = vperm.xlu0 %1353, %v714
    %v1355 = vpop.permute.xlu0 %1354
    %1358 = vset.pattern.permute.xlu0 0
    %1359 = vperm.xlu0 %1358, %v719
    %v1360 = vpop.permute.xlu0 %1359
    %1363 = vset.pattern.permute.xlu0 0
    %1364 = vperm.xlu0 %1363, %v724
    %v1365 = vpop.permute.xlu0 %1364
    %1368 = vset.pattern.permute.xlu0 0
    %1369 = vperm.xlu0 %1368, %v729
    %v1370 = vpop.permute.xlu0 %1369
    %1373 = vset.pattern.permute.xlu0 0
    %1374 = vperm.xlu0 %1373, %v734
    %v1375 = vpop.permute.xlu0 %1374
    %1378 = vset.pattern.permute.xlu0 0
    %1379 = vperm.xlu0 %1378, %v739
    %v1380 = vpop.permute.xlu0 %1379
    %1383 = vset.pattern.permute.xlu0 0
    %1384 = vperm.xlu0 %1383, %v744
    %v1385 = vpop.permute.xlu0 %1384
    %1388 = vset.pattern.permute.xlu0 0
    %1389 = vperm.xlu0 %1388, %v749
    %v1390 = vpop.permute.xlu0 %1389
    %1393 = vset.pattern.permute.xlu0 0
    %1394 = vperm.xlu0 %1393, %v754
    %v1395 = vpop.permute.xlu0 %1394
    %1398 = vset.pattern.permute.xlu0 0
    %1399 = vperm.xlu0 %1398, %v759
    %v1400 = vpop.permute.xlu0 %1399
    %1403 = vset.pattern.permute.xlu0 0
    %1404 = vperm.xlu0 %1403, %v764
    %v1405 = vpop.permute.xlu0 %1404
    %1408 = vset.pattern.permute.xlu0 0
    %1409 = vperm.xlu0 %1408, %v769
    %v1410 = vpop.permute.xlu0 %1409
    %1413 = vset.pattern.permute.xlu0 0
    %1414 = vperm.xlu0 %1413, %v774
    %v1415 = vpop.permute.xlu0 %1414
    %1418 = vset.pattern.permute.xlu0 0
    %1419 = vperm.xlu0 %1418, %v779
    %v1420 = vpop.permute.xlu0 %1419
    %1423 = vset.pattern.permute.xlu0 0
    %1424 = vperm.xlu0 %1423, %v784
    %v1425 = vpop.permute.xlu0 %1424
    %1428 = vset.pattern.permute.xlu0 0
    %1429 = vperm.xlu0 %1428, %v789
    %v1430 = vpop.permute.xlu0 %1429
    %1433 = vset.pattern.permute.xlu0 0
    %1434 = vperm.xlu0 %1433, %v794
    %v1435 = vpop.permute.xlu0 %1434
    %1438 = vset.pattern.permute.xlu0 0
    %1439 = vperm.xlu0 %1438, %v799
    %v1440 = vpop.permute.xlu0 %1439
    %1443 = vset.pattern.permute.xlu0 0
    %1444 = vperm.xlu0 %1443, %v804
    %v1445 = vpop.permute.xlu0 %1444
    %1448 = vset.pattern.permute.xlu0 0
    %1449 = vperm.xlu0 %1448, %v809
    %v1450 = vpop.permute.xlu0 %1449
    %1453 = vset.pattern.permute.xlu0 0
    %1454 = vperm.xlu0 %1453, %v814
    %v1455 = vpop.permute.xlu0 %1454
    %1458 = vset.pattern.permute.xlu0 0
    %1459 = vperm.xlu0 %1458, %v819
    %v1460 = vpop.permute.xlu0 %1459
    %1463 = vset.pattern.permute.xlu0 0
    %1464 = vperm.xlu0 %1463, %v824
    %v1465 = vpop.permute.xlu0 %1464
    %1468 = vset.pattern.permute.xlu0 0
    %1469 = vperm.xlu0 %1468, %v829
    %v1470 = vpop.permute.xlu0 %1469
    %1473 = vset.pattern.permute.xlu0 0
    %1474 = vperm.xlu0 %1473, %v834
    %v1475 = vpop.permute.xlu0 %1474
    %1478 = vset.pattern.permute.xlu0 0
    %1479 = vperm.xlu0 %1478, %v839
    %v1480 = vpop.permute.xlu0 %1479
    %1483 = vset.pattern.permute.xlu0 0
    %1484 = vperm.xlu0 %1483, %v844
    %v1485 = vpop.permute.xlu0 %1484
    %1488 = vset.pattern.permute.xlu0 0
    %1489 = vperm.xlu0 %1488, %v849
    %v1490 = vpop.permute.xlu0 %1489
    %1493 = vset.pattern.permute.xlu0 0
    %1494 = vperm.xlu0 %1493, %v854
    %v1495 = vpop.permute.xlu0 %1494
    %1498 = vset.pattern.permute.xlu0 0
    %1499 = vperm.xlu0 %1498, %v859
    %v1500 = vpop.permute.xlu0 %1499
    %1503 = vset.pattern.permute.xlu0 0
    %1504 = vperm.xlu0 %1503, %v864
    %v1505 = vpop.permute.xlu0 %1504
    %1508 = vset.pattern.permute.xlu0 0
    %1509 = vperm.xlu0 %1508, %v869
    %v1510 = vpop.permute.xlu0 %1509
    %1513 = vset.pattern.permute.xlu0 0
    %1514 = vperm.xlu0 %1513, %v874
    %v1515 = vpop.permute.xlu0 %1514
    %1518 = vset.pattern.permute.xlu0 0
    %1519 = vperm.xlu0 %1518, %v879
    %v1520 = vpop.permute.xlu0 %1519
    %1523 = vset.pattern.permute.xlu0 0
    %1524 = vperm.xlu0 %1523, %v884
    %v1525 = vpop.permute.xlu0 %1524
    %1528 = vset.pattern.permute.xlu0 0
    %1529 = vperm.xlu0 %1528, %v889
    %v1530 = vpop.permute.xlu0 %1529
    %1533 = vset.pattern.permute.xlu0 0
    %1534 = vperm.xlu0 %1533, %v894
    %v1535 = vpop.permute.xlu0 %1534
    %1538 = vset.pattern.permute.xlu0 0
    %1539 = vperm.xlu0 %1538, %v899
    %v1540 = vpop.permute.xlu0 %1539
    %1543 = vset.pattern.permute.xlu0 0
    %1544 = vperm.xlu0 %1543, %v904
    %v1545 = vpop.permute.xlu0 %1544
    %1548 = vset.pattern.permute.xlu0 0
    %1549 = vperm.xlu0 %1548, %v909
    %v1550 = vpop.permute.xlu0 %1549
    %1553 = vset.pattern.permute.xlu0 0
    %1554 = vperm.xlu0 %1553, %v914
    %v1555 = vpop.permute.xlu0 %1554
    %1558 = vset.pattern.permute.xlu0 0
    %1559 = vperm.xlu0 %1558, %v919
    %v1560 = vpop.permute.xlu0 %1559
    %1563 = vset.pattern.permute.xlu0 0
    %1564 = vperm.xlu0 %1563, %v924
    %v1565 = vpop.permute.xlu0 %1564
    %1568 = vset.pattern.permute.xlu0 0
    %1569 = vperm.xlu0 %1568, %v929
    %v1570 = vpop.permute.xlu0 %1569
    %1573 = vset.pattern.permute.xlu0 0
    %1574 = vperm.xlu0 %1573, %v934
    %v1575 = vpop.permute.xlu0 %1574
    %1578 = vset.pattern.permute.xlu0 0
    %1579 = vperm.xlu0 %1578, %v939
    %v1580 = vpop.permute.xlu0 %1579
    %1583 = vset.pattern.permute.xlu0 0
    %1584 = vperm.xlu0 %1583, %v944
    %v1585 = vpop.permute.xlu0 %1584
    %1588 = vset.pattern.permute.xlu0 0
    %1589 = vperm.xlu0 %1588, %v949
    %v1590 = vpop.permute.xlu0 %1589
    %1593 = vset.pattern.permute.xlu0 0
    %1594 = vperm.xlu0 %1593, %v954
    %v1595 = vpop.permute.xlu0 %1594
    %1598 = vset.pattern.permute.xlu0 0
    %1599 = vperm.xlu0 %1598, %v959
    %v1600 = vpop.permute.xlu0 %1599
    %1603 = vset.pattern.permute.xlu0 0
    %1604 = vperm.xlu0 %1603, %v964
    %v1605 = vpop.permute.xlu0 %1604
    %1608 = vset.pattern.permute.xlu0 0
    %1609 = vperm.xlu0 %1608, %v969
    %v1610 = vpop.permute.xlu0 %1609
    %1613 = vset.pattern.permute.xlu0 0
    %1614 = vperm.xlu0 %1613, %v974
    %v1615 = vpop.permute.xlu0 %1614
    %1618 = vset.pattern.permute.xlu0 0
    %1619 = vperm.xlu0 %1618, %v979
    %v1620 = vpop.permute.xlu0 %1619
    %1623 = vset.pattern.permute.xlu0 0
    %1624 = vperm.xlu0 %1623, %v984
    %v1625 = vpop.permute.xlu0 %1624
    %1628 = vset.pattern.permute.xlu0 0
    %1629 = vperm.xlu0 %1628, %v989
    %v1630 = vpop.permute.xlu0 %1629
    %1633 = vset.pattern.permute.xlu0 0
    %1634 = vperm.xlu0 %1633, %v994
    %v1635 = vpop.permute.xlu0 %1634
    %1638 = vset.pattern.permute.xlu0 0
    %1639 = vperm.xlu0 %1638, %v999
    %v1640 = vpop.permute.xlu0 %1639
    %1643 = vset.pattern.permute.xlu0 0
    %1644 = vperm.xlu0 %1643, %v1004
    %v1645 = vpop.permute.xlu0 %1644
    %1648 = vset.pattern.permute.xlu0 0
    %1649 = vperm.xlu0 %1648, %v1009
    %v1650 = vpop.permute.xlu0 %1649
    %1653 = vset.pattern.permute.xlu0 0
    %1654 = vperm.xlu0 %1653, %v1014
    %v1655 = vpop.permute.xlu0 %1654
    %1658 = vset.pattern.permute.xlu0 0
    %1659 = vperm.xlu0 %1658, %v1019
    %v1660 = vpop.permute.xlu0 %1659
    %1663 = vset.pattern.permute.xlu0 0
    %1664 = vperm.xlu0 %1663, %v1024
    %v1665 = vpop.permute.xlu0 %1664
    %1668 = vset.pattern.permute.xlu0 0
    %1669 = vperm.xlu0 %1668, %v1029
    %v1670 = vpop.permute.xlu0 %1669
    %1673 = vset.pattern.permute.xlu0 0
    %1674 = vperm.xlu0 %1673, %v1034
    %v1675 = vpop.permute.xlu0 %1674
    %1678 = vset.pattern.permute.xlu0 0
    %1679 = vperm.xlu0 %1678, %v1039
    %v1680 = vpop.permute.xlu0 %1679
    %1683 = vset.pattern.permute.xlu0 0
    %1684 = vperm.xlu0 %1683, %v1044
    %v1685 = vpop.permute.xlu0 %1684
    %1688 = vset.pattern.permute.xlu0 0
    %1689 = vperm.xlu0 %1688, %v1049
    %v1690 = vpop.permute.xlu0 %1689
    %1693 = vset.pattern.permute.xlu0 0
    %1694 = vperm.xlu0 %1693, %v1054
    %v1695 = vpop.permute.xlu0 %1694
    %1698 = vset.pattern.permute.xlu0 0
    %1699 = vperm.xlu0 %1698, %v1059
    %v1700 = vpop.permute.xlu0 %1699
    %1703 = vset.pattern.permute.xlu0 0
    %1704 = vperm.xlu0 %1703, %v1064
    %v1705 = vpop.permute.xlu0 %1704
    %1708 = vset.pattern.permute.xlu0 0
    %1709 = vperm.xlu0 %1708, %v1069
    %v1710 = vpop.permute.xlu0 %1709
    %1713 = vset.pattern.permute.xlu0 0
    %1714 = vperm.xlu0 %1713, %v1074
    %v1715 = vpop.permute.xlu0 %1714
    %1718 = vset.pattern.permute.xlu0 0
    %1719 = vperm.xlu0 %1718, %v1079
    %v1720 = vpop.permute.xlu0 %1719
    %1723 = vset.pattern.permute.xlu0 0
    %1724 = vperm.xlu0 %1723, %v1084
    %v1725 = vpop.permute.xlu0 %1724
    %1728 = vset.pattern.permute.xlu0 0
    %1729 = vperm.xlu0 %1728, %v1089
    %v1730 = vpop.permute.xlu0 %1729
    %1733 = vset.pattern.permute.xlu0 0
    %1734 = vperm.xlu0 %1733, %v1094
    %v1735 = vpop.permute.xlu0 %1734
    %1738 = vset.pattern.permute.xlu0 0
    %1739 = vperm.xlu0 %1738, %v1099
    %v1740 = vpop.permute.xlu0 %1739
    %1743 = vset.pattern.permute.xlu0 0
    %1744 = vperm.xlu0 %1743, %v1104
    %v1745 = vpop.permute.xlu0 %1744
    %1748 = vset.pattern.permute.xlu0 0
    %1749 = vperm.xlu0 %1748, %v1109
    %v1750 = vpop.permute.xlu0 %1749
    %1753 = vset.pattern.permute.xlu0 0
    %1754 = vperm.xlu0 %1753, %v1114
    %v1755 = vpop.permute.xlu0 %1754
    %1758 = vset.pattern.permute.xlu0 0
    %1759 = vperm.xlu0 %1758, %v1119
    %v1760 = vpop.permute.xlu0 %1759
    %1763 = vset.pattern.permute.xlu0 0
    %1764 = vperm.xlu0 %1763, %v1124
    %v1765 = vpop.permute.xlu0 %1764
    %1768 = vset.pattern.permute.xlu0 0
    %1769 = vperm.xlu0 %1768, %v1129
    %v1770 = vpop.permute.xlu0 %1769
    %1773 = vset.pattern.permute.xlu0 0
    %1774 = vperm.xlu0 %1773, %v1134
    %v1775 = vpop.permute.xlu0 %1774
    %1778 = vset.pattern.permute.xlu0 0
    %1779 = vperm.xlu0 %1778, %v1139
    %v1780 = vpop.permute.xlu0 %1779
    %1783 = vset.pattern.permute.xlu0 0
    %1784 = vperm.xlu0 %1783, %v1144
    %v1785 = vpop.permute.xlu0 %1784
    %1788 = vset.pattern.permute.xlu0 0
    %1789 = vperm.xlu0 %1788, %v1149
    %v1790 = vpop.permute.xlu0 %1789
    %1793 = vset.pattern.permute.xlu0 0
    %1794 = vperm.xlu0 %1793, %v1154
    %v1795 = vpop.permute.xlu0 %1794
    %1798 = vset.pattern.permute.xlu0 0
    %1799 = vperm.xlu0 %1798, %v1159
    %v1800 = vpop.permute.xlu0 %1799
    %1803 = vset.pattern.permute.xlu0 0
    %1804 = vperm.xlu0 %1803, %v1164
    %v1805 = vpop.permute.xlu0 %1804
    %1808 = vset.pattern.permute.xlu0 0
    %1809 = vperm.xlu0 %1808, %v1169
    %v1810 = vpop.permute.xlu0 %1809
    %1813 = vset.pattern.permute.xlu0 0
    %1814 = vperm.xlu0 %1813, %v1174
    %v1815 = vpop.permute.xlu0 %1814
    %1818 = vset.pattern.permute.xlu0 0
    %1819 = vperm.xlu0 %1818, %v1179
    %v1820 = vpop.permute.xlu0 %1819
    %1823 = vset.pattern.permute.xlu0 0
    %1824 = vperm.xlu0 %1823, %v1184
    %v1825 = vpop.permute.xlu0 %1824
    %1828 = vset.pattern.permute.xlu0 0
    %1829 = vperm.xlu0 %1828, %v1189
    %v1830 = vpop.permute.xlu0 %1829
    %1833 = vset.pattern.permute.xlu0 0
    %1834 = vperm.xlu0 %1833, %v1194
    %v1835 = vpop.permute.xlu0 %1834
    %1838 = vset.pattern.permute.xlu0 0
    %1839 = vperm.xlu0 %1838, %v1199
    %v1840 = vpop.permute.xlu0 %1839
    %1843 = vset.pattern.permute.xlu0 0
    %1844 = vperm.xlu0 %1843, %v1204
    %v1845 = vpop.permute.xlu0 %1844
    %1848 = vset.pattern.permute.xlu0 0
    %1849 = vperm.xlu0 %1848, %v1209
    %v1850 = vpop.permute.xlu0 %1849
    %1853 = vset.pattern.permute.xlu0 0
    %1854 = vperm.xlu0 %1853, %v1214
    %v1855 = vpop.permute.xlu0 %1854
    %1858 = vset.pattern.permute.xlu0 0
    %1859 = vperm.xlu0 %1858, %v1219
    %v1860 = vpop.permute.xlu0 %1859
    %1863 = vset.pattern.permute.xlu0 0
    %1864 = vperm.xlu0 %1863, %v1224
    %v1865 = vpop.permute.xlu0 %1864
    %1868 = vset.pattern.permute.xlu0 0
    %1869 = vperm.xlu0 %1868, %v1229
    %v1870 = vpop.permute.xlu0 %1869
    %1873 = vset.pattern.permute.xlu0 0
    %1874 = vperm.xlu0 %1873, %v1234
    %v1875 = vpop.permute.xlu0 %1874
    %1878 = vset.pattern.permute.xlu0 0
    %1879 = vperm.xlu0 %1878, %v1239
    %v1880 = vpop.permute.xlu0 %1879
    %1883 = vset.pattern.permute.xlu0 0
    %1884 = vperm.xlu0 %1883, %v1244
    %v1885 = vpop.permute.xlu0 %1884
    %1888 = vset.pattern.permute.xlu0 0
    %1889 = vperm.xlu0 %1888, %v1249
    %v1890 = vpop.permute.xlu0 %1889
    %1893 = vset.pattern.permute.xlu0 0
    %1894 = vperm.xlu0 %1893, %v1254
    %v1895 = vpop.permute.xlu0 %1894
    %1898 = vset.pattern.permute.xlu0 0
    %1899 = vperm.xlu0 %1898, %v1259
    %v1900 = vpop.permute.xlu0 %1899
    %1903 = vset.pattern.permute.xlu0 0
    %1904 = vperm.xlu0 %1903, %v1264
    %v1905 = vpop.permute.xlu0 %1904
    %v1907 = vmul.f32 %v629, %v1270
    %v1908 = vmul.f32 %v634, %v1275
    %v1909 = vmul.f32 %v639, %v1280
    %v1910 = vmul.f32 %v644, %v1285
    %v1911 = vmul.f32 %v649, %v1290
    %v1912 = vmul.f32 %v654, %v1295
    %v1913 = vmul.f32 %v659, %v1300
    %v1914 = vmul.f32 %v664, %v1305
    %v1915 = vmul.f32 %v669, %v1310
    %v1916 = vmul.f32 %v674, %v1315
    %v1917 = vmul.f32 %v679, %v1320
    %v1918 = vmul.f32 %v684, %v1325
    %v1919 = vmul.f32 %v689, %v1330
    %v1920 = vmul.f32 %v694, %v1335
    %v1921 = vmul.f32 %v699, %v1340
    %v1922 = vmul.f32 %v704, %v1345
    %v1923 = vmul.f32 %v709, %v1350
    %v1924 = vmul.f32 %v714, %v1355
    %v1925 = vmul.f32 %v719, %v1360
    %v1926 = vmul.f32 %v724, %v1365
    %v1927 = vmul.f32 %v729, %v1370
    %v1928 = vmul.f32 %v734, %v1375
    %v1929 = vmul.f32 %v739, %v1380
    %v1930 = vmul.f32 %v744, %v1385
    %v1931 = vmul.f32 %v749, %v1390
    %v1932 = vmul.f32 %v754, %v1395
    %v1933 = vmul.f32 %v759, %v1400
    %v1934 = vmul.f32 %v764, %v1405
    %v1935 = vmul.f32 %v769, %v1410
    %v1936 = vmul.f32 %v774, %v1415
    %v1937 = vmul.f32 %v779, %v1420
    %v1938 = vmul.f32 %v784, %v1425
    %v1939 = vmul.f32 %v789, %v1430
    %v1940 = vmul.f32 %v794, %v1435
    %v1941 = vmul.f32 %v799, %v1440
    %v1942 = vmul.f32 %v804, %v1445
    %v1943 = vmul.f32 %v809, %v1450
    %v1944 = vmul.f32 %v814, %v1455
    %v1945 = vmul.f32 %v819, %v1460
    %v1946 = vmul.f32 %v824, %v1465
    %v1947 = vmul.f32 %v829, %v1470
    %v1948 = vmul.f32 %v834, %v1475
    %v1949 = vmul.f32 %v839, %v1480
    %v1950 = vmul.f32 %v844, %v1485
    %v1951 = vmul.f32 %v849, %v1490
    %v1952 = vmul.f32 %v854, %v1495
    %v1953 = vmul.f32 %v859, %v1500
    %v1954 = vmul.f32 %v864, %v1505
    %v1955 = vmul.f32 %v869, %v1510
    %v1956 = vmul.f32 %v874, %v1515
    %v1957 = vmul.f32 %v879, %v1520
    %v1958 = vmul.f32 %v884, %v1525
    %v1959 = vmul.f32 %v889, %v1530
    %v1960 = vmul.f32 %v894, %v1535
    %v1961 = vmul.f32 %v899, %v1540
    %v1962 = vmul.f32 %v904, %v1545
    %v1963 = vmul.f32 %v909, %v1550
    %v1964 = vmul.f32 %v914, %v1555
    %v1965 = vmul.f32 %v919, %v1560
    %v1966 = vmul.f32 %v924, %v1565
    %v1967 = vmul.f32 %v929, %v1570
    %v1968 = vmul.f32 %v934, %v1575
    %v1969 = vmul.f32 %v939, %v1580
    %v1970 = vmul.f32 %v944, %v1585
    %v1971 = vmul.f32 %v949, %v1590
    %v1972 = vmul.f32 %v954, %v1595
    %v1973 = vmul.f32 %v959, %v1600
    %v1974 = vmul.f32 %v964, %v1605
    %v1975 = vmul.f32 %v969, %v1610
    %v1976 = vmul.f32 %v974, %v1615
    %v1977 = vmul.f32 %v979, %v1620
    %v1978 = vmul.f32 %v984, %v1625
    %v1979 = vmul.f32 %v989, %v1630
    %v1980 = vmul.f32 %v994, %v1635
    %v1981 = vmul.f32 %v999, %v1640
    %v1982 = vmul.f32 %v1004, %v1645
    %v1983 = vmul.f32 %v1009, %v1650
    %v1984 = vmul.f32 %v1014, %v1655
    %v1985 = vmul.f32 %v1019, %v1660
    %v1986 = vmul.f32 %v1024, %v1665
    %v1987 = vmul.f32 %v1029, %v1670
    %v1988 = vmul.f32 %v1034, %v1675
    %v1989 = vmul.f32 %v1039, %v1680
    %v1990 = vmul.f32 %v1044, %v1685
    %v1991 = vmul.f32 %v1049, %v1690
    %v1992 = vmul.f32 %v1054, %v1695
    %v1993 = vmul.f32 %v1059, %v1700
    %v1994 = vmul.f32 %v1064, %v1705
    %v1995 = vmul.f32 %v1069, %v1710
    %v1996 = vmul.f32 %v1074, %v1715
    %v1997 = vmul.f32 %v1079, %v1720
    %v1998 = vmul.f32 %v1084, %v1725
    %v1999 = vmul.f32 %v1089, %v1730
    %v2000 = vmul.f32 %v1094, %v1735
    %v2001 = vmul.f32 %v1099, %v1740
    %v2002 = vmul.f32 %v1104, %v1745
    %v2003 = vmul.f32 %v1109, %v1750
    %v2004 = vmul.f32 %v1114, %v1755
    %v2005 = vmul.f32 %v1119, %v1760
    %v2006 = vmul.f32 %v1124, %v1765
    %v2007 = vmul.f32 %v1129, %v1770
    %v2008 = vmul.f32 %v1134, %v1775
    %v2009 = vmul.f32 %v1139, %v1780
    %v2010 = vmul.f32 %v1144, %v1785
    %v2011 = vmul.f32 %v1149, %v1790
    %v2012 = vmul.f32 %v1154, %v1795
    %v2013 = vmul.f32 %v1159, %v1800
    %v2014 = vmul.f32 %v1164, %v1805
    %v2015 = vmul.f32 %v1169, %v1810
    %v2016 = vmul.f32 %v1174, %v1815
    %v2017 = vmul.f32 %v1179, %v1820
    %v2018 = vmul.f32 %v1184, %v1825
    %v2019 = vmul.f32 %v1189, %v1830
    %v2020 = vmul.f32 %v1194, %v1835
    %v2021 = vmul.f32 %v1199, %v1840
    %v2022 = vmul.f32 %v1204, %v1845
    %v2023 = vmul.f32 %v1209, %v1850
    %v2024 = vmul.f32 %v1214, %v1855
    %v2025 = vmul.f32 %v1219, %v1860
    %v2026 = vmul.f32 %v1224, %v1865
    %v2027 = vmul.f32 %v1229, %v1870
    %v2028 = vmul.f32 %v1234, %v1875
    %v2029 = vmul.f32 %v1239, %v1880
    %v2030 = vmul.f32 %v1244, %v1885
    %v2031 = vmul.f32 %v1249, %v1890
    %v2032 = vmul.f32 %v1254, %v1895
    %v2033 = vmul.f32 %v1259, %v1900
    %v2034 = vmul.f32 %v1264, %v1905
    %v2035 = vld [vmem:[%s2] sm:$0x1]
    %v2036 = vlaneseq
    %v2037 = vshrl.u32 %v2036, 7
    %v2038 = vsub.s32 0, %v2037
    %v2039 = vrot.slane %v2035, %v2038
    %v2040 = vadd.f32 %v1907, %v2039
    %v2041 = vadd.f32 %v1908, %v2039
    %v2042 = vadd.f32 %v1909, %v2039
    %v2043 = vadd.f32 %v1910, %v2039
    %v2044 = vadd.f32 %v1911, %v2039
    %v2045 = vadd.f32 %v1912, %v2039
    %v2046 = vadd.f32 %v1913, %v2039
    %v2047 = vadd.f32 %v1914, %v2039
    %v2048 = vadd.f32 %v1915, %v2039
    %v2049 = vadd.f32 %v1916, %v2039
    %v2050 = vadd.f32 %v1917, %v2039
    %v2051 = vadd.f32 %v1918, %v2039
    %v2052 = vadd.f32 %v1919, %v2039
    %v2053 = vadd.f32 %v1920, %v2039
    %v2054 = vadd.f32 %v1921, %v2039
    %v2055 = vadd.f32 %v1922, %v2039
    %v2056 = vadd.f32 %v1923, %v2039
    %v2057 = vadd.f32 %v1924, %v2039
    %v2058 = vadd.f32 %v1925, %v2039
    %v2059 = vadd.f32 %v1926, %v2039
    %v2060 = vadd.f32 %v1927, %v2039
    %v2061 = vadd.f32 %v1928, %v2039
    %v2062 = vadd.f32 %v1929, %v2039
    %v2063 = vadd.f32 %v1930, %v2039
    %v2064 = vadd.f32 %v1931, %v2039
    %v2065 = vadd.f32 %v1932, %v2039
    %v2066 = vadd.f32 %v1933, %v2039
    %v2067 = vadd.f32 %v1934, %v2039
    %v2068 = vadd.f32 %v1935, %v2039
    %v2069 = vadd.f32 %v1936, %v2039
    %v2070 = vadd.f32 %v1937, %v2039
    %v2071 = vadd.f32 %v1938, %v2039
    %v2072 = vadd.f32 %v1939, %v2039
    %v2073 = vadd.f32 %v1940, %v2039
    %v2074 = vadd.f32 %v1941, %v2039
    %v2075 = vadd.f32 %v1942, %v2039
    %v2076 = vadd.f32 %v1943, %v2039
    %v2077 = vadd.f32 %v1944, %v2039
    %v2078 = vadd.f32 %v1945, %v2039
    %v2079 = vadd.f32 %v1946, %v2039
    %v2080 = vadd.f32 %v1947, %v2039
    %v2081 = vadd.f32 %v1948, %v2039
    %v2082 = vadd.f32 %v1949, %v2039
    %v2083 = vadd.f32 %v1950, %v2039
    %v2084 = vadd.f32 %v1951, %v2039
    %v2085 = vadd.f32 %v1952, %v2039
    %v2086 = vadd.f32 %v1953, %v2039
    %v2087 = vadd.f32 %v1954, %v2039
    %v2088 = vadd.f32 %v1955, %v2039
    %v2089 = vadd.f32 %v1956, %v2039
    %v2090 = vadd.f32 %v1957, %v2039
    %v2091 = vadd.f32 %v1958, %v2039
    %v2092 = vadd.f32 %v1959, %v2039
    %v2093 = vadd.f32 %v1960, %v2039
    %v2094 = vadd.f32 %v1961, %v2039
    %v2095 = vadd.f32 %v1962, %v2039
    %v2096 = vadd.f32 %v1963, %v2039
    %v2097 = vadd.f32 %v1964, %v2039
    %v2098 = vadd.f32 %v1965, %v2039
    %v2099 = vadd.f32 %v1966, %v2039
    %v2100 = vadd.f32 %v1967, %v2039
    %v2101 = vadd.f32 %v1968, %v2039
    %v2102 = vadd.f32 %v1969, %v2039
    %v2103 = vadd.f32 %v1970, %v2039
    %v2104 = vadd.f32 %v1971, %v2039
    %v2105 = vadd.f32 %v1972, %v2039
    %v2106 = vadd.f32 %v1973, %v2039
    %v2107 = vadd.f32 %v1974, %v2039
    %v2108 = vadd.f32 %v1975, %v2039
    %v2109 = vadd.f32 %v1976, %v2039
    %v2110 = vadd.f32 %v1977, %v2039
    %v2111 = vadd.f32 %v1978, %v2039
    %v2112 = vadd.f32 %v1979, %v2039
    %v2113 = vadd.f32 %v1980, %v2039
    %v2114 = vadd.f32 %v1981, %v2039
    %v2115 = vadd.f32 %v1982, %v2039
    %v2116 = vadd.f32 %v1983, %v2039
    %v2117 = vadd.f32 %v1984, %v2039
    %v2118 = vadd.f32 %v1985, %v2039
    %v2119 = vadd.f32 %v1986, %v2039
    %v2120 = vadd.f32 %v1987, %v2039
    %v2121 = vadd.f32 %v1988, %v2039
    %v2122 = vadd.f32 %v1989, %v2039
    %v2123 = vadd.f32 %v1990, %v2039
    %v2124 = vadd.f32 %v1991, %v2039
    %v2125 = vadd.f32 %v1992, %v2039
    %v2126 = vadd.f32 %v1993, %v2039
    %v2127 = vadd.f32 %v1994, %v2039
    %v2128 = vadd.f32 %v1995, %v2039
    %v2129 = vadd.f32 %v1996, %v2039
    %v2130 = vadd.f32 %v1997, %v2039
    %v2131 = vadd.f32 %v1998, %v2039
    %v2132 = vadd.f32 %v1999, %v2039
    %v2133 = vadd.f32 %v2000, %v2039
    %v2134 = vadd.f32 %v2001, %v2039
    %v2135 = vadd.f32 %v2002, %v2039
    %v2136 = vadd.f32 %v2003, %v2039
    %v2137 = vadd.f32 %v2004, %v2039
    %v2138 = vadd.f32 %v2005, %v2039
    %v2139 = vadd.f32 %v2006, %v2039
    %v2140 = vadd.f32 %v2007, %v2039
    %v2141 = vadd.f32 %v2008, %v2039
    %v2142 = vadd.f32 %v2009, %v2039
    %v2143 = vadd.f32 %v2010, %v2039
    %v2144 = vadd.f32 %v2011, %v2039
    %v2145 = vadd.f32 %v2012, %v2039
    %v2146 = vadd.f32 %v2013, %v2039
    %v2147 = vadd.f32 %v2014, %v2039
    %v2148 = vadd.f32 %v2015, %v2039
    %v2149 = vadd.f32 %v2016, %v2039
    %v2150 = vadd.f32 %v2017, %v2039
    %v2151 = vadd.f32 %v2018, %v2039
    %v2152 = vadd.f32 %v2019, %v2039
    %v2153 = vadd.f32 %v2020, %v2039
    %v2154 = vadd.f32 %v2021, %v2039
    %v2155 = vadd.f32 %v2022, %v2039
    %v2156 = vadd.f32 %v2023, %v2039
    %v2157 = vadd.f32 %v2024, %v2039
    %v2158 = vadd.f32 %v2025, %v2039
    %v2159 = vadd.f32 %v2026, %v2039
    %v2160 = vadd.f32 %v2027, %v2039
    %v2161 = vadd.f32 %v2028, %v2039
    %v2162 = vadd.f32 %v2029, %v2039
    %v2163 = vadd.f32 %v2030, %v2039
    %v2164 = vadd.f32 %v2031, %v2039
    %v2165 = vadd.f32 %v2032, %v2039
    %v2166 = vadd.f32 %v2033, %v2039
    %v2167 = vadd.f32 %v2034, %v2039
    %v2168 = vadd.f32 %v2040, %v629
    %v2169 = vadd.f32 %v2041, %v634
    %v2170 = vadd.f32 %v2042, %v639
    %v2171 = vadd.f32 %v2043, %v644
    %v2172 = vadd.f32 %v2044, %v649
    %v2173 = vadd.f32 %v2045, %v654
    %v2174 = vadd.f32 %v2046, %v659
    %v2175 = vadd.f32 %v2047, %v664
    %v2176 = vadd.f32 %v2048, %v669
    %v2177 = vadd.f32 %v2049, %v674
    %v2178 = vadd.f32 %v2050, %v679
    %v2179 = vadd.f32 %v2051, %v684
    %v2180 = vadd.f32 %v2052, %v689
    %v2181 = vadd.f32 %v2053, %v694
    %v2182 = vadd.f32 %v2054, %v699
    %v2183 = vadd.f32 %v2055, %v704
    %v2184 = vadd.f32 %v2056, %v709
    %v2185 = vadd.f32 %v2057, %v714
    %v2186 = vadd.f32 %v2058, %v719
    %v2187 = vadd.f32 %v2059, %v724
    %v2188 = vadd.f32 %v2060, %v729
    %v2189 = vadd.f32 %v2061, %v734
    %v2190 = vadd.f32 %v2062, %v739
    %v2191 = vadd.f32 %v2063, %v744
    %v2192 = vadd.f32 %v2064, %v749
    %v2193 = vadd.f32 %v2065, %v754
    %v2194 = vadd.f32 %v2066, %v759
    %v2195 = vadd.f32 %v2067, %v764
    %v2196 = vadd.f32 %v2068, %v769
    %v2197 = vadd.f32 %v2069, %v774
    %v2198 = vadd.f32 %v2070, %v779
    %v2199 = vadd.f32 %v2071, %v784
    %v2200 = vadd.f32 %v2072, %v789
    %v2201 = vadd.f32 %v2073, %v794
    %v2202 = vadd.f32 %v2074, %v799
    %v2203 = vadd.f32 %v2075, %v804
    %v2204 = vadd.f32 %v2076, %v809
    %v2205 = vadd.f32 %v2077, %v814
    %v2206 = vadd.f32 %v2078, %v819
    %v2207 = vadd.f32 %v2079, %v824
    %v2208 = vadd.f32 %v2080, %v829
    %v2209 = vadd.f32 %v2081, %v834
    %v2210 = vadd.f32 %v2082, %v839
    %v2211 = vadd.f32 %v2083, %v844
    %v2212 = vadd.f32 %v2084, %v849
    %v2213 = vadd.f32 %v2085, %v854
    %v2214 = vadd.f32 %v2086, %v859
    %v2215 = vadd.f32 %v2087, %v864
    %v2216 = vadd.f32 %v2088, %v869
    %v2217 = vadd.f32 %v2089, %v874
    %v2218 = vadd.f32 %v2090, %v879
    %v2219 = vadd.f32 %v2091, %v884
    %v2220 = vadd.f32 %v2092, %v889
    %v2221 = vadd.f32 %v2093, %v894
    %v2222 = vadd.f32 %v2094, %v899
    %v2223 = vadd.f32 %v2095, %v904
    %v2224 = vadd.f32 %v2096, %v909
    %v2225 = vadd.f32 %v2097, %v914
    %v2226 = vadd.f32 %v2098, %v919
    %v2227 = vadd.f32 %v2099, %v924
    %v2228 = vadd.f32 %v2100, %v929
    %v2229 = vadd.f32 %v2101, %v934
    %v2230 = vadd.f32 %v2102, %v939
    %v2231 = vadd.f32 %v2103, %v944
    %v2232 = vadd.f32 %v2104, %v949
    %v2233 = vadd.f32 %v2105, %v954
    %v2234 = vadd.f32 %v2106, %v959
    %v2235 = vadd.f32 %v2107, %v964
    %v2236 = vadd.f32 %v2108, %v969
    %v2237 = vadd.f32 %v2109, %v974
    %v2238 = vadd.f32 %v2110, %v979
    %v2239 = vadd.f32 %v2111, %v984
    %v2240 = vadd.f32 %v2112, %v989
    %v2241 = vadd.f32 %v2113, %v994
    %v2242 = vadd.f32 %v2114, %v999
    %v2243 = vadd.f32 %v2115, %v1004
    %v2244 = vadd.f32 %v2116, %v1009
    %v2245 = vadd.f32 %v2117, %v1014
    %v2246 = vadd.f32 %v2118, %v1019
    %v2247 = vadd.f32 %v2119, %v1024
    %v2248 = vadd.f32 %v2120, %v1029
    %v2249 = vadd.f32 %v2121, %v1034
    %v2250 = vadd.f32 %v2122, %v1039
    %v2251 = vadd.f32 %v2123, %v1044
    %v2252 = vadd.f32 %v2124, %v1049
    %v2253 = vadd.f32 %v2125, %v1054
    %v2254 = vadd.f32 %v2126, %v1059
    %v2255 = vadd.f32 %v2127, %v1064
    %v2256 = vadd.f32 %v2128, %v1069
    %v2257 = vadd.f32 %v2129, %v1074
    %v2258 = vadd.f32 %v2130, %v1079
    %v2259 = vadd.f32 %v2131, %v1084
    %v2260 = vadd.f32 %v2132, %v1089
    %v2261 = vadd.f32 %v2133, %v1094
    %v2262 = vadd.f32 %v2134, %v1099
    %v2263 = vadd.f32 %v2135, %v1104
    %v2264 = vadd.f32 %v2136, %v1109
    %v2265 = vadd.f32 %v2137, %v1114
    %v2266 = vadd.f32 %v2138, %v1119
    %v2267 = vadd.f32 %v2139, %v1124
    %v2268 = vadd.f32 %v2140, %v1129
    %v2269 = vadd.f32 %v2141, %v1134
    %v2270 = vadd.f32 %v2142, %v1139
    %v2271 = vadd.f32 %v2143, %v1144
    %v2272 = vadd.f32 %v2144, %v1149
    %v2273 = vadd.f32 %v2145, %v1154
    %v2274 = vadd.f32 %v2146, %v1159
    %v2275 = vadd.f32 %v2147, %v1164
    %v2276 = vadd.f32 %v2148, %v1169
    %v2277 = vadd.f32 %v2149, %v1174
    %v2278 = vadd.f32 %v2150, %v1179
    %v2279 = vadd.f32 %v2151, %v1184
    %v2280 = vadd.f32 %v2152, %v1189
    %v2281 = vadd.f32 %v2153, %v1194
    %v2282 = vadd.f32 %v2154, %v1199
    %v2283 = vadd.f32 %v2155, %v1204
    %v2284 = vadd.f32 %v2156, %v1209
    %v2285 = vadd.f32 %v2157, %v1214
    %v2286 = vadd.f32 %v2158, %v1219
    %v2287 = vadd.f32 %v2159, %v1224
    %v2288 = vadd.f32 %v2160, %v1229
    %v2289 = vadd.f32 %v2161, %v1234
    %v2290 = vadd.f32 %v2162, %v1239
    %v2291 = vadd.f32 %v2163, %v1244
    %v2292 = vadd.f32 %v2164, %v1249
    %v2293 = vadd.f32 %v2165, %v1254
    %v2294 = vadd.f32 %v2166, %v1259
    %v2295 = vadd.f32 %v2167, %v1264
    %2297 = vset.pattern.permute.xlu0 1
    %2298 = vperm.xlu0 %2297, %v2168
    %v2299 = vpop.permute.xlu0 %2298
    %2302 = vset.pattern.permute.xlu0 1
    %2303 = vperm.xlu0 %2302, %v2169
    %v2304 = vpop.permute.xlu0 %2303
    %2307 = vset.pattern.permute.xlu0 1
    %2308 = vperm.xlu0 %2307, %v2170
    %v2309 = vpop.permute.xlu0 %2308
    %2312 = vset.pattern.permute.xlu0 1
    %2313 = vperm.xlu0 %2312, %v2171
    %v2314 = vpop.permute.xlu0 %2313
    %2317 = vset.pattern.permute.xlu0 1
    %2318 = vperm.xlu0 %2317, %v2172
    %v2319 = vpop.permute.xlu0 %2318
    %2322 = vset.pattern.permute.xlu0 1
    %2323 = vperm.xlu0 %2322, %v2173
    %v2324 = vpop.permute.xlu0 %2323
    %2327 = vset.pattern.permute.xlu0 1
    %2328 = vperm.xlu0 %2327, %v2174
    %v2329 = vpop.permute.xlu0 %2328
    %2332 = vset.pattern.permute.xlu0 1
    %2333 = vperm.xlu0 %2332, %v2175
    %v2334 = vpop.permute.xlu0 %2333
    %2337 = vset.pattern.permute.xlu0 1
    %2338 = vperm.xlu0 %2337, %v2176
    %v2339 = vpop.permute.xlu0 %2338
    %2342 = vset.pattern.permute.xlu0 1
    %2343 = vperm.xlu0 %2342, %v2177
    %v2344 = vpop.permute.xlu0 %2343
    %2347 = vset.pattern.permute.xlu0 1
    %2348 = vperm.xlu0 %2347, %v2178
    %v2349 = vpop.permute.xlu0 %2348
    %2352 = vset.pattern.permute.xlu0 1
    %2353 = vperm.xlu0 %2352, %v2179
    %v2354 = vpop.permute.xlu0 %2353
    %2357 = vset.pattern.permute.xlu0 1
    %2358 = vperm.xlu0 %2357, %v2180
    %v2359 = vpop.permute.xlu0 %2358
    %2362 = vset.pattern.permute.xlu0 1
    %2363 = vperm.xlu0 %2362, %v2181
    %v2364 = vpop.permute.xlu0 %2363
    %2367 = vset.pattern.permute.xlu0 1
    %2368 = vperm.xlu0 %2367, %v2182
    %v2369 = vpop.permute.xlu0 %2368
    %2372 = vset.pattern.permute.xlu0 1
    %2373 = vperm.xlu0 %2372, %v2183
    %v2374 = vpop.permute.xlu0 %2373
    %2377 = vset.pattern.permute.xlu0 1
    %2378 = vperm.xlu0 %2377, %v2184
    %v2379 = vpop.permute.xlu0 %2378
    %2382 = vset.pattern.permute.xlu0 1
    %2383 = vperm.xlu0 %2382, %v2185
    %v2384 = vpop.permute.xlu0 %2383
    %2387 = vset.pattern.permute.xlu0 1
    %2388 = vperm.xlu0 %2387, %v2186
    %v2389 = vpop.permute.xlu0 %2388
    %2392 = vset.pattern.permute.xlu0 1
    %2393 = vperm.xlu0 %2392, %v2187
    %v2394 = vpop.permute.xlu0 %2393
    %2397 = vset.pattern.permute.xlu0 1
    %2398 = vperm.xlu0 %2397, %v2188
    %v2399 = vpop.permute.xlu0 %2398
    %2402 = vset.pattern.permute.xlu0 1
    %2403 = vperm.xlu0 %2402, %v2189
    %v2404 = vpop.permute.xlu0 %2403
    %2407 = vset.pattern.permute.xlu0 1
    %2408 = vperm.xlu0 %2407, %v2190
    %v2409 = vpop.permute.xlu0 %2408
    %2412 = vset.pattern.permute.xlu0 1
    %2413 = vperm.xlu0 %2412, %v2191
    %v2414 = vpop.permute.xlu0 %2413
    %2417 = vset.pattern.permute.xlu0 1
    %2418 = vperm.xlu0 %2417, %v2192
    %v2419 = vpop.permute.xlu0 %2418
    %2422 = vset.pattern.permute.xlu0 1
    %2423 = vperm.xlu0 %2422, %v2193
    %v2424 = vpop.permute.xlu0 %2423
    %2427 = vset.pattern.permute.xlu0 1
    %2428 = vperm.xlu0 %2427, %v2194
    %v2429 = vpop.permute.xlu0 %2428
    %2432 = vset.pattern.permute.xlu0 1
    %2433 = vperm.xlu0 %2432, %v2195
    %v2434 = vpop.permute.xlu0 %2433
    %2437 = vset.pattern.permute.xlu0 1
    %2438 = vperm.xlu0 %2437, %v2196
    %v2439 = vpop.permute.xlu0 %2438
    %2442 = vset.pattern.permute.xlu0 1
    %2443 = vperm.xlu0 %2442, %v2197
    %v2444 = vpop.permute.xlu0 %2443
    %2447 = vset.pattern.permute.xlu0 1
    %2448 = vperm.xlu0 %2447, %v2198
    %v2449 = vpop.permute.xlu0 %2448
    %2452 = vset.pattern.permute.xlu0 1
    %2453 = vperm.xlu0 %2452, %v2199
    %v2454 = vpop.permute.xlu0 %2453
    %2457 = vset.pattern.permute.xlu0 1
    %2458 = vperm.xlu0 %2457, %v2200
    %v2459 = vpop.permute.xlu0 %2458
    %2462 = vset.pattern.permute.xlu0 1
    %2463 = vperm.xlu0 %2462, %v2201
    %v2464 = vpop.permute.xlu0 %2463
    %2467 = vset.pattern.permute.xlu0 1
    %2468 = vperm.xlu0 %2467, %v2202
    %v2469 = vpop.permute.xlu0 %2468
    %2472 = vset.pattern.permute.xlu0 1
    %2473 = vperm.xlu0 %2472, %v2203
    %v2474 = vpop.permute.xlu0 %2473
    %2477 = vset.pattern.permute.xlu0 1
    %2478 = vperm.xlu0 %2477, %v2204
    %v2479 = vpop.permute.xlu0 %2478
    %2482 = vset.pattern.permute.xlu0 1
    %2483 = vperm.xlu0 %2482, %v2205
    %v2484 = vpop.permute.xlu0 %2483
    %2487 = vset.pattern.permute.xlu0 1
    %2488 = vperm.xlu0 %2487, %v2206
    %v2489 = vpop.permute.xlu0 %2488
    %2492 = vset.pattern.permute.xlu0 1
    %2493 = vperm.xlu0 %2492, %v2207
    %v2494 = vpop.permute.xlu0 %2493
    %2497 = vset.pattern.permute.xlu0 1
    %2498 = vperm.xlu0 %2497, %v2208
    %v2499 = vpop.permute.xlu0 %2498
    %2502 = vset.pattern.permute.xlu0 1
    %2503 = vperm.xlu0 %2502, %v2209
    %v2504 = vpop.permute.xlu0 %2503
    %2507 = vset.pattern.permute.xlu0 1
    %2508 = vperm.xlu0 %2507, %v2210
    %v2509 = vpop.permute.xlu0 %2508
    %2512 = vset.pattern.permute.xlu0 1
    %2513 = vperm.xlu0 %2512, %v2211
    %v2514 = vpop.permute.xlu0 %2513
    %2517 = vset.pattern.permute.xlu0 1
    %2518 = vperm.xlu0 %2517, %v2212
    %v2519 = vpop.permute.xlu0 %2518
    %2522 = vset.pattern.permute.xlu0 1
    %2523 = vperm.xlu0 %2522, %v2213
    %v2524 = vpop.permute.xlu0 %2523
    %2527 = vset.pattern.permute.xlu0 1
    %2528 = vperm.xlu0 %2527, %v2214
    %v2529 = vpop.permute.xlu0 %2528
    %2532 = vset.pattern.permute.xlu0 1
    %2533 = vperm.xlu0 %2532, %v2215
    %v2534 = vpop.permute.xlu0 %2533
    %2537 = vset.pattern.permute.xlu0 1
    %2538 = vperm.xlu0 %2537, %v2216
    %v2539 = vpop.permute.xlu0 %2538
    %2542 = vset.pattern.permute.xlu0 1
    %2543 = vperm.xlu0 %2542, %v2217
    %v2544 = vpop.permute.xlu0 %2543
    %2547 = vset.pattern.permute.xlu0 1
    %2548 = vperm.xlu0 %2547, %v2218
    %v2549 = vpop.permute.xlu0 %2548
    %2552 = vset.pattern.permute.xlu0 1
    %2553 = vperm.xlu0 %2552, %v2219
    %v2554 = vpop.permute.xlu0 %2553
    %2557 = vset.pattern.permute.xlu0 1
    %2558 = vperm.xlu0 %2557, %v2220
    %v2559 = vpop.permute.xlu0 %2558
    %2562 = vset.pattern.permute.xlu0 1
    %2563 = vperm.xlu0 %2562, %v2221
    %v2564 = vpop.permute.xlu0 %2563
    %2567 = vset.pattern.permute.xlu0 1
    %2568 = vperm.xlu0 %2567, %v2222
    %v2569 = vpop.permute.xlu0 %2568
    %2572 = vset.pattern.permute.xlu0 1
    %2573 = vperm.xlu0 %2572, %v2223
    %v2574 = vpop.permute.xlu0 %2573
    %2577 = vset.pattern.permute.xlu0 1
    %2578 = vperm.xlu0 %2577, %v2224
    %v2579 = vpop.permute.xlu0 %2578
    %2582 = vset.pattern.permute.xlu0 1
    %2583 = vperm.xlu0 %2582, %v2225
    %v2584 = vpop.permute.xlu0 %2583
    %2587 = vset.pattern.permute.xlu0 1
    %2588 = vperm.xlu0 %2587, %v2226
    %v2589 = vpop.permute.xlu0 %2588
    %2592 = vset.pattern.permute.xlu0 1
    %2593 = vperm.xlu0 %2592, %v2227
    %v2594 = vpop.permute.xlu0 %2593
    %2597 = vset.pattern.permute.xlu0 1
    %2598 = vperm.xlu0 %2597, %v2228
    %v2599 = vpop.permute.xlu0 %2598
    %2602 = vset.pattern.permute.xlu0 1
    %2603 = vperm.xlu0 %2602, %v2229
    %v2604 = vpop.permute.xlu0 %2603
    %2607 = vset.pattern.permute.xlu0 1
    %2608 = vperm.xlu0 %2607, %v2230
    %v2609 = vpop.permute.xlu0 %2608
    %2612 = vset.pattern.permute.xlu0 1
    %2613 = vperm.xlu0 %2612, %v2231
    %v2614 = vpop.permute.xlu0 %2613
    %2617 = vset.pattern.permute.xlu0 1
    %2618 = vperm.xlu0 %2617, %v2232
    %v2619 = vpop.permute.xlu0 %2618
    %2622 = vset.pattern.permute.xlu0 1
    %2623 = vperm.xlu0 %2622, %v2233
    %v2624 = vpop.permute.xlu0 %2623
    %2627 = vset.pattern.permute.xlu0 1
    %2628 = vperm.xlu0 %2627, %v2234
    %v2629 = vpop.permute.xlu0 %2628
    %2632 = vset.pattern.permute.xlu0 1
    %2633 = vperm.xlu0 %2632, %v2235
    %v2634 = vpop.permute.xlu0 %2633
    %2637 = vset.pattern.permute.xlu0 1
    %2638 = vperm.xlu0 %2637, %v2236
    %v2639 = vpop.permute.xlu0 %2638
    %2642 = vset.pattern.permute.xlu0 1
    %2643 = vperm.xlu0 %2642, %v2237
    %v2644 = vpop.permute.xlu0 %2643
    %2647 = vset.pattern.permute.xlu0 1
    %2648 = vperm.xlu0 %2647, %v2238
    %v2649 = vpop.permute.xlu0 %2648
    %2652 = vset.pattern.permute.xlu0 1
    %2653 = vperm.xlu0 %2652, %v2239
    %v2654 = vpop.permute.xlu0 %2653
    %2657 = vset.pattern.permute.xlu0 1
    %2658 = vperm.xlu0 %2657, %v2240
    %v2659 = vpop.permute.xlu0 %2658
    %2662 = vset.pattern.permute.xlu0 1
    %2663 = vperm.xlu0 %2662, %v2241
    %v2664 = vpop.permute.xlu0 %2663
    %2667 = vset.pattern.permute.xlu0 1
    %2668 = vperm.xlu0 %2667, %v2242
    %v2669 = vpop.permute.xlu0 %2668
    %2672 = vset.pattern.permute.xlu0 1
    %2673 = vperm.xlu0 %2672, %v2243
    %v2674 = vpop.permute.xlu0 %2673
    %2677 = vset.pattern.permute.xlu0 1
    %2678 = vperm.xlu0 %2677, %v2244
    %v2679 = vpop.permute.xlu0 %2678
    %2682 = vset.pattern.permute.xlu0 1
    %2683 = vperm.xlu0 %2682, %v2245
    %v2684 = vpop.permute.xlu0 %2683
    %2687 = vset.pattern.permute.xlu0 1
    %2688 = vperm.xlu0 %2687, %v2246
    %v2689 = vpop.permute.xlu0 %2688
    %2692 = vset.pattern.permute.xlu0 1
    %2693 = vperm.xlu0 %2692, %v2247
    %v2694 = vpop.permute.xlu0 %2693
    %2697 = vset.pattern.permute.xlu0 1
    %2698 = vperm.xlu0 %2697, %v2248
    %v2699 = vpop.permute.xlu0 %2698
    %2702 = vset.pattern.permute.xlu0 1
    %2703 = vperm.xlu0 %2702, %v2249
    %v2704 = vpop.permute.xlu0 %2703
    %2707 = vset.pattern.permute.xlu0 1
    %2708 = vperm.xlu0 %2707, %v2250
    %v2709 = vpop.permute.xlu0 %2708
    %2712 = vset.pattern.permute.xlu0 1
    %2713 = vperm.xlu0 %2712, %v2251
    %v2714 = vpop.permute.xlu0 %2713
    %2717 = vset.pattern.permute.xlu0 1
    %2718 = vperm.xlu0 %2717, %v2252
    %v2719 = vpop.permute.xlu0 %2718
    %2722 = vset.pattern.permute.xlu0 1
    %2723 = vperm.xlu0 %2722, %v2253
    %v2724 = vpop.permute.xlu0 %2723
    %2727 = vset.pattern.permute.xlu0 1
    %2728 = vperm.xlu0 %2727, %v2254
    %v2729 = vpop.permute.xlu0 %2728
    %2732 = vset.pattern.permute.xlu0 1
    %2733 = vperm.xlu0 %2732, %v2255
    %v2734 = vpop.permute.xlu0 %2733
    %2737 = vset.pattern.permute.xlu0 1
    %2738 = vperm.xlu0 %2737, %v2256
    %v2739 = vpop.permute.xlu0 %2738
    %2742 = vset.pattern.permute.xlu0 1
    %2743 = vperm.xlu0 %2742, %v2257
    %v2744 = vpop.permute.xlu0 %2743
    %2747 = vset.pattern.permute.xlu0 1
    %2748 = vperm.xlu0 %2747, %v2258
    %v2749 = vpop.permute.xlu0 %2748
    %2752 = vset.pattern.permute.xlu0 1
    %2753 = vperm.xlu0 %2752, %v2259
    %v2754 = vpop.permute.xlu0 %2753
    %2757 = vset.pattern.permute.xlu0 1
    %2758 = vperm.xlu0 %2757, %v2260
    %v2759 = vpop.permute.xlu0 %2758
    %2762 = vset.pattern.permute.xlu0 1
    %2763 = vperm.xlu0 %2762, %v2261
    %v2764 = vpop.permute.xlu0 %2763
    %2767 = vset.pattern.permute.xlu0 1
    %2768 = vperm.xlu0 %2767, %v2262
    %v2769 = vpop.permute.xlu0 %2768
    %2772 = vset.pattern.permute.xlu0 1
    %2773 = vperm.xlu0 %2772, %v2263
    %v2774 = vpop.permute.xlu0 %2773
    %2777 = vset.pattern.permute.xlu0 1
    %2778 = vperm.xlu0 %2777, %v2264
    %v2779 = vpop.permute.xlu0 %2778
    %2782 = vset.pattern.permute.xlu0 1
    %2783 = vperm.xlu0 %2782, %v2265
    %v2784 = vpop.permute.xlu0 %2783
    %2787 = vset.pattern.permute.xlu0 1
    %2788 = vperm.xlu0 %2787, %v2266
    %v2789 = vpop.permute.xlu0 %2788
    %2792 = vset.pattern.permute.xlu0 1
    %2793 = vperm.xlu0 %2792, %v2267
    %v2794 = vpop.permute.xlu0 %2793
    %2797 = vset.pattern.permute.xlu0 1
    %2798 = vperm.xlu0 %2797, %v2268
    %v2799 = vpop.permute.xlu0 %2798
    %2802 = vset.pattern.permute.xlu0 1
    %2803 = vperm.xlu0 %2802, %v2269
    %v2804 = vpop.permute.xlu0 %2803
    %2807 = vset.pattern.permute.xlu0 1
    %2808 = vperm.xlu0 %2807, %v2270
    %v2809 = vpop.permute.xlu0 %2808
    %2812 = vset.pattern.permute.xlu0 1
    %2813 = vperm.xlu0 %2812, %v2271
    %v2814 = vpop.permute.xlu0 %2813
    %2817 = vset.pattern.permute.xlu0 1
    %2818 = vperm.xlu0 %2817, %v2272
    %v2819 = vpop.permute.xlu0 %2818
    %2822 = vset.pattern.permute.xlu0 1
    %2823 = vperm.xlu0 %2822, %v2273
    %v2824 = vpop.permute.xlu0 %2823
    %2827 = vset.pattern.permute.xlu0 1
    %2828 = vperm.xlu0 %2827, %v2274
    %v2829 = vpop.permute.xlu0 %2828
    %2832 = vset.pattern.permute.xlu0 1
    %2833 = vperm.xlu0 %2832, %v2275
    %v2834 = vpop.permute.xlu0 %2833
    %2837 = vset.pattern.permute.xlu0 1
    %2838 = vperm.xlu0 %2837, %v2276
    %v2839 = vpop.permute.xlu0 %2838
    %2842 = vset.pattern.permute.xlu0 1
    %2843 = vperm.xlu0 %2842, %v2277
    %v2844 = vpop.permute.xlu0 %2843
    %2847 = vset.pattern.permute.xlu0 1
    %2848 = vperm.xlu0 %2847, %v2278
    %v2849 = vpop.permute.xlu0 %2848
    %2852 = vset.pattern.permute.xlu0 1
    %2853 = vperm.xlu0 %2852, %v2279
    %v2854 = vpop.permute.xlu0 %2853
    %2857 = vset.pattern.permute.xlu0 1
    %2858 = vperm.xlu0 %2857, %v2280
    %v2859 = vpop.permute.xlu0 %2858
    %2862 = vset.pattern.permute.xlu0 1
    %2863 = vperm.xlu0 %2862, %v2281
    %v2864 = vpop.permute.xlu0 %2863
    %2867 = vset.pattern.permute.xlu0 1
    %2868 = vperm.xlu0 %2867, %v2282
    %v2869 = vpop.permute.xlu0 %2868
    %2872 = vset.pattern.permute.xlu0 1
    %2873 = vperm.xlu0 %2872, %v2283
    %v2874 = vpop.permute.xlu0 %2873
    %2877 = vset.pattern.permute.xlu0 1
    %2878 = vperm.xlu0 %2877, %v2284
    %v2879 = vpop.permute.xlu0 %2878
    %2882 = vset.pattern.permute.xlu0 1
    %2883 = vperm.xlu0 %2882, %v2285
    %v2884 = vpop.permute.xlu0 %2883
    %2887 = vset.pattern.permute.xlu0 1
    %2888 = vperm.xlu0 %2887, %v2286
    %v2889 = vpop.permute.xlu0 %2888
    %2892 = vset.pattern.permute.xlu0 1
    %2893 = vperm.xlu0 %2892, %v2287
    %v2894 = vpop.permute.xlu0 %2893
    %2897 = vset.pattern.permute.xlu0 1
    %2898 = vperm.xlu0 %2897, %v2288
    %v2899 = vpop.permute.xlu0 %2898
    %2902 = vset.pattern.permute.xlu0 1
    %2903 = vperm.xlu0 %2902, %v2289
    %v2904 = vpop.permute.xlu0 %2903
    %2907 = vset.pattern.permute.xlu0 1
    %2908 = vperm.xlu0 %2907, %v2290
    %v2909 = vpop.permute.xlu0 %2908
    %2912 = vset.pattern.permute.xlu0 1
    %2913 = vperm.xlu0 %2912, %v2291
    %v2914 = vpop.permute.xlu0 %2913
    %2917 = vset.pattern.permute.xlu0 1
    %2918 = vperm.xlu0 %2917, %v2292
    %v2919 = vpop.permute.xlu0 %2918
    %2922 = vset.pattern.permute.xlu0 1
    %2923 = vperm.xlu0 %2922, %v2293
    %v2924 = vpop.permute.xlu0 %2923
    %2927 = vset.pattern.permute.xlu0 1
    %2928 = vperm.xlu0 %2927, %v2294
    %v2929 = vpop.permute.xlu0 %2928
    %2932 = vset.pattern.permute.xlu0 1
    %2933 = vperm.xlu0 %2932, %v2295
    %v2934 = vpop.permute.xlu0 %2933
    %v2936 = vmul.f32 %v629, %v2299
    %v2937 = vmul.f32 %v634, %v2304
    %v2938 = vmul.f32 %v639, %v2309
    %v2939 = vmul.f32 %v644, %v2314
    %v2940 = vmul.f32 %v649, %v2319
    %v2941 = vmul.f32 %v654, %v2324
    %v2942 = vmul.f32 %v659, %v2329
    %v2943 = vmul.f32 %v664, %v2334
    %v2944 = vmul.f32 %v669, %v2339
    %v2945 = vmul.f32 %v674, %v2344
    %v2946 = vmul.f32 %v679, %v2349
    %v2947 = vmul.f32 %v684, %v2354
    %v2948 = vmul.f32 %v689, %v2359
    %v2949 = vmul.f32 %v694, %v2364
    %v2950 = vmul.f32 %v699, %v2369
    %v2951 = vmul.f32 %v704, %v2374
    %v2952 = vmul.f32 %v709, %v2379
    %v2953 = vmul.f32 %v714, %v2384
    %v2954 = vmul.f32 %v719, %v2389
    %v2955 = vmul.f32 %v724, %v2394
    %v2956 = vmul.f32 %v729, %v2399
    %v2957 = vmul.f32 %v734, %v2404
    %v2958 = vmul.f32 %v739, %v2409
    %v2959 = vmul.f32 %v744, %v2414
    %v2960 = vmul.f32 %v749, %v2419
    %v2961 = vmul.f32 %v754, %v2424
    %v2962 = vmul.f32 %v759, %v2429
    %v2963 = vmul.f32 %v764, %v2434
    %v2964 = vmul.f32 %v769, %v2439
    %v2965 = vmul.f32 %v774, %v2444
    %v2966 = vmul.f32 %v779, %v2449
    %v2967 = vmul.f32 %v784, %v2454
    %v2968 = vmul.f32 %v789, %v2459
    %v2969 = vmul.f32 %v794, %v2464
    %v2970 = vmul.f32 %v799, %v2469
    %v2971 = vmul.f32 %v804, %v2474
    %v2972 = vmul.f32 %v809, %v2479
    %v2973 = vmul.f32 %v814, %v2484
    %v2974 = vmul.f32 %v819, %v2489
    %v2975 = vmul.f32 %v824, %v2494
    %v2976 = vmul.f32 %v829, %v2499
    %v2977 = vmul.f32 %v834, %v2504
    %v2978 = vmul.f32 %v839, %v2509
    %v2979 = vmul.f32 %v844, %v2514
    %v2980 = vmul.f32 %v849, %v2519
    %v2981 = vmul.f32 %v854, %v2524
    %v2982 = vmul.f32 %v859, %v2529
    %v2983 = vmul.f32 %v864, %v2534
    %v2984 = vmul.f32 %v869, %v2539
    %v2985 = vmul.f32 %v874, %v2544
    %v2986 = vmul.f32 %v879, %v2549
    %v2987 = vmul.f32 %v884, %v2554
    %v2988 = vmul.f32 %v889, %v2559
    %v2989 = vmul.f32 %v894, %v2564
    %v2990 = vmul.f32 %v899, %v2569
    %v2991 = vmul.f32 %v904, %v2574
    %v2992 = vmul.f32 %v909, %v2579
    %v2993 = vmul.f32 %v914, %v2584
    %v2994 = vmul.f32 %v919, %v2589
    %v2995 = vmul.f32 %v924, %v2594
    %v2996 = vmul.f32 %v929, %v2599
    %v2997 = vmul.f32 %v934, %v2604
    %v2998 = vmul.f32 %v939, %v2609
    %v2999 = vmul.f32 %v944, %v2614
    %v3000 = vmul.f32 %v949, %v2619
    %v3001 = vmul.f32 %v954, %v2624
    %v3002 = vmul.f32 %v959, %v2629
    %v3003 = vmul.f32 %v964, %v2634
    %v3004 = vmul.f32 %v969, %v2639
    %v3005 = vmul.f32 %v974, %v2644
    %v3006 = vmul.f32 %v979, %v2649
    %v3007 = vmul.f32 %v984, %v2654
    %v3008 = vmul.f32 %v989, %v2659
    %v3009 = vmul.f32 %v994, %v2664
    %v3010 = vmul.f32 %v999, %v2669
    %v3011 = vmul.f32 %v1004, %v2674
    %v3012 = vmul.f32 %v1009, %v2679
    %v3013 = vmul.f32 %v1014, %v2684
    %v3014 = vmul.f32 %v1019, %v2689
    %v3015 = vmul.f32 %v1024, %v2694
    %v3016 = vmul.f32 %v1029, %v2699
    %v3017 = vmul.f32 %v1034, %v2704
    %v3018 = vmul.f32 %v1039, %v2709
    %v3019 = vmul.f32 %v1044, %v2714
    %v3020 = vmul.f32 %v1049, %v2719
    %v3021 = vmul.f32 %v1054, %v2724
    %v3022 = vmul.f32 %v1059, %v2729
    %v3023 = vmul.f32 %v1064, %v2734
    %v3024 = vmul.f32 %v1069, %v2739
    %v3025 = vmul.f32 %v1074, %v2744
    %v3026 = vmul.f32 %v1079, %v2749
    %v3027 = vmul.f32 %v1084, %v2754
    %v3028 = vmul.f32 %v1089, %v2759
    %v3029 = vmul.f32 %v1094, %v2764
    %v3030 = vmul.f32 %v1099, %v2769
    %v3031 = vmul.f32 %v1104, %v2774
    %v3032 = vmul.f32 %v1109, %v2779
    %v3033 = vmul.f32 %v1114, %v2784
    %v3034 = vmul.f32 %v1119, %v2789
    %v3035 = vmul.f32 %v1124, %v2794
    %v3036 = vmul.f32 %v1129, %v2799
    %v3037 = vmul.f32 %v1134, %v2804
    %v3038 = vmul.f32 %v1139, %v2809
    %v3039 = vmul.f32 %v1144, %v2814
    %v3040 = vmul.f32 %v1149, %v2819
    %v3041 = vmul.f32 %v1154, %v2824
    %v3042 = vmul.f32 %v1159, %v2829
    %v3043 = vmul.f32 %v1164, %v2834
    %v3044 = vmul.f32 %v1169, %v2839
    %v3045 = vmul.f32 %v1174, %v2844
    %v3046 = vmul.f32 %v1179, %v2849
    %v3047 = vmul.f32 %v1184, %v2854
    %v3048 = vmul.f32 %v1189, %v2859
    %v3049 = vmul.f32 %v1194, %v2864
    %v3050 = vmul.f32 %v1199, %v2869
    %v3051 = vmul.f32 %v1204, %v2874
    %v3052 = vmul.f32 %v1209, %v2879
    %v3053 = vmul.f32 %v1214, %v2884
    %v3054 = vmul.f32 %v1219, %v2889
    %v3055 = vmul.f32 %v1224, %v2894
    %v3056 = vmul.f32 %v1229, %v2899
    %v3057 = vmul.f32 %v1234, %v2904
    %v3058 = vmul.f32 %v1239, %v2909
    %v3059 = vmul.f32 %v1244, %v2914
    %v3060 = vmul.f32 %v1249, %v2919
    %v3061 = vmul.f32 %v1254, %v2924
    %v3062 = vmul.f32 %v1259, %v2929
    %v3063 = vmul.f32 %v1264, %v2934
    %v3064 = vld [vmem:[%s2 + $0x1] sm:$0x1]
    %v3065 = vlaneseq
    %v3066 = vshrl.u32 %v3065, 7
    %v3067 = vsub.s32 0, %v3066
    %v3068 = vrot.slane %v3064, %v3067
    %v3069 = vadd.f32 %v2936, %v3068
    %v3070 = vadd.f32 %v2937, %v3068
    %v3071 = vadd.f32 %v2938, %v3068
    %v3072 = vadd.f32 %v2939, %v3068
    %v3073 = vadd.f32 %v2940, %v3068
    %v3074 = vadd.f32 %v2941, %v3068
    %v3075 = vadd.f32 %v2942, %v3068
    %v3076 = vadd.f32 %v2943, %v3068
    %v3077 = vadd.f32 %v2944, %v3068
    %v3078 = vadd.f32 %v2945, %v3068
    %v3079 = vadd.f32 %v2946, %v3068
    %v3080 = vadd.f32 %v2947, %v3068
    %v3081 = vadd.f32 %v2948, %v3068
    %v3082 = vadd.f32 %v2949, %v3068
    %v3083 = vadd.f32 %v2950, %v3068
    %v3084 = vadd.f32 %v2951, %v3068
    %v3085 = vadd.f32 %v2952, %v3068
    %v3086 = vadd.f32 %v2953, %v3068
    %v3087 = vadd.f32 %v2954, %v3068
    %v3088 = vadd.f32 %v2955, %v3068
    %v3089 = vadd.f32 %v2956, %v3068
    %v3090 = vadd.f32 %v2957, %v3068
    %v3091 = vadd.f32 %v2958, %v3068
    %v3092 = vadd.f32 %v2959, %v3068
    %v3093 = vadd.f32 %v2960, %v3068
    %v3094 = vadd.f32 %v2961, %v3068
    %v3095 = vadd.f32 %v2962, %v3068
    %v3096 = vadd.f32 %v2963, %v3068
    %v3097 = vadd.f32 %v2964, %v3068
    %v3098 = vadd.f32 %v2965, %v3068
    %v3099 = vadd.f32 %v2966, %v3068
    %v3100 = vadd.f32 %v2967, %v3068
    %v3101 = vadd.f32 %v2968, %v3068
    %v3102 = vadd.f32 %v2969, %v3068
    %v3103 = vadd.f32 %v2970, %v3068
    %v3104 = vadd.f32 %v2971, %v3068
    %v3105 = vadd.f32 %v2972, %v3068
    %v3106 = vadd.f32 %v2973, %v3068
    %v3107 = vadd.f32 %v2974, %v3068
    %v3108 = vadd.f32 %v2975, %v3068
    %v3109 = vadd.f32 %v2976, %v3068
    %v3110 = vadd.f32 %v2977, %v3068
    %v3111 = vadd.f32 %v2978, %v3068
    %v3112 = vadd.f32 %v2979, %v3068
    %v3113 = vadd.f32 %v2980, %v3068
    %v3114 = vadd.f32 %v2981, %v3068
    %v3115 = vadd.f32 %v2982, %v3068
    %v3116 = vadd.f32 %v2983, %v3068
    %v3117 = vadd.f32 %v2984, %v3068
    %v3118 = vadd.f32 %v2985, %v3068
    %v3119 = vadd.f32 %v2986, %v3068
    %v3120 = vadd.f32 %v2987, %v3068
    %v3121 = vadd.f32 %v2988, %v3068
    %v3122 = vadd.f32 %v2989, %v3068
    %v3123 = vadd.f32 %v2990, %v3068
    %v3124 = vadd.f32 %v2991, %v3068
    %v3125 = vadd.f32 %v2992, %v3068
    %v3126 = vadd.f32 %v2993, %v3068
    %v3127 = vadd.f32 %v2994, %v3068
    %v3128 = vadd.f32 %v2995, %v3068
    %v3129 = vadd.f32 %v2996, %v3068
    %v3130 = vadd.f32 %v2997, %v3068
    %v3131 = vadd.f32 %v2998, %v3068
    %v3132 = vadd.f32 %v2999, %v3068
    %v3133 = vadd.f32 %v3000, %v3068
    %v3134 = vadd.f32 %v3001, %v3068
    %v3135 = vadd.f32 %v3002, %v3068
    %v3136 = vadd.f32 %v3003, %v3068
    %v3137 = vadd.f32 %v3004, %v3068
    %v3138 = vadd.f32 %v3005, %v3068
    %v3139 = vadd.f32 %v3006, %v3068
    %v3140 = vadd.f32 %v3007, %v3068
    %v3141 = vadd.f32 %v3008, %v3068
    %v3142 = vadd.f32 %v3009, %v3068
    %v3143 = vadd.f32 %v3010, %v3068
    %v3144 = vadd.f32 %v3011, %v3068
    %v3145 = vadd.f32 %v3012, %v3068
    %v3146 = vadd.f32 %v3013, %v3068
    %v3147 = vadd.f32 %v3014, %v3068
    %v3148 = vadd.f32 %v3015, %v3068
    %v3149 = vadd.f32 %v3016, %v3068
    %v3150 = vadd.f32 %v3017, %v3068
    %v3151 = vadd.f32 %v3018, %v3068
    %v3152 = vadd.f32 %v3019, %v3068
    %v3153 = vadd.f32 %v3020, %v3068
    %v3154 = vadd.f32 %v3021, %v3068
    %v3155 = vadd.f32 %v3022, %v3068
    %v3156 = vadd.f32 %v3023, %v3068
    %v3157 = vadd.f32 %v3024, %v3068
    %v3158 = vadd.f32 %v3025, %v3068
    %v3159 = vadd.f32 %v3026, %v3068
    %v3160 = vadd.f32 %v3027, %v3068
    %v3161 = vadd.f32 %v3028, %v3068
    %v3162 = vadd.f32 %v3029, %v3068
    %v3163 = vadd.f32 %v3030, %v3068
    %v3164 = vadd.f32 %v3031, %v3068
    %v3165 = vadd.f32 %v3032, %v3068
    %v3166 = vadd.f32 %v3033, %v3068
    %v3167 = vadd.f32 %v3034, %v3068
    %v3168 = vadd.f32 %v3035, %v3068
    %v3169 = vadd.f32 %v3036, %v3068
    %v3170 = vadd.f32 %v3037, %v3068
    %v3171 = vadd.f32 %v3038, %v3068
    %v3172 = vadd.f32 %v3039, %v3068
    %v3173 = vadd.f32 %v3040, %v3068
    %v3174 = vadd.f32 %v3041, %v3068
    %v3175 = vadd.f32 %v3042, %v3068
    %v3176 = vadd.f32 %v3043, %v3068
    %v3177 = vadd.f32 %v3044, %v3068
    %v3178 = vadd.f32 %v3045, %v3068
    %v3179 = vadd.f32 %v3046, %v3068
    %v3180 = vadd.f32 %v3047, %v3068
    %v3181 = vadd.f32 %v3048, %v3068
    %v3182 = vadd.f32 %v3049, %v3068
    %v3183 = vadd.f32 %v3050, %v3068
    %v3184 = vadd.f32 %v3051, %v3068
    %v3185 = vadd.f32 %v3052, %v3068
    %v3186 = vadd.f32 %v3053, %v3068
    %v3187 = vadd.f32 %v3054, %v3068
    %v3188 = vadd.f32 %v3055, %v3068
    %v3189 = vadd.f32 %v3056, %v3068
    %v3190 = vadd.f32 %v3057, %v3068
    %v3191 = vadd.f32 %v3058, %v3068
    %v3192 = vadd.f32 %v3059, %v3068
    %v3193 = vadd.f32 %v3060, %v3068
    %v3194 = vadd.f32 %v3061, %v3068
    %v3195 = vadd.f32 %v3062, %v3068
    %v3196 = vadd.f32 %v3063, %v3068
    %v3197 = vadd.f32 %v3069, %v2168
    %v3198 = vadd.f32 %v3070, %v2169
    %v3199 = vadd.f32 %v3071, %v2170
    %v3200 = vadd.f32 %v3072, %v2171
    %v3201 = vadd.f32 %v3073, %v2172
    %v3202 = vadd.f32 %v3074, %v2173
    %v3203 = vadd.f32 %v3075, %v2174
    %v3204 = vadd.f32 %v3076, %v2175
    %v3205 = vadd.f32 %v3077, %v2176
    %v3206 = vadd.f32 %v3078, %v2177
    %v3207 = vadd.f32 %v3079, %v2178
    %v3208 = vadd.f32 %v3080, %v2179
    %v3209 = vadd.f32 %v3081, %v2180
    %v3210 = vadd.f32 %v3082, %v2181
    %v3211 = vadd.f32 %v3083, %v2182
    %v3212 = vadd.f32 %v3084, %v2183
    %v3213 = vadd.f32 %v3085, %v2184
    %v3214 = vadd.f32 %v3086, %v2185
    %v3215 = vadd.f32 %v3087, %v2186
    %v3216 = vadd.f32 %v3088, %v2187
    %v3217 = vadd.f32 %v3089, %v2188
    %v3218 = vadd.f32 %v3090, %v2189
    %v3219 = vadd.f32 %v3091, %v2190
    %v3220 = vadd.f32 %v3092, %v2191
    %v3221 = vadd.f32 %v3093, %v2192
    %v3222 = vadd.f32 %v3094, %v2193
    %v3223 = vadd.f32 %v3095, %v2194
    %v3224 = vadd.f32 %v3096, %v2195
    %v3225 = vadd.f32 %v3097, %v2196
    %v3226 = vadd.f32 %v3098, %v2197
    %v3227 = vadd.f32 %v3099, %v2198
    %v3228 = vadd.f32 %v3100, %v2199
    %v3229 = vadd.f32 %v3101, %v2200
    %v3230 = vadd.f32 %v3102, %v2201
    %v3231 = vadd.f32 %v3103, %v2202
    %v3232 = vadd.f32 %v3104, %v2203
    %v3233 = vadd.f32 %v3105, %v2204
    %v3234 = vadd.f32 %v3106, %v2205
    %v3235 = vadd.f32 %v3107, %v2206
    %v3236 = vadd.f32 %v3108, %v2207
    %v3237 = vadd.f32 %v3109, %v2208
    %v3238 = vadd.f32 %v3110, %v2209
    %v3239 = vadd.f32 %v3111, %v2210
    %v3240 = vadd.f32 %v3112, %v2211
    %v3241 = vadd.f32 %v3113, %v2212
    %v3242 = vadd.f32 %v3114, %v2213
    %v3243 = vadd.f32 %v3115, %v2214
    %v3244 = vadd.f32 %v3116, %v2215
    %v3245 = vadd.f32 %v3117, %v2216
    %v3246 = vadd.f32 %v3118, %v2217
    %v3247 = vadd.f32 %v3119, %v2218
    %v3248 = vadd.f32 %v3120, %v2219
    %v3249 = vadd.f32 %v3121, %v2220
    %v3250 = vadd.f32 %v3122, %v2221
    %v3251 = vadd.f32 %v3123, %v2222
    %v3252 = vadd.f32 %v3124, %v2223
    %v3253 = vadd.f32 %v3125, %v2224
    %v3254 = vadd.f32 %v3126, %v2225
    %v3255 = vadd.f32 %v3127, %v2226
    %v3256 = vadd.f32 %v3128, %v2227
    %v3257 = vadd.f32 %v3129, %v2228
    %v3258 = vadd.f32 %v3130, %v2229
    %v3259 = vadd.f32 %v3131, %v2230
    %v3260 = vadd.f32 %v3132, %v2231
    %v3261 = vadd.f32 %v3133, %v2232
    %v3262 = vadd.f32 %v3134, %v2233
    %v3263 = vadd.f32 %v3135, %v2234
    %v3264 = vadd.f32 %v3136, %v2235
    %v3265 = vadd.f32 %v3137, %v2236
    %v3266 = vadd.f32 %v3138, %v2237
    %v3267 = vadd.f32 %v3139, %v2238
    %v3268 = vadd.f32 %v3140, %v2239
    %v3269 = vadd.f32 %v3141, %v2240
    %v3270 = vadd.f32 %v3142, %v2241
    %v3271 = vadd.f32 %v3143, %v2242
    %v3272 = vadd.f32 %v3144, %v2243
    %v3273 = vadd.f32 %v3145, %v2244
    %v3274 = vadd.f32 %v3146, %v2245
    %v3275 = vadd.f32 %v3147, %v2246
    %v3276 = vadd.f32 %v3148, %v2247
    %v3277 = vadd.f32 %v3149, %v2248
    %v3278 = vadd.f32 %v3150, %v2249
    %v3279 = vadd.f32 %v3151, %v2250
    %v3280 = vadd.f32 %v3152, %v2251
    %v3281 = vadd.f32 %v3153, %v2252
    %v3282 = vadd.f32 %v3154, %v2253
    %v3283 = vadd.f32 %v3155, %v2254
    %v3284 = vadd.f32 %v3156, %v2255
    %v3285 = vadd.f32 %v3157, %v2256
    %v3286 = vadd.f32 %v3158, %v2257
    %v3287 = vadd.f32 %v3159, %v2258
    %v3288 = vadd.f32 %v3160, %v2259
    %v3289 = vadd.f32 %v3161, %v2260
    %v3290 = vadd.f32 %v3162, %v2261
    %v3291 = vadd.f32 %v3163, %v2262
    %v3292 = vadd.f32 %v3164, %v2263
    %v3293 = vadd.f32 %v3165, %v2264
    %v3294 = vadd.f32 %v3166, %v2265
    %v3295 = vadd.f32 %v3167, %v2266
    %v3296 = vadd.f32 %v3168, %v2267
    %v3297 = vadd.f32 %v3169, %v2268
    %v3298 = vadd.f32 %v3170, %v2269
    %v3299 = vadd.f32 %v3171, %v2270
    %v3300 = vadd.f32 %v3172, %v2271
    %v3301 = vadd.f32 %v3173, %v2272
    %v3302 = vadd.f32 %v3174, %v2273
    %v3303 = vadd.f32 %v3175, %v2274
    %v3304 = vadd.f32 %v3176, %v2275
    %v3305 = vadd.f32 %v3177, %v2276
    %v3306 = vadd.f32 %v3178, %v2277
    %v3307 = vadd.f32 %v3179, %v2278
    %v3308 = vadd.f32 %v3180, %v2279
    %v3309 = vadd.f32 %v3181, %v2280
    %v3310 = vadd.f32 %v3182, %v2281
    %v3311 = vadd.f32 %v3183, %v2282
    %v3312 = vadd.f32 %v3184, %v2283
    %v3313 = vadd.f32 %v3185, %v2284
    %v3314 = vadd.f32 %v3186, %v2285
    %v3315 = vadd.f32 %v3187, %v2286
    %v3316 = vadd.f32 %v3188, %v2287
    %v3317 = vadd.f32 %v3189, %v2288
    %v3318 = vadd.f32 %v3190, %v2289
    %v3319 = vadd.f32 %v3191, %v2290
    %v3320 = vadd.f32 %v3192, %v2291
    %v3321 = vadd.f32 %v3193, %v2292
    %v3322 = vadd.f32 %v3194, %v2293
    %v3323 = vadd.f32 %v3195, %v2294
    %v3324 = vadd.f32 %v3196, %v2295
    %3326 = vset.pattern.permute.xlu0 2
    %3327 = vperm.xlu0 %3326, %v3197
    %v3328 = vpop.permute.xlu0 %3327
    %3331 = vset.pattern.permute.xlu0 2
    %3332 = vperm.xlu0 %3331, %v3198
    %v3333 = vpop.permute.xlu0 %3332
    %3336 = vset.pattern.permute.xlu0 2
    %3337 = vperm.xlu0 %3336, %v3199
    %v3338 = vpop.permute.xlu0 %3337
    %3341 = vset.pattern.permute.xlu0 2
    %3342 = vperm.xlu0 %3341, %v3200
    %v3343 = vpop.permute.xlu0 %3342
    %3346 = vset.pattern.permute.xlu0 2
    %3347 = vperm.xlu0 %3346, %v3201
    %v3348 = vpop.permute.xlu0 %3347
    %3351 = vset.pattern.permute.xlu0 2
    %3352 = vperm.xlu0 %3351, %v3202
    %v3353 = vpop.permute.xlu0 %3352
    %3356 = vset.pattern.permute.xlu0 2
    %3357 = vperm.xlu0 %3356, %v3203
    %v3358 = vpop.permute.xlu0 %3357
    %3361 = vset.pattern.permute.xlu0 2
    %3362 = vperm.xlu0 %3361, %v3204
    %v3363 = vpop.permute.xlu0 %3362
    %3366 = vset.pattern.permute.xlu0 2
    %3367 = vperm.xlu0 %3366, %v3205
    %v3368 = vpop.permute.xlu0 %3367
    %3371 = vset.pattern.permute.xlu0 2
    %3372 = vperm.xlu0 %3371, %v3206
    %v3373 = vpop.permute.xlu0 %3372
    %3376 = vset.pattern.permute.xlu0 2
    %3377 = vperm.xlu0 %3376, %v3207
    %v3378 = vpop.permute.xlu0 %3377
    %3381 = vset.pattern.permute.xlu0 2
    %3382 = vperm.xlu0 %3381, %v3208
    %v3383 = vpop.permute.xlu0 %3382
    %3386 = vset.pattern.permute.xlu0 2
    %3387 = vperm.xlu0 %3386, %v3209
    %v3388 = vpop.permute.xlu0 %3387
    %3391 = vset.pattern.permute.xlu0 2
    %3392 = vperm.xlu0 %3391, %v3210
    %v3393 = vpop.permute.xlu0 %3392
    %3396 = vset.pattern.permute.xlu0 2
    %3397 = vperm.xlu0 %3396, %v3211
    %v3398 = vpop.permute.xlu0 %3397
    %3401 = vset.pattern.permute.xlu0 2
    %3402 = vperm.xlu0 %3401, %v3212
    %v3403 = vpop.permute.xlu0 %3402
    %3406 = vset.pattern.permute.xlu0 2
    %3407 = vperm.xlu0 %3406, %v3213
    %v3408 = vpop.permute.xlu0 %3407
    %3411 = vset.pattern.permute.xlu0 2
    %3412 = vperm.xlu0 %3411, %v3214
    %v3413 = vpop.permute.xlu0 %3412
    %3416 = vset.pattern.permute.xlu0 2
    %3417 = vperm.xlu0 %3416, %v3215
    %v3418 = vpop.permute.xlu0 %3417
    %3421 = vset.pattern.permute.xlu0 2
    %3422 = vperm.xlu0 %3421, %v3216
    %v3423 = vpop.permute.xlu0 %3422
    %3426 = vset.pattern.permute.xlu0 2
    %3427 = vperm.xlu0 %3426, %v3217
    %v3428 = vpop.permute.xlu0 %3427
    %3431 = vset.pattern.permute.xlu0 2
    %3432 = vperm.xlu0 %3431, %v3218
    %v3433 = vpop.permute.xlu0 %3432
    %3436 = vset.pattern.permute.xlu0 2
    %3437 = vperm.xlu0 %3436, %v3219
    %v3438 = vpop.permute.xlu0 %3437
    %3441 = vset.pattern.permute.xlu0 2
    %3442 = vperm.xlu0 %3441, %v3220
    %v3443 = vpop.permute.xlu0 %3442
    %3446 = vset.pattern.permute.xlu0 2
    %3447 = vperm.xlu0 %3446, %v3221
    %v3448 = vpop.permute.xlu0 %3447
    %3451 = vset.pattern.permute.xlu0 2
    %3452 = vperm.xlu0 %3451, %v3222
    %v3453 = vpop.permute.xlu0 %3452
    %3456 = vset.pattern.permute.xlu0 2
    %3457 = vperm.xlu0 %3456, %v3223
    %v3458 = vpop.permute.xlu0 %3457
    %3461 = vset.pattern.permute.xlu0 2
    %3462 = vperm.xlu0 %3461, %v3224
    %v3463 = vpop.permute.xlu0 %3462
    %3466 = vset.pattern.permute.xlu0 2
    %3467 = vperm.xlu0 %3466, %v3225
    %v3468 = vpop.permute.xlu0 %3467
    %3471 = vset.pattern.permute.xlu0 2
    %3472 = vperm.xlu0 %3471, %v3226
    %v3473 = vpop.permute.xlu0 %3472
    %3476 = vset.pattern.permute.xlu0 2
    %3477 = vperm.xlu0 %3476, %v3227
    %v3478 = vpop.permute.xlu0 %3477
    %3481 = vset.pattern.permute.xlu0 2
    %3482 = vperm.xlu0 %3481, %v3228
    %v3483 = vpop.permute.xlu0 %3482
    %3486 = vset.pattern.permute.xlu0 2
    %3487 = vperm.xlu0 %3486, %v3229
    %v3488 = vpop.permute.xlu0 %3487
    %3491 = vset.pattern.permute.xlu0 2
    %3492 = vperm.xlu0 %3491, %v3230
    %v3493 = vpop.permute.xlu0 %3492
    %3496 = vset.pattern.permute.xlu0 2
    %3497 = vperm.xlu0 %3496, %v3231
    %v3498 = vpop.permute.xlu0 %3497
    %3501 = vset.pattern.permute.xlu0 2
    %3502 = vperm.xlu0 %3501, %v3232
    %v3503 = vpop.permute.xlu0 %3502
    %3506 = vset.pattern.permute.xlu0 2
    %3507 = vperm.xlu0 %3506, %v3233
    %v3508 = vpop.permute.xlu0 %3507
    %3511 = vset.pattern.permute.xlu0 2
    %3512 = vperm.xlu0 %3511, %v3234
    %v3513 = vpop.permute.xlu0 %3512
    %3516 = vset.pattern.permute.xlu0 2
    %3517 = vperm.xlu0 %3516, %v3235
    %v3518 = vpop.permute.xlu0 %3517
    %3521 = vset.pattern.permute.xlu0 2
    %3522 = vperm.xlu0 %3521, %v3236
    %v3523 = vpop.permute.xlu0 %3522
    %3526 = vset.pattern.permute.xlu0 2
    %3527 = vperm.xlu0 %3526, %v3237
    %v3528 = vpop.permute.xlu0 %3527
    %3531 = vset.pattern.permute.xlu0 2
    %3532 = vperm.xlu0 %3531, %v3238
    %v3533 = vpop.permute.xlu0 %3532
    %3536 = vset.pattern.permute.xlu0 2
    %3537 = vperm.xlu0 %3536, %v3239
    %v3538 = vpop.permute.xlu0 %3537
    %3541 = vset.pattern.permute.xlu0 2
    %3542 = vperm.xlu0 %3541, %v3240
    %v3543 = vpop.permute.xlu0 %3542
    %3546 = vset.pattern.permute.xlu0 2
    %3547 = vperm.xlu0 %3546, %v3241
    %v3548 = vpop.permute.xlu0 %3547
    %3551 = vset.pattern.permute.xlu0 2
    %3552 = vperm.xlu0 %3551, %v3242
    %v3553 = vpop.permute.xlu0 %3552
    %3556 = vset.pattern.permute.xlu0 2
    %3557 = vperm.xlu0 %3556, %v3243
    %v3558 = vpop.permute.xlu0 %3557
    %3561 = vset.pattern.permute.xlu0 2
    %3562 = vperm.xlu0 %3561, %v3244
    %v3563 = vpop.permute.xlu0 %3562
    %3566 = vset.pattern.permute.xlu0 2
    %3567 = vperm.xlu0 %3566, %v3245
    %v3568 = vpop.permute.xlu0 %3567
    %3571 = vset.pattern.permute.xlu0 2
    %3572 = vperm.xlu0 %3571, %v3246
    %v3573 = vpop.permute.xlu0 %3572
    %3576 = vset.pattern.permute.xlu0 2
    %3577 = vperm.xlu0 %3576, %v3247
    %v3578 = vpop.permute.xlu0 %3577
    %3581 = vset.pattern.permute.xlu0 2
    %3582 = vperm.xlu0 %3581, %v3248
    %v3583 = vpop.permute.xlu0 %3582
    %3586 = vset.pattern.permute.xlu0 2
    %3587 = vperm.xlu0 %3586, %v3249
    %v3588 = vpop.permute.xlu0 %3587
    %3591 = vset.pattern.permute.xlu0 2
    %3592 = vperm.xlu0 %3591, %v3250
    %v3593 = vpop.permute.xlu0 %3592
    %3596 = vset.pattern.permute.xlu0 2
    %3597 = vperm.xlu0 %3596, %v3251
    %v3598 = vpop.permute.xlu0 %3597
    %3601 = vset.pattern.permute.xlu0 2
    %3602 = vperm.xlu0 %3601, %v3252
    %v3603 = vpop.permute.xlu0 %3602
    %3606 = vset.pattern.permute.xlu0 2
    %3607 = vperm.xlu0 %3606, %v3253
    %v3608 = vpop.permute.xlu0 %3607
    %3611 = vset.pattern.permute.xlu0 2
    %3612 = vperm.xlu0 %3611, %v3254
    %v3613 = vpop.permute.xlu0 %3612
    %3616 = vset.pattern.permute.xlu0 2
    %3617 = vperm.xlu0 %3616, %v3255
    %v3618 = vpop.permute.xlu0 %3617
    %3621 = vset.pattern.permute.xlu0 2
    %3622 = vperm.xlu0 %3621, %v3256
    %v3623 = vpop.permute.xlu0 %3622
    %3626 = vset.pattern.permute.xlu0 2
    %3627 = vperm.xlu0 %3626, %v3257
    %v3628 = vpop.permute.xlu0 %3627
    %3631 = vset.pattern.permute.xlu0 2
    %3632 = vperm.xlu0 %3631, %v3258
    %v3633 = vpop.permute.xlu0 %3632
    %3636 = vset.pattern.permute.xlu0 2
    %3637 = vperm.xlu0 %3636, %v3259
    %v3638 = vpop.permute.xlu0 %3637
    %3641 = vset.pattern.permute.xlu0 2
    %3642 = vperm.xlu0 %3641, %v3260
    %v3643 = vpop.permute.xlu0 %3642
    %3646 = vset.pattern.permute.xlu0 2
    %3647 = vperm.xlu0 %3646, %v3261
    %v3648 = vpop.permute.xlu0 %3647
    %3651 = vset.pattern.permute.xlu0 2
    %3652 = vperm.xlu0 %3651, %v3262
    %v3653 = vpop.permute.xlu0 %3652
    %3656 = vset.pattern.permute.xlu0 2
    %3657 = vperm.xlu0 %3656, %v3263
    %v3658 = vpop.permute.xlu0 %3657
    %3661 = vset.pattern.permute.xlu0 2
    %3662 = vperm.xlu0 %3661, %v3264
    %v3663 = vpop.permute.xlu0 %3662
    %3666 = vset.pattern.permute.xlu0 2
    %3667 = vperm.xlu0 %3666, %v3265
    %v3668 = vpop.permute.xlu0 %3667
    %3671 = vset.pattern.permute.xlu0 2
    %3672 = vperm.xlu0 %3671, %v3266
    %v3673 = vpop.permute.xlu0 %3672
    %3676 = vset.pattern.permute.xlu0 2
    %3677 = vperm.xlu0 %3676, %v3267
    %v3678 = vpop.permute.xlu0 %3677
    %3681 = vset.pattern.permute.xlu0 2
    %3682 = vperm.xlu0 %3681, %v3268
    %v3683 = vpop.permute.xlu0 %3682
    %3686 = vset.pattern.permute.xlu0 2
    %3687 = vperm.xlu0 %3686, %v3269
    %v3688 = vpop.permute.xlu0 %3687
    %3691 = vset.pattern.permute.xlu0 2
    %3692 = vperm.xlu0 %3691, %v3270
    %v3693 = vpop.permute.xlu0 %3692
    %3696 = vset.pattern.permute.xlu0 2
    %3697 = vperm.xlu0 %3696, %v3271
    %v3698 = vpop.permute.xlu0 %3697
    %3701 = vset.pattern.permute.xlu0 2
    %3702 = vperm.xlu0 %3701, %v3272
    %v3703 = vpop.permute.xlu0 %3702
    %3706 = vset.pattern.permute.xlu0 2
    %3707 = vperm.xlu0 %3706, %v3273
    %v3708 = vpop.permute.xlu0 %3707
    %3711 = vset.pattern.permute.xlu0 2
    %3712 = vperm.xlu0 %3711, %v3274
    %v3713 = vpop.permute.xlu0 %3712
    %3716 = vset.pattern.permute.xlu0 2
    %3717 = vperm.xlu0 %3716, %v3275
    %v3718 = vpop.permute.xlu0 %3717
    %3721 = vset.pattern.permute.xlu0 2
    %3722 = vperm.xlu0 %3721, %v3276
    %v3723 = vpop.permute.xlu0 %3722
    %3726 = vset.pattern.permute.xlu0 2
    %3727 = vperm.xlu0 %3726, %v3277
    %v3728 = vpop.permute.xlu0 %3727
    %3731 = vset.pattern.permute.xlu0 2
    %3732 = vperm.xlu0 %3731, %v3278
    %v3733 = vpop.permute.xlu0 %3732
    %3736 = vset.pattern.permute.xlu0 2
    %3737 = vperm.xlu0 %3736, %v3279
    %v3738 = vpop.permute.xlu0 %3737
    %3741 = vset.pattern.permute.xlu0 2
    %3742 = vperm.xlu0 %3741, %v3280
    %v3743 = vpop.permute.xlu0 %3742
    %3746 = vset.pattern.permute.xlu0 2
    %3747 = vperm.xlu0 %3746, %v3281
    %v3748 = vpop.permute.xlu0 %3747
    %3751 = vset.pattern.permute.xlu0 2
    %3752 = vperm.xlu0 %3751, %v3282
    %v3753 = vpop.permute.xlu0 %3752
    %3756 = vset.pattern.permute.xlu0 2
    %3757 = vperm.xlu0 %3756, %v3283
    %v3758 = vpop.permute.xlu0 %3757
    %3761 = vset.pattern.permute.xlu0 2
    %3762 = vperm.xlu0 %3761, %v3284
    %v3763 = vpop.permute.xlu0 %3762
    %3766 = vset.pattern.permute.xlu0 2
    %3767 = vperm.xlu0 %3766, %v3285
    %v3768 = vpop.permute.xlu0 %3767
    %3771 = vset.pattern.permute.xlu0 2
    %3772 = vperm.xlu0 %3771, %v3286
    %v3773 = vpop.permute.xlu0 %3772
    %3776 = vset.pattern.permute.xlu0 2
    %3777 = vperm.xlu0 %3776, %v3287
    %v3778 = vpop.permute.xlu0 %3777
    %3781 = vset.pattern.permute.xlu0 2
    %3782 = vperm.xlu0 %3781, %v3288
    %v3783 = vpop.permute.xlu0 %3782
    %3786 = vset.pattern.permute.xlu0 2
    %3787 = vperm.xlu0 %3786, %v3289
    %v3788 = vpop.permute.xlu0 %3787
    %3791 = vset.pattern.permute.xlu0 2
    %3792 = vperm.xlu0 %3791, %v3290
    %v3793 = vpop.permute.xlu0 %3792
    %3796 = vset.pattern.permute.xlu0 2
    %3797 = vperm.xlu0 %3796, %v3291
    %v3798 = vpop.permute.xlu0 %3797
    %3801 = vset.pattern.permute.xlu0 2
    %3802 = vperm.xlu0 %3801, %v3292
    %v3803 = vpop.permute.xlu0 %3802
    %3806 = vset.pattern.permute.xlu0 2
    %3807 = vperm.xlu0 %3806, %v3293
    %v3808 = vpop.permute.xlu0 %3807
    %3811 = vset.pattern.permute.xlu0 2
    %3812 = vperm.xlu0 %3811, %v3294
    %v3813 = vpop.permute.xlu0 %3812
    %3816 = vset.pattern.permute.xlu0 2
    %3817 = vperm.xlu0 %3816, %v3295
    %v3818 = vpop.permute.xlu0 %3817
    %3821 = vset.pattern.permute.xlu0 2
    %3822 = vperm.xlu0 %3821, %v3296
    %v3823 = vpop.permute.xlu0 %3822
    %3826 = vset.pattern.permute.xlu0 2
    %3827 = vperm.xlu0 %3826, %v3297
    %v3828 = vpop.permute.xlu0 %3827
    %3831 = vset.pattern.permute.xlu0 2
    %3832 = vperm.xlu0 %3831, %v3298
    %v3833 = vpop.permute.xlu0 %3832
    %3836 = vset.pattern.permute.xlu0 2
    %3837 = vperm.xlu0 %3836, %v3299
    %v3838 = vpop.permute.xlu0 %3837
    %3841 = vset.pattern.permute.xlu0 2
    %3842 = vperm.xlu0 %3841, %v3300
    %v3843 = vpop.permute.xlu0 %3842
    %3846 = vset.pattern.permute.xlu0 2
    %3847 = vperm.xlu0 %3846, %v3301
    %v3848 = vpop.permute.xlu0 %3847
    %3851 = vset.pattern.permute.xlu0 2
    %3852 = vperm.xlu0 %3851, %v3302
    %v3853 = vpop.permute.xlu0 %3852
    %3856 = vset.pattern.permute.xlu0 2
    %3857 = vperm.xlu0 %3856, %v3303
    %v3858 = vpop.permute.xlu0 %3857
    %3861 = vset.pattern.permute.xlu0 2
    %3862 = vperm.xlu0 %3861, %v3304
    %v3863 = vpop.permute.xlu0 %3862
    %3866 = vset.pattern.permute.xlu0 2
    %3867 = vperm.xlu0 %3866, %v3305
    %v3868 = vpop.permute.xlu0 %3867
    %3871 = vset.pattern.permute.xlu0 2
    %3872 = vperm.xlu0 %3871, %v3306
    %v3873 = vpop.permute.xlu0 %3872
    %3876 = vset.pattern.permute.xlu0 2
    %3877 = vperm.xlu0 %3876, %v3307
    %v3878 = vpop.permute.xlu0 %3877
    %3881 = vset.pattern.permute.xlu0 2
    %3882 = vperm.xlu0 %3881, %v3308
    %v3883 = vpop.permute.xlu0 %3882
    %3886 = vset.pattern.permute.xlu0 2
    %3887 = vperm.xlu0 %3886, %v3309
    %v3888 = vpop.permute.xlu0 %3887
    %3891 = vset.pattern.permute.xlu0 2
    %3892 = vperm.xlu0 %3891, %v3310
    %v3893 = vpop.permute.xlu0 %3892
    %3896 = vset.pattern.permute.xlu0 2
    %3897 = vperm.xlu0 %3896, %v3311
    %v3898 = vpop.permute.xlu0 %3897
    %3901 = vset.pattern.permute.xlu0 2
    %3902 = vperm.xlu0 %3901, %v3312
    %v3903 = vpop.permute.xlu0 %3902
    %3906 = vset.pattern.permute.xlu0 2
    %3907 = vperm.xlu0 %3906, %v3313
    %v3908 = vpop.permute.xlu0 %3907
    %3911 = vset.pattern.permute.xlu0 2
    %3912 = vperm.xlu0 %3911, %v3314
    %v3913 = vpop.permute.xlu0 %3912
    %3916 = vset.pattern.permute.xlu0 2
    %3917 = vperm.xlu0 %3916, %v3315
    %v3918 = vpop.permute.xlu0 %3917
    %3921 = vset.pattern.permute.xlu0 2
    %3922 = vperm.xlu0 %3921, %v3316
    %v3923 = vpop.permute.xlu0 %3922
    %3926 = vset.pattern.permute.xlu0 2
    %3927 = vperm.xlu0 %3926, %v3317
    %v3928 = vpop.permute.xlu0 %3927
    %3931 = vset.pattern.permute.xlu0 2
    %3932 = vperm.xlu0 %3931, %v3318
    %v3933 = vpop.permute.xlu0 %3932
    %3936 = vset.pattern.permute.xlu0 2
    %3937 = vperm.xlu0 %3936, %v3319
    %v3938 = vpop.permute.xlu0 %3937
    %3941 = vset.pattern.permute.xlu0 2
    %3942 = vperm.xlu0 %3941, %v3320
    %v3943 = vpop.permute.xlu0 %3942
    %3946 = vset.pattern.permute.xlu0 2
    %3947 = vperm.xlu0 %3946, %v3321
    %v3948 = vpop.permute.xlu0 %3947
    %3951 = vset.pattern.permute.xlu0 2
    %3952 = vperm.xlu0 %3951, %v3322
    %v3953 = vpop.permute.xlu0 %3952
    %3956 = vset.pattern.permute.xlu0 2
    %3957 = vperm.xlu0 %3956, %v3323
    %v3958 = vpop.permute.xlu0 %3957
    %3961 = vset.pattern.permute.xlu0 2
    %3962 = vperm.xlu0 %3961, %v3324
    %v3963 = vpop.permute.xlu0 %3962
    %v3965 = vmul.f32 %v629, %v3328
    %v3966 = vmul.f32 %v634, %v3333
    %v3967 = vmul.f32 %v639, %v3338
    %v3968 = vmul.f32 %v644, %v3343
    %v3969 = vmul.f32 %v649, %v3348
    %v3970 = vmul.f32 %v654, %v3353
    %v3971 = vmul.f32 %v659, %v3358
    %v3972 = vmul.f32 %v664, %v3363
    %v3973 = vmul.f32 %v669, %v3368
    %v3974 = vmul.f32 %v674, %v3373
    %v3975 = vmul.f32 %v679, %v3378
    %v3976 = vmul.f32 %v684, %v3383
    %v3977 = vmul.f32 %v689, %v3388
    %v3978 = vmul.f32 %v694, %v3393
    %v3979 = vmul.f32 %v699, %v3398
    %v3980 = vmul.f32 %v704, %v3403
    %v3981 = vmul.f32 %v709, %v3408
    %v3982 = vmul.f32 %v714, %v3413
    %v3983 = vmul.f32 %v719, %v3418
    %v3984 = vmul.f32 %v724, %v3423
    %v3985 = vmul.f32 %v729, %v3428
    %v3986 = vmul.f32 %v734, %v3433
    %v3987 = vmul.f32 %v739, %v3438
    %v3988 = vmul.f32 %v744, %v3443
    %v3989 = vmul.f32 %v749, %v3448
    %v3990 = vmul.f32 %v754, %v3453
    %v3991 = vmul.f32 %v759, %v3458
    %v3992 = vmul.f32 %v764, %v3463
    %v3993 = vmul.f32 %v769, %v3468
    %v3994 = vmul.f32 %v774, %v3473
    %v3995 = vmul.f32 %v779, %v3478
    %v3996 = vmul.f32 %v784, %v3483
    %v3997 = vmul.f32 %v789, %v3488
    %v3998 = vmul.f32 %v794, %v3493
    %v3999 = vmul.f32 %v799, %v3498
    %v4000 = vmul.f32 %v804, %v3503
    %v4001 = vmul.f32 %v809, %v3508
    %v4002 = vmul.f32 %v814, %v3513
    %v4003 = vmul.f32 %v819, %v3518
    %v4004 = vmul.f32 %v824, %v3523
    %v4005 = vmul.f32 %v829, %v3528
    %v4006 = vmul.f32 %v834, %v3533
    %v4007 = vmul.f32 %v839, %v3538
    %v4008 = vmul.f32 %v844, %v3543
    %v4009 = vmul.f32 %v849, %v3548
    %v4010 = vmul.f32 %v854, %v3553
    %v4011 = vmul.f32 %v859, %v3558
    %v4012 = vmul.f32 %v864, %v3563
    %v4013 = vmul.f32 %v869, %v3568
    %v4014 = vmul.f32 %v874, %v3573
    %v4015 = vmul.f32 %v879, %v3578
    %v4016 = vmul.f32 %v884, %v3583
    %v4017 = vmul.f32 %v889, %v3588
    %v4018 = vmul.f32 %v894, %v3593
    %v4019 = vmul.f32 %v899, %v3598
    %v4020 = vmul.f32 %v904, %v3603
    %v4021 = vmul.f32 %v909, %v3608
    %v4022 = vmul.f32 %v914, %v3613
    %v4023 = vmul.f32 %v919, %v3618
    %v4024 = vmul.f32 %v924, %v3623
    %v4025 = vmul.f32 %v929, %v3628
    %v4026 = vmul.f32 %v934, %v3633
    %v4027 = vmul.f32 %v939, %v3638
    %v4028 = vmul.f32 %v944, %v3643
    %v4029 = vmul.f32 %v949, %v3648
    %v4030 = vmul.f32 %v954, %v3653
    %v4031 = vmul.f32 %v959, %v3658
    %v4032 = vmul.f32 %v964, %v3663
    %v4033 = vmul.f32 %v969, %v3668
    %v4034 = vmul.f32 %v974, %v3673
    %v4035 = vmul.f32 %v979, %v3678
    %v4036 = vmul.f32 %v984, %v3683
    %v4037 = vmul.f32 %v989, %v3688
    %v4038 = vmul.f32 %v994, %v3693
    %v4039 = vmul.f32 %v999, %v3698
    %v4040 = vmul.f32 %v1004, %v3703
    %v4041 = vmul.f32 %v1009, %v3708
    %v4042 = vmul.f32 %v1014, %v3713
    %v4043 = vmul.f32 %v1019, %v3718
    %v4044 = vmul.f32 %v1024, %v3723
    %v4045 = vmul.f32 %v1029, %v3728
    %v4046 = vmul.f32 %v1034, %v3733
    %v4047 = vmul.f32 %v1039, %v3738
    %v4048 = vmul.f32 %v1044, %v3743
    %v4049 = vmul.f32 %v1049, %v3748
    %v4050 = vmul.f32 %v1054, %v3753
    %v4051 = vmul.f32 %v1059, %v3758
    %v4052 = vmul.f32 %v1064, %v3763
    %v4053 = vmul.f32 %v1069, %v3768
    %v4054 = vmul.f32 %v1074, %v3773
    %v4055 = vmul.f32 %v1079, %v3778
    %v4056 = vmul.f32 %v1084, %v3783
    %v4057 = vmul.f32 %v1089, %v3788
    %v4058 = vmul.f32 %v1094, %v3793
    %v4059 = vmul.f32 %v1099, %v3798
    %v4060 = vmul.f32 %v1104, %v3803
    %v4061 = vmul.f32 %v1109, %v3808
    %v4062 = vmul.f32 %v1114, %v3813
    %v4063 = vmul.f32 %v1119, %v3818
    %v4064 = vmul.f32 %v1124, %v3823
    %v4065 = vmul.f32 %v1129, %v3828
    %v4066 = vmul.f32 %v1134, %v3833
    %v4067 = vmul.f32 %v1139, %v3838
    %v4068 = vmul.f32 %v1144, %v3843
    %v4069 = vmul.f32 %v1149, %v3848
    %v4070 = vmul.f32 %v1154, %v3853
    %v4071 = vmul.f32 %v1159, %v3858
    %v4072 = vmul.f32 %v1164, %v3863
    %v4073 = vmul.f32 %v1169, %v3868
    %v4074 = vmul.f32 %v1174, %v3873
    %v4075 = vmul.f32 %v1179, %v3878
    %v4076 = vmul.f32 %v1184, %v3883
    %v4077 = vmul.f32 %v1189, %v3888
    %v4078 = vmul.f32 %v1194, %v3893
    %v4079 = vmul.f32 %v1199, %v3898
    %v4080 = vmul.f32 %v1204, %v3903
    %v4081 = vmul.f32 %v1209, %v3908
    %v4082 = vmul.f32 %v1214, %v3913
    %v4083 = vmul.f32 %v1219, %v3918
    %v4084 = vmul.f32 %v1224, %v3923
    %v4085 = vmul.f32 %v1229, %v3928
    %v4086 = vmul.f32 %v1234, %v3933
    %v4087 = vmul.f32 %v1239, %v3938
    %v4088 = vmul.f32 %v1244, %v3943
    %v4089 = vmul.f32 %v1249, %v3948
    %v4090 = vmul.f32 %v1254, %v3953
    %v4091 = vmul.f32 %v1259, %v3958
    %v4092 = vmul.f32 %v1264, %v3963
    %v4093 = vld [vmem:[%s2 + $0x2] sm:$0x1]
    %v4094 = vlaneseq
    %v4095 = vshrl.u32 %v4094, 7
    %v4096 = vsub.s32 0, %v4095
    %v4097 = vrot.slane %v4093, %v4096
    %v4098 = vadd.f32 %v3965, %v4097
    %v4099 = vadd.f32 %v3966, %v4097
    %v4100 = vadd.f32 %v3967, %v4097
    %v4101 = vadd.f32 %v3968, %v4097
    %v4102 = vadd.f32 %v3969, %v4097
    %v4103 = vadd.f32 %v3970, %v4097
    %v4104 = vadd.f32 %v3971, %v4097
    %v4105 = vadd.f32 %v3972, %v4097
    %v4106 = vadd.f32 %v3973, %v4097
    %v4107 = vadd.f32 %v3974, %v4097
    %v4108 = vadd.f32 %v3975, %v4097
    %v4109 = vadd.f32 %v3976, %v4097
    %v4110 = vadd.f32 %v3977, %v4097
    %v4111 = vadd.f32 %v3978, %v4097
    %v4112 = vadd.f32 %v3979, %v4097
    %v4113 = vadd.f32 %v3980, %v4097
    %v4114 = vadd.f32 %v3981, %v4097
    %v4115 = vadd.f32 %v3982, %v4097
    %v4116 = vadd.f32 %v3983, %v4097
    %v4117 = vadd.f32 %v3984, %v4097
    %v4118 = vadd.f32 %v3985, %v4097
    %v4119 = vadd.f32 %v3986, %v4097
    %v4120 = vadd.f32 %v3987, %v4097
    %v4121 = vadd.f32 %v3988, %v4097
    %v4122 = vadd.f32 %v3989, %v4097
    %v4123 = vadd.f32 %v3990, %v4097
    %v4124 = vadd.f32 %v3991, %v4097
    %v4125 = vadd.f32 %v3992, %v4097
    %v4126 = vadd.f32 %v3993, %v4097
    %v4127 = vadd.f32 %v3994, %v4097
    %v4128 = vadd.f32 %v3995, %v4097
    %v4129 = vadd.f32 %v3996, %v4097
    %v4130 = vadd.f32 %v3997, %v4097
    %v4131 = vadd.f32 %v3998, %v4097
    %v4132 = vadd.f32 %v3999, %v4097
    %v4133 = vadd.f32 %v4000, %v4097
    %v4134 = vadd.f32 %v4001, %v4097
    %v4135 = vadd.f32 %v4002, %v4097
    %v4136 = vadd.f32 %v4003, %v4097
    %v4137 = vadd.f32 %v4004, %v4097
    %v4138 = vadd.f32 %v4005, %v4097
    %v4139 = vadd.f32 %v4006, %v4097
    %v4140 = vadd.f32 %v4007, %v4097
    %v4141 = vadd.f32 %v4008, %v4097
    %v4142 = vadd.f32 %v4009, %v4097
    %v4143 = vadd.f32 %v4010, %v4097
    %v4144 = vadd.f32 %v4011, %v4097
    %v4145 = vadd.f32 %v4012, %v4097
    %v4146 = vadd.f32 %v4013, %v4097
    %v4147 = vadd.f32 %v4014, %v4097
    %v4148 = vadd.f32 %v4015, %v4097
    %v4149 = vadd.f32 %v4016, %v4097
    %v4150 = vadd.f32 %v4017, %v4097
    %v4151 = vadd.f32 %v4018, %v4097
    %v4152 = vadd.f32 %v4019, %v4097
    %v4153 = vadd.f32 %v4020, %v4097
    %v4154 = vadd.f32 %v4021, %v4097
    %v4155 = vadd.f32 %v4022, %v4097
    %v4156 = vadd.f32 %v4023, %v4097
    %v4157 = vadd.f32 %v4024, %v4097
    %v4158 = vadd.f32 %v4025, %v4097
    %v4159 = vadd.f32 %v4026, %v4097
    %v4160 = vadd.f32 %v4027, %v4097
    %v4161 = vadd.f32 %v4028, %v4097
    %v4162 = vadd.f32 %v4029, %v4097
    %v4163 = vadd.f32 %v4030, %v4097
    %v4164 = vadd.f32 %v4031, %v4097
    %v4165 = vadd.f32 %v4032, %v4097
    %v4166 = vadd.f32 %v4033, %v4097
    %v4167 = vadd.f32 %v4034, %v4097
    %v4168 = vadd.f32 %v4035, %v4097
    %v4169 = vadd.f32 %v4036, %v4097
    %v4170 = vadd.f32 %v4037, %v4097
    %v4171 = vadd.f32 %v4038, %v4097
    %v4172 = vadd.f32 %v4039, %v4097
    %v4173 = vadd.f32 %v4040, %v4097
    %v4174 = vadd.f32 %v4041, %v4097
    %v4175 = vadd.f32 %v4042, %v4097
    %v4176 = vadd.f32 %v4043, %v4097
    %v4177 = vadd.f32 %v4044, %v4097
    %v4178 = vadd.f32 %v4045, %v4097
    %v4179 = vadd.f32 %v4046, %v4097
    %v4180 = vadd.f32 %v4047, %v4097
    %v4181 = vadd.f32 %v4048, %v4097
    %v4182 = vadd.f32 %v4049, %v4097
    %v4183 = vadd.f32 %v4050, %v4097
    %v4184 = vadd.f32 %v4051, %v4097
    %v4185 = vadd.f32 %v4052, %v4097
    %v4186 = vadd.f32 %v4053, %v4097
    %v4187 = vadd.f32 %v4054, %v4097
    %v4188 = vadd.f32 %v4055, %v4097
    %v4189 = vadd.f32 %v4056, %v4097
    %v4190 = vadd.f32 %v4057, %v4097
    %v4191 = vadd.f32 %v4058, %v4097
    %v4192 = vadd.f32 %v4059, %v4097
    %v4193 = vadd.f32 %v4060, %v4097
    %v4194 = vadd.f32 %v4061, %v4097
    %v4195 = vadd.f32 %v4062, %v4097
    %v4196 = vadd.f32 %v4063, %v4097
    %v4197 = vadd.f32 %v4064, %v4097
    %v4198 = vadd.f32 %v4065, %v4097
    %v4199 = vadd.f32 %v4066, %v4097
    %v4200 = vadd.f32 %v4067, %v4097
    %v4201 = vadd.f32 %v4068, %v4097
    %v4202 = vadd.f32 %v4069, %v4097
    %v4203 = vadd.f32 %v4070, %v4097
    %v4204 = vadd.f32 %v4071, %v4097
    %v4205 = vadd.f32 %v4072, %v4097
    %v4206 = vadd.f32 %v4073, %v4097
    %v4207 = vadd.f32 %v4074, %v4097
    %v4208 = vadd.f32 %v4075, %v4097
    %v4209 = vadd.f32 %v4076, %v4097
    %v4210 = vadd.f32 %v4077, %v4097
    %v4211 = vadd.f32 %v4078, %v4097
    %v4212 = vadd.f32 %v4079, %v4097
    %v4213 = vadd.f32 %v4080, %v4097
    %v4214 = vadd.f32 %v4081, %v4097
    %v4215 = vadd.f32 %v4082, %v4097
    %v4216 = vadd.f32 %v4083, %v4097
    %v4217 = vadd.f32 %v4084, %v4097
    %v4218 = vadd.f32 %v4085, %v4097
    %v4219 = vadd.f32 %v4086, %v4097
    %v4220 = vadd.f32 %v4087, %v4097
    %v4221 = vadd.f32 %v4088, %v4097
    %v4222 = vadd.f32 %v4089, %v4097
    %v4223 = vadd.f32 %v4090, %v4097
    %v4224 = vadd.f32 %v4091, %v4097
    %v4225 = vadd.f32 %v4092, %v4097
    %v4226 = vadd.f32 %v4098, %v3197
    %v4227 = vadd.f32 %v4099, %v3198
    %v4228 = vadd.f32 %v4100, %v3199
    %v4229 = vadd.f32 %v4101, %v3200
    %v4230 = vadd.f32 %v4102, %v3201
    %v4231 = vadd.f32 %v4103, %v3202
    %v4232 = vadd.f32 %v4104, %v3203
    %v4233 = vadd.f32 %v4105, %v3204
    %v4234 = vadd.f32 %v4106, %v3205
    %v4235 = vadd.f32 %v4107, %v3206
    %v4236 = vadd.f32 %v4108, %v3207
    %v4237 = vadd.f32 %v4109, %v3208
    %v4238 = vadd.f32 %v4110, %v3209
    %v4239 = vadd.f32 %v4111, %v3210
    %v4240 = vadd.f32 %v4112, %v3211
    %v4241 = vadd.f32 %v4113, %v3212
    %v4242 = vadd.f32 %v4114, %v3213
    %v4243 = vadd.f32 %v4115, %v3214
    %v4244 = vadd.f32 %v4116, %v3215
    %v4245 = vadd.f32 %v4117, %v3216
    %v4246 = vadd.f32 %v4118, %v3217
    %v4247 = vadd.f32 %v4119, %v3218
    %v4248 = vadd.f32 %v4120, %v3219
    %v4249 = vadd.f32 %v4121, %v3220
    %v4250 = vadd.f32 %v4122, %v3221
    %v4251 = vadd.f32 %v4123, %v3222
    %v4252 = vadd.f32 %v4124, %v3223
    %v4253 = vadd.f32 %v4125, %v3224
    %v4254 = vadd.f32 %v4126, %v3225
    %v4255 = vadd.f32 %v4127, %v3226
    %v4256 = vadd.f32 %v4128, %v3227
    %v4257 = vadd.f32 %v4129, %v3228
    %v4258 = vadd.f32 %v4130, %v3229
    %v4259 = vadd.f32 %v4131, %v3230
    %v4260 = vadd.f32 %v4132, %v3231
    %v4261 = vadd.f32 %v4133, %v3232
    %v4262 = vadd.f32 %v4134, %v3233
    %v4263 = vadd.f32 %v4135, %v3234
    %v4264 = vadd.f32 %v4136, %v3235
    %v4265 = vadd.f32 %v4137, %v3236
    %v4266 = vadd.f32 %v4138, %v3237
    %v4267 = vadd.f32 %v4139, %v3238
    %v4268 = vadd.f32 %v4140, %v3239
    %v4269 = vadd.f32 %v4141, %v3240
    %v4270 = vadd.f32 %v4142, %v3241
    %v4271 = vadd.f32 %v4143, %v3242
    %v4272 = vadd.f32 %v4144, %v3243
    %v4273 = vadd.f32 %v4145, %v3244
    %v4274 = vadd.f32 %v4146, %v3245
    %v4275 = vadd.f32 %v4147, %v3246
    %v4276 = vadd.f32 %v4148, %v3247
    %v4277 = vadd.f32 %v4149, %v3248
    %v4278 = vadd.f32 %v4150, %v3249
    %v4279 = vadd.f32 %v4151, %v3250
    %v4280 = vadd.f32 %v4152, %v3251
    %v4281 = vadd.f32 %v4153, %v3252
    %v4282 = vadd.f32 %v4154, %v3253
    %v4283 = vadd.f32 %v4155, %v3254
    %v4284 = vadd.f32 %v4156, %v3255
    %v4285 = vadd.f32 %v4157, %v3256
    %v4286 = vadd.f32 %v4158, %v3257
    %v4287 = vadd.f32 %v4159, %v3258
    %v4288 = vadd.f32 %v4160, %v3259
    %v4289 = vadd.f32 %v4161, %v3260
    %v4290 = vadd.f32 %v4162, %v3261
    %v4291 = vadd.f32 %v4163, %v3262
    %v4292 = vadd.f32 %v4164, %v3263
    %v4293 = vadd.f32 %v4165, %v3264
    %v4294 = vadd.f32 %v4166, %v3265
    %v4295 = vadd.f32 %v4167, %v3266
    %v4296 = vadd.f32 %v4168, %v3267
    %v4297 = vadd.f32 %v4169, %v3268
    %v4298 = vadd.f32 %v4170, %v3269
    %v4299 = vadd.f32 %v4171, %v3270
    %v4300 = vadd.f32 %v4172, %v3271
    %v4301 = vadd.f32 %v4173, %v3272
    %v4302 = vadd.f32 %v4174, %v3273
    %v4303 = vadd.f32 %v4175, %v3274
    %v4304 = vadd.f32 %v4176, %v3275
    %v4305 = vadd.f32 %v4177, %v3276
    %v4306 = vadd.f32 %v4178, %v3277
    %v4307 = vadd.f32 %v4179, %v3278
    %v4308 = vadd.f32 %v4180, %v3279
    %v4309 = vadd.f32 %v4181, %v3280
    %v4310 = vadd.f32 %v4182, %v3281
    %v4311 = vadd.f32 %v4183, %v3282
    %v4312 = vadd.f32 %v4184, %v3283
    %v4313 = vadd.f32 %v4185, %v3284
    %v4314 = vadd.f32 %v4186, %v3285
    %v4315 = vadd.f32 %v4187, %v3286
    %v4316 = vadd.f32 %v4188, %v3287
    %v4317 = vadd.f32 %v4189, %v3288
    %v4318 = vadd.f32 %v4190, %v3289
    %v4319 = vadd.f32 %v4191, %v3290
    %v4320 = vadd.f32 %v4192, %v3291
    %v4321 = vadd.f32 %v4193, %v3292
    %v4322 = vadd.f32 %v4194, %v3293
    %v4323 = vadd.f32 %v4195, %v3294
    %v4324 = vadd.f32 %v4196, %v3295
    %v4325 = vadd.f32 %v4197, %v3296
    %v4326 = vadd.f32 %v4198, %v3297
    %v4327 = vadd.f32 %v4199, %v3298
    %v4328 = vadd.f32 %v4200, %v3299
    %v4329 = vadd.f32 %v4201, %v3300
    %v4330 = vadd.f32 %v4202, %v3301
    %v4331 = vadd.f32 %v4203, %v3302
    %v4332 = vadd.f32 %v4204, %v3303
    %v4333 = vadd.f32 %v4205, %v3304
    %v4334 = vadd.f32 %v4206, %v3305
    %v4335 = vadd.f32 %v4207, %v3306
    %v4336 = vadd.f32 %v4208, %v3307
    %v4337 = vadd.f32 %v4209, %v3308
    %v4338 = vadd.f32 %v4210, %v3309
    %v4339 = vadd.f32 %v4211, %v3310
    %v4340 = vadd.f32 %v4212, %v3311
    %v4341 = vadd.f32 %v4213, %v3312
    %v4342 = vadd.f32 %v4214, %v3313
    %v4343 = vadd.f32 %v4215, %v3314
    %v4344 = vadd.f32 %v4216, %v3315
    %v4345 = vadd.f32 %v4217, %v3316
    %v4346 = vadd.f32 %v4218, %v3317
    %v4347 = vadd.f32 %v4219, %v3318
    %v4348 = vadd.f32 %v4220, %v3319
    %v4349 = vadd.f32 %v4221, %v3320
    %v4350 = vadd.f32 %v4222, %v3321
    %v4351 = vadd.f32 %v4223, %v3322
    %v4352 = vadd.f32 %v4224, %v3323
    %v4353 = vadd.f32 %v4225, %v3324
    %v4354 = vpack.c.bf16 %v42, %v41
    %v4355 = vpack.c.bf16 %v44, %v43
    %v4356 = vpack.c.bf16 %v46, %v45
    %v4357 = vpack.c.bf16 %v48, %v47
    %v4358 = vpack.c.bf16 %v50, %v49
    %v4359 = vpack.c.bf16 %v52, %v51
    %v4360 = vpack.c.bf16 %v54, %v53
    %v4361 = vpack.c.bf16 %v56, %v55
    %v4362 = vpack.c.bf16 %v58, %v57
    %v4363 = vpack.c.bf16 %v60, %v59
    %v4364 = vpack.c.bf16 %v62, %v61
    %v4365 = vpack.c.bf16 %v64, %v63
    %v4366 = vpack.c.bf16 %v66, %v65
    %v4367 = vpack.c.bf16 %v68, %v67
    %v4368 = vpack.c.bf16 %v70, %v69
    %v4369 = vpack.c.bf16 %v72, %v71
    %v4370 = vpack.c.bf16 %v74, %v73
    %v4371 = vpack.c.bf16 %v76, %v75
    %v4372 = vpack.c.bf16 %v78, %v77
    %v4373 = vpack.c.bf16 %v80, %v79
    %v4374 = vpack.c.bf16 %v82, %v81
    %v4375 = vpack.c.bf16 %v84, %v83
    %v4376 = vpack.c.bf16 %v86, %v85
    %v4377 = vpack.c.bf16 %v88, %v87
    %v4378 = vpack.c.bf16 %v90, %v89
    %v4379 = vpack.c.bf16 %v92, %v91
    %v4380 = vpack.c.bf16 %v94, %v93
    %v4381 = vpack.c.bf16 %v96, %v95
    %v4382 = vpack.c.bf16 %v98, %v97
    %v4383 = vpack.c.bf16 %v100, %v99
    %v4384 = vpack.c.bf16 %v102, %v101
    %v4385 = vpack.c.bf16 %v104, %v103
    %v4386 = vpack.c.bf16 %v106, %v105
    %v4387 = vpack.c.bf16 %v108, %v107
    %v4388 = vpack.c.bf16 %v110, %v109
    %v4389 = vpack.c.bf16 %v112, %v111
    %v4390 = vpack.c.bf16 %v114, %v113
    %v4391 = vpack.c.bf16 %v116, %v115
    %v4392 = vpack.c.bf16 %v118, %v117
    %v4393 = vpack.c.bf16 %v120, %v119
    %v4394 = vpack.c.bf16 %v122, %v121
    %v4395 = vpack.c.bf16 %v124, %v123
    %v4396 = vpack.c.bf16 %v126, %v125
    %v4397 = vpack.c.bf16 %v128, %v127
    %v4398 = vpack.c.bf16 %v130, %v129
    %v4399 = vpack.c.bf16 %v132, %v131
    %v4400 = vpack.c.bf16 %v134, %v133
    %v4401 = vpack.c.bf16 %v136, %v135
    %v4402 = vpack.c.bf16 %v138, %v137
    %v4403 = vpack.c.bf16 %v140, %v139
    %v4404 = vpack.c.bf16 %v142, %v141
    %v4405 = vpack.c.bf16 %v144, %v143
    %v4406 = vpack.c.bf16 %v146, %v145
    %v4407 = vpack.c.bf16 %v148, %v147
    %v4408 = vpack.c.bf16 %v150, %v149
    %v4409 = vpack.c.bf16 %v152, %v151
    %v4410 = vpack.c.bf16 %v154, %v153
    %v4411 = vpack.c.bf16 %v156, %v155
    %v4412 = vpack.c.bf16 %v158, %v157
    %v4413 = vpack.c.bf16 %v160, %v159
    %v4414 = vpack.c.bf16 %v162, %v161
    %v4415 = vpack.c.bf16 %v164, %v163
    %v4416 = vpack.c.bf16 %v166, %v165
    %v4417 = vpack.c.bf16 %v168, %v167
    %v4418 = vld [vmem:[%s3] sm:$0xf]
    %v4419 = vld [vmem:[%s3 + $0x4] sm:$0xf]
    %v4420 = vld [vmem:[%s3 + $0x8] sm:$0xf]
    %v4421 = vld [vmem:[%s3 + $0xc] sm:$0xf]
    %v4422 = vld [vmem:[%s3 + $0x10] sm:$0xf]
    %v4423 = vld [vmem:[%s3 + $0x14] sm:$0xf]
    %v4424 = vld [vmem:[%s3 + $0x18] sm:$0xf]
    %v4425 = vld [vmem:[%s3 + $0x1c] sm:$0xf]
    %v4426 = vld [vmem:[%s4] sm:$0x1]
    %v4428 = vlaneseq
    %v4429 = vshrl.u32 %v4428, 7
    %v4430 = vsub.s32 0, %v4429
    %v4431 = vrot.slane %v4426, %v4430
    %v4441 = vunpack.c.l.b16 %v4418
    %v4442 = vunpack.c.l.b16 %v4419
    %v4443 = vunpack.c.l.b16 %v4420
    %v4444 = vunpack.c.l.b16 %v4421
    %v4445 = vunpack.c.l.b16 %v4422
    %v4446 = vunpack.c.l.b16 %v4423
    %v4447 = vunpack.c.l.b16 %v4424
    %v4448 = vunpack.c.l.b16 %v4425
    %v4449 = vpack.c.b16 %v4442, %v4441
    %v4450 = vpack.c.b16 %v4444, %v4443
    %v4451 = vpack.c.b16 %v4446, %v4445
    %v4452 = vpack.c.b16 %v4448, %v4447
    %v4458 = vsel %vm177, %v4354, 0
    %v4461 = vsel %vm177, %v4355, 0
    %v4464 = vsel %vm177, %v4356, 0
    %v4467 = vsel %vm177, %v4357, 0
    %v4470 = vsel %vm177, %v4358, 0
    %v4473 = vsel %vm177, %v4359, 0
    %v4476 = vsel %vm177, %v4360, 0
    %v4479 = vsel %vm177, %v4361, 0
    %v4482 = vsel %vm177, %v4362, 0
    %v4485 = vsel %vm177, %v4363, 0
    %v4488 = vsel %vm177, %v4364, 0
    %v4491 = vsel %vm177, %v4365, 0
    %v4494 = vsel %vm177, %v4366, 0
    %v4497 = vsel %vm177, %v4367, 0
    %v4500 = vsel %vm177, %v4368, 0
    %v4503 = vsel %vm177, %v4369, 0
    %v4506 = vsel %vm177, %v4370, 0
    %v4509 = vsel %vm177, %v4371, 0
    %v4512 = vsel %vm177, %v4372, 0
    %v4515 = vsel %vm177, %v4373, 0
    %v4518 = vsel %vm177, %v4374, 0
    %v4521 = vsel %vm177, %v4375, 0
    %v4524 = vsel %vm177, %v4376, 0
    %v4527 = vsel %vm177, %v4377, 0
    %v4530 = vsel %vm177, %v4378, 0
    %v4533 = vsel %vm177, %v4379, 0
    %v4536 = vsel %vm177, %v4380, 0
    %v4539 = vsel %vm177, %v4381, 0
    %v4542 = vsel %vm177, %v4382, 0
    %v4545 = vsel %vm177, %v4383, 0
    %v4548 = vsel %vm177, %v4384, 0
    %v4551 = vsel %vm177, %v4385, 0
    %v4554 = vsel %vm177, %v4386, 0
    %v4557 = vsel %vm177, %v4387, 0
    %v4560 = vsel %vm177, %v4388, 0
    %v4563 = vsel %vm177, %v4389, 0
    %v4566 = vsel %vm177, %v4390, 0
    %v4569 = vsel %vm177, %v4391, 0
    %v4572 = vsel %vm177, %v4392, 0
    %v4575 = vsel %vm177, %v4393, 0
    %v4578 = vsel %vm177, %v4394, 0
    %v4581 = vsel %vm177, %v4395, 0
    %v4584 = vsel %vm177, %v4396, 0
    %v4587 = vsel %vm177, %v4397, 0
    %v4590 = vsel %vm177, %v4398, 0
    %v4593 = vsel %vm177, %v4399, 0
    %v4596 = vsel %vm177, %v4400, 0
    %v4599 = vsel %vm177, %v4401, 0
    %v4602 = vsel %vm177, %v4402, 0
    %v4605 = vsel %vm177, %v4403, 0
    %v4608 = vsel %vm177, %v4404, 0
    %v4611 = vsel %vm177, %v4405, 0
    %v4614 = vsel %vm177, %v4406, 0
    %v4617 = vsel %vm177, %v4407, 0
    %v4620 = vsel %vm177, %v4408, 0
    %v4623 = vsel %vm177, %v4409, 0
    %v4626 = vsel %vm177, %v4410, 0
    %v4629 = vsel %vm177, %v4411, 0
    %v4632 = vsel %vm177, %v4412, 0
    %v4635 = vsel %vm177, %v4413, 0
    %v4638 = vsel %vm177, %v4414, 0
    %v4641 = vsel %vm177, %v4415, 0
    %v4644 = vsel %vm177, %v4416, 0
    %v4647 = vsel %vm177, %v4417, 0
    %4649 = vmatprep.subr.bf16.mxu0 0
    %4650 = vmatpush1.bf16.msra.mxu0 0
    %4651 = vmatprep.subr.bf16.mxu0 0
    %4652 = vmatpush1.bf16.msra.mxu0 0
    %4653 = vmatprep.subr.bf16.mxu0 0
    %4654 = vmatpush1.bf16.msra.mxu0 0
    %4655 = vmatprep.subr.bf16.mxu0 0
    %4656 = vmatpush1.bf16.msra.mxu0 0
    %4657 = vmatprep.subr.bf16.mxu0 0
    %4658 = vmatpush1.bf16.msra.mxu0 %v4452
    %4659 = vmatprep.subr.bf16.mxu0 0
    %4660 = vmatpush1.bf16.msra.mxu0 %v4451
    %4661 = vmatprep.subr.bf16.mxu0 0
    %4662 = vmatpush1.bf16.msra.mxu0 %v4450
    %4663 = vmatprep.subr.bf16.mxu0 0
    %4664 = vmatpush1.bf16.msra.mxu0 %v4449
    %4665 = vmatprep.subr.bf16.mxu0 0
    %4666 = vmatpush2.bf16.msra.mxu0 0
    %4667 = vmatprep.subr.bf16.mxu0 0
    %4668 = vmatpush2.bf16.msra.mxu0 0
    %4669 = vmatprep.subr.bf16.mxu0 0
    %4670 = vmatpush2.bf16.msra.mxu0 0
    %4671 = vmatprep.subr.bf16.mxu0 0
    %4672 = vmatpush2.bf16.msra.mxu0 0
    %4673 = vmatprep.subr.bf16.mxu0 0
    %4674 = vmatpush2.bf16.msra.mxu0 0
    %4675 = vmatprep.subr.bf16.mxu0 0
    %4676 = vmatpush2.bf16.msra.mxu0 0
    %4677 = vmatprep.subr.bf16.mxu0 0
    %4678 = vmatpush2.bf16.msra.mxu0 0
    %4679 = vmatprep.subr.bf16.mxu0 0
    %4680 = vmatpush2.bf16.msra.mxu0 0
    %4681 = vmatprep.mubr.bf16.mxu0 0
    %4682 = vmatmul.mubr.bf16.gmra.mxu0 %v4458
    %v4683 = vpop.f32.mrf.mxu0
    %v4684 = vadd.f32 %v4431, %v4683
    %v4685 = vpop.f32.mrf.mxu0
    %v4686 = vpop.f32.mrf.mxu0
    %v4687 = vadd.f32 %v4431, %v4686
    %v4688 = vpop.f32.mrf.mxu0
    %4689 = vmatprep.mubr.bf16.mxu0 0
    %4690 = vmatmul.mubr.bf16.gmra.mxu0 %v4461
    %v4691 = vpop.f32.mrf.mxu0
    %v4692 = vadd.f32 %v4431, %v4691
    %v4693 = vpop.f32.mrf.mxu0
    %v4694 = vpop.f32.mrf.mxu0
    %v4695 = vadd.f32 %v4431, %v4694
    %v4696 = vpop.f32.mrf.mxu0
    %4697 = vmatprep.mubr.bf16.mxu0 0
    %4698 = vmatmul.mubr.bf16.gmra.mxu0 %v4464
    %v4699 = vpop.f32.mrf.mxu0
    %v4700 = vadd.f32 %v4431, %v4699
    %v4701 = vpop.f32.mrf.mxu0
    %v4702 = vpop.f32.mrf.mxu0
    %v4703 = vadd.f32 %v4431, %v4702
    %v4704 = vpop.f32.mrf.mxu0
    %4705 = vmatprep.mubr.bf16.mxu0 0
    %4706 = vmatmul.mubr.bf16.gmra.mxu0 %v4467
    %v4707 = vpop.f32.mrf.mxu0
    %v4708 = vadd.f32 %v4431, %v4707
    %v4709 = vpop.f32.mrf.mxu0
    %v4710 = vpop.f32.mrf.mxu0
    %v4711 = vadd.f32 %v4431, %v4710
    %v4712 = vpop.f32.mrf.mxu0
    %4713 = vmatprep.mubr.bf16.mxu0 0
    %4714 = vmatmul.mubr.bf16.gmra.mxu0 %v4470
    %v4715 = vpop.f32.mrf.mxu0
    %v4716 = vadd.f32 %v4431, %v4715
    %v4717 = vpop.f32.mrf.mxu0
    %v4718 = vpop.f32.mrf.mxu0
    %v4719 = vadd.f32 %v4431, %v4718
    %v4720 = vpop.f32.mrf.mxu0
    %4721 = vmatprep.mubr.bf16.mxu0 0
    %4722 = vmatmul.mubr.bf16.gmra.mxu0 %v4473
    %v4723 = vpop.f32.mrf.mxu0
    %v4724 = vadd.f32 %v4431, %v4723
    %v4725 = vpop.f32.mrf.mxu0
    %v4726 = vpop.f32.mrf.mxu0
    %v4727 = vadd.f32 %v4431, %v4726
    %v4728 = vpop.f32.mrf.mxu0
    %4729 = vmatprep.mubr.bf16.mxu0 0
    %4730 = vmatmul.mubr.bf16.gmra.mxu0 %v4476
    %v4731 = vpop.f32.mrf.mxu0
    %v4732 = vadd.f32 %v4431, %v4731
    %v4733 = vpop.f32.mrf.mxu0
    %v4734 = vpop.f32.mrf.mxu0
    %v4735 = vadd.f32 %v4431, %v4734
    %v4736 = vpop.f32.mrf.mxu0
    %4737 = vmatprep.mubr.bf16.mxu0 0
    %4738 = vmatmul.mubr.bf16.gmra.mxu0 %v4479
    %v4739 = vpop.f32.mrf.mxu0
    %v4740 = vadd.f32 %v4431, %v4739
    %v4741 = vpop.f32.mrf.mxu0
    %v4742 = vpop.f32.mrf.mxu0
    %v4743 = vadd.f32 %v4431, %v4742
    %v4744 = vpop.f32.mrf.mxu0
    %4745 = vmatprep.mubr.bf16.mxu0 0
    %4746 = vmatmul.mubr.bf16.gmra.mxu0 %v4482
    %v4747 = vpop.f32.mrf.mxu0
    %v4748 = vadd.f32 %v4431, %v4747
    %v4749 = vpop.f32.mrf.mxu0
    %v4750 = vpop.f32.mrf.mxu0
    %v4751 = vadd.f32 %v4431, %v4750
    %v4752 = vpop.f32.mrf.mxu0
    %4753 = vmatprep.mubr.bf16.mxu0 0
    %4754 = vmatmul.mubr.bf16.gmra.mxu0 %v4485
    %v4755 = vpop.f32.mrf.mxu0
    %v4756 = vadd.f32 %v4431, %v4755
    %v4757 = vpop.f32.mrf.mxu0
    %v4758 = vpop.f32.mrf.mxu0
    %v4759 = vadd.f32 %v4431, %v4758
    %v4760 = vpop.f32.mrf.mxu0
    %4761 = vmatprep.mubr.bf16.mxu0 0
    %4762 = vmatmul.mubr.bf16.gmra.mxu0 %v4488
    %v4763 = vpop.f32.mrf.mxu0
    %v4764 = vadd.f32 %v4431, %v4763
    %v4765 = vpop.f32.mrf.mxu0
    %v4766 = vpop.f32.mrf.mxu0
    %v4767 = vadd.f32 %v4431, %v4766
    %v4768 = vpop.f32.mrf.mxu0
    %4769 = vmatprep.mubr.bf16.mxu0 0
    %4770 = vmatmul.mubr.bf16.gmra.mxu0 %v4491
    %v4771 = vpop.f32.mrf.mxu0
    %v4772 = vadd.f32 %v4431, %v4771
    %v4773 = vpop.f32.mrf.mxu0
    %v4774 = vpop.f32.mrf.mxu0
    %v4775 = vadd.f32 %v4431, %v4774
    %v4776 = vpop.f32.mrf.mxu0
    %4777 = vmatprep.mubr.bf16.mxu0 0
    %4778 = vmatmul.mubr.bf16.gmra.mxu0 %v4494
    %v4779 = vpop.f32.mrf.mxu0
    %v4780 = vadd.f32 %v4431, %v4779
    %v4781 = vpop.f32.mrf.mxu0
    %v4782 = vpop.f32.mrf.mxu0
    %v4783 = vadd.f32 %v4431, %v4782
    %v4784 = vpop.f32.mrf.mxu0
    %4785 = vmatprep.mubr.bf16.mxu0 0
    %4786 = vmatmul.mubr.bf16.gmra.mxu0 %v4497
    %v4787 = vpop.f32.mrf.mxu0
    %v4788 = vadd.f32 %v4431, %v4787
    %v4789 = vpop.f32.mrf.mxu0
    %v4790 = vpop.f32.mrf.mxu0
    %v4791 = vadd.f32 %v4431, %v4790
    %v4792 = vpop.f32.mrf.mxu0
    %4793 = vmatprep.mubr.bf16.mxu0 0
    %4794 = vmatmul.mubr.bf16.gmra.mxu0 %v4500
    %v4795 = vpop.f32.mrf.mxu0
    %v4796 = vadd.f32 %v4431, %v4795
    %v4797 = vpop.f32.mrf.mxu0
    %v4798 = vpop.f32.mrf.mxu0
    %v4799 = vadd.f32 %v4431, %v4798
    %v4800 = vpop.f32.mrf.mxu0
    %4801 = vmatprep.mubr.bf16.mxu0 0
    %4802 = vmatmul.mubr.bf16.gmra.mxu0 %v4503
    %v4803 = vpop.f32.mrf.mxu0
    %v4804 = vadd.f32 %v4431, %v4803
    %v4805 = vpop.f32.mrf.mxu0
    %v4806 = vpop.f32.mrf.mxu0
    %v4807 = vadd.f32 %v4431, %v4806
    %v4808 = vpop.f32.mrf.mxu0
    %4809 = vmatprep.mubr.bf16.mxu0 0
    %4810 = vmatmul.mubr.bf16.gmra.mxu0 %v4506
    %v4811 = vpop.f32.mrf.mxu0
    %v4812 = vadd.f32 %v4431, %v4811
    %v4813 = vpop.f32.mrf.mxu0
    %v4814 = vpop.f32.mrf.mxu0
    %v4815 = vadd.f32 %v4431, %v4814
    %v4816 = vpop.f32.mrf.mxu0
    %4817 = vmatprep.mubr.bf16.mxu0 0
    %4818 = vmatmul.mubr.bf16.gmra.mxu0 %v4509
    %v4819 = vpop.f32.mrf.mxu0
    %v4820 = vadd.f32 %v4431, %v4819
    %v4821 = vpop.f32.mrf.mxu0
    %v4822 = vpop.f32.mrf.mxu0
    %v4823 = vadd.f32 %v4431, %v4822
    %v4824 = vpop.f32.mrf.mxu0
    %4825 = vmatprep.mubr.bf16.mxu0 0
    %4826 = vmatmul.mubr.bf16.gmra.mxu0 %v4512
    %v4827 = vpop.f32.mrf.mxu0
    %v4828 = vadd.f32 %v4431, %v4827
    %v4829 = vpop.f32.mrf.mxu0
    %v4830 = vpop.f32.mrf.mxu0
    %v4831 = vadd.f32 %v4431, %v4830
    %v4832 = vpop.f32.mrf.mxu0
    %4833 = vmatprep.mubr.bf16.mxu0 0
    %4834 = vmatmul.mubr.bf16.gmra.mxu0 %v4515
    %v4835 = vpop.f32.mrf.mxu0
    %v4836 = vadd.f32 %v4431, %v4835
    %v4837 = vpop.f32.mrf.mxu0
    %v4838 = vpop.f32.mrf.mxu0
    %v4839 = vadd.f32 %v4431, %v4838
    %v4840 = vpop.f32.mrf.mxu0
    %4841 = vmatprep.mubr.bf16.mxu0 0
    %4842 = vmatmul.mubr.bf16.gmra.mxu0 %v4518
    %v4843 = vpop.f32.mrf.mxu0
    %v4844 = vadd.f32 %v4431, %v4843
    %v4845 = vpop.f32.mrf.mxu0
    %v4846 = vpop.f32.mrf.mxu0
    %v4847 = vadd.f32 %v4431, %v4846
    %v4848 = vpop.f32.mrf.mxu0
    %4849 = vmatprep.mubr.bf16.mxu0 0
    %4850 = vmatmul.mubr.bf16.gmra.mxu0 %v4521
    %v4851 = vpop.f32.mrf.mxu0
    %v4852 = vadd.f32 %v4431, %v4851
    %v4853 = vpop.f32.mrf.mxu0
    %v4854 = vpop.f32.mrf.mxu0
    %v4855 = vadd.f32 %v4431, %v4854
    %v4856 = vpop.f32.mrf.mxu0
    %4857 = vmatprep.mubr.bf16.mxu0 0
    %4858 = vmatmul.mubr.bf16.gmra.mxu0 %v4524
    %v4859 = vpop.f32.mrf.mxu0
    %v4860 = vadd.f32 %v4431, %v4859
    %v4861 = vpop.f32.mrf.mxu0
    %v4862 = vpop.f32.mrf.mxu0
    %v4863 = vadd.f32 %v4431, %v4862
    %v4864 = vpop.f32.mrf.mxu0
    %4865 = vmatprep.mubr.bf16.mxu0 0
    %4866 = vmatmul.mubr.bf16.gmra.mxu0 %v4527
    %v4867 = vpop.f32.mrf.mxu0
    %v4868 = vadd.f32 %v4431, %v4867
    %v4869 = vpop.f32.mrf.mxu0
    %v4870 = vpop.f32.mrf.mxu0
    %v4871 = vadd.f32 %v4431, %v4870
    %v4872 = vpop.f32.mrf.mxu0
    %4873 = vmatprep.mubr.bf16.mxu0 0
    %4874 = vmatmul.mubr.bf16.gmra.mxu0 %v4530
    %v4875 = vpop.f32.mrf.mxu0
    %v4876 = vadd.f32 %v4431, %v4875
    %v4877 = vpop.f32.mrf.mxu0
    %v4878 = vpop.f32.mrf.mxu0
    %v4879 = vadd.f32 %v4431, %v4878
    %v4880 = vpop.f32.mrf.mxu0
    %4881 = vmatprep.mubr.bf16.mxu0 0
    %4882 = vmatmul.mubr.bf16.gmra.mxu0 %v4533
    %v4883 = vpop.f32.mrf.mxu0
    %v4884 = vadd.f32 %v4431, %v4883
    %v4885 = vpop.f32.mrf.mxu0
    %v4886 = vpop.f32.mrf.mxu0
    %v4887 = vadd.f32 %v4431, %v4886
    %v4888 = vpop.f32.mrf.mxu0
    %4889 = vmatprep.mubr.bf16.mxu0 0
    %4890 = vmatmul.mubr.bf16.gmra.mxu0 %v4536
    %v4891 = vpop.f32.mrf.mxu0
    %v4892 = vadd.f32 %v4431, %v4891
    %v4893 = vpop.f32.mrf.mxu0
    %v4894 = vpop.f32.mrf.mxu0
    %v4895 = vadd.f32 %v4431, %v4894
    %v4896 = vpop.f32.mrf.mxu0
    %4897 = vmatprep.mubr.bf16.mxu0 0
    %4898 = vmatmul.mubr.bf16.gmra.mxu0 %v4539
    %v4899 = vpop.f32.mrf.mxu0
    %v4900 = vadd.f32 %v4431, %v4899
    %v4901 = vpop.f32.mrf.mxu0
    %v4902 = vpop.f32.mrf.mxu0
    %v4903 = vadd.f32 %v4431, %v4902
    %v4904 = vpop.f32.mrf.mxu0
    %4905 = vmatprep.mubr.bf16.mxu0 0
    %4906 = vmatmul.mubr.bf16.gmra.mxu0 %v4542
    %v4907 = vpop.f32.mrf.mxu0
    %v4908 = vadd.f32 %v4431, %v4907
    %v4909 = vpop.f32.mrf.mxu0
    %v4910 = vpop.f32.mrf.mxu0
    %v4911 = vadd.f32 %v4431, %v4910
    %v4912 = vpop.f32.mrf.mxu0
    %4913 = vmatprep.mubr.bf16.mxu0 0
    %4914 = vmatmul.mubr.bf16.gmra.mxu0 %v4545
    %v4915 = vpop.f32.mrf.mxu0
    %v4916 = vadd.f32 %v4431, %v4915
    %v4917 = vpop.f32.mrf.mxu0
    %v4918 = vpop.f32.mrf.mxu0
    %v4919 = vadd.f32 %v4431, %v4918
    %v4920 = vpop.f32.mrf.mxu0
    %4921 = vmatprep.mubr.bf16.mxu0 0
    %4922 = vmatmul.mubr.bf16.gmra.mxu0 %v4548
    %v4923 = vpop.f32.mrf.mxu0
    %v4924 = vadd.f32 %v4431, %v4923
    %v4925 = vpop.f32.mrf.mxu0
    %v4926 = vpop.f32.mrf.mxu0
    %v4927 = vadd.f32 %v4431, %v4926
    %v4928 = vpop.f32.mrf.mxu0
    %4929 = vmatprep.mubr.bf16.mxu0 0
    %4930 = vmatmul.mubr.bf16.gmra.mxu0 %v4551
    %v4931 = vpop.f32.mrf.mxu0
    %v4932 = vadd.f32 %v4431, %v4931
    %v4933 = vpop.f32.mrf.mxu0
    %v4934 = vpop.f32.mrf.mxu0
    %v4935 = vadd.f32 %v4431, %v4934
    %v4936 = vpop.f32.mrf.mxu0
    %4937 = vmatprep.mubr.bf16.mxu0 0
    %4938 = vmatmul.mubr.bf16.gmra.mxu0 %v4554
    %v4939 = vpop.f32.mrf.mxu0
    %v4940 = vadd.f32 %v4431, %v4939
    %v4941 = vpop.f32.mrf.mxu0
    %v4942 = vpop.f32.mrf.mxu0
    %v4943 = vadd.f32 %v4431, %v4942
    %v4944 = vpop.f32.mrf.mxu0
    %4945 = vmatprep.mubr.bf16.mxu0 0
    %4946 = vmatmul.mubr.bf16.gmra.mxu0 %v4557
    %v4947 = vpop.f32.mrf.mxu0
    %v4948 = vadd.f32 %v4431, %v4947
    %v4949 = vpop.f32.mrf.mxu0
    %v4950 = vpop.f32.mrf.mxu0
    %v4951 = vadd.f32 %v4431, %v4950
    %v4952 = vpop.f32.mrf.mxu0
    %4953 = vmatprep.mubr.bf16.mxu0 0
    %4954 = vmatmul.mubr.bf16.gmra.mxu0 %v4560
    %v4955 = vpop.f32.mrf.mxu0
    %v4956 = vadd.f32 %v4431, %v4955
    %v4957 = vpop.f32.mrf.mxu0
    %v4958 = vpop.f32.mrf.mxu0
    %v4959 = vadd.f32 %v4431, %v4958
    %v4960 = vpop.f32.mrf.mxu0
    %4961 = vmatprep.mubr.bf16.mxu0 0
    %4962 = vmatmul.mubr.bf16.gmra.mxu0 %v4563
    %v4963 = vpop.f32.mrf.mxu0
    %v4964 = vadd.f32 %v4431, %v4963
    %v4965 = vpop.f32.mrf.mxu0
    %v4966 = vpop.f32.mrf.mxu0
    %v4967 = vadd.f32 %v4431, %v4966
    %v4968 = vpop.f32.mrf.mxu0
    %4969 = vmatprep.mubr.bf16.mxu0 0
    %4970 = vmatmul.mubr.bf16.gmra.mxu0 %v4566
    %v4971 = vpop.f32.mrf.mxu0
    %v4972 = vadd.f32 %v4431, %v4971
    %v4973 = vpop.f32.mrf.mxu0
    %v4974 = vpop.f32.mrf.mxu0
    %v4975 = vadd.f32 %v4431, %v4974
    %v4976 = vpop.f32.mrf.mxu0
    %4977 = vmatprep.mubr.bf16.mxu0 0
    %4978 = vmatmul.mubr.bf16.gmra.mxu0 %v4569
    %v4979 = vpop.f32.mrf.mxu0
    %v4980 = vadd.f32 %v4431, %v4979
    %v4981 = vpop.f32.mrf.mxu0
    %v4982 = vpop.f32.mrf.mxu0
    %v4983 = vadd.f32 %v4431, %v4982
    %v4984 = vpop.f32.mrf.mxu0
    %4985 = vmatprep.mubr.bf16.mxu0 0
    %4986 = vmatmul.mubr.bf16.gmra.mxu0 %v4572
    %v4987 = vpop.f32.mrf.mxu0
    %v4988 = vadd.f32 %v4431, %v4987
    %v4989 = vpop.f32.mrf.mxu0
    %v4990 = vpop.f32.mrf.mxu0
    %v4991 = vadd.f32 %v4431, %v4990
    %v4992 = vpop.f32.mrf.mxu0
    %4993 = vmatprep.mubr.bf16.mxu0 0
    %4994 = vmatmul.mubr.bf16.gmra.mxu0 %v4575
    %v4995 = vpop.f32.mrf.mxu0
    %v4996 = vadd.f32 %v4431, %v4995
    %v4997 = vpop.f32.mrf.mxu0
    %v4998 = vpop.f32.mrf.mxu0
    %v4999 = vadd.f32 %v4431, %v4998
    %v5000 = vpop.f32.mrf.mxu0
    %5001 = vmatprep.mubr.bf16.mxu0 0
    %5002 = vmatmul.mubr.bf16.gmra.mxu0 %v4578
    %v5003 = vpop.f32.mrf.mxu0
    %v5004 = vadd.f32 %v4431, %v5003
    %v5005 = vpop.f32.mrf.mxu0
    %v5006 = vpop.f32.mrf.mxu0
    %v5007 = vadd.f32 %v4431, %v5006
    %v5008 = vpop.f32.mrf.mxu0
    %5009 = vmatprep.mubr.bf16.mxu0 0
    %5010 = vmatmul.mubr.bf16.gmra.mxu0 %v4581
    %v5011 = vpop.f32.mrf.mxu0
    %v5012 = vadd.f32 %v4431, %v5011
    %v5013 = vpop.f32.mrf.mxu0
    %v5014 = vpop.f32.mrf.mxu0
    %v5015 = vadd.f32 %v4431, %v5014
    %v5016 = vpop.f32.mrf.mxu0
    %5017 = vmatprep.mubr.bf16.mxu0 0
    %5018 = vmatmul.mubr.bf16.gmra.mxu0 %v4584
    %v5019 = vpop.f32.mrf.mxu0
    %v5020 = vadd.f32 %v4431, %v5019
    %v5021 = vpop.f32.mrf.mxu0
    %v5022 = vpop.f32.mrf.mxu0
    %v5023 = vadd.f32 %v4431, %v5022
    %v5024 = vpop.f32.mrf.mxu0
    %5025 = vmatprep.mubr.bf16.mxu0 0
    %5026 = vmatmul.mubr.bf16.gmra.mxu0 %v4587
    %v5027 = vpop.f32.mrf.mxu0
    %v5028 = vadd.f32 %v4431, %v5027
    %v5029 = vpop.f32.mrf.mxu0
    %v5030 = vpop.f32.mrf.mxu0
    %v5031 = vadd.f32 %v4431, %v5030
    %v5032 = vpop.f32.mrf.mxu0
    %5033 = vmatprep.mubr.bf16.mxu0 0
    %5034 = vmatmul.mubr.bf16.gmra.mxu0 %v4590
    %v5035 = vpop.f32.mrf.mxu0
    %v5036 = vadd.f32 %v4431, %v5035
    %v5037 = vpop.f32.mrf.mxu0
    %v5038 = vpop.f32.mrf.mxu0
    %v5039 = vadd.f32 %v4431, %v5038
    %v5040 = vpop.f32.mrf.mxu0
    %5041 = vmatprep.mubr.bf16.mxu0 0
    %5042 = vmatmul.mubr.bf16.gmra.mxu0 %v4593
    %v5043 = vpop.f32.mrf.mxu0
    %v5044 = vadd.f32 %v4431, %v5043
    %v5045 = vpop.f32.mrf.mxu0
    %v5046 = vpop.f32.mrf.mxu0
    %v5047 = vadd.f32 %v4431, %v5046
    %v5048 = vpop.f32.mrf.mxu0
    %5049 = vmatprep.mubr.bf16.mxu0 0
    %5050 = vmatmul.mubr.bf16.gmra.mxu0 %v4596
    %v5051 = vpop.f32.mrf.mxu0
    %v5052 = vadd.f32 %v4431, %v5051
    %v5053 = vpop.f32.mrf.mxu0
    %v5054 = vpop.f32.mrf.mxu0
    %v5055 = vadd.f32 %v4431, %v5054
    %v5056 = vpop.f32.mrf.mxu0
    %5057 = vmatprep.mubr.bf16.mxu0 0
    %5058 = vmatmul.mubr.bf16.gmra.mxu0 %v4599
    %v5059 = vpop.f32.mrf.mxu0
    %v5060 = vadd.f32 %v4431, %v5059
    %v5061 = vpop.f32.mrf.mxu0
    %v5062 = vpop.f32.mrf.mxu0
    %v5063 = vadd.f32 %v4431, %v5062
    %v5064 = vpop.f32.mrf.mxu0
    %5065 = vmatprep.mubr.bf16.mxu0 0
    %5066 = vmatmul.mubr.bf16.gmra.mxu0 %v4602
    %v5067 = vpop.f32.mrf.mxu0
    %v5068 = vadd.f32 %v4431, %v5067
    %v5069 = vpop.f32.mrf.mxu0
    %v5070 = vpop.f32.mrf.mxu0
    %v5071 = vadd.f32 %v4431, %v5070
    %v5072 = vpop.f32.mrf.mxu0
    %5073 = vmatprep.mubr.bf16.mxu0 0
    %5074 = vmatmul.mubr.bf16.gmra.mxu0 %v4605
    %v5075 = vpop.f32.mrf.mxu0
    %v5076 = vadd.f32 %v4431, %v5075
    %v5077 = vpop.f32.mrf.mxu0
    %v5078 = vpop.f32.mrf.mxu0
    %v5079 = vadd.f32 %v4431, %v5078
    %v5080 = vpop.f32.mrf.mxu0
    %5081 = vmatprep.mubr.bf16.mxu0 0
    %5082 = vmatmul.mubr.bf16.gmra.mxu0 %v4608
    %v5083 = vpop.f32.mrf.mxu0
    %v5084 = vadd.f32 %v4431, %v5083
    %v5085 = vpop.f32.mrf.mxu0
    %v5086 = vpop.f32.mrf.mxu0
    %v5087 = vadd.f32 %v4431, %v5086
    %v5088 = vpop.f32.mrf.mxu0
    %5089 = vmatprep.mubr.bf16.mxu0 0
    %5090 = vmatmul.mubr.bf16.gmra.mxu0 %v4611
    %v5091 = vpop.f32.mrf.mxu0
    %v5092 = vadd.f32 %v4431, %v5091
    %v5093 = vpop.f32.mrf.mxu0
    %v5094 = vpop.f32.mrf.mxu0
    %v5095 = vadd.f32 %v4431, %v5094
    %v5096 = vpop.f32.mrf.mxu0
    %5097 = vmatprep.mubr.bf16.mxu0 0
    %5098 = vmatmul.mubr.bf16.gmra.mxu0 %v4614
    %v5099 = vpop.f32.mrf.mxu0
    %v5100 = vadd.f32 %v4431, %v5099
    %v5101 = vpop.f32.mrf.mxu0
    %v5102 = vpop.f32.mrf.mxu0
    %v5103 = vadd.f32 %v4431, %v5102
    %v5104 = vpop.f32.mrf.mxu0
    %5105 = vmatprep.mubr.bf16.mxu0 0
    %5106 = vmatmul.mubr.bf16.gmra.mxu0 %v4617
    %v5107 = vpop.f32.mrf.mxu0
    %v5108 = vadd.f32 %v4431, %v5107
    %v5109 = vpop.f32.mrf.mxu0
    %v5110 = vpop.f32.mrf.mxu0
    %v5111 = vadd.f32 %v4431, %v5110
    %v5112 = vpop.f32.mrf.mxu0
    %5113 = vmatprep.mubr.bf16.mxu0 0
    %5114 = vmatmul.mubr.bf16.gmra.mxu0 %v4620
    %v5115 = vpop.f32.mrf.mxu0
    %v5116 = vadd.f32 %v4431, %v5115
    %v5117 = vpop.f32.mrf.mxu0
    %v5118 = vpop.f32.mrf.mxu0
    %v5119 = vadd.f32 %v4431, %v5118
    %v5120 = vpop.f32.mrf.mxu0
    %5121 = vmatprep.mubr.bf16.mxu0 0
    %5122 = vmatmul.mubr.bf16.gmra.mxu0 %v4623
    %v5123 = vpop.f32.mrf.mxu0
    %v5124 = vadd.f32 %v4431, %v5123
    %v5125 = vpop.f32.mrf.mxu0
    %v5126 = vpop.f32.mrf.mxu0
    %v5127 = vadd.f32 %v4431, %v5126
    %v5128 = vpop.f32.mrf.mxu0
    %5129 = vmatprep.mubr.bf16.mxu0 0
    %5130 = vmatmul.mubr.bf16.gmra.mxu0 %v4626
    %v5131 = vpop.f32.mrf.mxu0
    %v5132 = vadd.f32 %v4431, %v5131
    %v5133 = vpop.f32.mrf.mxu0
    %v5134 = vpop.f32.mrf.mxu0
    %v5135 = vadd.f32 %v4431, %v5134
    %v5136 = vpop.f32.mrf.mxu0
    %5137 = vmatprep.mubr.bf16.mxu0 0
    %5138 = vmatmul.mubr.bf16.gmra.mxu0 %v4629
    %v5139 = vpop.f32.mrf.mxu0
    %v5140 = vadd.f32 %v4431, %v5139
    %v5141 = vpop.f32.mrf.mxu0
    %v5142 = vpop.f32.mrf.mxu0
    %v5143 = vadd.f32 %v4431, %v5142
    %v5144 = vpop.f32.mrf.mxu0
    %5145 = vmatprep.mubr.bf16.mxu0 0
    %5146 = vmatmul.mubr.bf16.gmra.mxu0 %v4632
    %v5147 = vpop.f32.mrf.mxu0
    %v5148 = vadd.f32 %v4431, %v5147
    %v5149 = vpop.f32.mrf.mxu0
    %v5150 = vpop.f32.mrf.mxu0
    %v5151 = vadd.f32 %v4431, %v5150
    %v5152 = vpop.f32.mrf.mxu0
    %5153 = vmatprep.mubr.bf16.mxu0 0
    %5154 = vmatmul.mubr.bf16.gmra.mxu0 %v4635
    %v5155 = vpop.f32.mrf.mxu0
    %v5156 = vadd.f32 %v4431, %v5155
    %v5157 = vpop.f32.mrf.mxu0
    %v5158 = vpop.f32.mrf.mxu0
    %v5159 = vadd.f32 %v4431, %v5158
    %v5160 = vpop.f32.mrf.mxu0
    %5161 = vmatprep.mubr.bf16.mxu0 0
    %5162 = vmatmul.mubr.bf16.gmra.mxu0 %v4638
    %v5163 = vpop.f32.mrf.mxu0
    %v5164 = vadd.f32 %v4431, %v5163
    %v5165 = vpop.f32.mrf.mxu0
    %v5166 = vpop.f32.mrf.mxu0
    %v5167 = vadd.f32 %v4431, %v5166
    %v5168 = vpop.f32.mrf.mxu0
    %5169 = vmatprep.mubr.bf16.mxu0 0
    %5170 = vmatmul.mubr.bf16.gmra.mxu0 %v4641
    %v5171 = vpop.f32.mrf.mxu0
    %v5172 = vadd.f32 %v4431, %v5171
    %v5173 = vpop.f32.mrf.mxu0
    %v5174 = vpop.f32.mrf.mxu0
    %v5175 = vadd.f32 %v4431, %v5174
    %v5176 = vpop.f32.mrf.mxu0
    %5177 = vmatprep.mubr.bf16.mxu0 0
    %5178 = vmatmul.mubr.bf16.gmra.mxu0 %v4644
    %v5179 = vpop.f32.mrf.mxu0
    %v5180 = vadd.f32 %v4431, %v5179
    %v5181 = vpop.f32.mrf.mxu0
    %v5182 = vpop.f32.mrf.mxu0
    %v5183 = vadd.f32 %v4431, %v5182
    %v5184 = vpop.f32.mrf.mxu0
    %5185 = vmatprep.mubr.bf16.mxu0 0
    %5186 = vmatmul.mubr.bf16.gmra.mxu0 %v4647
    %v5187 = vpop.f32.mrf.mxu0
    %v5188 = vadd.f32 %v4431, %v5187
    %v5189 = vpop.f32.mrf.mxu0
    %v5190 = vpop.f32.mrf.mxu0
    %v5191 = vadd.f32 %v4431, %v5190
    %v5192 = vpop.f32.mrf.mxu0
    %5193 = vdwg.mxu0
    %v5194 = vmax.f32 %v4684, 0.0
    %v5195 = vmax.f32 %v4687, 0.0
    %v5196 = vmax.f32 %v4692, 0.0
    %v5197 = vmax.f32 %v4695, 0.0
    %v5198 = vmax.f32 %v4700, 0.0
    %v5199 = vmax.f32 %v4703, 0.0
    %v5200 = vmax.f32 %v4708, 0.0
    %v5201 = vmax.f32 %v4711, 0.0
    %v5202 = vmax.f32 %v4716, 0.0
    %v5203 = vmax.f32 %v4719, 0.0
    %v5204 = vmax.f32 %v4724, 0.0
    %v5205 = vmax.f32 %v4727, 0.0
    %v5206 = vmax.f32 %v4732, 0.0
    %v5207 = vmax.f32 %v4735, 0.0
    %v5208 = vmax.f32 %v4740, 0.0
    %v5209 = vmax.f32 %v4743, 0.0
    %v5210 = vmax.f32 %v4748, 0.0
    %v5211 = vmax.f32 %v4751, 0.0
    %v5212 = vmax.f32 %v4756, 0.0
    %v5213 = vmax.f32 %v4759, 0.0
    %v5214 = vmax.f32 %v4764, 0.0
    %v5215 = vmax.f32 %v4767, 0.0
    %v5216 = vmax.f32 %v4772, 0.0
    %v5217 = vmax.f32 %v4775, 0.0
    %v5218 = vmax.f32 %v4780, 0.0
    %v5219 = vmax.f32 %v4783, 0.0
    %v5220 = vmax.f32 %v4788, 0.0
    %v5221 = vmax.f32 %v4791, 0.0
    %v5222 = vmax.f32 %v4796, 0.0
    %v5223 = vmax.f32 %v4799, 0.0
    %v5224 = vmax.f32 %v4804, 0.0
    %v5225 = vmax.f32 %v4807, 0.0
    %v5226 = vmax.f32 %v4812, 0.0
    %v5227 = vmax.f32 %v4815, 0.0
    %v5228 = vmax.f32 %v4820, 0.0
    %v5229 = vmax.f32 %v4823, 0.0
    %v5230 = vmax.f32 %v4828, 0.0
    %v5231 = vmax.f32 %v4831, 0.0
    %v5232 = vmax.f32 %v4836, 0.0
    %v5233 = vmax.f32 %v4839, 0.0
    %v5234 = vmax.f32 %v4844, 0.0
    %v5235 = vmax.f32 %v4847, 0.0
    %v5236 = vmax.f32 %v4852, 0.0
    %v5237 = vmax.f32 %v4855, 0.0
    %v5238 = vmax.f32 %v4860, 0.0
    %v5239 = vmax.f32 %v4863, 0.0
    %v5240 = vmax.f32 %v4868, 0.0
    %v5241 = vmax.f32 %v4871, 0.0
    %v5242 = vmax.f32 %v4876, 0.0
    %v5243 = vmax.f32 %v4879, 0.0
    %v5244 = vmax.f32 %v4884, 0.0
    %v5245 = vmax.f32 %v4887, 0.0
    %v5246 = vmax.f32 %v4892, 0.0
    %v5247 = vmax.f32 %v4895, 0.0
    %v5248 = vmax.f32 %v4900, 0.0
    %v5249 = vmax.f32 %v4903, 0.0
    %v5250 = vmax.f32 %v4908, 0.0
    %v5251 = vmax.f32 %v4911, 0.0
    %v5252 = vmax.f32 %v4916, 0.0
    %v5253 = vmax.f32 %v4919, 0.0
    %v5254 = vmax.f32 %v4924, 0.0
    %v5255 = vmax.f32 %v4927, 0.0
    %v5256 = vmax.f32 %v4932, 0.0
    %v5257 = vmax.f32 %v4935, 0.0
    %v5258 = vmax.f32 %v4940, 0.0
    %v5259 = vmax.f32 %v4943, 0.0
    %v5260 = vmax.f32 %v4948, 0.0
    %v5261 = vmax.f32 %v4951, 0.0
    %v5262 = vmax.f32 %v4956, 0.0
    %v5263 = vmax.f32 %v4959, 0.0
    %v5264 = vmax.f32 %v4964, 0.0
    %v5265 = vmax.f32 %v4967, 0.0
    %v5266 = vmax.f32 %v4972, 0.0
    %v5267 = vmax.f32 %v4975, 0.0
    %v5268 = vmax.f32 %v4980, 0.0
    %v5269 = vmax.f32 %v4983, 0.0
    %v5270 = vmax.f32 %v4988, 0.0
    %v5271 = vmax.f32 %v4991, 0.0
    %v5272 = vmax.f32 %v4996, 0.0
    %v5273 = vmax.f32 %v4999, 0.0
    %v5274 = vmax.f32 %v5004, 0.0
    %v5275 = vmax.f32 %v5007, 0.0
    %v5276 = vmax.f32 %v5012, 0.0
    %v5277 = vmax.f32 %v5015, 0.0
    %v5278 = vmax.f32 %v5020, 0.0
    %v5279 = vmax.f32 %v5023, 0.0
    %v5280 = vmax.f32 %v5028, 0.0
    %v5281 = vmax.f32 %v5031, 0.0
    %v5282 = vmax.f32 %v5036, 0.0
    %v5283 = vmax.f32 %v5039, 0.0
    %v5284 = vmax.f32 %v5044, 0.0
    %v5285 = vmax.f32 %v5047, 0.0
    %v5286 = vmax.f32 %v5052, 0.0
    %v5287 = vmax.f32 %v5055, 0.0
    %v5288 = vmax.f32 %v5060, 0.0
    %v5289 = vmax.f32 %v5063, 0.0
    %v5290 = vmax.f32 %v5068, 0.0
    %v5291 = vmax.f32 %v5071, 0.0
    %v5292 = vmax.f32 %v5076, 0.0
    %v5293 = vmax.f32 %v5079, 0.0
    %v5294 = vmax.f32 %v5084, 0.0
    %v5295 = vmax.f32 %v5087, 0.0
    %v5296 = vmax.f32 %v5092, 0.0
    %v5297 = vmax.f32 %v5095, 0.0
    %v5298 = vmax.f32 %v5100, 0.0
    %v5299 = vmax.f32 %v5103, 0.0
    %v5300 = vmax.f32 %v5108, 0.0
    %v5301 = vmax.f32 %v5111, 0.0
    %v5302 = vmax.f32 %v5116, 0.0
    %v5303 = vmax.f32 %v5119, 0.0
    %v5304 = vmax.f32 %v5124, 0.0
    %v5305 = vmax.f32 %v5127, 0.0
    %v5306 = vmax.f32 %v5132, 0.0
    %v5307 = vmax.f32 %v5135, 0.0
    %v5308 = vmax.f32 %v5140, 0.0
    %v5309 = vmax.f32 %v5143, 0.0
    %v5310 = vmax.f32 %v5148, 0.0
    %v5311 = vmax.f32 %v5151, 0.0
    %v5312 = vmax.f32 %v5156, 0.0
    %v5313 = vmax.f32 %v5159, 0.0
    %v5314 = vmax.f32 %v5164, 0.0
    %v5315 = vmax.f32 %v5167, 0.0
    %v5316 = vmax.f32 %v5172, 0.0
    %v5317 = vmax.f32 %v5175, 0.0
    %v5318 = vmax.f32 %v5180, 0.0
    %v5319 = vmax.f32 %v5183, 0.0
    %v5320 = vmax.f32 %v5188, 0.0
    %v5321 = vmax.f32 %v5191, 0.0
    %v5322 = vpack.c.bf16 %v5195, %v5194
    %v5323 = vpack.c.bf16 %v5197, %v5196
    %v5324 = vpack.c.bf16 %v5199, %v5198
    %v5325 = vpack.c.bf16 %v5201, %v5200
    %v5326 = vpack.c.bf16 %v5203, %v5202
    %v5327 = vpack.c.bf16 %v5205, %v5204
    %v5328 = vpack.c.bf16 %v5207, %v5206
    %v5329 = vpack.c.bf16 %v5209, %v5208
    %v5330 = vpack.c.bf16 %v5211, %v5210
    %v5331 = vpack.c.bf16 %v5213, %v5212
    %v5332 = vpack.c.bf16 %v5215, %v5214
    %v5333 = vpack.c.bf16 %v5217, %v5216
    %v5334 = vpack.c.bf16 %v5219, %v5218
    %v5335 = vpack.c.bf16 %v5221, %v5220
    %v5336 = vpack.c.bf16 %v5223, %v5222
    %v5337 = vpack.c.bf16 %v5225, %v5224
    %v5338 = vpack.c.bf16 %v5227, %v5226
    %v5339 = vpack.c.bf16 %v5229, %v5228
    %v5340 = vpack.c.bf16 %v5231, %v5230
    %v5341 = vpack.c.bf16 %v5233, %v5232
    %v5342 = vpack.c.bf16 %v5235, %v5234
    %v5343 = vpack.c.bf16 %v5237, %v5236
    %v5344 = vpack.c.bf16 %v5239, %v5238
    %v5345 = vpack.c.bf16 %v5241, %v5240
    %v5346 = vpack.c.bf16 %v5243, %v5242
    %v5347 = vpack.c.bf16 %v5245, %v5244
    %v5348 = vpack.c.bf16 %v5247, %v5246
    %v5349 = vpack.c.bf16 %v5249, %v5248
    %v5350 = vpack.c.bf16 %v5251, %v5250
    %v5351 = vpack.c.bf16 %v5253, %v5252
    %v5352 = vpack.c.bf16 %v5255, %v5254
    %v5353 = vpack.c.bf16 %v5257, %v5256
    %v5354 = vpack.c.bf16 %v5259, %v5258
    %v5355 = vpack.c.bf16 %v5261, %v5260
    %v5356 = vpack.c.bf16 %v5263, %v5262
    %v5357 = vpack.c.bf16 %v5265, %v5264
    %v5358 = vpack.c.bf16 %v5267, %v5266
    %v5359 = vpack.c.bf16 %v5269, %v5268
    %v5360 = vpack.c.bf16 %v5271, %v5270
    %v5361 = vpack.c.bf16 %v5273, %v5272
    %v5362 = vpack.c.bf16 %v5275, %v5274
    %v5363 = vpack.c.bf16 %v5277, %v5276
    %v5364 = vpack.c.bf16 %v5279, %v5278
    %v5365 = vpack.c.bf16 %v5281, %v5280
    %v5366 = vpack.c.bf16 %v5283, %v5282
    %v5367 = vpack.c.bf16 %v5285, %v5284
    %v5368 = vpack.c.bf16 %v5287, %v5286
    %v5369 = vpack.c.bf16 %v5289, %v5288
    %v5370 = vpack.c.bf16 %v5291, %v5290
    %v5371 = vpack.c.bf16 %v5293, %v5292
    %v5372 = vpack.c.bf16 %v5295, %v5294
    %v5373 = vpack.c.bf16 %v5297, %v5296
    %v5374 = vpack.c.bf16 %v5299, %v5298
    %v5375 = vpack.c.bf16 %v5301, %v5300
    %v5376 = vpack.c.bf16 %v5303, %v5302
    %v5377 = vpack.c.bf16 %v5305, %v5304
    %v5378 = vpack.c.bf16 %v5307, %v5306
    %v5379 = vpack.c.bf16 %v5309, %v5308
    %v5380 = vpack.c.bf16 %v5311, %v5310
    %v5381 = vpack.c.bf16 %v5313, %v5312
    %v5382 = vpack.c.bf16 %v5315, %v5314
    %v5383 = vpack.c.bf16 %v5317, %v5316
    %v5384 = vpack.c.bf16 %v5319, %v5318
    %v5385 = vpack.c.bf16 %v5321, %v5320
    %v5386 = vld [vmem:[%s5] sm:$0xf]
    %v5387 = vld [vmem:[%s5 + $0x4] sm:$0xf]
    %v5388 = vld [vmem:[%s5 + $0x8] sm:$0xf]
    %v5389 = vld [vmem:[%s5 + $0xc] sm:$0xf]
    %v5390 = vld [vmem:[%s5 + $0x10] sm:$0xf]
    %v5391 = vld [vmem:[%s5 + $0x14] sm:$0xf]
    %v5392 = vld [vmem:[%s5 + $0x18] sm:$0xf]
    %v5393 = vld [vmem:[%s5 + $0x1c] sm:$0xf]
    %v5394 = vld [vmem:[%s5 + $0x20] sm:$0xf]
    %v5395 = vld [vmem:[%s5 + $0x24] sm:$0xf]
    %v5396 = vld [vmem:[%s5 + $0x28] sm:$0xf]
    %v5397 = vld [vmem:[%s5 + $0x2c] sm:$0xf]
    %v5398 = vld [vmem:[%s5 + $0x30] sm:$0xf]
    %v5399 = vld [vmem:[%s5 + $0x34] sm:$0xf]
    %v5400 = vld [vmem:[%s5 + $0x38] sm:$0xf]
    %v5401 = vld [vmem:[%s5 + $0x3c] sm:$0xf]
    %v5402 = vld [vmem:[%s6] sm:$0x1]
    %v5404 = vlaneseq
    %v5405 = vshrl.u32 %v5404, 7
    %v5406 = vsub.s32 0, %v5405
    %v5407 = vrot.slane %v5402, %v5406
    %v5425 = vunpack.c.l.b16 %v5386
    %v5426 = vunpack.c.l.b16 %v5387
    %v5427 = vunpack.c.l.b16 %v5388
    %v5428 = vunpack.c.l.b16 %v5389
    %v5429 = vunpack.c.l.b16 %v5390
    %v5430 = vunpack.c.l.b16 %v5391
    %v5431 = vunpack.c.l.b16 %v5392
    %v5432 = vunpack.c.l.b16 %v5393
    %v5433 = vunpack.c.l.b16 %v5394
    %v5434 = vunpack.c.l.b16 %v5395
    %v5435 = vunpack.c.l.b16 %v5396
    %v5436 = vunpack.c.l.b16 %v5397
    %v5437 = vunpack.c.l.b16 %v5398
    %v5438 = vunpack.c.l.b16 %v5399
    %v5439 = vunpack.c.l.b16 %v5400
    %v5440 = vunpack.c.l.b16 %v5401
    %v5441 = vpack.c.b16 %v5426, %v5425
    %v5442 = vpack.c.b16 %v5428, %v5427
    %v5443 = vpack.c.b16 %v5430, %v5429
    %v5444 = vpack.c.b16 %v5432, %v5431
    %v5445 = vpack.c.b16 %v5434, %v5433
    %v5446 = vpack.c.b16 %v5436, %v5435
    %v5447 = vpack.c.b16 %v5438, %v5437
    %v5448 = vpack.c.b16 %v5440, %v5439
    %5457 = vmatprep.subr.bf16.mxu0 0
    %5458 = vmatpush1.bf16.msra.mxu0 %v5448
    %5459 = vmatprep.subr.bf16.mxu0 0
    %5460 = vmatpush1.bf16.msra.mxu0 %v5447
    %5461 = vmatprep.subr.bf16.mxu0 0
    %5462 = vmatpush1.bf16.msra.mxu0 %v5446
    %5463 = vmatprep.subr.bf16.mxu0 0
    %5464 = vmatpush1.bf16.msra.mxu0 %v5445
    %5465 = vmatprep.subr.bf16.mxu0 0
    %5466 = vmatpush1.bf16.msra.mxu0 %v5444
    %5467 = vmatprep.subr.bf16.mxu0 0
    %5468 = vmatpush1.bf16.msra.mxu0 %v5443
    %5469 = vmatprep.subr.bf16.mxu0 0
    %5470 = vmatpush1.bf16.msra.mxu0 %v5442
    %5471 = vmatprep.subr.bf16.mxu0 0
    %5472 = vmatpush1.bf16.msra.mxu0 %v5441
    %5473 = vmatprep.subr.bf16.mxu0 0
    %5474 = vmatpush2.bf16.msra.mxu0 0
    %5475 = vmatprep.subr.bf16.mxu0 0
    %5476 = vmatpush2.bf16.msra.mxu0 0
    %5477 = vmatprep.subr.bf16.mxu0 0
    %5478 = vmatpush2.bf16.msra.mxu0 0
    %5479 = vmatprep.subr.bf16.mxu0 0
    %5480 = vmatpush2.bf16.msra.mxu0 0
    %5481 = vmatprep.subr.bf16.mxu0 0
    %5482 = vmatpush2.bf16.msra.mxu0 0
    %5483 = vmatprep.subr.bf16.mxu0 0
    %5484 = vmatpush2.bf16.msra.mxu0 0
    %5485 = vmatprep.subr.bf16.mxu0 0
    %5486 = vmatpush2.bf16.msra.mxu0 0
    %5487 = vmatprep.subr.bf16.mxu0 0
    %5488 = vmatpush2.bf16.msra.mxu0 0
    %5489 = vmatprep.mubr.bf16.mxu0 0
    %5490 = vmatmul.mubr.bf16.gmra.mxu0 %v5322
    %v5491 = vpop.f32.mrf.mxu0
    %v5492 = vadd.f32 %v5407, %v5491
    %v5493 = vpop.f32.mrf.mxu0
    %v5494 = vpop.f32.mrf.mxu0
    %v5495 = vadd.f32 %v5407, %v5494
    %v5496 = vpop.f32.mrf.mxu0
    %5497 = vmatprep.mubr.bf16.mxu0 0
    %5498 = vmatmul.mubr.bf16.gmra.mxu0 %v5323
    %v5499 = vpop.f32.mrf.mxu0
    %v5500 = vadd.f32 %v5407, %v5499
    %v5501 = vpop.f32.mrf.mxu0
    %v5502 = vpop.f32.mrf.mxu0
    %v5503 = vadd.f32 %v5407, %v5502
    %v5504 = vpop.f32.mrf.mxu0
    %5505 = vmatprep.mubr.bf16.mxu0 0
    %5506 = vmatmul.mubr.bf16.gmra.mxu0 %v5324
    %v5507 = vpop.f32.mrf.mxu0
    %v5508 = vadd.f32 %v5407, %v5507
    %v5509 = vpop.f32.mrf.mxu0
    %v5510 = vpop.f32.mrf.mxu0
    %v5511 = vadd.f32 %v5407, %v5510
    %v5512 = vpop.f32.mrf.mxu0
    %5513 = vmatprep.mubr.bf16.mxu0 0
    %5514 = vmatmul.mubr.bf16.gmra.mxu0 %v5325
    %v5515 = vpop.f32.mrf.mxu0
    %v5516 = vadd.f32 %v5407, %v5515
    %v5517 = vpop.f32.mrf.mxu0
    %v5518 = vpop.f32.mrf.mxu0
    %v5519 = vadd.f32 %v5407, %v5518
    %v5520 = vpop.f32.mrf.mxu0
    %5521 = vmatprep.mubr.bf16.mxu0 0
    %5522 = vmatmul.mubr.bf16.gmra.mxu0 %v5326
    %v5523 = vpop.f32.mrf.mxu0
    %v5524 = vadd.f32 %v5407, %v5523
    %v5525 = vpop.f32.mrf.mxu0
    %v5526 = vpop.f32.mrf.mxu0
    %v5527 = vadd.f32 %v5407, %v5526
    %v5528 = vpop.f32.mrf.mxu0
    %5529 = vmatprep.mubr.bf16.mxu0 0
    %5530 = vmatmul.mubr.bf16.gmra.mxu0 %v5327
    %v5531 = vpop.f32.mrf.mxu0
    %v5532 = vadd.f32 %v5407, %v5531
    %v5533 = vpop.f32.mrf.mxu0
    %v5534 = vpop.f32.mrf.mxu0
    %v5535 = vadd.f32 %v5407, %v5534
    %v5536 = vpop.f32.mrf.mxu0
    %5537 = vmatprep.mubr.bf16.mxu0 0
    %5538 = vmatmul.mubr.bf16.gmra.mxu0 %v5328
    %v5539 = vpop.f32.mrf.mxu0
    %v5540 = vadd.f32 %v5407, %v5539
    %v5541 = vpop.f32.mrf.mxu0
    %v5542 = vpop.f32.mrf.mxu0
    %v5543 = vadd.f32 %v5407, %v5542
    %v5544 = vpop.f32.mrf.mxu0
    %5545 = vmatprep.mubr.bf16.mxu0 0
    %5546 = vmatmul.mubr.bf16.gmra.mxu0 %v5329
    %v5547 = vpop.f32.mrf.mxu0
    %v5548 = vadd.f32 %v5407, %v5547
    %v5549 = vpop.f32.mrf.mxu0
    %v5550 = vpop.f32.mrf.mxu0
    %v5551 = vadd.f32 %v5407, %v5550
    %v5552 = vpop.f32.mrf.mxu0
    %5553 = vmatprep.mubr.bf16.mxu0 0
    %5554 = vmatmul.mubr.bf16.gmra.mxu0 %v5330
    %v5555 = vpop.f32.mrf.mxu0
    %v5556 = vadd.f32 %v5407, %v5555
    %v5557 = vpop.f32.mrf.mxu0
    %v5558 = vpop.f32.mrf.mxu0
    %v5559 = vadd.f32 %v5407, %v5558
    %v5560 = vpop.f32.mrf.mxu0
    %5561 = vmatprep.mubr.bf16.mxu0 0
    %5562 = vmatmul.mubr.bf16.gmra.mxu0 %v5331
    %v5563 = vpop.f32.mrf.mxu0
    %v5564 = vadd.f32 %v5407, %v5563
    %v5565 = vpop.f32.mrf.mxu0
    %v5566 = vpop.f32.mrf.mxu0
    %v5567 = vadd.f32 %v5407, %v5566
    %v5568 = vpop.f32.mrf.mxu0
    %5569 = vmatprep.mubr.bf16.mxu0 0
    %5570 = vmatmul.mubr.bf16.gmra.mxu0 %v5332
    %v5571 = vpop.f32.mrf.mxu0
    %v5572 = vadd.f32 %v5407, %v5571
    %v5573 = vpop.f32.mrf.mxu0
    %v5574 = vpop.f32.mrf.mxu0
    %v5575 = vadd.f32 %v5407, %v5574
    %v5576 = vpop.f32.mrf.mxu0
    %5577 = vmatprep.mubr.bf16.mxu0 0
    %5578 = vmatmul.mubr.bf16.gmra.mxu0 %v5333
    %v5579 = vpop.f32.mrf.mxu0
    %v5580 = vadd.f32 %v5407, %v5579
    %v5581 = vpop.f32.mrf.mxu0
    %v5582 = vpop.f32.mrf.mxu0
    %v5583 = vadd.f32 %v5407, %v5582
    %v5584 = vpop.f32.mrf.mxu0
    %5585 = vmatprep.mubr.bf16.mxu0 0
    %5586 = vmatmul.mubr.bf16.gmra.mxu0 %v5334
    %v5587 = vpop.f32.mrf.mxu0
    %v5588 = vadd.f32 %v5407, %v5587
    %v5589 = vpop.f32.mrf.mxu0
    %v5590 = vpop.f32.mrf.mxu0
    %v5591 = vadd.f32 %v5407, %v5590
    %v5592 = vpop.f32.mrf.mxu0
    %5593 = vmatprep.mubr.bf16.mxu0 0
    %5594 = vmatmul.mubr.bf16.gmra.mxu0 %v5335
    %v5595 = vpop.f32.mrf.mxu0
    %v5596 = vadd.f32 %v5407, %v5595
    %v5597 = vpop.f32.mrf.mxu0
    %v5598 = vpop.f32.mrf.mxu0
    %v5599 = vadd.f32 %v5407, %v5598
    %v5600 = vpop.f32.mrf.mxu0
    %5601 = vmatprep.mubr.bf16.mxu0 0
    %5602 = vmatmul.mubr.bf16.gmra.mxu0 %v5336
    %v5603 = vpop.f32.mrf.mxu0
    %v5604 = vadd.f32 %v5407, %v5603
    %v5605 = vpop.f32.mrf.mxu0
    %v5606 = vpop.f32.mrf.mxu0
    %v5607 = vadd.f32 %v5407, %v5606
    %v5608 = vpop.f32.mrf.mxu0
    %5609 = vmatprep.mubr.bf16.mxu0 0
    %5610 = vmatmul.mubr.bf16.gmra.mxu0 %v5337
    %v5611 = vpop.f32.mrf.mxu0
    %v5612 = vadd.f32 %v5407, %v5611
    %v5613 = vpop.f32.mrf.mxu0
    %v5614 = vpop.f32.mrf.mxu0
    %v5615 = vadd.f32 %v5407, %v5614
    %v5616 = vpop.f32.mrf.mxu0
    %5617 = vmatprep.mubr.bf16.mxu0 0
    %5618 = vmatmul.mubr.bf16.gmra.mxu0 %v5338
    %v5619 = vpop.f32.mrf.mxu0
    %v5620 = vadd.f32 %v5407, %v5619
    %v5621 = vpop.f32.mrf.mxu0
    %v5622 = vpop.f32.mrf.mxu0
    %v5623 = vadd.f32 %v5407, %v5622
    %v5624 = vpop.f32.mrf.mxu0
    %5625 = vmatprep.mubr.bf16.mxu0 0
    %5626 = vmatmul.mubr.bf16.gmra.mxu0 %v5339
    %v5627 = vpop.f32.mrf.mxu0
    %v5628 = vadd.f32 %v5407, %v5627
    %v5629 = vpop.f32.mrf.mxu0
    %v5630 = vpop.f32.mrf.mxu0
    %v5631 = vadd.f32 %v5407, %v5630
    %v5632 = vpop.f32.mrf.mxu0
    %5633 = vmatprep.mubr.bf16.mxu0 0
    %5634 = vmatmul.mubr.bf16.gmra.mxu0 %v5340
    %v5635 = vpop.f32.mrf.mxu0
    %v5636 = vadd.f32 %v5407, %v5635
    %v5637 = vpop.f32.mrf.mxu0
    %v5638 = vpop.f32.mrf.mxu0
    %v5639 = vadd.f32 %v5407, %v5638
    %v5640 = vpop.f32.mrf.mxu0
    %5641 = vmatprep.mubr.bf16.mxu0 0
    %5642 = vmatmul.mubr.bf16.gmra.mxu0 %v5341
    %v5643 = vpop.f32.mrf.mxu0
    %v5644 = vadd.f32 %v5407, %v5643
    %v5645 = vpop.f32.mrf.mxu0
    %v5646 = vpop.f32.mrf.mxu0
    %v5647 = vadd.f32 %v5407, %v5646
    %v5648 = vpop.f32.mrf.mxu0
    %5649 = vmatprep.mubr.bf16.mxu0 0
    %5650 = vmatmul.mubr.bf16.gmra.mxu0 %v5342
    %v5651 = vpop.f32.mrf.mxu0
    %v5652 = vadd.f32 %v5407, %v5651
    %v5653 = vpop.f32.mrf.mxu0
    %v5654 = vpop.f32.mrf.mxu0
    %v5655 = vadd.f32 %v5407, %v5654
    %v5656 = vpop.f32.mrf.mxu0
    %5657 = vmatprep.mubr.bf16.mxu0 0
    %5658 = vmatmul.mubr.bf16.gmra.mxu0 %v5343
    %v5659 = vpop.f32.mrf.mxu0
    %v5660 = vadd.f32 %v5407, %v5659
    %v5661 = vpop.f32.mrf.mxu0
    %v5662 = vpop.f32.mrf.mxu0
    %v5663 = vadd.f32 %v5407, %v5662
    %v5664 = vpop.f32.mrf.mxu0
    %5665 = vmatprep.mubr.bf16.mxu0 0
    %5666 = vmatmul.mubr.bf16.gmra.mxu0 %v5344
    %v5667 = vpop.f32.mrf.mxu0
    %v5668 = vadd.f32 %v5407, %v5667
    %v5669 = vpop.f32.mrf.mxu0
    %v5670 = vpop.f32.mrf.mxu0
    %v5671 = vadd.f32 %v5407, %v5670
    %v5672 = vpop.f32.mrf.mxu0
    %5673 = vmatprep.mubr.bf16.mxu0 0
    %5674 = vmatmul.mubr.bf16.gmra.mxu0 %v5345
    %v5675 = vpop.f32.mrf.mxu0
    %v5676 = vadd.f32 %v5407, %v5675
    %v5677 = vpop.f32.mrf.mxu0
    %v5678 = vpop.f32.mrf.mxu0
    %v5679 = vadd.f32 %v5407, %v5678
    %v5680 = vpop.f32.mrf.mxu0
    %5681 = vmatprep.mubr.bf16.mxu0 0
    %5682 = vmatmul.mubr.bf16.gmra.mxu0 %v5346
    %v5683 = vpop.f32.mrf.mxu0
    %v5684 = vadd.f32 %v5407, %v5683
    %v5685 = vpop.f32.mrf.mxu0
    %v5686 = vpop.f32.mrf.mxu0
    %v5687 = vadd.f32 %v5407, %v5686
    %v5688 = vpop.f32.mrf.mxu0
    %5689 = vmatprep.mubr.bf16.mxu0 0
    %5690 = vmatmul.mubr.bf16.gmra.mxu0 %v5347
    %v5691 = vpop.f32.mrf.mxu0
    %v5692 = vadd.f32 %v5407, %v5691
    %v5693 = vpop.f32.mrf.mxu0
    %v5694 = vpop.f32.mrf.mxu0
    %v5695 = vadd.f32 %v5407, %v5694
    %v5696 = vpop.f32.mrf.mxu0
    %5697 = vmatprep.mubr.bf16.mxu0 0
    %5698 = vmatmul.mubr.bf16.gmra.mxu0 %v5348
    %v5699 = vpop.f32.mrf.mxu0
    %v5700 = vadd.f32 %v5407, %v5699
    %v5701 = vpop.f32.mrf.mxu0
    %v5702 = vpop.f32.mrf.mxu0
    %v5703 = vadd.f32 %v5407, %v5702
    %v5704 = vpop.f32.mrf.mxu0
    %5705 = vmatprep.mubr.bf16.mxu0 0
    %5706 = vmatmul.mubr.bf16.gmra.mxu0 %v5349
    %v5707 = vpop.f32.mrf.mxu0
    %v5708 = vadd.f32 %v5407, %v5707
    %v5709 = vpop.f32.mrf.mxu0
    %v5710 = vpop.f32.mrf.mxu0
    %v5711 = vadd.f32 %v5407, %v5710
    %v5712 = vpop.f32.mrf.mxu0
    %5713 = vmatprep.mubr.bf16.mxu0 0
    %5714 = vmatmul.mubr.bf16.gmra.mxu0 %v5350
    %v5715 = vpop.f32.mrf.mxu0
    %v5716 = vadd.f32 %v5407, %v5715
    %v5717 = vpop.f32.mrf.mxu0
    %v5718 = vpop.f32.mrf.mxu0
    %v5719 = vadd.f32 %v5407, %v5718
    %v5720 = vpop.f32.mrf.mxu0
    %5721 = vmatprep.mubr.bf16.mxu0 0
    %5722 = vmatmul.mubr.bf16.gmra.mxu0 %v5351
    %v5723 = vpop.f32.mrf.mxu0
    %v5724 = vadd.f32 %v5407, %v5723
    %v5725 = vpop.f32.mrf.mxu0
    %v5726 = vpop.f32.mrf.mxu0
    %v5727 = vadd.f32 %v5407, %v5726
    %v5728 = vpop.f32.mrf.mxu0
    %5729 = vmatprep.mubr.bf16.mxu0 0
    %5730 = vmatmul.mubr.bf16.gmra.mxu0 %v5352
    %v5731 = vpop.f32.mrf.mxu0
    %v5732 = vadd.f32 %v5407, %v5731
    %v5733 = vpop.f32.mrf.mxu0
    %v5734 = vpop.f32.mrf.mxu0
    %v5735 = vadd.f32 %v5407, %v5734
    %v5736 = vpop.f32.mrf.mxu0
    %5737 = vmatprep.mubr.bf16.mxu0 0
    %5738 = vmatmul.mubr.bf16.gmra.mxu0 %v5353
    %v5739 = vpop.f32.mrf.mxu0
    %v5740 = vadd.f32 %v5407, %v5739
    %v5741 = vpop.f32.mrf.mxu0
    %v5742 = vpop.f32.mrf.mxu0
    %v5743 = vadd.f32 %v5407, %v5742
    %v5744 = vpop.f32.mrf.mxu0
    %5745 = vmatprep.mubr.bf16.mxu0 0
    %5746 = vmatmul.mubr.bf16.gmra.mxu0 %v5354
    %v5747 = vpop.f32.mrf.mxu0
    %v5748 = vadd.f32 %v5407, %v5747
    %v5749 = vpop.f32.mrf.mxu0
    %v5750 = vpop.f32.mrf.mxu0
    %v5751 = vadd.f32 %v5407, %v5750
    %v5752 = vpop.f32.mrf.mxu0
    %5753 = vmatprep.mubr.bf16.mxu0 0
    %5754 = vmatmul.mubr.bf16.gmra.mxu0 %v5355
    %v5755 = vpop.f32.mrf.mxu0
    %v5756 = vadd.f32 %v5407, %v5755
    %v5757 = vpop.f32.mrf.mxu0
    %v5758 = vpop.f32.mrf.mxu0
    %v5759 = vadd.f32 %v5407, %v5758
    %v5760 = vpop.f32.mrf.mxu0
    %5761 = vmatprep.mubr.bf16.mxu0 0
    %5762 = vmatmul.mubr.bf16.gmra.mxu0 %v5356
    %v5763 = vpop.f32.mrf.mxu0
    %v5764 = vadd.f32 %v5407, %v5763
    %v5765 = vpop.f32.mrf.mxu0
    %v5766 = vpop.f32.mrf.mxu0
    %v5767 = vadd.f32 %v5407, %v5766
    %v5768 = vpop.f32.mrf.mxu0
    %5769 = vmatprep.mubr.bf16.mxu0 0
    %5770 = vmatmul.mubr.bf16.gmra.mxu0 %v5357
    %v5771 = vpop.f32.mrf.mxu0
    %v5772 = vadd.f32 %v5407, %v5771
    %v5773 = vpop.f32.mrf.mxu0
    %v5774 = vpop.f32.mrf.mxu0
    %v5775 = vadd.f32 %v5407, %v5774
    %v5776 = vpop.f32.mrf.mxu0
    %5777 = vmatprep.mubr.bf16.mxu0 0
    %5778 = vmatmul.mubr.bf16.gmra.mxu0 %v5358
    %v5779 = vpop.f32.mrf.mxu0
    %v5780 = vadd.f32 %v5407, %v5779
    %v5781 = vpop.f32.mrf.mxu0
    %v5782 = vpop.f32.mrf.mxu0
    %v5783 = vadd.f32 %v5407, %v5782
    %v5784 = vpop.f32.mrf.mxu0
    %5785 = vmatprep.mubr.bf16.mxu0 0
    %5786 = vmatmul.mubr.bf16.gmra.mxu0 %v5359
    %v5787 = vpop.f32.mrf.mxu0
    %v5788 = vadd.f32 %v5407, %v5787
    %v5789 = vpop.f32.mrf.mxu0
    %v5790 = vpop.f32.mrf.mxu0
    %v5791 = vadd.f32 %v5407, %v5790
    %v5792 = vpop.f32.mrf.mxu0
    %5793 = vmatprep.mubr.bf16.mxu0 0
    %5794 = vmatmul.mubr.bf16.gmra.mxu0 %v5360
    %v5795 = vpop.f32.mrf.mxu0
    %v5796 = vadd.f32 %v5407, %v5795
    %v5797 = vpop.f32.mrf.mxu0
    %v5798 = vpop.f32.mrf.mxu0
    %v5799 = vadd.f32 %v5407, %v5798
    %v5800 = vpop.f32.mrf.mxu0
    %5801 = vmatprep.mubr.bf16.mxu0 0
    %5802 = vmatmul.mubr.bf16.gmra.mxu0 %v5361
    %v5803 = vpop.f32.mrf.mxu0
    %v5804 = vadd.f32 %v5407, %v5803
    %v5805 = vpop.f32.mrf.mxu0
    %v5806 = vpop.f32.mrf.mxu0
    %v5807 = vadd.f32 %v5407, %v5806
    %v5808 = vpop.f32.mrf.mxu0
    %5809 = vmatprep.mubr.bf16.mxu0 0
    %5810 = vmatmul.mubr.bf16.gmra.mxu0 %v5362
    %v5811 = vpop.f32.mrf.mxu0
    %v5812 = vadd.f32 %v5407, %v5811
    %v5813 = vpop.f32.mrf.mxu0
    %v5814 = vpop.f32.mrf.mxu0
    %v5815 = vadd.f32 %v5407, %v5814
    %v5816 = vpop.f32.mrf.mxu0
    %5817 = vmatprep.mubr.bf16.mxu0 0
    %5818 = vmatmul.mubr.bf16.gmra.mxu0 %v5363
    %v5819 = vpop.f32.mrf.mxu0
    %v5820 = vadd.f32 %v5407, %v5819
    %v5821 = vpop.f32.mrf.mxu0
    %v5822 = vpop.f32.mrf.mxu0
    %v5823 = vadd.f32 %v5407, %v5822
    %v5824 = vpop.f32.mrf.mxu0
    %5825 = vmatprep.mubr.bf16.mxu0 0
    %5826 = vmatmul.mubr.bf16.gmra.mxu0 %v5364
    %v5827 = vpop.f32.mrf.mxu0
    %v5828 = vadd.f32 %v5407, %v5827
    %v5829 = vpop.f32.mrf.mxu0
    %v5830 = vpop.f32.mrf.mxu0
    %v5831 = vadd.f32 %v5407, %v5830
    %v5832 = vpop.f32.mrf.mxu0
    %5833 = vmatprep.mubr.bf16.mxu0 0
    %5834 = vmatmul.mubr.bf16.gmra.mxu0 %v5365
    %v5835 = vpop.f32.mrf.mxu0
    %v5836 = vadd.f32 %v5407, %v5835
    %v5837 = vpop.f32.mrf.mxu0
    %v5838 = vpop.f32.mrf.mxu0
    %v5839 = vadd.f32 %v5407, %v5838
    %v5840 = vpop.f32.mrf.mxu0
    %5841 = vmatprep.mubr.bf16.mxu0 0
    %5842 = vmatmul.mubr.bf16.gmra.mxu0 %v5366
    %v5843 = vpop.f32.mrf.mxu0
    %v5844 = vadd.f32 %v5407, %v5843
    %v5845 = vpop.f32.mrf.mxu0
    %v5846 = vpop.f32.mrf.mxu0
    %v5847 = vadd.f32 %v5407, %v5846
    %v5848 = vpop.f32.mrf.mxu0
    %5849 = vmatprep.mubr.bf16.mxu0 0
    %5850 = vmatmul.mubr.bf16.gmra.mxu0 %v5367
    %v5851 = vpop.f32.mrf.mxu0
    %v5852 = vadd.f32 %v5407, %v5851
    %v5853 = vpop.f32.mrf.mxu0
    %v5854 = vpop.f32.mrf.mxu0
    %v5855 = vadd.f32 %v5407, %v5854
    %v5856 = vpop.f32.mrf.mxu0
    %5857 = vmatprep.mubr.bf16.mxu0 0
    %5858 = vmatmul.mubr.bf16.gmra.mxu0 %v5368
    %v5859 = vpop.f32.mrf.mxu0
    %v5860 = vadd.f32 %v5407, %v5859
    %v5861 = vpop.f32.mrf.mxu0
    %v5862 = vpop.f32.mrf.mxu0
    %v5863 = vadd.f32 %v5407, %v5862
    %v5864 = vpop.f32.mrf.mxu0
    %5865 = vmatprep.mubr.bf16.mxu0 0
    %5866 = vmatmul.mubr.bf16.gmra.mxu0 %v5369
    %v5867 = vpop.f32.mrf.mxu0
    %v5868 = vadd.f32 %v5407, %v5867
    %v5869 = vpop.f32.mrf.mxu0
    %v5870 = vpop.f32.mrf.mxu0
    %v5871 = vadd.f32 %v5407, %v5870
    %v5872 = vpop.f32.mrf.mxu0
    %5873 = vmatprep.mubr.bf16.mxu0 0
    %5874 = vmatmul.mubr.bf16.gmra.mxu0 %v5370
    %v5875 = vpop.f32.mrf.mxu0
    %v5876 = vadd.f32 %v5407, %v5875
    %v5877 = vpop.f32.mrf.mxu0
    %v5878 = vpop.f32.mrf.mxu0
    %v5879 = vadd.f32 %v5407, %v5878
    %v5880 = vpop.f32.mrf.mxu0
    %5881 = vmatprep.mubr.bf16.mxu0 0
    %5882 = vmatmul.mubr.bf16.gmra.mxu0 %v5371
    %v5883 = vpop.f32.mrf.mxu0
    %v5884 = vadd.f32 %v5407, %v5883
    %v5885 = vpop.f32.mrf.mxu0
    %v5886 = vpop.f32.mrf.mxu0
    %v5887 = vadd.f32 %v5407, %v5886
    %v5888 = vpop.f32.mrf.mxu0
    %5889 = vmatprep.mubr.bf16.mxu0 0
    %5890 = vmatmul.mubr.bf16.gmra.mxu0 %v5372
    %v5891 = vpop.f32.mrf.mxu0
    %v5892 = vadd.f32 %v5407, %v5891
    %v5893 = vpop.f32.mrf.mxu0
    %v5894 = vpop.f32.mrf.mxu0
    %v5895 = vadd.f32 %v5407, %v5894
    %v5896 = vpop.f32.mrf.mxu0
    %5897 = vmatprep.mubr.bf16.mxu0 0
    %5898 = vmatmul.mubr.bf16.gmra.mxu0 %v5373
    %v5899 = vpop.f32.mrf.mxu0
    %v5900 = vadd.f32 %v5407, %v5899
    %v5901 = vpop.f32.mrf.mxu0
    %v5902 = vpop.f32.mrf.mxu0
    %v5903 = vadd.f32 %v5407, %v5902
    %v5904 = vpop.f32.mrf.mxu0
    %5905 = vmatprep.mubr.bf16.mxu0 0
    %5906 = vmatmul.mubr.bf16.gmra.mxu0 %v5374
    %v5907 = vpop.f32.mrf.mxu0
    %v5908 = vadd.f32 %v5407, %v5907
    %v5909 = vpop.f32.mrf.mxu0
    %v5910 = vpop.f32.mrf.mxu0
    %v5911 = vadd.f32 %v5407, %v5910
    %v5912 = vpop.f32.mrf.mxu0
    %5913 = vmatprep.mubr.bf16.mxu0 0
    %5914 = vmatmul.mubr.bf16.gmra.mxu0 %v5375
    %v5915 = vpop.f32.mrf.mxu0
    %v5916 = vadd.f32 %v5407, %v5915
    %v5917 = vpop.f32.mrf.mxu0
    %v5918 = vpop.f32.mrf.mxu0
    %v5919 = vadd.f32 %v5407, %v5918
    %v5920 = vpop.f32.mrf.mxu0
    %5921 = vmatprep.mubr.bf16.mxu0 0
    %5922 = vmatmul.mubr.bf16.gmra.mxu0 %v5376
    %v5923 = vpop.f32.mrf.mxu0
    %v5924 = vadd.f32 %v5407, %v5923
    %v5925 = vpop.f32.mrf.mxu0
    %v5926 = vpop.f32.mrf.mxu0
    %v5927 = vadd.f32 %v5407, %v5926
    %v5928 = vpop.f32.mrf.mxu0
    %5929 = vmatprep.mubr.bf16.mxu0 0
    %5930 = vmatmul.mubr.bf16.gmra.mxu0 %v5377
    %v5931 = vpop.f32.mrf.mxu0
    %v5932 = vadd.f32 %v5407, %v5931
    %v5933 = vpop.f32.mrf.mxu0
    %v5934 = vpop.f32.mrf.mxu0
    %v5935 = vadd.f32 %v5407, %v5934
    %v5936 = vpop.f32.mrf.mxu0
    %5937 = vmatprep.mubr.bf16.mxu0 0
    %5938 = vmatmul.mubr.bf16.gmra.mxu0 %v5378
    %v5939 = vpop.f32.mrf.mxu0
    %v5940 = vadd.f32 %v5407, %v5939
    %v5941 = vpop.f32.mrf.mxu0
    %v5942 = vpop.f32.mrf.mxu0
    %v5943 = vadd.f32 %v5407, %v5942
    %v5944 = vpop.f32.mrf.mxu0
    %5945 = vmatprep.mubr.bf16.mxu0 0
    %5946 = vmatmul.mubr.bf16.gmra.mxu0 %v5379
    %v5947 = vpop.f32.mrf.mxu0
    %v5948 = vadd.f32 %v5407, %v5947
    %v5949 = vpop.f32.mrf.mxu0
    %v5950 = vpop.f32.mrf.mxu0
    %v5951 = vadd.f32 %v5407, %v5950
    %v5952 = vpop.f32.mrf.mxu0
    %5953 = vmatprep.mubr.bf16.mxu0 0
    %5954 = vmatmul.mubr.bf16.gmra.mxu0 %v5380
    %v5955 = vpop.f32.mrf.mxu0
    %v5956 = vadd.f32 %v5407, %v5955
    %v5957 = vpop.f32.mrf.mxu0
    %v5958 = vpop.f32.mrf.mxu0
    %v5959 = vadd.f32 %v5407, %v5958
    %v5960 = vpop.f32.mrf.mxu0
    %5961 = vmatprep.mubr.bf16.mxu0 0
    %5962 = vmatmul.mubr.bf16.gmra.mxu0 %v5381
    %v5963 = vpop.f32.mrf.mxu0
    %v5964 = vadd.f32 %v5407, %v5963
    %v5965 = vpop.f32.mrf.mxu0
    %v5966 = vpop.f32.mrf.mxu0
    %v5967 = vadd.f32 %v5407, %v5966
    %v5968 = vpop.f32.mrf.mxu0
    %5969 = vmatprep.mubr.bf16.mxu0 0
    %5970 = vmatmul.mubr.bf16.gmra.mxu0 %v5382
    %v5971 = vpop.f32.mrf.mxu0
    %v5972 = vadd.f32 %v5407, %v5971
    %v5973 = vpop.f32.mrf.mxu0
    %v5974 = vpop.f32.mrf.mxu0
    %v5975 = vadd.f32 %v5407, %v5974
    %v5976 = vpop.f32.mrf.mxu0
    %5977 = vmatprep.mubr.bf16.mxu0 0
    %5978 = vmatmul.mubr.bf16.gmra.mxu0 %v5383
    %v5979 = vpop.f32.mrf.mxu0
    %v5980 = vadd.f32 %v5407, %v5979
    %v5981 = vpop.f32.mrf.mxu0
    %v5982 = vpop.f32.mrf.mxu0
    %v5983 = vadd.f32 %v5407, %v5982
    %v5984 = vpop.f32.mrf.mxu0
    %5985 = vmatprep.mubr.bf16.mxu0 0
    %5986 = vmatmul.mubr.bf16.gmra.mxu0 %v5384
    %v5987 = vpop.f32.mrf.mxu0
    %v5988 = vadd.f32 %v5407, %v5987
    %v5989 = vpop.f32.mrf.mxu0
    %v5990 = vpop.f32.mrf.mxu0
    %v5991 = vadd.f32 %v5407, %v5990
    %v5992 = vpop.f32.mrf.mxu0
    %5993 = vmatprep.mubr.bf16.mxu0 0
    %5994 = vmatmul.mubr.bf16.gmra.mxu0 %v5385
    %v5995 = vpop.f32.mrf.mxu0
    %v5996 = vadd.f32 %v5407, %v5995
    %v5997 = vpop.f32.mrf.mxu0
    %v5998 = vpop.f32.mrf.mxu0
    %v5999 = vadd.f32 %v5407, %v5998
    %v6000 = vpop.f32.mrf.mxu0
    %6001 = vdwg.mxu0
    %v6002 = vmax.f32 %v5492, 0.0
    %v6003 = vmax.f32 %v5495, 0.0
    %v6004 = vmax.f32 %v5500, 0.0
    %v6005 = vmax.f32 %v5503, 0.0
    %v6006 = vmax.f32 %v5508, 0.0
    %v6007 = vmax.f32 %v5511, 0.0
    %v6008 = vmax.f32 %v5516, 0.0
    %v6009 = vmax.f32 %v5519, 0.0
    %v6010 = vmax.f32 %v5524, 0.0
    %v6011 = vmax.f32 %v5527, 0.0
    %v6012 = vmax.f32 %v5532, 0.0
    %v6013 = vmax.f32 %v5535, 0.0
    %v6014 = vmax.f32 %v5540, 0.0
    %v6015 = vmax.f32 %v5543, 0.0
    %v6016 = vmax.f32 %v5548, 0.0
    %v6017 = vmax.f32 %v5551, 0.0
    %v6018 = vmax.f32 %v5556, 0.0
    %v6019 = vmax.f32 %v5559, 0.0
    %v6020 = vmax.f32 %v5564, 0.0
    %v6021 = vmax.f32 %v5567, 0.0
    %v6022 = vmax.f32 %v5572, 0.0
    %v6023 = vmax.f32 %v5575, 0.0
    %v6024 = vmax.f32 %v5580, 0.0
    %v6025 = vmax.f32 %v5583, 0.0
    %v6026 = vmax.f32 %v5588, 0.0
    %v6027 = vmax.f32 %v5591, 0.0
    %v6028 = vmax.f32 %v5596, 0.0
    %v6029 = vmax.f32 %v5599, 0.0
    %v6030 = vmax.f32 %v5604, 0.0
    %v6031 = vmax.f32 %v5607, 0.0
    %v6032 = vmax.f32 %v5612, 0.0
    %v6033 = vmax.f32 %v5615, 0.0
    %v6034 = vmax.f32 %v5620, 0.0
    %v6035 = vmax.f32 %v5623, 0.0
    %v6036 = vmax.f32 %v5628, 0.0
    %v6037 = vmax.f32 %v5631, 0.0
    %v6038 = vmax.f32 %v5636, 0.0
    %v6039 = vmax.f32 %v5639, 0.0
    %v6040 = vmax.f32 %v5644, 0.0
    %v6041 = vmax.f32 %v5647, 0.0
    %v6042 = vmax.f32 %v5652, 0.0
    %v6043 = vmax.f32 %v5655, 0.0
    %v6044 = vmax.f32 %v5660, 0.0
    %v6045 = vmax.f32 %v5663, 0.0
    %v6046 = vmax.f32 %v5668, 0.0
    %v6047 = vmax.f32 %v5671, 0.0
    %v6048 = vmax.f32 %v5676, 0.0
    %v6049 = vmax.f32 %v5679, 0.0
    %v6050 = vmax.f32 %v5684, 0.0
    %v6051 = vmax.f32 %v5687, 0.0
    %v6052 = vmax.f32 %v5692, 0.0
    %v6053 = vmax.f32 %v5695, 0.0
    %v6054 = vmax.f32 %v5700, 0.0
    %v6055 = vmax.f32 %v5703, 0.0
    %v6056 = vmax.f32 %v5708, 0.0
    %v6057 = vmax.f32 %v5711, 0.0
    %v6058 = vmax.f32 %v5716, 0.0
    %v6059 = vmax.f32 %v5719, 0.0
    %v6060 = vmax.f32 %v5724, 0.0
    %v6061 = vmax.f32 %v5727, 0.0
    %v6062 = vmax.f32 %v5732, 0.0
    %v6063 = vmax.f32 %v5735, 0.0
    %v6064 = vmax.f32 %v5740, 0.0
    %v6065 = vmax.f32 %v5743, 0.0
    %v6066 = vmax.f32 %v5748, 0.0
    %v6067 = vmax.f32 %v5751, 0.0
    %v6068 = vmax.f32 %v5756, 0.0
    %v6069 = vmax.f32 %v5759, 0.0
    %v6070 = vmax.f32 %v5764, 0.0
    %v6071 = vmax.f32 %v5767, 0.0
    %v6072 = vmax.f32 %v5772, 0.0
    %v6073 = vmax.f32 %v5775, 0.0
    %v6074 = vmax.f32 %v5780, 0.0
    %v6075 = vmax.f32 %v5783, 0.0
    %v6076 = vmax.f32 %v5788, 0.0
    %v6077 = vmax.f32 %v5791, 0.0
    %v6078 = vmax.f32 %v5796, 0.0
    %v6079 = vmax.f32 %v5799, 0.0
    %v6080 = vmax.f32 %v5804, 0.0
    %v6081 = vmax.f32 %v5807, 0.0
    %v6082 = vmax.f32 %v5812, 0.0
    %v6083 = vmax.f32 %v5815, 0.0
    %v6084 = vmax.f32 %v5820, 0.0
    %v6085 = vmax.f32 %v5823, 0.0
    %v6086 = vmax.f32 %v5828, 0.0
    %v6087 = vmax.f32 %v5831, 0.0
    %v6088 = vmax.f32 %v5836, 0.0
    %v6089 = vmax.f32 %v5839, 0.0
    %v6090 = vmax.f32 %v5844, 0.0
    %v6091 = vmax.f32 %v5847, 0.0
    %v6092 = vmax.f32 %v5852, 0.0
    %v6093 = vmax.f32 %v5855, 0.0
    %v6094 = vmax.f32 %v5860, 0.0
    %v6095 = vmax.f32 %v5863, 0.0
    %v6096 = vmax.f32 %v5868, 0.0
    %v6097 = vmax.f32 %v5871, 0.0
    %v6098 = vmax.f32 %v5876, 0.0
    %v6099 = vmax.f32 %v5879, 0.0
    %v6100 = vmax.f32 %v5884, 0.0
    %v6101 = vmax.f32 %v5887, 0.0
    %v6102 = vmax.f32 %v5892, 0.0
    %v6103 = vmax.f32 %v5895, 0.0
    %v6104 = vmax.f32 %v5900, 0.0
    %v6105 = vmax.f32 %v5903, 0.0
    %v6106 = vmax.f32 %v5908, 0.0
    %v6107 = vmax.f32 %v5911, 0.0
    %v6108 = vmax.f32 %v5916, 0.0
    %v6109 = vmax.f32 %v5919, 0.0
    %v6110 = vmax.f32 %v5924, 0.0
    %v6111 = vmax.f32 %v5927, 0.0
    %v6112 = vmax.f32 %v5932, 0.0
    %v6113 = vmax.f32 %v5935, 0.0
    %v6114 = vmax.f32 %v5940, 0.0
    %v6115 = vmax.f32 %v5943, 0.0
    %v6116 = vmax.f32 %v5948, 0.0
    %v6117 = vmax.f32 %v5951, 0.0
    %v6118 = vmax.f32 %v5956, 0.0
    %v6119 = vmax.f32 %v5959, 0.0
    %v6120 = vmax.f32 %v5964, 0.0
    %v6121 = vmax.f32 %v5967, 0.0
    %v6122 = vmax.f32 %v5972, 0.0
    %v6123 = vmax.f32 %v5975, 0.0
    %v6124 = vmax.f32 %v5980, 0.0
    %v6125 = vmax.f32 %v5983, 0.0
    %v6126 = vmax.f32 %v5988, 0.0
    %v6127 = vmax.f32 %v5991, 0.0
    %v6128 = vmax.f32 %v5996, 0.0
    %v6129 = vmax.f32 %v5999, 0.0
    %v6130 = vpack.c.bf16 %v6003, %v6002
    %v6131 = vpack.c.bf16 %v6005, %v6004
    %v6132 = vpack.c.bf16 %v6007, %v6006
    %v6133 = vpack.c.bf16 %v6009, %v6008
    %v6134 = vpack.c.bf16 %v6011, %v6010
    %v6135 = vpack.c.bf16 %v6013, %v6012
    %v6136 = vpack.c.bf16 %v6015, %v6014
    %v6137 = vpack.c.bf16 %v6017, %v6016
    %v6138 = vpack.c.bf16 %v6019, %v6018
    %v6139 = vpack.c.bf16 %v6021, %v6020
    %v6140 = vpack.c.bf16 %v6023, %v6022
    %v6141 = vpack.c.bf16 %v6025, %v6024
    %v6142 = vpack.c.bf16 %v6027, %v6026
    %v6143 = vpack.c.bf16 %v6029, %v6028
    %v6144 = vpack.c.bf16 %v6031, %v6030
    %v6145 = vpack.c.bf16 %v6033, %v6032
    %v6146 = vpack.c.bf16 %v6035, %v6034
    %v6147 = vpack.c.bf16 %v6037, %v6036
    %v6148 = vpack.c.bf16 %v6039, %v6038
    %v6149 = vpack.c.bf16 %v6041, %v6040
    %v6150 = vpack.c.bf16 %v6043, %v6042
    %v6151 = vpack.c.bf16 %v6045, %v6044
    %v6152 = vpack.c.bf16 %v6047, %v6046
    %v6153 = vpack.c.bf16 %v6049, %v6048
    %v6154 = vpack.c.bf16 %v6051, %v6050
    %v6155 = vpack.c.bf16 %v6053, %v6052
    %v6156 = vpack.c.bf16 %v6055, %v6054
    %v6157 = vpack.c.bf16 %v6057, %v6056
    %v6158 = vpack.c.bf16 %v6059, %v6058
    %v6159 = vpack.c.bf16 %v6061, %v6060
    %v6160 = vpack.c.bf16 %v6063, %v6062
    %v6161 = vpack.c.bf16 %v6065, %v6064
    %v6162 = vpack.c.bf16 %v6067, %v6066
    %v6163 = vpack.c.bf16 %v6069, %v6068
    %v6164 = vpack.c.bf16 %v6071, %v6070
    %v6165 = vpack.c.bf16 %v6073, %v6072
    %v6166 = vpack.c.bf16 %v6075, %v6074
    %v6167 = vpack.c.bf16 %v6077, %v6076
    %v6168 = vpack.c.bf16 %v6079, %v6078
    %v6169 = vpack.c.bf16 %v6081, %v6080
    %v6170 = vpack.c.bf16 %v6083, %v6082
    %v6171 = vpack.c.bf16 %v6085, %v6084
    %v6172 = vpack.c.bf16 %v6087, %v6086
    %v6173 = vpack.c.bf16 %v6089, %v6088
    %v6174 = vpack.c.bf16 %v6091, %v6090
    %v6175 = vpack.c.bf16 %v6093, %v6092
    %v6176 = vpack.c.bf16 %v6095, %v6094
    %v6177 = vpack.c.bf16 %v6097, %v6096
    %v6178 = vpack.c.bf16 %v6099, %v6098
    %v6179 = vpack.c.bf16 %v6101, %v6100
    %v6180 = vpack.c.bf16 %v6103, %v6102
    %v6181 = vpack.c.bf16 %v6105, %v6104
    %v6182 = vpack.c.bf16 %v6107, %v6106
    %v6183 = vpack.c.bf16 %v6109, %v6108
    %v6184 = vpack.c.bf16 %v6111, %v6110
    %v6185 = vpack.c.bf16 %v6113, %v6112
    %v6186 = vpack.c.bf16 %v6115, %v6114
    %v6187 = vpack.c.bf16 %v6117, %v6116
    %v6188 = vpack.c.bf16 %v6119, %v6118
    %v6189 = vpack.c.bf16 %v6121, %v6120
    %v6190 = vpack.c.bf16 %v6123, %v6122
    %v6191 = vpack.c.bf16 %v6125, %v6124
    %v6192 = vpack.c.bf16 %v6127, %v6126
    %v6193 = vpack.c.bf16 %v6129, %v6128
    %v6194 = vld [vmem:[%s7] sm:$0xf]
    %v6195 = vld [vmem:[%s7 + $0x4] sm:$0xf]
    %v6196 = vld [vmem:[%s7 + $0x8] sm:$0xf]
    %v6197 = vld [vmem:[%s7 + $0xc] sm:$0xf]
    %v6198 = vld [vmem:[%s7 + $0x10] sm:$0xf]
    %v6199 = vld [vmem:[%s7 + $0x14] sm:$0xf]
    %v6200 = vld [vmem:[%s7 + $0x18] sm:$0xf]
    %v6201 = vld [vmem:[%s7 + $0x1c] sm:$0xf]
    %v6202 = vld [vmem:[%s7 + $0x20] sm:$0xf]
    %v6203 = vld [vmem:[%s7 + $0x24] sm:$0xf]
    %v6204 = vld [vmem:[%s7 + $0x28] sm:$0xf]
    %v6205 = vld [vmem:[%s7 + $0x2c] sm:$0xf]
    %v6206 = vld [vmem:[%s7 + $0x30] sm:$0xf]
    %v6207 = vld [vmem:[%s7 + $0x34] sm:$0xf]
    %v6208 = vld [vmem:[%s7 + $0x38] sm:$0xf]
    %v6209 = vld [vmem:[%s7 + $0x3c] sm:$0xf]
    %v6210 = vld [vmem:[%s8] sm:$0x1]
    %v6212 = vlaneseq
    %v6213 = vshrl.u32 %v6212, 7
    %v6214 = vsub.s32 0, %v6213
    %v6215 = vrot.slane %v6210, %v6214
    %v6233 = vunpack.c.l.b16 %v6194
    %v6234 = vunpack.c.l.b16 %v6195
    %v6235 = vunpack.c.l.b16 %v6196
    %v6236 = vunpack.c.l.b16 %v6197
    %v6237 = vunpack.c.l.b16 %v6198
    %v6238 = vunpack.c.l.b16 %v6199
    %v6239 = vunpack.c.l.b16 %v6200
    %v6240 = vunpack.c.l.b16 %v6201
    %v6241 = vunpack.c.l.b16 %v6202
    %v6242 = vunpack.c.l.b16 %v6203
    %v6243 = vunpack.c.l.b16 %v6204
    %v6244 = vunpack.c.l.b16 %v6205
    %v6245 = vunpack.c.l.b16 %v6206
    %v6246 = vunpack.c.l.b16 %v6207
    %v6247 = vunpack.c.l.b16 %v6208
    %v6248 = vunpack.c.l.b16 %v6209
    %v6249 = vpack.c.b16 %v6234, %v6233
    %v6250 = vpack.c.b16 %v6236, %v6235
    %v6251 = vpack.c.b16 %v6238, %v6237
    %v6252 = vpack.c.b16 %v6240, %v6239
    %v6253 = vpack.c.b16 %v6242, %v6241
    %v6254 = vpack.c.b16 %v6244, %v6243
    %v6255 = vpack.c.b16 %v6246, %v6245
    %v6256 = vpack.c.b16 %v6248, %v6247
    %6265 = vmatprep.subr.bf16.mxu0 0
    %6266 = vmatpush1.bf16.msra.mxu0 %v6256
    %6267 = vmatprep.subr.bf16.mxu0 0
    %6268 = vmatpush1.bf16.msra.mxu0 %v6255
    %6269 = vmatprep.subr.bf16.mxu0 0
    %6270 = vmatpush1.bf16.msra.mxu0 %v6254
    %6271 = vmatprep.subr.bf16.mxu0 0
    %6272 = vmatpush1.bf16.msra.mxu0 %v6253
    %6273 = vmatprep.subr.bf16.mxu0 0
    %6274 = vmatpush1.bf16.msra.mxu0 %v6252
    %6275 = vmatprep.subr.bf16.mxu0 0
    %6276 = vmatpush1.bf16.msra.mxu0 %v6251
    %6277 = vmatprep.subr.bf16.mxu0 0
    %6278 = vmatpush1.bf16.msra.mxu0 %v6250
    %6279 = vmatprep.subr.bf16.mxu0 0
    %6280 = vmatpush1.bf16.msra.mxu0 %v6249
    %6281 = vmatprep.subr.bf16.mxu0 0
    %6282 = vmatpush2.bf16.msra.mxu0 0
    %6283 = vmatprep.subr.bf16.mxu0 0
    %6284 = vmatpush2.bf16.msra.mxu0 0
    %6285 = vmatprep.subr.bf16.mxu0 0
    %6286 = vmatpush2.bf16.msra.mxu0 0
    %6287 = vmatprep.subr.bf16.mxu0 0
    %6288 = vmatpush2.bf16.msra.mxu0 0
    %6289 = vmatprep.subr.bf16.mxu0 0
    %6290 = vmatpush2.bf16.msra.mxu0 0
    %6291 = vmatprep.subr.bf16.mxu0 0
    %6292 = vmatpush2.bf16.msra.mxu0 0
    %6293 = vmatprep.subr.bf16.mxu0 0
    %6294 = vmatpush2.bf16.msra.mxu0 0
    %6295 = vmatprep.subr.bf16.mxu0 0
    %6296 = vmatpush2.bf16.msra.mxu0 0
    %6297 = vmatprep.mubr.bf16.mxu0 0
    %6298 = vmatmul.mubr.bf16.gmra.mxu0 %v6130
    %v6299 = vpop.f32.mrf.mxu0
    %v6300 = vadd.f32 %v6215, %v6299
    %v6301 = vpop.f32.mrf.mxu0
    %v6302 = vpop.f32.mrf.mxu0
    %v6303 = vadd.f32 %v6215, %v6302
    %v6304 = vpop.f32.mrf.mxu0
    %6305 = vmatprep.mubr.bf16.mxu0 0
    %6306 = vmatmul.mubr.bf16.gmra.mxu0 %v6131
    %v6307 = vpop.f32.mrf.mxu0
    %v6308 = vadd.f32 %v6215, %v6307
    %v6309 = vpop.f32.mrf.mxu0
    %v6310 = vpop.f32.mrf.mxu0
    %v6311 = vadd.f32 %v6215, %v6310
    %v6312 = vpop.f32.mrf.mxu0
    %6313 = vmatprep.mubr.bf16.mxu0 0
    %6314 = vmatmul.mubr.bf16.gmra.mxu0 %v6132
    %v6315 = vpop.f32.mrf.mxu0
    %v6316 = vadd.f32 %v6215, %v6315
    %v6317 = vpop.f32.mrf.mxu0
    %v6318 = vpop.f32.mrf.mxu0
    %v6319 = vadd.f32 %v6215, %v6318
    %v6320 = vpop.f32.mrf.mxu0
    %6321 = vmatprep.mubr.bf16.mxu0 0
    %6322 = vmatmul.mubr.bf16.gmra.mxu0 %v6133
    %v6323 = vpop.f32.mrf.mxu0
    %v6324 = vadd.f32 %v6215, %v6323
    %v6325 = vpop.f32.mrf.mxu0
    %v6326 = vpop.f32.mrf.mxu0
    %v6327 = vadd.f32 %v6215, %v6326
    %v6328 = vpop.f32.mrf.mxu0
    %6329 = vmatprep.mubr.bf16.mxu0 0
    %6330 = vmatmul.mubr.bf16.gmra.mxu0 %v6134
    %v6331 = vpop.f32.mrf.mxu0
    %v6332 = vadd.f32 %v6215, %v6331
    %v6333 = vpop.f32.mrf.mxu0
    %v6334 = vpop.f32.mrf.mxu0
    %v6335 = vadd.f32 %v6215, %v6334
    %v6336 = vpop.f32.mrf.mxu0
    %6337 = vmatprep.mubr.bf16.mxu0 0
    %6338 = vmatmul.mubr.bf16.gmra.mxu0 %v6135
    %v6339 = vpop.f32.mrf.mxu0
    %v6340 = vadd.f32 %v6215, %v6339
    %v6341 = vpop.f32.mrf.mxu0
    %v6342 = vpop.f32.mrf.mxu0
    %v6343 = vadd.f32 %v6215, %v6342
    %v6344 = vpop.f32.mrf.mxu0
    %6345 = vmatprep.mubr.bf16.mxu0 0
    %6346 = vmatmul.mubr.bf16.gmra.mxu0 %v6136
    %v6347 = vpop.f32.mrf.mxu0
    %v6348 = vadd.f32 %v6215, %v6347
    %v6349 = vpop.f32.mrf.mxu0
    %v6350 = vpop.f32.mrf.mxu0
    %v6351 = vadd.f32 %v6215, %v6350
    %v6352 = vpop.f32.mrf.mxu0
    %6353 = vmatprep.mubr.bf16.mxu0 0
    %6354 = vmatmul.mubr.bf16.gmra.mxu0 %v6137
    %v6355 = vpop.f32.mrf.mxu0
    %v6356 = vadd.f32 %v6215, %v6355
    %v6357 = vpop.f32.mrf.mxu0
    %v6358 = vpop.f32.mrf.mxu0
    %v6359 = vadd.f32 %v6215, %v6358
    %v6360 = vpop.f32.mrf.mxu0
    %6361 = vmatprep.mubr.bf16.mxu0 0
    %6362 = vmatmul.mubr.bf16.gmra.mxu0 %v6138
    %v6363 = vpop.f32.mrf.mxu0
    %v6364 = vadd.f32 %v6215, %v6363
    %v6365 = vpop.f32.mrf.mxu0
    %v6366 = vpop.f32.mrf.mxu0
    %v6367 = vadd.f32 %v6215, %v6366
    %v6368 = vpop.f32.mrf.mxu0
    %6369 = vmatprep.mubr.bf16.mxu0 0
    %6370 = vmatmul.mubr.bf16.gmra.mxu0 %v6139
    %v6371 = vpop.f32.mrf.mxu0
    %v6372 = vadd.f32 %v6215, %v6371
    %v6373 = vpop.f32.mrf.mxu0
    %v6374 = vpop.f32.mrf.mxu0
    %v6375 = vadd.f32 %v6215, %v6374
    %v6376 = vpop.f32.mrf.mxu0
    %6377 = vmatprep.mubr.bf16.mxu0 0
    %6378 = vmatmul.mubr.bf16.gmra.mxu0 %v6140
    %v6379 = vpop.f32.mrf.mxu0
    %v6380 = vadd.f32 %v6215, %v6379
    %v6381 = vpop.f32.mrf.mxu0
    %v6382 = vpop.f32.mrf.mxu0
    %v6383 = vadd.f32 %v6215, %v6382
    %v6384 = vpop.f32.mrf.mxu0
    %6385 = vmatprep.mubr.bf16.mxu0 0
    %6386 = vmatmul.mubr.bf16.gmra.mxu0 %v6141
    %v6387 = vpop.f32.mrf.mxu0
    %v6388 = vadd.f32 %v6215, %v6387
    %v6389 = vpop.f32.mrf.mxu0
    %v6390 = vpop.f32.mrf.mxu0
    %v6391 = vadd.f32 %v6215, %v6390
    %v6392 = vpop.f32.mrf.mxu0
    %6393 = vmatprep.mubr.bf16.mxu0 0
    %6394 = vmatmul.mubr.bf16.gmra.mxu0 %v6142
    %v6395 = vpop.f32.mrf.mxu0
    %v6396 = vadd.f32 %v6215, %v6395
    %v6397 = vpop.f32.mrf.mxu0
    %v6398 = vpop.f32.mrf.mxu0
    %v6399 = vadd.f32 %v6215, %v6398
    %v6400 = vpop.f32.mrf.mxu0
    %6401 = vmatprep.mubr.bf16.mxu0 0
    %6402 = vmatmul.mubr.bf16.gmra.mxu0 %v6143
    %v6403 = vpop.f32.mrf.mxu0
    %v6404 = vadd.f32 %v6215, %v6403
    %v6405 = vpop.f32.mrf.mxu0
    %v6406 = vpop.f32.mrf.mxu0
    %v6407 = vadd.f32 %v6215, %v6406
    %v6408 = vpop.f32.mrf.mxu0
    %6409 = vmatprep.mubr.bf16.mxu0 0
    %6410 = vmatmul.mubr.bf16.gmra.mxu0 %v6144
    %v6411 = vpop.f32.mrf.mxu0
    %v6412 = vadd.f32 %v6215, %v6411
    %v6413 = vpop.f32.mrf.mxu0
    %v6414 = vpop.f32.mrf.mxu0
    %v6415 = vadd.f32 %v6215, %v6414
    %v6416 = vpop.f32.mrf.mxu0
    %6417 = vmatprep.mubr.bf16.mxu0 0
    %6418 = vmatmul.mubr.bf16.gmra.mxu0 %v6145
    %v6419 = vpop.f32.mrf.mxu0
    %v6420 = vadd.f32 %v6215, %v6419
    %v6421 = vpop.f32.mrf.mxu0
    %v6422 = vpop.f32.mrf.mxu0
    %v6423 = vadd.f32 %v6215, %v6422
    %v6424 = vpop.f32.mrf.mxu0
    %6425 = vmatprep.mubr.bf16.mxu0 0
    %6426 = vmatmul.mubr.bf16.gmra.mxu0 %v6146
    %v6427 = vpop.f32.mrf.mxu0
    %v6428 = vadd.f32 %v6215, %v6427
    %v6429 = vpop.f32.mrf.mxu0
    %v6430 = vpop.f32.mrf.mxu0
    %v6431 = vadd.f32 %v6215, %v6430
    %v6432 = vpop.f32.mrf.mxu0
    %6433 = vmatprep.mubr.bf16.mxu0 0
    %6434 = vmatmul.mubr.bf16.gmra.mxu0 %v6147
    %v6435 = vpop.f32.mrf.mxu0
    %v6436 = vadd.f32 %v6215, %v6435
    %v6437 = vpop.f32.mrf.mxu0
    %v6438 = vpop.f32.mrf.mxu0
    %v6439 = vadd.f32 %v6215, %v6438
    %v6440 = vpop.f32.mrf.mxu0
    %6441 = vmatprep.mubr.bf16.mxu0 0
    %6442 = vmatmul.mubr.bf16.gmra.mxu0 %v6148
    %v6443 = vpop.f32.mrf.mxu0
    %v6444 = vadd.f32 %v6215, %v6443
    %v6445 = vpop.f32.mrf.mxu0
    %v6446 = vpop.f32.mrf.mxu0
    %v6447 = vadd.f32 %v6215, %v6446
    %v6448 = vpop.f32.mrf.mxu0
    %6449 = vmatprep.mubr.bf16.mxu0 0
    %6450 = vmatmul.mubr.bf16.gmra.mxu0 %v6149
    %v6451 = vpop.f32.mrf.mxu0
    %v6452 = vadd.f32 %v6215, %v6451
    %v6453 = vpop.f32.mrf.mxu0
    %v6454 = vpop.f32.mrf.mxu0
    %v6455 = vadd.f32 %v6215, %v6454
    %v6456 = vpop.f32.mrf.mxu0
    %6457 = vmatprep.mubr.bf16.mxu0 0
    %6458 = vmatmul.mubr.bf16.gmra.mxu0 %v6150
    %v6459 = vpop.f32.mrf.mxu0
    %v6460 = vadd.f32 %v6215, %v6459
    %v6461 = vpop.f32.mrf.mxu0
    %v6462 = vpop.f32.mrf.mxu0
    %v6463 = vadd.f32 %v6215, %v6462
    %v6464 = vpop.f32.mrf.mxu0
    %6465 = vmatprep.mubr.bf16.mxu0 0
    %6466 = vmatmul.mubr.bf16.gmra.mxu0 %v6151
    %v6467 = vpop.f32.mrf.mxu0
    %v6468 = vadd.f32 %v6215, %v6467
    %v6469 = vpop.f32.mrf.mxu0
    %v6470 = vpop.f32.mrf.mxu0
    %v6471 = vadd.f32 %v6215, %v6470
    %v6472 = vpop.f32.mrf.mxu0
    %6473 = vmatprep.mubr.bf16.mxu0 0
    %6474 = vmatmul.mubr.bf16.gmra.mxu0 %v6152
    %v6475 = vpop.f32.mrf.mxu0
    %v6476 = vadd.f32 %v6215, %v6475
    %v6477 = vpop.f32.mrf.mxu0
    %v6478 = vpop.f32.mrf.mxu0
    %v6479 = vadd.f32 %v6215, %v6478
    %v6480 = vpop.f32.mrf.mxu0
    %6481 = vmatprep.mubr.bf16.mxu0 0
    %6482 = vmatmul.mubr.bf16.gmra.mxu0 %v6153
    %v6483 = vpop.f32.mrf.mxu0
    %v6484 = vadd.f32 %v6215, %v6483
    %v6485 = vpop.f32.mrf.mxu0
    %v6486 = vpop.f32.mrf.mxu0
    %v6487 = vadd.f32 %v6215, %v6486
    %v6488 = vpop.f32.mrf.mxu0
    %6489 = vmatprep.mubr.bf16.mxu0 0
    %6490 = vmatmul.mubr.bf16.gmra.mxu0 %v6154
    %v6491 = vpop.f32.mrf.mxu0
    %v6492 = vadd.f32 %v6215, %v6491
    %v6493 = vpop.f32.mrf.mxu0
    %v6494 = vpop.f32.mrf.mxu0
    %v6495 = vadd.f32 %v6215, %v6494
    %v6496 = vpop.f32.mrf.mxu0
    %6497 = vmatprep.mubr.bf16.mxu0 0
    %6498 = vmatmul.mubr.bf16.gmra.mxu0 %v6155
    %v6499 = vpop.f32.mrf.mxu0
    %v6500 = vadd.f32 %v6215, %v6499
    %v6501 = vpop.f32.mrf.mxu0
    %v6502 = vpop.f32.mrf.mxu0
    %v6503 = vadd.f32 %v6215, %v6502
    %v6504 = vpop.f32.mrf.mxu0
    %6505 = vmatprep.mubr.bf16.mxu0 0
    %6506 = vmatmul.mubr.bf16.gmra.mxu0 %v6156
    %v6507 = vpop.f32.mrf.mxu0
    %v6508 = vadd.f32 %v6215, %v6507
    %v6509 = vpop.f32.mrf.mxu0
    %v6510 = vpop.f32.mrf.mxu0
    %v6511 = vadd.f32 %v6215, %v6510
    %v6512 = vpop.f32.mrf.mxu0
    %6513 = vmatprep.mubr.bf16.mxu0 0
    %6514 = vmatmul.mubr.bf16.gmra.mxu0 %v6157
    %v6515 = vpop.f32.mrf.mxu0
    %v6516 = vadd.f32 %v6215, %v6515
    %v6517 = vpop.f32.mrf.mxu0
    %v6518 = vpop.f32.mrf.mxu0
    %v6519 = vadd.f32 %v6215, %v6518
    %v6520 = vpop.f32.mrf.mxu0
    %6521 = vmatprep.mubr.bf16.mxu0 0
    %6522 = vmatmul.mubr.bf16.gmra.mxu0 %v6158
    %v6523 = vpop.f32.mrf.mxu0
    %v6524 = vadd.f32 %v6215, %v6523
    %v6525 = vpop.f32.mrf.mxu0
    %v6526 = vpop.f32.mrf.mxu0
    %v6527 = vadd.f32 %v6215, %v6526
    %v6528 = vpop.f32.mrf.mxu0
    %6529 = vmatprep.mubr.bf16.mxu0 0
    %6530 = vmatmul.mubr.bf16.gmra.mxu0 %v6159
    %v6531 = vpop.f32.mrf.mxu0
    %v6532 = vadd.f32 %v6215, %v6531
    %v6533 = vpop.f32.mrf.mxu0
    %v6534 = vpop.f32.mrf.mxu0
    %v6535 = vadd.f32 %v6215, %v6534
    %v6536 = vpop.f32.mrf.mxu0
    %6537 = vmatprep.mubr.bf16.mxu0 0
    %6538 = vmatmul.mubr.bf16.gmra.mxu0 %v6160
    %v6539 = vpop.f32.mrf.mxu0
    %v6540 = vadd.f32 %v6215, %v6539
    %v6541 = vpop.f32.mrf.mxu0
    %v6542 = vpop.f32.mrf.mxu0
    %v6543 = vadd.f32 %v6215, %v6542
    %v6544 = vpop.f32.mrf.mxu0
    %6545 = vmatprep.mubr.bf16.mxu0 0
    %6546 = vmatmul.mubr.bf16.gmra.mxu0 %v6161
    %v6547 = vpop.f32.mrf.mxu0
    %v6548 = vadd.f32 %v6215, %v6547
    %v6549 = vpop.f32.mrf.mxu0
    %v6550 = vpop.f32.mrf.mxu0
    %v6551 = vadd.f32 %v6215, %v6550
    %v6552 = vpop.f32.mrf.mxu0
    %6553 = vmatprep.mubr.bf16.mxu0 0
    %6554 = vmatmul.mubr.bf16.gmra.mxu0 %v6162
    %v6555 = vpop.f32.mrf.mxu0
    %v6556 = vadd.f32 %v6215, %v6555
    %v6557 = vpop.f32.mrf.mxu0
    %v6558 = vpop.f32.mrf.mxu0
    %v6559 = vadd.f32 %v6215, %v6558
    %v6560 = vpop.f32.mrf.mxu0
    %6561 = vmatprep.mubr.bf16.mxu0 0
    %6562 = vmatmul.mubr.bf16.gmra.mxu0 %v6163
    %v6563 = vpop.f32.mrf.mxu0
    %v6564 = vadd.f32 %v6215, %v6563
    %v6565 = vpop.f32.mrf.mxu0
    %v6566 = vpop.f32.mrf.mxu0
    %v6567 = vadd.f32 %v6215, %v6566
    %v6568 = vpop.f32.mrf.mxu0
    %6569 = vmatprep.mubr.bf16.mxu0 0
    %6570 = vmatmul.mubr.bf16.gmra.mxu0 %v6164
    %v6571 = vpop.f32.mrf.mxu0
    %v6572 = vadd.f32 %v6215, %v6571
    %v6573 = vpop.f32.mrf.mxu0
    %v6574 = vpop.f32.mrf.mxu0
    %v6575 = vadd.f32 %v6215, %v6574
    %v6576 = vpop.f32.mrf.mxu0
    %6577 = vmatprep.mubr.bf16.mxu0 0
    %6578 = vmatmul.mubr.bf16.gmra.mxu0 %v6165
    %v6579 = vpop.f32.mrf.mxu0
    %v6580 = vadd.f32 %v6215, %v6579
    %v6581 = vpop.f32.mrf.mxu0
    %v6582 = vpop.f32.mrf.mxu0
    %v6583 = vadd.f32 %v6215, %v6582
    %v6584 = vpop.f32.mrf.mxu0
    %6585 = vmatprep.mubr.bf16.mxu0 0
    %6586 = vmatmul.mubr.bf16.gmra.mxu0 %v6166
    %v6587 = vpop.f32.mrf.mxu0
    %v6588 = vadd.f32 %v6215, %v6587
    %v6589 = vpop.f32.mrf.mxu0
    %v6590 = vpop.f32.mrf.mxu0
    %v6591 = vadd.f32 %v6215, %v6590
    %v6592 = vpop.f32.mrf.mxu0
    %6593 = vmatprep.mubr.bf16.mxu0 0
    %6594 = vmatmul.mubr.bf16.gmra.mxu0 %v6167
    %v6595 = vpop.f32.mrf.mxu0
    %v6596 = vadd.f32 %v6215, %v6595
    %v6597 = vpop.f32.mrf.mxu0
    %v6598 = vpop.f32.mrf.mxu0
    %v6599 = vadd.f32 %v6215, %v6598
    %v6600 = vpop.f32.mrf.mxu0
    %6601 = vmatprep.mubr.bf16.mxu0 0
    %6602 = vmatmul.mubr.bf16.gmra.mxu0 %v6168
    %v6603 = vpop.f32.mrf.mxu0
    %v6604 = vadd.f32 %v6215, %v6603
    %v6605 = vpop.f32.mrf.mxu0
    %v6606 = vpop.f32.mrf.mxu0
    %v6607 = vadd.f32 %v6215, %v6606
    %v6608 = vpop.f32.mrf.mxu0
    %6609 = vmatprep.mubr.bf16.mxu0 0
    %6610 = vmatmul.mubr.bf16.gmra.mxu0 %v6169
    %v6611 = vpop.f32.mrf.mxu0
    %v6612 = vadd.f32 %v6215, %v6611
    %v6613 = vpop.f32.mrf.mxu0
    %v6614 = vpop.f32.mrf.mxu0
    %v6615 = vadd.f32 %v6215, %v6614
    %v6616 = vpop.f32.mrf.mxu0
    %6617 = vmatprep.mubr.bf16.mxu0 0
    %6618 = vmatmul.mubr.bf16.gmra.mxu0 %v6170
    %v6619 = vpop.f32.mrf.mxu0
    %v6620 = vadd.f32 %v6215, %v6619
    %v6621 = vpop.f32.mrf.mxu0
    %v6622 = vpop.f32.mrf.mxu0
    %v6623 = vadd.f32 %v6215, %v6622
    %v6624 = vpop.f32.mrf.mxu0
    %6625 = vmatprep.mubr.bf16.mxu0 0
    %6626 = vmatmul.mubr.bf16.gmra.mxu0 %v6171
    %v6627 = vpop.f32.mrf.mxu0
    %v6628 = vadd.f32 %v6215, %v6627
    %v6629 = vpop.f32.mrf.mxu0
    %v6630 = vpop.f32.mrf.mxu0
    %v6631 = vadd.f32 %v6215, %v6630
    %v6632 = vpop.f32.mrf.mxu0
    %6633 = vmatprep.mubr.bf16.mxu0 0
    %6634 = vmatmul.mubr.bf16.gmra.mxu0 %v6172
    %v6635 = vpop.f32.mrf.mxu0
    %v6636 = vadd.f32 %v6215, %v6635
    %v6637 = vpop.f32.mrf.mxu0
    %v6638 = vpop.f32.mrf.mxu0
    %v6639 = vadd.f32 %v6215, %v6638
    %v6640 = vpop.f32.mrf.mxu0
    %6641 = vmatprep.mubr.bf16.mxu0 0
    %6642 = vmatmul.mubr.bf16.gmra.mxu0 %v6173
    %v6643 = vpop.f32.mrf.mxu0
    %v6644 = vadd.f32 %v6215, %v6643
    %v6645 = vpop.f32.mrf.mxu0
    %v6646 = vpop.f32.mrf.mxu0
    %v6647 = vadd.f32 %v6215, %v6646
    %v6648 = vpop.f32.mrf.mxu0
    %6649 = vmatprep.mubr.bf16.mxu0 0
    %6650 = vmatmul.mubr.bf16.gmra.mxu0 %v6174
    %v6651 = vpop.f32.mrf.mxu0
    %v6652 = vadd.f32 %v6215, %v6651
    %v6653 = vpop.f32.mrf.mxu0
    %v6654 = vpop.f32.mrf.mxu0
    %v6655 = vadd.f32 %v6215, %v6654
    %v6656 = vpop.f32.mrf.mxu0
    %6657 = vmatprep.mubr.bf16.mxu0 0
    %6658 = vmatmul.mubr.bf16.gmra.mxu0 %v6175
    %v6659 = vpop.f32.mrf.mxu0
    %v6660 = vadd.f32 %v6215, %v6659
    %v6661 = vpop.f32.mrf.mxu0
    %v6662 = vpop.f32.mrf.mxu0
    %v6663 = vadd.f32 %v6215, %v6662
    %v6664 = vpop.f32.mrf.mxu0
    %6665 = vmatprep.mubr.bf16.mxu0 0
    %6666 = vmatmul.mubr.bf16.gmra.mxu0 %v6176
    %v6667 = vpop.f32.mrf.mxu0
    %v6668 = vadd.f32 %v6215, %v6667
    %v6669 = vpop.f32.mrf.mxu0
    %v6670 = vpop.f32.mrf.mxu0
    %v6671 = vadd.f32 %v6215, %v6670
    %v6672 = vpop.f32.mrf.mxu0
    %6673 = vmatprep.mubr.bf16.mxu0 0
    %6674 = vmatmul.mubr.bf16.gmra.mxu0 %v6177
    %v6675 = vpop.f32.mrf.mxu0
    %v6676 = vadd.f32 %v6215, %v6675
    %v6677 = vpop.f32.mrf.mxu0
    %v6678 = vpop.f32.mrf.mxu0
    %v6679 = vadd.f32 %v6215, %v6678
    %v6680 = vpop.f32.mrf.mxu0
    %6681 = vmatprep.mubr.bf16.mxu0 0
    %6682 = vmatmul.mubr.bf16.gmra.mxu0 %v6178
    %v6683 = vpop.f32.mrf.mxu0
    %v6684 = vadd.f32 %v6215, %v6683
    %v6685 = vpop.f32.mrf.mxu0
    %v6686 = vpop.f32.mrf.mxu0
    %v6687 = vadd.f32 %v6215, %v6686
    %v6688 = vpop.f32.mrf.mxu0
    %6689 = vmatprep.mubr.bf16.mxu0 0
    %6690 = vmatmul.mubr.bf16.gmra.mxu0 %v6179
    %v6691 = vpop.f32.mrf.mxu0
    %v6692 = vadd.f32 %v6215, %v6691
    %v6693 = vpop.f32.mrf.mxu0
    %v6694 = vpop.f32.mrf.mxu0
    %v6695 = vadd.f32 %v6215, %v6694
    %v6696 = vpop.f32.mrf.mxu0
    %6697 = vmatprep.mubr.bf16.mxu0 0
    %6698 = vmatmul.mubr.bf16.gmra.mxu0 %v6180
    %v6699 = vpop.f32.mrf.mxu0
    %v6700 = vadd.f32 %v6215, %v6699
    %v6701 = vpop.f32.mrf.mxu0
    %v6702 = vpop.f32.mrf.mxu0
    %v6703 = vadd.f32 %v6215, %v6702
    %v6704 = vpop.f32.mrf.mxu0
    %6705 = vmatprep.mubr.bf16.mxu0 0
    %6706 = vmatmul.mubr.bf16.gmra.mxu0 %v6181
    %v6707 = vpop.f32.mrf.mxu0
    %v6708 = vadd.f32 %v6215, %v6707
    %v6709 = vpop.f32.mrf.mxu0
    %v6710 = vpop.f32.mrf.mxu0
    %v6711 = vadd.f32 %v6215, %v6710
    %v6712 = vpop.f32.mrf.mxu0
    %6713 = vmatprep.mubr.bf16.mxu0 0
    %6714 = vmatmul.mubr.bf16.gmra.mxu0 %v6182
    %v6715 = vpop.f32.mrf.mxu0
    %v6716 = vadd.f32 %v6215, %v6715
    %v6717 = vpop.f32.mrf.mxu0
    %v6718 = vpop.f32.mrf.mxu0
    %v6719 = vadd.f32 %v6215, %v6718
    %v6720 = vpop.f32.mrf.mxu0
    %6721 = vmatprep.mubr.bf16.mxu0 0
    %6722 = vmatmul.mubr.bf16.gmra.mxu0 %v6183
    %v6723 = vpop.f32.mrf.mxu0
    %v6724 = vadd.f32 %v6215, %v6723
    %v6725 = vpop.f32.mrf.mxu0
    %v6726 = vpop.f32.mrf.mxu0
    %v6727 = vadd.f32 %v6215, %v6726
    %v6728 = vpop.f32.mrf.mxu0
    %6729 = vmatprep.mubr.bf16.mxu0 0
    %6730 = vmatmul.mubr.bf16.gmra.mxu0 %v6184
    %v6731 = vpop.f32.mrf.mxu0
    %v6732 = vadd.f32 %v6215, %v6731
    %v6733 = vpop.f32.mrf.mxu0
    %v6734 = vpop.f32.mrf.mxu0
    %v6735 = vadd.f32 %v6215, %v6734
    %v6736 = vpop.f32.mrf.mxu0
    %6737 = vmatprep.mubr.bf16.mxu0 0
    %6738 = vmatmul.mubr.bf16.gmra.mxu0 %v6185
    %v6739 = vpop.f32.mrf.mxu0
    %v6740 = vadd.f32 %v6215, %v6739
    %v6741 = vpop.f32.mrf.mxu0
    %v6742 = vpop.f32.mrf.mxu0
    %v6743 = vadd.f32 %v6215, %v6742
    %v6744 = vpop.f32.mrf.mxu0
    %6745 = vmatprep.mubr.bf16.mxu0 0
    %6746 = vmatmul.mubr.bf16.gmra.mxu0 %v6186
    %v6747 = vpop.f32.mrf.mxu0
    %v6748 = vadd.f32 %v6215, %v6747
    %v6749 = vpop.f32.mrf.mxu0
    %v6750 = vpop.f32.mrf.mxu0
    %v6751 = vadd.f32 %v6215, %v6750
    %v6752 = vpop.f32.mrf.mxu0
    %6753 = vmatprep.mubr.bf16.mxu0 0
    %6754 = vmatmul.mubr.bf16.gmra.mxu0 %v6187
    %v6755 = vpop.f32.mrf.mxu0
    %v6756 = vadd.f32 %v6215, %v6755
    %v6757 = vpop.f32.mrf.mxu0
    %v6758 = vpop.f32.mrf.mxu0
    %v6759 = vadd.f32 %v6215, %v6758
    %v6760 = vpop.f32.mrf.mxu0
    %6761 = vmatprep.mubr.bf16.mxu0 0
    %6762 = vmatmul.mubr.bf16.gmra.mxu0 %v6188
    %v6763 = vpop.f32.mrf.mxu0
    %v6764 = vadd.f32 %v6215, %v6763
    %v6765 = vpop.f32.mrf.mxu0
    %v6766 = vpop.f32.mrf.mxu0
    %v6767 = vadd.f32 %v6215, %v6766
    %v6768 = vpop.f32.mrf.mxu0
    %6769 = vmatprep.mubr.bf16.mxu0 0
    %6770 = vmatmul.mubr.bf16.gmra.mxu0 %v6189
    %v6771 = vpop.f32.mrf.mxu0
    %v6772 = vadd.f32 %v6215, %v6771
    %v6773 = vpop.f32.mrf.mxu0
    %v6774 = vpop.f32.mrf.mxu0
    %v6775 = vadd.f32 %v6215, %v6774
    %v6776 = vpop.f32.mrf.mxu0
    %6777 = vmatprep.mubr.bf16.mxu0 0
    %6778 = vmatmul.mubr.bf16.gmra.mxu0 %v6190
    %v6779 = vpop.f32.mrf.mxu0
    %v6780 = vadd.f32 %v6215, %v6779
    %v6781 = vpop.f32.mrf.mxu0
    %v6782 = vpop.f32.mrf.mxu0
    %v6783 = vadd.f32 %v6215, %v6782
    %v6784 = vpop.f32.mrf.mxu0
    %6785 = vmatprep.mubr.bf16.mxu0 0
    %6786 = vmatmul.mubr.bf16.gmra.mxu0 %v6191
    %v6787 = vpop.f32.mrf.mxu0
    %v6788 = vadd.f32 %v6215, %v6787
    %v6789 = vpop.f32.mrf.mxu0
    %v6790 = vpop.f32.mrf.mxu0
    %v6791 = vadd.f32 %v6215, %v6790
    %v6792 = vpop.f32.mrf.mxu0
    %6793 = vmatprep.mubr.bf16.mxu0 0
    %6794 = vmatmul.mubr.bf16.gmra.mxu0 %v6192
    %v6795 = vpop.f32.mrf.mxu0
    %v6796 = vadd.f32 %v6215, %v6795
    %v6797 = vpop.f32.mrf.mxu0
    %v6798 = vpop.f32.mrf.mxu0
    %v6799 = vadd.f32 %v6215, %v6798
    %v6800 = vpop.f32.mrf.mxu0
    %6801 = vmatprep.mubr.bf16.mxu0 0
    %6802 = vmatmul.mubr.bf16.gmra.mxu0 %v6193
    %v6803 = vpop.f32.mrf.mxu0
    %v6804 = vadd.f32 %v6215, %v6803
    %v6805 = vpop.f32.mrf.mxu0
    %v6806 = vpop.f32.mrf.mxu0
    %v6807 = vadd.f32 %v6215, %v6806
    %v6808 = vpop.f32.mrf.mxu0
    %6809 = vdwg.mxu0
    %v6810 = vmax.f32 %v6300, 0.0
    %v6811 = vmax.f32 %v6303, 0.0
    %v6812 = vmax.f32 %v6308, 0.0
    %v6813 = vmax.f32 %v6311, 0.0
    %v6814 = vmax.f32 %v6316, 0.0
    %v6815 = vmax.f32 %v6319, 0.0
    %v6816 = vmax.f32 %v6324, 0.0
    %v6817 = vmax.f32 %v6327, 0.0
    %v6818 = vmax.f32 %v6332, 0.0
    %v6819 = vmax.f32 %v6335, 0.0
    %v6820 = vmax.f32 %v6340, 0.0
    %v6821 = vmax.f32 %v6343, 0.0
    %v6822 = vmax.f32 %v6348, 0.0
    %v6823 = vmax.f32 %v6351, 0.0
    %v6824 = vmax.f32 %v6356, 0.0
    %v6825 = vmax.f32 %v6359, 0.0
    %v6826 = vmax.f32 %v6364, 0.0
    %v6827 = vmax.f32 %v6367, 0.0
    %v6828 = vmax.f32 %v6372, 0.0
    %v6829 = vmax.f32 %v6375, 0.0
    %v6830 = vmax.f32 %v6380, 0.0
    %v6831 = vmax.f32 %v6383, 0.0
    %v6832 = vmax.f32 %v6388, 0.0
    %v6833 = vmax.f32 %v6391, 0.0
    %v6834 = vmax.f32 %v6396, 0.0
    %v6835 = vmax.f32 %v6399, 0.0
    %v6836 = vmax.f32 %v6404, 0.0
    %v6837 = vmax.f32 %v6407, 0.0
    %v6838 = vmax.f32 %v6412, 0.0
    %v6839 = vmax.f32 %v6415, 0.0
    %v6840 = vmax.f32 %v6420, 0.0
    %v6841 = vmax.f32 %v6423, 0.0
    %v6842 = vmax.f32 %v6428, 0.0
    %v6843 = vmax.f32 %v6431, 0.0
    %v6844 = vmax.f32 %v6436, 0.0
    %v6845 = vmax.f32 %v6439, 0.0
    %v6846 = vmax.f32 %v6444, 0.0
    %v6847 = vmax.f32 %v6447, 0.0
    %v6848 = vmax.f32 %v6452, 0.0
    %v6849 = vmax.f32 %v6455, 0.0
    %v6850 = vmax.f32 %v6460, 0.0
    %v6851 = vmax.f32 %v6463, 0.0
    %v6852 = vmax.f32 %v6468, 0.0
    %v6853 = vmax.f32 %v6471, 0.0
    %v6854 = vmax.f32 %v6476, 0.0
    %v6855 = vmax.f32 %v6479, 0.0
    %v6856 = vmax.f32 %v6484, 0.0
    %v6857 = vmax.f32 %v6487, 0.0
    %v6858 = vmax.f32 %v6492, 0.0
    %v6859 = vmax.f32 %v6495, 0.0
    %v6860 = vmax.f32 %v6500, 0.0
    %v6861 = vmax.f32 %v6503, 0.0
    %v6862 = vmax.f32 %v6508, 0.0
    %v6863 = vmax.f32 %v6511, 0.0
    %v6864 = vmax.f32 %v6516, 0.0
    %v6865 = vmax.f32 %v6519, 0.0
    %v6866 = vmax.f32 %v6524, 0.0
    %v6867 = vmax.f32 %v6527, 0.0
    %v6868 = vmax.f32 %v6532, 0.0
    %v6869 = vmax.f32 %v6535, 0.0
    %v6870 = vmax.f32 %v6540, 0.0
    %v6871 = vmax.f32 %v6543, 0.0
    %v6872 = vmax.f32 %v6548, 0.0
    %v6873 = vmax.f32 %v6551, 0.0
    %v6874 = vmax.f32 %v6556, 0.0
    %v6875 = vmax.f32 %v6559, 0.0
    %v6876 = vmax.f32 %v6564, 0.0
    %v6877 = vmax.f32 %v6567, 0.0
    %v6878 = vmax.f32 %v6572, 0.0
    %v6879 = vmax.f32 %v6575, 0.0
    %v6880 = vmax.f32 %v6580, 0.0
    %v6881 = vmax.f32 %v6583, 0.0
    %v6882 = vmax.f32 %v6588, 0.0
    %v6883 = vmax.f32 %v6591, 0.0
    %v6884 = vmax.f32 %v6596, 0.0
    %v6885 = vmax.f32 %v6599, 0.0
    %v6886 = vmax.f32 %v6604, 0.0
    %v6887 = vmax.f32 %v6607, 0.0
    %v6888 = vmax.f32 %v6612, 0.0
    %v6889 = vmax.f32 %v6615, 0.0
    %v6890 = vmax.f32 %v6620, 0.0
    %v6891 = vmax.f32 %v6623, 0.0
    %v6892 = vmax.f32 %v6628, 0.0
    %v6893 = vmax.f32 %v6631, 0.0
    %v6894 = vmax.f32 %v6636, 0.0
    %v6895 = vmax.f32 %v6639, 0.0
    %v6896 = vmax.f32 %v6644, 0.0
    %v6897 = vmax.f32 %v6647, 0.0
    %v6898 = vmax.f32 %v6652, 0.0
    %v6899 = vmax.f32 %v6655, 0.0
    %v6900 = vmax.f32 %v6660, 0.0
    %v6901 = vmax.f32 %v6663, 0.0
    %v6902 = vmax.f32 %v6668, 0.0
    %v6903 = vmax.f32 %v6671, 0.0
    %v6904 = vmax.f32 %v6676, 0.0
    %v6905 = vmax.f32 %v6679, 0.0
    %v6906 = vmax.f32 %v6684, 0.0
    %v6907 = vmax.f32 %v6687, 0.0
    %v6908 = vmax.f32 %v6692, 0.0
    %v6909 = vmax.f32 %v6695, 0.0
    %v6910 = vmax.f32 %v6700, 0.0
    %v6911 = vmax.f32 %v6703, 0.0
    %v6912 = vmax.f32 %v6708, 0.0
    %v6913 = vmax.f32 %v6711, 0.0
    %v6914 = vmax.f32 %v6716, 0.0
    %v6915 = vmax.f32 %v6719, 0.0
    %v6916 = vmax.f32 %v6724, 0.0
    %v6917 = vmax.f32 %v6727, 0.0
    %v6918 = vmax.f32 %v6732, 0.0
    %v6919 = vmax.f32 %v6735, 0.0
    %v6920 = vmax.f32 %v6740, 0.0
    %v6921 = vmax.f32 %v6743, 0.0
    %v6922 = vmax.f32 %v6748, 0.0
    %v6923 = vmax.f32 %v6751, 0.0
    %v6924 = vmax.f32 %v6756, 0.0
    %v6925 = vmax.f32 %v6759, 0.0
    %v6926 = vmax.f32 %v6764, 0.0
    %v6927 = vmax.f32 %v6767, 0.0
    %v6928 = vmax.f32 %v6772, 0.0
    %v6929 = vmax.f32 %v6775, 0.0
    %v6930 = vmax.f32 %v6780, 0.0
    %v6931 = vmax.f32 %v6783, 0.0
    %v6932 = vmax.f32 %v6788, 0.0
    %v6933 = vmax.f32 %v6791, 0.0
    %v6934 = vmax.f32 %v6796, 0.0
    %v6935 = vmax.f32 %v6799, 0.0
    %v6936 = vmax.f32 %v6804, 0.0
    %v6937 = vmax.f32 %v6807, 0.0
    %v6938 = vpack.c.bf16 %v6811, %v6810
    %v6939 = vpack.c.bf16 %v6813, %v6812
    %v6940 = vpack.c.bf16 %v6815, %v6814
    %v6941 = vpack.c.bf16 %v6817, %v6816
    %v6942 = vpack.c.bf16 %v6819, %v6818
    %v6943 = vpack.c.bf16 %v6821, %v6820
    %v6944 = vpack.c.bf16 %v6823, %v6822
    %v6945 = vpack.c.bf16 %v6825, %v6824
    %v6946 = vpack.c.bf16 %v6827, %v6826
    %v6947 = vpack.c.bf16 %v6829, %v6828
    %v6948 = vpack.c.bf16 %v6831, %v6830
    %v6949 = vpack.c.bf16 %v6833, %v6832
    %v6950 = vpack.c.bf16 %v6835, %v6834
    %v6951 = vpack.c.bf16 %v6837, %v6836
    %v6952 = vpack.c.bf16 %v6839, %v6838
    %v6953 = vpack.c.bf16 %v6841, %v6840
    %v6954 = vpack.c.bf16 %v6843, %v6842
    %v6955 = vpack.c.bf16 %v6845, %v6844
    %v6956 = vpack.c.bf16 %v6847, %v6846
    %v6957 = vpack.c.bf16 %v6849, %v6848
    %v6958 = vpack.c.bf16 %v6851, %v6850
    %v6959 = vpack.c.bf16 %v6853, %v6852
    %v6960 = vpack.c.bf16 %v6855, %v6854
    %v6961 = vpack.c.bf16 %v6857, %v6856
    %v6962 = vpack.c.bf16 %v6859, %v6858
    %v6963 = vpack.c.bf16 %v6861, %v6860
    %v6964 = vpack.c.bf16 %v6863, %v6862
    %v6965 = vpack.c.bf16 %v6865, %v6864
    %v6966 = vpack.c.bf16 %v6867, %v6866
    %v6967 = vpack.c.bf16 %v6869, %v6868
    %v6968 = vpack.c.bf16 %v6871, %v6870
    %v6969 = vpack.c.bf16 %v6873, %v6872
    %v6970 = vpack.c.bf16 %v6875, %v6874
    %v6971 = vpack.c.bf16 %v6877, %v6876
    %v6972 = vpack.c.bf16 %v6879, %v6878
    %v6973 = vpack.c.bf16 %v6881, %v6880
    %v6974 = vpack.c.bf16 %v6883, %v6882
    %v6975 = vpack.c.bf16 %v6885, %v6884
    %v6976 = vpack.c.bf16 %v6887, %v6886
    %v6977 = vpack.c.bf16 %v6889, %v6888
    %v6978 = vpack.c.bf16 %v6891, %v6890
    %v6979 = vpack.c.bf16 %v6893, %v6892
    %v6980 = vpack.c.bf16 %v6895, %v6894
    %v6981 = vpack.c.bf16 %v6897, %v6896
    %v6982 = vpack.c.bf16 %v6899, %v6898
    %v6983 = vpack.c.bf16 %v6901, %v6900
    %v6984 = vpack.c.bf16 %v6903, %v6902
    %v6985 = vpack.c.bf16 %v6905, %v6904
    %v6986 = vpack.c.bf16 %v6907, %v6906
    %v6987 = vpack.c.bf16 %v6909, %v6908
    %v6988 = vpack.c.bf16 %v6911, %v6910
    %v6989 = vpack.c.bf16 %v6913, %v6912
    %v6990 = vpack.c.bf16 %v6915, %v6914
    %v6991 = vpack.c.bf16 %v6917, %v6916
    %v6992 = vpack.c.bf16 %v6919, %v6918
    %v6993 = vpack.c.bf16 %v6921, %v6920
    %v6994 = vpack.c.bf16 %v6923, %v6922
    %v6995 = vpack.c.bf16 %v6925, %v6924
    %v6996 = vpack.c.bf16 %v6927, %v6926
    %v6997 = vpack.c.bf16 %v6929, %v6928
    %v6998 = vpack.c.bf16 %v6931, %v6930
    %v6999 = vpack.c.bf16 %v6933, %v6932
    %v7000 = vpack.c.bf16 %v6935, %v6934
    %v7001 = vpack.c.bf16 %v6937, %v6936
    %v7002 = vld [vmem:[%s9] sm:$0x1]
    %v7003 = vunpack.c.l.bf16 %v6938
    %v7004 = vunpack.c.h.bf16 %v6938
    %v7005 = vunpack.c.l.bf16 %v6939
    %v7006 = vunpack.c.h.bf16 %v6939
    %v7007 = vunpack.c.l.bf16 %v6940
    %v7008 = vunpack.c.h.bf16 %v6940
    %v7009 = vunpack.c.l.bf16 %v6941
    %v7010 = vunpack.c.h.bf16 %v6941
    %v7011 = vunpack.c.l.bf16 %v6942
    %v7012 = vunpack.c.h.bf16 %v6942
    %v7013 = vunpack.c.l.bf16 %v6943
    %v7014 = vunpack.c.h.bf16 %v6943
    %v7015 = vunpack.c.l.bf16 %v6944
    %v7016 = vunpack.c.h.bf16 %v6944
    %v7017 = vunpack.c.l.bf16 %v6945
    %v7018 = vunpack.c.h.bf16 %v6945
    %v7019 = vunpack.c.l.bf16 %v6946
    %v7020 = vunpack.c.h.bf16 %v6946
    %v7021 = vunpack.c.l.bf16 %v6947
    %v7022 = vunpack.c.h.bf16 %v6947
    %v7023 = vunpack.c.l.bf16 %v6948
    %v7024 = vunpack.c.h.bf16 %v6948
    %v7025 = vunpack.c.l.bf16 %v6949
    %v7026 = vunpack.c.h.bf16 %v6949
    %v7027 = vunpack.c.l.bf16 %v6950
    %v7028 = vunpack.c.h.bf16 %v6950
    %v7029 = vunpack.c.l.bf16 %v6951
    %v7030 = vunpack.c.h.bf16 %v6951
    %v7031 = vunpack.c.l.bf16 %v6952
    %v7032 = vunpack.c.h.bf16 %v6952
    %v7033 = vunpack.c.l.bf16 %v6953
    %v7034 = vunpack.c.h.bf16 %v6953
    %v7035 = vunpack.c.l.bf16 %v6954
    %v7036 = vunpack.c.h.bf16 %v6954
    %v7037 = vunpack.c.l.bf16 %v6955
    %v7038 = vunpack.c.h.bf16 %v6955
    %v7039 = vunpack.c.l.bf16 %v6956
    %v7040 = vunpack.c.h.bf16 %v6956
    %v7041 = vunpack.c.l.bf16 %v6957
    %v7042 = vunpack.c.h.bf16 %v6957
    %v7043 = vunpack.c.l.bf16 %v6958
    %v7044 = vunpack.c.h.bf16 %v6958
    %v7045 = vunpack.c.l.bf16 %v6959
    %v7046 = vunpack.c.h.bf16 %v6959
    %v7047 = vunpack.c.l.bf16 %v6960
    %v7048 = vunpack.c.h.bf16 %v6960
    %v7049 = vunpack.c.l.bf16 %v6961
    %v7050 = vunpack.c.h.bf16 %v6961
    %v7051 = vunpack.c.l.bf16 %v6962
    %v7052 = vunpack.c.h.bf16 %v6962
    %v7053 = vunpack.c.l.bf16 %v6963
    %v7054 = vunpack.c.h.bf16 %v6963
    %v7055 = vunpack.c.l.bf16 %v6964
    %v7056 = vunpack.c.h.bf16 %v6964
    %v7057 = vunpack.c.l.bf16 %v6965
    %v7058 = vunpack.c.h.bf16 %v6965
    %v7059 = vunpack.c.l.bf16 %v6966
    %v7060 = vunpack.c.h.bf16 %v6966
    %v7061 = vunpack.c.l.bf16 %v6967
    %v7062 = vunpack.c.h.bf16 %v6967
    %v7063 = vunpack.c.l.bf16 %v6968
    %v7064 = vunpack.c.h.bf16 %v6968
    %v7065 = vunpack.c.l.bf16 %v6969
    %v7066 = vunpack.c.h.bf16 %v6969
    %v7067 = vunpack.c.l.bf16 %v6970
    %v7068 = vunpack.c.h.bf16 %v6970
    %v7069 = vunpack.c.l.bf16 %v6971
    %v7070 = vunpack.c.h.bf16 %v6971
    %v7071 = vunpack.c.l.bf16 %v6972
    %v7072 = vunpack.c.h.bf16 %v6972
    %v7073 = vunpack.c.l.bf16 %v6973
    %v7074 = vunpack.c.h.bf16 %v6973
    %v7075 = vunpack.c.l.bf16 %v6974
    %v7076 = vunpack.c.h.bf16 %v6974
    %v7077 = vunpack.c.l.bf16 %v6975
    %v7078 = vunpack.c.h.bf16 %v6975
    %v7079 = vunpack.c.l.bf16 %v6976
    %v7080 = vunpack.c.h.bf16 %v6976
    %v7081 = vunpack.c.l.bf16 %v6977
    %v7082 = vunpack.c.h.bf16 %v6977
    %v7083 = vunpack.c.l.bf16 %v6978
    %v7084 = vunpack.c.h.bf16 %v6978
    %v7085 = vunpack.c.l.bf16 %v6979
    %v7086 = vunpack.c.h.bf16 %v6979
    %v7087 = vunpack.c.l.bf16 %v6980
    %v7088 = vunpack.c.h.bf16 %v6980
    %v7089 = vunpack.c.l.bf16 %v6981
    %v7090 = vunpack.c.h.bf16 %v6981
    %v7091 = vunpack.c.l.bf16 %v6982
    %v7092 = vunpack.c.h.bf16 %v6982
    %v7093 = vunpack.c.l.bf16 %v6983
    %v7094 = vunpack.c.h.bf16 %v6983
    %v7095 = vunpack.c.l.bf16 %v6984
    %v7096 = vunpack.c.h.bf16 %v6984
    %v7097 = vunpack.c.l.bf16 %v6985
    %v7098 = vunpack.c.h.bf16 %v6985
    %v7099 = vunpack.c.l.bf16 %v6986
    %v7100 = vunpack.c.h.bf16 %v6986
    %v7101 = vunpack.c.l.bf16 %v6987
    %v7102 = vunpack.c.h.bf16 %v6987
    %v7103 = vunpack.c.l.bf16 %v6988
    %v7104 = vunpack.c.h.bf16 %v6988
    %v7105 = vunpack.c.l.bf16 %v6989
    %v7106 = vunpack.c.h.bf16 %v6989
    %v7107 = vunpack.c.l.bf16 %v6990
    %v7108 = vunpack.c.h.bf16 %v6990
    %v7109 = vunpack.c.l.bf16 %v6991
    %v7110 = vunpack.c.h.bf16 %v6991
    %v7111 = vunpack.c.l.bf16 %v6992
    %v7112 = vunpack.c.h.bf16 %v6992
    %v7113 = vunpack.c.l.bf16 %v6993
    %v7114 = vunpack.c.h.bf16 %v6993
    %v7115 = vunpack.c.l.bf16 %v6994
    %v7116 = vunpack.c.h.bf16 %v6994
    %v7117 = vunpack.c.l.bf16 %v6995
    %v7118 = vunpack.c.h.bf16 %v6995
    %v7119 = vunpack.c.l.bf16 %v6996
    %v7120 = vunpack.c.h.bf16 %v6996
    %v7121 = vunpack.c.l.bf16 %v6997
    %v7122 = vunpack.c.h.bf16 %v6997
    %v7123 = vunpack.c.l.bf16 %v6998
    %v7124 = vunpack.c.h.bf16 %v6998
    %v7125 = vunpack.c.l.bf16 %v6999
    %v7126 = vunpack.c.h.bf16 %v6999
    %v7127 = vunpack.c.l.bf16 %v7000
    %v7128 = vunpack.c.h.bf16 %v7000
    %v7129 = vunpack.c.l.bf16 %v7001
    %v7130 = vunpack.c.h.bf16 %v7001
    %v7132 = vlaneseq
    %v7133 = vshrl.u32 %v7132, 7
    %v7134 = vsub.s32 0, %v7133
    %v7135 = vrot.slane %v7002, %v7134
    %v7137 = vmul.f32 %v7003, %v7135
    %v7138 = vmul.f32 %v7004, %v7135
    %v7139 = vmul.f32 %v7005, %v7135
    %v7140 = vmul.f32 %v7006, %v7135
    %v7141 = vmul.f32 %v7007, %v7135
    %v7142 = vmul.f32 %v7008, %v7135
    %v7143 = vmul.f32 %v7009, %v7135
    %v7144 = vmul.f32 %v7010, %v7135
    %v7145 = vmul.f32 %v7011, %v7135
    %v7146 = vmul.f32 %v7012, %v7135
    %v7147 = vmul.f32 %v7013, %v7135
    %v7148 = vmul.f32 %v7014, %v7135
    %v7149 = vmul.f32 %v7015, %v7135
    %v7150 = vmul.f32 %v7016, %v7135
    %v7151 = vmul.f32 %v7017, %v7135
    %v7152 = vmul.f32 %v7018, %v7135
    %v7153 = vmul.f32 %v7019, %v7135
    %v7154 = vmul.f32 %v7020, %v7135
    %v7155 = vmul.f32 %v7021, %v7135
    %v7156 = vmul.f32 %v7022, %v7135
    %v7157 = vmul.f32 %v7023, %v7135
    %v7158 = vmul.f32 %v7024, %v7135
    %v7159 = vmul.f32 %v7025, %v7135
    %v7160 = vmul.f32 %v7026, %v7135
    %v7161 = vmul.f32 %v7027, %v7135
    %v7162 = vmul.f32 %v7028, %v7135
    %v7163 = vmul.f32 %v7029, %v7135
    %v7164 = vmul.f32 %v7030, %v7135
    %v7165 = vmul.f32 %v7031, %v7135
    %v7166 = vmul.f32 %v7032, %v7135
    %v7167 = vmul.f32 %v7033, %v7135
    %v7168 = vmul.f32 %v7034, %v7135
    %v7169 = vmul.f32 %v7035, %v7135
    %v7170 = vmul.f32 %v7036, %v7135
    %v7171 = vmul.f32 %v7037, %v7135
    %v7172 = vmul.f32 %v7038, %v7135
    %v7173 = vmul.f32 %v7039, %v7135
    %v7174 = vmul.f32 %v7040, %v7135
    %v7175 = vmul.f32 %v7041, %v7135
    %v7176 = vmul.f32 %v7042, %v7135
    %v7177 = vmul.f32 %v7043, %v7135
    %v7178 = vmul.f32 %v7044, %v7135
    %v7179 = vmul.f32 %v7045, %v7135
    %v7180 = vmul.f32 %v7046, %v7135
    %v7181 = vmul.f32 %v7047, %v7135
    %v7182 = vmul.f32 %v7048, %v7135
    %v7183 = vmul.f32 %v7049, %v7135
    %v7184 = vmul.f32 %v7050, %v7135
    %v7185 = vmul.f32 %v7051, %v7135
    %v7186 = vmul.f32 %v7052, %v7135
    %v7187 = vmul.f32 %v7053, %v7135
    %v7188 = vmul.f32 %v7054, %v7135
    %v7189 = vmul.f32 %v7055, %v7135
    %v7190 = vmul.f32 %v7056, %v7135
    %v7191 = vmul.f32 %v7057, %v7135
    %v7192 = vmul.f32 %v7058, %v7135
    %v7193 = vmul.f32 %v7059, %v7135
    %v7194 = vmul.f32 %v7060, %v7135
    %v7195 = vmul.f32 %v7061, %v7135
    %v7196 = vmul.f32 %v7062, %v7135
    %v7197 = vmul.f32 %v7063, %v7135
    %v7198 = vmul.f32 %v7064, %v7135
    %v7199 = vmul.f32 %v7065, %v7135
    %v7200 = vmul.f32 %v7066, %v7135
    %v7201 = vmul.f32 %v7067, %v7135
    %v7202 = vmul.f32 %v7068, %v7135
    %v7203 = vmul.f32 %v7069, %v7135
    %v7204 = vmul.f32 %v7070, %v7135
    %v7205 = vmul.f32 %v7071, %v7135
    %v7206 = vmul.f32 %v7072, %v7135
    %v7207 = vmul.f32 %v7073, %v7135
    %v7208 = vmul.f32 %v7074, %v7135
    %v7209 = vmul.f32 %v7075, %v7135
    %v7210 = vmul.f32 %v7076, %v7135
    %v7211 = vmul.f32 %v7077, %v7135
    %v7212 = vmul.f32 %v7078, %v7135
    %v7213 = vmul.f32 %v7079, %v7135
    %v7214 = vmul.f32 %v7080, %v7135
    %v7215 = vmul.f32 %v7081, %v7135
    %v7216 = vmul.f32 %v7082, %v7135
    %v7217 = vmul.f32 %v7083, %v7135
    %v7218 = vmul.f32 %v7084, %v7135
    %v7219 = vmul.f32 %v7085, %v7135
    %v7220 = vmul.f32 %v7086, %v7135
    %v7221 = vmul.f32 %v7087, %v7135
    %v7222 = vmul.f32 %v7088, %v7135
    %v7223 = vmul.f32 %v7089, %v7135
    %v7224 = vmul.f32 %v7090, %v7135
    %v7225 = vmul.f32 %v7091, %v7135
    %v7226 = vmul.f32 %v7092, %v7135
    %v7227 = vmul.f32 %v7093, %v7135
    %v7228 = vmul.f32 %v7094, %v7135
    %v7229 = vmul.f32 %v7095, %v7135
    %v7230 = vmul.f32 %v7096, %v7135
    %v7231 = vmul.f32 %v7097, %v7135
    %v7232 = vmul.f32 %v7098, %v7135
    %v7233 = vmul.f32 %v7099, %v7135
    %v7234 = vmul.f32 %v7100, %v7135
    %v7235 = vmul.f32 %v7101, %v7135
    %v7236 = vmul.f32 %v7102, %v7135
    %v7237 = vmul.f32 %v7103, %v7135
    %v7238 = vmul.f32 %v7104, %v7135
    %v7239 = vmul.f32 %v7105, %v7135
    %v7240 = vmul.f32 %v7106, %v7135
    %v7241 = vmul.f32 %v7107, %v7135
    %v7242 = vmul.f32 %v7108, %v7135
    %v7243 = vmul.f32 %v7109, %v7135
    %v7244 = vmul.f32 %v7110, %v7135
    %v7245 = vmul.f32 %v7111, %v7135
    %v7246 = vmul.f32 %v7112, %v7135
    %v7247 = vmul.f32 %v7113, %v7135
    %v7248 = vmul.f32 %v7114, %v7135
    %v7249 = vmul.f32 %v7115, %v7135
    %v7250 = vmul.f32 %v7116, %v7135
    %v7251 = vmul.f32 %v7117, %v7135
    %v7252 = vmul.f32 %v7118, %v7135
    %v7253 = vmul.f32 %v7119, %v7135
    %v7254 = vmul.f32 %v7120, %v7135
    %v7255 = vmul.f32 %v7121, %v7135
    %v7256 = vmul.f32 %v7122, %v7135
    %v7257 = vmul.f32 %v7123, %v7135
    %v7258 = vmul.f32 %v7124, %v7135
    %v7259 = vmul.f32 %v7125, %v7135
    %v7260 = vmul.f32 %v7126, %v7135
    %v7261 = vmul.f32 %v7127, %v7135
    %v7262 = vmul.f32 %v7128, %v7135
    %v7263 = vmul.f32 %v7129, %v7135
    %v7264 = vmul.f32 %v7130, %v7135
    %7265 = vadd.xlane.f32.xlu0 %v7137
    %v7266 = vpop.xlane.xlu0 %7265
    %7267 = vadd.xlane.f32.xlu0 %v7138
    %v7268 = vpop.xlane.xlu0 %7267
    %7269 = vadd.xlane.f32.xlu0 %v7139
    %v7270 = vpop.xlane.xlu0 %7269
    %7271 = vadd.xlane.f32.xlu0 %v7140
    %v7272 = vpop.xlane.xlu0 %7271
    %7273 = vadd.xlane.f32.xlu0 %v7141
    %v7274 = vpop.xlane.xlu0 %7273
    %7275 = vadd.xlane.f32.xlu0 %v7142
    %v7276 = vpop.xlane.xlu0 %7275
    %7277 = vadd.xlane.f32.xlu0 %v7143
    %v7278 = vpop.xlane.xlu0 %7277
    %7279 = vadd.xlane.f32.xlu0 %v7144
    %v7280 = vpop.xlane.xlu0 %7279
    %7281 = vadd.xlane.f32.xlu0 %v7145
    %v7282 = vpop.xlane.xlu0 %7281
    %7283 = vadd.xlane.f32.xlu0 %v7146
    %v7284 = vpop.xlane.xlu0 %7283
    %7285 = vadd.xlane.f32.xlu0 %v7147
    %v7286 = vpop.xlane.xlu0 %7285
    %7287 = vadd.xlane.f32.xlu0 %v7148
    %v7288 = vpop.xlane.xlu0 %7287
    %7289 = vadd.xlane.f32.xlu0 %v7149
    %v7290 = vpop.xlane.xlu0 %7289
    %7291 = vadd.xlane.f32.xlu0 %v7150
    %v7292 = vpop.xlane.xlu0 %7291
    %7293 = vadd.xlane.f32.xlu0 %v7151
    %v7294 = vpop.xlane.xlu0 %7293
    %7295 = vadd.xlane.f32.xlu0 %v7152
    %v7296 = vpop.xlane.xlu0 %7295
    %7297 = vadd.xlane.f32.xlu0 %v7153
    %v7298 = vpop.xlane.xlu0 %7297
    %7299 = vadd.xlane.f32.xlu0 %v7154
    %v7300 = vpop.xlane.xlu0 %7299
    %7301 = vadd.xlane.f32.xlu0 %v7155
    %v7302 = vpop.xlane.xlu0 %7301
    %7303 = vadd.xlane.f32.xlu0 %v7156
    %v7304 = vpop.xlane.xlu0 %7303
    %7305 = vadd.xlane.f32.xlu0 %v7157
    %v7306 = vpop.xlane.xlu0 %7305
    %7307 = vadd.xlane.f32.xlu0 %v7158
    %v7308 = vpop.xlane.xlu0 %7307
    %7309 = vadd.xlane.f32.xlu0 %v7159
    %v7310 = vpop.xlane.xlu0 %7309
    %7311 = vadd.xlane.f32.xlu0 %v7160
    %v7312 = vpop.xlane.xlu0 %7311
    %7313 = vadd.xlane.f32.xlu0 %v7161
    %v7314 = vpop.xlane.xlu0 %7313
    %7315 = vadd.xlane.f32.xlu0 %v7162
    %v7316 = vpop.xlane.xlu0 %7315
    %7317 = vadd.xlane.f32.xlu0 %v7163
    %v7318 = vpop.xlane.xlu0 %7317
    %7319 = vadd.xlane.f32.xlu0 %v7164
    %v7320 = vpop.xlane.xlu0 %7319
    %7321 = vadd.xlane.f32.xlu0 %v7165
    %v7322 = vpop.xlane.xlu0 %7321
    %7323 = vadd.xlane.f32.xlu0 %v7166
    %v7324 = vpop.xlane.xlu0 %7323
    %7325 = vadd.xlane.f32.xlu0 %v7167
    %v7326 = vpop.xlane.xlu0 %7325
    %7327 = vadd.xlane.f32.xlu0 %v7168
    %v7328 = vpop.xlane.xlu0 %7327
    %7329 = vadd.xlane.f32.xlu0 %v7169
    %v7330 = vpop.xlane.xlu0 %7329
    %7331 = vadd.xlane.f32.xlu0 %v7170
    %v7332 = vpop.xlane.xlu0 %7331
    %7333 = vadd.xlane.f32.xlu0 %v7171
    %v7334 = vpop.xlane.xlu0 %7333
    %7335 = vadd.xlane.f32.xlu0 %v7172
    %v7336 = vpop.xlane.xlu0 %7335
    %7337 = vadd.xlane.f32.xlu0 %v7173
    %v7338 = vpop.xlane.xlu0 %7337
    %7339 = vadd.xlane.f32.xlu0 %v7174
    %v7340 = vpop.xlane.xlu0 %7339
    %7341 = vadd.xlane.f32.xlu0 %v7175
    %v7342 = vpop.xlane.xlu0 %7341
    %7343 = vadd.xlane.f32.xlu0 %v7176
    %v7344 = vpop.xlane.xlu0 %7343
    %7345 = vadd.xlane.f32.xlu0 %v7177
    %v7346 = vpop.xlane.xlu0 %7345
    %7347 = vadd.xlane.f32.xlu0 %v7178
    %v7348 = vpop.xlane.xlu0 %7347
    %7349 = vadd.xlane.f32.xlu0 %v7179
    %v7350 = vpop.xlane.xlu0 %7349
    %7351 = vadd.xlane.f32.xlu0 %v7180
    %v7352 = vpop.xlane.xlu0 %7351
    %7353 = vadd.xlane.f32.xlu0 %v7181
    %v7354 = vpop.xlane.xlu0 %7353
    %7355 = vadd.xlane.f32.xlu0 %v7182
    %v7356 = vpop.xlane.xlu0 %7355
    %7357 = vadd.xlane.f32.xlu0 %v7183
    %v7358 = vpop.xlane.xlu0 %7357
    %7359 = vadd.xlane.f32.xlu0 %v7184
    %v7360 = vpop.xlane.xlu0 %7359
    %7361 = vadd.xlane.f32.xlu0 %v7185
    %v7362 = vpop.xlane.xlu0 %7361
    %7363 = vadd.xlane.f32.xlu0 %v7186
    %v7364 = vpop.xlane.xlu0 %7363
    %7365 = vadd.xlane.f32.xlu0 %v7187
    %v7366 = vpop.xlane.xlu0 %7365
    %7367 = vadd.xlane.f32.xlu0 %v7188
    %v7368 = vpop.xlane.xlu0 %7367
    %7369 = vadd.xlane.f32.xlu0 %v7189
    %v7370 = vpop.xlane.xlu0 %7369
    %7371 = vadd.xlane.f32.xlu0 %v7190
    %v7372 = vpop.xlane.xlu0 %7371
    %7373 = vadd.xlane.f32.xlu0 %v7191
    %v7374 = vpop.xlane.xlu0 %7373
    %7375 = vadd.xlane.f32.xlu0 %v7192
    %v7376 = vpop.xlane.xlu0 %7375
    %7377 = vadd.xlane.f32.xlu0 %v7193
    %v7378 = vpop.xlane.xlu0 %7377
    %7379 = vadd.xlane.f32.xlu0 %v7194
    %v7380 = vpop.xlane.xlu0 %7379
    %7381 = vadd.xlane.f32.xlu0 %v7195
    %v7382 = vpop.xlane.xlu0 %7381
    %7383 = vadd.xlane.f32.xlu0 %v7196
    %v7384 = vpop.xlane.xlu0 %7383
    %7385 = vadd.xlane.f32.xlu0 %v7197
    %v7386 = vpop.xlane.xlu0 %7385
    %7387 = vadd.xlane.f32.xlu0 %v7198
    %v7388 = vpop.xlane.xlu0 %7387
    %7389 = vadd.xlane.f32.xlu0 %v7199
    %v7390 = vpop.xlane.xlu0 %7389
    %7391 = vadd.xlane.f32.xlu0 %v7200
    %v7392 = vpop.xlane.xlu0 %7391
    %7393 = vadd.xlane.f32.xlu0 %v7201
    %v7394 = vpop.xlane.xlu0 %7393
    %7395 = vadd.xlane.f32.xlu0 %v7202
    %v7396 = vpop.xlane.xlu0 %7395
    %7397 = vadd.xlane.f32.xlu0 %v7203
    %v7398 = vpop.xlane.xlu0 %7397
    %7399 = vadd.xlane.f32.xlu0 %v7204
    %v7400 = vpop.xlane.xlu0 %7399
    %7401 = vadd.xlane.f32.xlu0 %v7205
    %v7402 = vpop.xlane.xlu0 %7401
    %7403 = vadd.xlane.f32.xlu0 %v7206
    %v7404 = vpop.xlane.xlu0 %7403
    %7405 = vadd.xlane.f32.xlu0 %v7207
    %v7406 = vpop.xlane.xlu0 %7405
    %7407 = vadd.xlane.f32.xlu0 %v7208
    %v7408 = vpop.xlane.xlu0 %7407
    %7409 = vadd.xlane.f32.xlu0 %v7209
    %v7410 = vpop.xlane.xlu0 %7409
    %7411 = vadd.xlane.f32.xlu0 %v7210
    %v7412 = vpop.xlane.xlu0 %7411
    %7413 = vadd.xlane.f32.xlu0 %v7211
    %v7414 = vpop.xlane.xlu0 %7413
    %7415 = vadd.xlane.f32.xlu0 %v7212
    %v7416 = vpop.xlane.xlu0 %7415
    %7417 = vadd.xlane.f32.xlu0 %v7213
    %v7418 = vpop.xlane.xlu0 %7417
    %7419 = vadd.xlane.f32.xlu0 %v7214
    %v7420 = vpop.xlane.xlu0 %7419
    %7421 = vadd.xlane.f32.xlu0 %v7215
    %v7422 = vpop.xlane.xlu0 %7421
    %7423 = vadd.xlane.f32.xlu0 %v7216
    %v7424 = vpop.xlane.xlu0 %7423
    %7425 = vadd.xlane.f32.xlu0 %v7217
    %v7426 = vpop.xlane.xlu0 %7425
    %7427 = vadd.xlane.f32.xlu0 %v7218
    %v7428 = vpop.xlane.xlu0 %7427
    %7429 = vadd.xlane.f32.xlu0 %v7219
    %v7430 = vpop.xlane.xlu0 %7429
    %7431 = vadd.xlane.f32.xlu0 %v7220
    %v7432 = vpop.xlane.xlu0 %7431
    %7433 = vadd.xlane.f32.xlu0 %v7221
    %v7434 = vpop.xlane.xlu0 %7433
    %7435 = vadd.xlane.f32.xlu0 %v7222
    %v7436 = vpop.xlane.xlu0 %7435
    %7437 = vadd.xlane.f32.xlu0 %v7223
    %v7438 = vpop.xlane.xlu0 %7437
    %7439 = vadd.xlane.f32.xlu0 %v7224
    %v7440 = vpop.xlane.xlu0 %7439
    %7441 = vadd.xlane.f32.xlu0 %v7225
    %v7442 = vpop.xlane.xlu0 %7441
    %7443 = vadd.xlane.f32.xlu0 %v7226
    %v7444 = vpop.xlane.xlu0 %7443
    %7445 = vadd.xlane.f32.xlu0 %v7227
    %v7446 = vpop.xlane.xlu0 %7445
    %7447 = vadd.xlane.f32.xlu0 %v7228
    %v7448 = vpop.xlane.xlu0 %7447
    %7449 = vadd.xlane.f32.xlu0 %v7229
    %v7450 = vpop.xlane.xlu0 %7449
    %7451 = vadd.xlane.f32.xlu0 %v7230
    %v7452 = vpop.xlane.xlu0 %7451
    %7453 = vadd.xlane.f32.xlu0 %v7231
    %v7454 = vpop.xlane.xlu0 %7453
    %7455 = vadd.xlane.f32.xlu0 %v7232
    %v7456 = vpop.xlane.xlu0 %7455
    %7457 = vadd.xlane.f32.xlu0 %v7233
    %v7458 = vpop.xlane.xlu0 %7457
    %7459 = vadd.xlane.f32.xlu0 %v7234
    %v7460 = vpop.xlane.xlu0 %7459
    %7461 = vadd.xlane.f32.xlu0 %v7235
    %v7462 = vpop.xlane.xlu0 %7461
    %7463 = vadd.xlane.f32.xlu0 %v7236
    %v7464 = vpop.xlane.xlu0 %7463
    %7465 = vadd.xlane.f32.xlu0 %v7237
    %v7466 = vpop.xlane.xlu0 %7465
    %7467 = vadd.xlane.f32.xlu0 %v7238
    %v7468 = vpop.xlane.xlu0 %7467
    %7469 = vadd.xlane.f32.xlu0 %v7239
    %v7470 = vpop.xlane.xlu0 %7469
    %7471 = vadd.xlane.f32.xlu0 %v7240
    %v7472 = vpop.xlane.xlu0 %7471
    %7473 = vadd.xlane.f32.xlu0 %v7241
    %v7474 = vpop.xlane.xlu0 %7473
    %7475 = vadd.xlane.f32.xlu0 %v7242
    %v7476 = vpop.xlane.xlu0 %7475
    %7477 = vadd.xlane.f32.xlu0 %v7243
    %v7478 = vpop.xlane.xlu0 %7477
    %7479 = vadd.xlane.f32.xlu0 %v7244
    %v7480 = vpop.xlane.xlu0 %7479
    %7481 = vadd.xlane.f32.xlu0 %v7245
    %v7482 = vpop.xlane.xlu0 %7481
    %7483 = vadd.xlane.f32.xlu0 %v7246
    %v7484 = vpop.xlane.xlu0 %7483
    %7485 = vadd.xlane.f32.xlu0 %v7247
    %v7486 = vpop.xlane.xlu0 %7485
    %7487 = vadd.xlane.f32.xlu0 %v7248
    %v7488 = vpop.xlane.xlu0 %7487
    %7489 = vadd.xlane.f32.xlu0 %v7249
    %v7490 = vpop.xlane.xlu0 %7489
    %7491 = vadd.xlane.f32.xlu0 %v7250
    %v7492 = vpop.xlane.xlu0 %7491
    %7493 = vadd.xlane.f32.xlu0 %v7251
    %v7494 = vpop.xlane.xlu0 %7493
    %7495 = vadd.xlane.f32.xlu0 %v7252
    %v7496 = vpop.xlane.xlu0 %7495
    %7497 = vadd.xlane.f32.xlu0 %v7253
    %v7498 = vpop.xlane.xlu0 %7497
    %7499 = vadd.xlane.f32.xlu0 %v7254
    %v7500 = vpop.xlane.xlu0 %7499
    %7501 = vadd.xlane.f32.xlu0 %v7255
    %v7502 = vpop.xlane.xlu0 %7501
    %7503 = vadd.xlane.f32.xlu0 %v7256
    %v7504 = vpop.xlane.xlu0 %7503
    %7505 = vadd.xlane.f32.xlu0 %v7257
    %v7506 = vpop.xlane.xlu0 %7505
    %7507 = vadd.xlane.f32.xlu0 %v7258
    %v7508 = vpop.xlane.xlu0 %7507
    %7509 = vadd.xlane.f32.xlu0 %v7259
    %v7510 = vpop.xlane.xlu0 %7509
    %7511 = vadd.xlane.f32.xlu0 %v7260
    %v7512 = vpop.xlane.xlu0 %7511
    %7513 = vadd.xlane.f32.xlu0 %v7261
    %v7514 = vpop.xlane.xlu0 %7513
    %7515 = vadd.xlane.f32.xlu0 %v7262
    %v7516 = vpop.xlane.xlu0 %7515
    %7517 = vadd.xlane.f32.xlu0 %v7263
    %v7518 = vpop.xlane.xlu0 %7517
    %7519 = vadd.xlane.f32.xlu0 %v7264
    %v7520 = vpop.xlane.xlu0 %7519
    %v7521 = vadd.f32 %v4226, %v7266
    %v7522 = vadd.f32 %v4227, %v7268
    %v7523 = vadd.f32 %v4228, %v7270
    %v7524 = vadd.f32 %v4229, %v7272
    %v7525 = vadd.f32 %v4230, %v7274
    %v7526 = vadd.f32 %v4231, %v7276
    %v7527 = vadd.f32 %v4232, %v7278
    %v7528 = vadd.f32 %v4233, %v7280
    %v7529 = vadd.f32 %v4234, %v7282
    %v7530 = vadd.f32 %v4235, %v7284
    %v7531 = vadd.f32 %v4236, %v7286
    %v7532 = vadd.f32 %v4237, %v7288
    %v7533 = vadd.f32 %v4238, %v7290
    %v7534 = vadd.f32 %v4239, %v7292
    %v7535 = vadd.f32 %v4240, %v7294
    %v7536 = vadd.f32 %v4241, %v7296
    %v7537 = vadd.f32 %v4242, %v7298
    %v7538 = vadd.f32 %v4243, %v7300
    %v7539 = vadd.f32 %v4244, %v7302
    %v7540 = vadd.f32 %v4245, %v7304
    %v7541 = vadd.f32 %v4246, %v7306
    %v7542 = vadd.f32 %v4247, %v7308
    %v7543 = vadd.f32 %v4248, %v7310
    %v7544 = vadd.f32 %v4249, %v7312
    %v7545 = vadd.f32 %v4250, %v7314
    %v7546 = vadd.f32 %v4251, %v7316
    %v7547 = vadd.f32 %v4252, %v7318
    %v7548 = vadd.f32 %v4253, %v7320
    %v7549 = vadd.f32 %v4254, %v7322
    %v7550 = vadd.f32 %v4255, %v7324
    %v7551 = vadd.f32 %v4256, %v7326
    %v7552 = vadd.f32 %v4257, %v7328
    %v7553 = vadd.f32 %v4258, %v7330
    %v7554 = vadd.f32 %v4259, %v7332
    %v7555 = vadd.f32 %v4260, %v7334
    %v7556 = vadd.f32 %v4261, %v7336
    %v7557 = vadd.f32 %v4262, %v7338
    %v7558 = vadd.f32 %v4263, %v7340
    %v7559 = vadd.f32 %v4264, %v7342
    %v7560 = vadd.f32 %v4265, %v7344
    %v7561 = vadd.f32 %v4266, %v7346
    %v7562 = vadd.f32 %v4267, %v7348
    %v7563 = vadd.f32 %v4268, %v7350
    %v7564 = vadd.f32 %v4269, %v7352
    %v7565 = vadd.f32 %v4270, %v7354
    %v7566 = vadd.f32 %v4271, %v7356
    %v7567 = vadd.f32 %v4272, %v7358
    %v7568 = vadd.f32 %v4273, %v7360
    %v7569 = vadd.f32 %v4274, %v7362
    %v7570 = vadd.f32 %v4275, %v7364
    %v7571 = vadd.f32 %v4276, %v7366
    %v7572 = vadd.f32 %v4277, %v7368
    %v7573 = vadd.f32 %v4278, %v7370
    %v7574 = vadd.f32 %v4279, %v7372
    %v7575 = vadd.f32 %v4280, %v7374
    %v7576 = vadd.f32 %v4281, %v7376
    %v7577 = vadd.f32 %v4282, %v7378
    %v7578 = vadd.f32 %v4283, %v7380
    %v7579 = vadd.f32 %v4284, %v7382
    %v7580 = vadd.f32 %v4285, %v7384
    %v7581 = vadd.f32 %v4286, %v7386
    %v7582 = vadd.f32 %v4287, %v7388
    %v7583 = vadd.f32 %v4288, %v7390
    %v7584 = vadd.f32 %v4289, %v7392
    %v7585 = vadd.f32 %v4290, %v7394
    %v7586 = vadd.f32 %v4291, %v7396
    %v7587 = vadd.f32 %v4292, %v7398
    %v7588 = vadd.f32 %v4293, %v7400
    %v7589 = vadd.f32 %v4294, %v7402
    %v7590 = vadd.f32 %v4295, %v7404
    %v7591 = vadd.f32 %v4296, %v7406
    %v7592 = vadd.f32 %v4297, %v7408
    %v7593 = vadd.f32 %v4298, %v7410
    %v7594 = vadd.f32 %v4299, %v7412
    %v7595 = vadd.f32 %v4300, %v7414
    %v7596 = vadd.f32 %v4301, %v7416
    %v7597 = vadd.f32 %v4302, %v7418
    %v7598 = vadd.f32 %v4303, %v7420
    %v7599 = vadd.f32 %v4304, %v7422
    %v7600 = vadd.f32 %v4305, %v7424
    %v7601 = vadd.f32 %v4306, %v7426
    %v7602 = vadd.f32 %v4307, %v7428
    %v7603 = vadd.f32 %v4308, %v7430
    %v7604 = vadd.f32 %v4309, %v7432
    %v7605 = vadd.f32 %v4310, %v7434
    %v7606 = vadd.f32 %v4311, %v7436
    %v7607 = vadd.f32 %v4312, %v7438
    %v7608 = vadd.f32 %v4313, %v7440
    %v7609 = vadd.f32 %v4314, %v7442
    %v7610 = vadd.f32 %v4315, %v7444
    %v7611 = vadd.f32 %v4316, %v7446
    %v7612 = vadd.f32 %v4317, %v7448
    %v7613 = vadd.f32 %v4318, %v7450
    %v7614 = vadd.f32 %v4319, %v7452
    %v7615 = vadd.f32 %v4320, %v7454
    %v7616 = vadd.f32 %v4321, %v7456
    %v7617 = vadd.f32 %v4322, %v7458
    %v7618 = vadd.f32 %v4323, %v7460
    %v7619 = vadd.f32 %v4324, %v7462
    %v7620 = vadd.f32 %v4325, %v7464
    %v7621 = vadd.f32 %v4326, %v7466
    %v7622 = vadd.f32 %v4327, %v7468
    %v7623 = vadd.f32 %v4328, %v7470
    %v7624 = vadd.f32 %v4329, %v7472
    %v7625 = vadd.f32 %v4330, %v7474
    %v7626 = vadd.f32 %v4331, %v7476
    %v7627 = vadd.f32 %v4332, %v7478
    %v7628 = vadd.f32 %v4333, %v7480
    %v7629 = vadd.f32 %v4334, %v7482
    %v7630 = vadd.f32 %v4335, %v7484
    %v7631 = vadd.f32 %v4336, %v7486
    %v7632 = vadd.f32 %v4337, %v7488
    %v7633 = vadd.f32 %v4338, %v7490
    %v7634 = vadd.f32 %v4339, %v7492
    %v7635 = vadd.f32 %v4340, %v7494
    %v7636 = vadd.f32 %v4341, %v7496
    %v7637 = vadd.f32 %v4342, %v7498
    %v7638 = vadd.f32 %v4343, %v7500
    %v7639 = vadd.f32 %v4344, %v7502
    %v7640 = vadd.f32 %v4345, %v7504
    %v7641 = vadd.f32 %v4346, %v7506
    %v7642 = vadd.f32 %v4347, %v7508
    %v7643 = vadd.f32 %v4348, %v7510
    %v7644 = vadd.f32 %v4349, %v7512
    %v7645 = vadd.f32 %v4350, %v7514
    %v7646 = vadd.f32 %v4351, %v7516
    %v7647 = vadd.f32 %v4352, %v7518
    %v7648 = vadd.f32 %v4353, %v7520
    %s7649 = sld [smem:[#allocation2]]
    %v7650 = vstv %s7649
    %v7651 = vadd.f32 %v7521, %v7650
    %v7652 = vadd.f32 %v7522, %v7650
    %v7653 = vadd.f32 %v7523, %v7650
    %v7654 = vadd.f32 %v7524, %v7650
    %v7655 = vadd.f32 %v7525, %v7650
    %v7656 = vadd.f32 %v7526, %v7650
    %v7657 = vadd.f32 %v7527, %v7650
    %v7658 = vadd.f32 %v7528, %v7650
    %v7659 = vadd.f32 %v7529, %v7650
    %v7660 = vadd.f32 %v7530, %v7650
    %v7661 = vadd.f32 %v7531, %v7650
    %v7662 = vadd.f32 %v7532, %v7650
    %v7663 = vadd.f32 %v7533, %v7650
    %v7664 = vadd.f32 %v7534, %v7650
    %v7665 = vadd.f32 %v7535, %v7650
    %v7666 = vadd.f32 %v7536, %v7650
    %v7667 = vadd.f32 %v7537, %v7650
    %v7668 = vadd.f32 %v7538, %v7650
    %v7669 = vadd.f32 %v7539, %v7650
    %v7670 = vadd.f32 %v7540, %v7650
    %v7671 = vadd.f32 %v7541, %v7650
    %v7672 = vadd.f32 %v7542, %v7650
    %v7673 = vadd.f32 %v7543, %v7650
    %v7674 = vadd.f32 %v7544, %v7650
    %v7675 = vadd.f32 %v7545, %v7650
    %v7676 = vadd.f32 %v7546, %v7650
    %v7677 = vadd.f32 %v7547, %v7650
    %v7678 = vadd.f32 %v7548, %v7650
    %v7679 = vadd.f32 %v7549, %v7650
    %v7680 = vadd.f32 %v7550, %v7650
    %v7681 = vadd.f32 %v7551, %v7650
    %v7682 = vadd.f32 %v7552, %v7650
    %v7683 = vadd.f32 %v7553, %v7650
    %v7684 = vadd.f32 %v7554, %v7650
    %v7685 = vadd.f32 %v7555, %v7650
    %v7686 = vadd.f32 %v7556, %v7650
    %v7687 = vadd.f32 %v7557, %v7650
    %v7688 = vadd.f32 %v7558, %v7650
    %v7689 = vadd.f32 %v7559, %v7650
    %v7690 = vadd.f32 %v7560, %v7650
    %v7691 = vadd.f32 %v7561, %v7650
    %v7692 = vadd.f32 %v7562, %v7650
    %v7693 = vadd.f32 %v7563, %v7650
    %v7694 = vadd.f32 %v7564, %v7650
    %v7695 = vadd.f32 %v7565, %v7650
    %v7696 = vadd.f32 %v7566, %v7650
    %v7697 = vadd.f32 %v7567, %v7650
    %v7698 = vadd.f32 %v7568, %v7650
    %v7699 = vadd.f32 %v7569, %v7650
    %v7700 = vadd.f32 %v7570, %v7650
    %v7701 = vadd.f32 %v7571, %v7650
    %v7702 = vadd.f32 %v7572, %v7650
    %v7703 = vadd.f32 %v7573, %v7650
    %v7704 = vadd.f32 %v7574, %v7650
    %v7705 = vadd.f32 %v7575, %v7650
    %v7706 = vadd.f32 %v7576, %v7650
    %v7707 = vadd.f32 %v7577, %v7650
    %v7708 = vadd.f32 %v7578, %v7650
    %v7709 = vadd.f32 %v7579, %v7650
    %v7710 = vadd.f32 %v7580, %v7650
    %v7711 = vadd.f32 %v7581, %v7650
    %v7712 = vadd.f32 %v7582, %v7650
    %v7713 = vadd.f32 %v7583, %v7650
    %v7714 = vadd.f32 %v7584, %v7650
    %v7715 = vadd.f32 %v7585, %v7650
    %v7716 = vadd.f32 %v7586, %v7650
    %v7717 = vadd.f32 %v7587, %v7650
    %v7718 = vadd.f32 %v7588, %v7650
    %v7719 = vadd.f32 %v7589, %v7650
    %v7720 = vadd.f32 %v7590, %v7650
    %v7721 = vadd.f32 %v7591, %v7650
    %v7722 = vadd.f32 %v7592, %v7650
    %v7723 = vadd.f32 %v7593, %v7650
    %v7724 = vadd.f32 %v7594, %v7650
    %v7725 = vadd.f32 %v7595, %v7650
    %v7726 = vadd.f32 %v7596, %v7650
    %v7727 = vadd.f32 %v7597, %v7650
    %v7728 = vadd.f32 %v7598, %v7650
    %v7729 = vadd.f32 %v7599, %v7650
    %v7730 = vadd.f32 %v7600, %v7650
    %v7731 = vadd.f32 %v7601, %v7650
    %v7732 = vadd.f32 %v7602, %v7650
    %v7733 = vadd.f32 %v7603, %v7650
    %v7734 = vadd.f32 %v7604, %v7650
    %v7735 = vadd.f32 %v7605, %v7650
    %v7736 = vadd.f32 %v7606, %v7650
    %v7737 = vadd.f32 %v7607, %v7650
    %v7738 = vadd.f32 %v7608, %v7650
    %v7739 = vadd.f32 %v7609, %v7650
    %v7740 = vadd.f32 %v7610, %v7650
    %v7741 = vadd.f32 %v7611, %v7650
    %v7742 = vadd.f32 %v7612, %v7650
    %v7743 = vadd.f32 %v7613, %v7650
    %v7744 = vadd.f32 %v7614, %v7650
    %v7745 = vadd.f32 %v7615, %v7650
    %v7746 = vadd.f32 %v7616, %v7650
    %v7747 = vadd.f32 %v7617, %v7650
    %v7748 = vadd.f32 %v7618, %v7650
    %v7749 = vadd.f32 %v7619, %v7650
    %v7750 = vadd.f32 %v7620, %v7650
    %v7751 = vadd.f32 %v7621, %v7650
    %v7752 = vadd.f32 %v7622, %v7650
    %v7753 = vadd.f32 %v7623, %v7650
    %v7754 = vadd.f32 %v7624, %v7650
    %v7755 = vadd.f32 %v7625, %v7650
    %v7756 = vadd.f32 %v7626, %v7650
    %v7757 = vadd.f32 %v7627, %v7650
    %v7758 = vadd.f32 %v7628, %v7650
    %v7759 = vadd.f32 %v7629, %v7650
    %v7760 = vadd.f32 %v7630, %v7650
    %v7761 = vadd.f32 %v7631, %v7650
    %v7762 = vadd.f32 %v7632, %v7650
    %v7763 = vadd.f32 %v7633, %v7650
    %v7764 = vadd.f32 %v7634, %v7650
    %v7765 = vadd.f32 %v7635, %v7650
    %v7766 = vadd.f32 %v7636, %v7650
    %v7767 = vadd.f32 %v7637, %v7650
    %v7768 = vadd.f32 %v7638, %v7650
    %v7769 = vadd.f32 %v7639, %v7650
    %v7770 = vadd.f32 %v7640, %v7650
    %v7771 = vadd.f32 %v7641, %v7650
    %v7772 = vadd.f32 %v7642, %v7650
    %v7773 = vadd.f32 %v7643, %v7650
    %v7774 = vadd.f32 %v7644, %v7650
    %v7775 = vadd.f32 %v7645, %v7650
    %v7776 = vadd.f32 %v7646, %v7650
    %v7777 = vadd.f32 %v7647, %v7650
    %v7778 = vadd.f32 %v7648, %v7650
    %7907 = vset.pattern.permute.xlu0 3
    %7908 = vperm.xlu0 %7907, %v7651
    %v7909 = vpop.permute.xlu0 %7908
    %7910 = vset.pattern.permute.xlu0 3
    %7911 = vperm.xlu0 %7910, %v7652
    %v7912 = vpop.permute.xlu0 %7911
    %7913 = vset.pattern.permute.xlu0 3
    %7914 = vperm.xlu0 %7913, %v7653
    %v7915 = vpop.permute.xlu0 %7914
    %7916 = vset.pattern.permute.xlu0 3
    %7917 = vperm.xlu0 %7916, %v7654
    %v7918 = vpop.permute.xlu0 %7917
    %7919 = vset.pattern.permute.xlu0 3
    %7920 = vperm.xlu0 %7919, %v7655
    %v7921 = vpop.permute.xlu0 %7920
    %7922 = vset.pattern.permute.xlu0 3
    %7923 = vperm.xlu0 %7922, %v7656
    %v7924 = vpop.permute.xlu0 %7923
    %7925 = vset.pattern.permute.xlu0 3
    %7926 = vperm.xlu0 %7925, %v7657
    %v7927 = vpop.permute.xlu0 %7926
    %7928 = vset.pattern.permute.xlu0 3
    %7929 = vperm.xlu0 %7928, %v7658
    %v7930 = vpop.permute.xlu0 %7929
    %7931 = vset.pattern.permute.xlu0 3
    %7932 = vperm.xlu0 %7931, %v7659
    %v7933 = vpop.permute.xlu0 %7932
    %7934 = vset.pattern.permute.xlu0 3
    %7935 = vperm.xlu0 %7934, %v7660
    %v7936 = vpop.permute.xlu0 %7935
    %7937 = vset.pattern.permute.xlu0 3
    %7938 = vperm.xlu0 %7937, %v7661
    %v7939 = vpop.permute.xlu0 %7938
    %7940 = vset.pattern.permute.xlu0 3
    %7941 = vperm.xlu0 %7940, %v7662
    %v7942 = vpop.permute.xlu0 %7941
    %7943 = vset.pattern.permute.xlu0 3
    %7944 = vperm.xlu0 %7943, %v7663
    %v7945 = vpop.permute.xlu0 %7944
    %7946 = vset.pattern.permute.xlu0 3
    %7947 = vperm.xlu0 %7946, %v7664
    %v7948 = vpop.permute.xlu0 %7947
    %7949 = vset.pattern.permute.xlu0 3
    %7950 = vperm.xlu0 %7949, %v7665
    %v7951 = vpop.permute.xlu0 %7950
    %7952 = vset.pattern.permute.xlu0 3
    %7953 = vperm.xlu0 %7952, %v7666
    %v7954 = vpop.permute.xlu0 %7953
    %7955 = vset.pattern.permute.xlu0 3
    %7956 = vperm.xlu0 %7955, %v7667
    %v7957 = vpop.permute.xlu0 %7956
    %7958 = vset.pattern.permute.xlu0 3
    %7959 = vperm.xlu0 %7958, %v7668
    %v7960 = vpop.permute.xlu0 %7959
    %7961 = vset.pattern.permute.xlu0 3
    %7962 = vperm.xlu0 %7961, %v7669
    %v7963 = vpop.permute.xlu0 %7962
    %7964 = vset.pattern.permute.xlu0 3
    %7965 = vperm.xlu0 %7964, %v7670
    %v7966 = vpop.permute.xlu0 %7965
    %7967 = vset.pattern.permute.xlu0 3
    %7968 = vperm.xlu0 %7967, %v7671
    %v7969 = vpop.permute.xlu0 %7968
    %7970 = vset.pattern.permute.xlu0 3
    %7971 = vperm.xlu0 %7970, %v7672
    %v7972 = vpop.permute.xlu0 %7971
    %7973 = vset.pattern.permute.xlu0 3
    %7974 = vperm.xlu0 %7973, %v7673
    %v7975 = vpop.permute.xlu0 %7974
    %7976 = vset.pattern.permute.xlu0 3
    %7977 = vperm.xlu0 %7976, %v7674
    %v7978 = vpop.permute.xlu0 %7977
    %7979 = vset.pattern.permute.xlu0 3
    %7980 = vperm.xlu0 %7979, %v7675
    %v7981 = vpop.permute.xlu0 %7980
    %7982 = vset.pattern.permute.xlu0 3
    %7983 = vperm.xlu0 %7982, %v7676
    %v7984 = vpop.permute.xlu0 %7983
    %7985 = vset.pattern.permute.xlu0 3
    %7986 = vperm.xlu0 %7985, %v7677
    %v7987 = vpop.permute.xlu0 %7986
    %7988 = vset.pattern.permute.xlu0 3
    %7989 = vperm.xlu0 %7988, %v7678
    %v7990 = vpop.permute.xlu0 %7989
    %7991 = vset.pattern.permute.xlu0 3
    %7992 = vperm.xlu0 %7991, %v7679
    %v7993 = vpop.permute.xlu0 %7992
    %7994 = vset.pattern.permute.xlu0 3
    %7995 = vperm.xlu0 %7994, %v7680
    %v7996 = vpop.permute.xlu0 %7995
    %7997 = vset.pattern.permute.xlu0 3
    %7998 = vperm.xlu0 %7997, %v7681
    %v7999 = vpop.permute.xlu0 %7998
    %8000 = vset.pattern.permute.xlu0 3
    %8001 = vperm.xlu0 %8000, %v7682
    %v8002 = vpop.permute.xlu0 %8001
    %8003 = vset.pattern.permute.xlu0 3
    %8004 = vperm.xlu0 %8003, %v7683
    %v8005 = vpop.permute.xlu0 %8004
    %8006 = vset.pattern.permute.xlu0 3
    %8007 = vperm.xlu0 %8006, %v7684
    %v8008 = vpop.permute.xlu0 %8007
    %8009 = vset.pattern.permute.xlu0 3
    %8010 = vperm.xlu0 %8009, %v7685
    %v8011 = vpop.permute.xlu0 %8010
    %8012 = vset.pattern.permute.xlu0 3
    %8013 = vperm.xlu0 %8012, %v7686
    %v8014 = vpop.permute.xlu0 %8013
    %8015 = vset.pattern.permute.xlu0 3
    %8016 = vperm.xlu0 %8015, %v7687
    %v8017 = vpop.permute.xlu0 %8016
    %8018 = vset.pattern.permute.xlu0 3
    %8019 = vperm.xlu0 %8018, %v7688
    %v8020 = vpop.permute.xlu0 %8019
    %8021 = vset.pattern.permute.xlu0 3
    %8022 = vperm.xlu0 %8021, %v7689
    %v8023 = vpop.permute.xlu0 %8022
    %8024 = vset.pattern.permute.xlu0 3
    %8025 = vperm.xlu0 %8024, %v7690
    %v8026 = vpop.permute.xlu0 %8025
    %8027 = vset.pattern.permute.xlu0 3
    %8028 = vperm.xlu0 %8027, %v7691
    %v8029 = vpop.permute.xlu0 %8028
    %8030 = vset.pattern.permute.xlu0 3
    %8031 = vperm.xlu0 %8030, %v7692
    %v8032 = vpop.permute.xlu0 %8031
    %8033 = vset.pattern.permute.xlu0 3
    %8034 = vperm.xlu0 %8033, %v7693
    %v8035 = vpop.permute.xlu0 %8034
    %8036 = vset.pattern.permute.xlu0 3
    %8037 = vperm.xlu0 %8036, %v7694
    %v8038 = vpop.permute.xlu0 %8037
    %8039 = vset.pattern.permute.xlu0 3
    %8040 = vperm.xlu0 %8039, %v7695
    %v8041 = vpop.permute.xlu0 %8040
    %8042 = vset.pattern.permute.xlu0 3
    %8043 = vperm.xlu0 %8042, %v7696
    %v8044 = vpop.permute.xlu0 %8043
    %8045 = vset.pattern.permute.xlu0 3
    %8046 = vperm.xlu0 %8045, %v7697
    %v8047 = vpop.permute.xlu0 %8046
    %8048 = vset.pattern.permute.xlu0 3
    %8049 = vperm.xlu0 %8048, %v7698
    %v8050 = vpop.permute.xlu0 %8049
    %8051 = vset.pattern.permute.xlu0 3
    %8052 = vperm.xlu0 %8051, %v7699
    %v8053 = vpop.permute.xlu0 %8052
    %8054 = vset.pattern.permute.xlu0 3
    %8055 = vperm.xlu0 %8054, %v7700
    %v8056 = vpop.permute.xlu0 %8055
    %8057 = vset.pattern.permute.xlu0 3
    %8058 = vperm.xlu0 %8057, %v7701
    %v8059 = vpop.permute.xlu0 %8058
    %8060 = vset.pattern.permute.xlu0 3
    %8061 = vperm.xlu0 %8060, %v7702
    %v8062 = vpop.permute.xlu0 %8061
    %8063 = vset.pattern.permute.xlu0 3
    %8064 = vperm.xlu0 %8063, %v7703
    %v8065 = vpop.permute.xlu0 %8064
    %8066 = vset.pattern.permute.xlu0 3
    %8067 = vperm.xlu0 %8066, %v7704
    %v8068 = vpop.permute.xlu0 %8067
    %8069 = vset.pattern.permute.xlu0 3
    %8070 = vperm.xlu0 %8069, %v7705
    %v8071 = vpop.permute.xlu0 %8070
    %8072 = vset.pattern.permute.xlu0 3
    %8073 = vperm.xlu0 %8072, %v7706
    %v8074 = vpop.permute.xlu0 %8073
    %8075 = vset.pattern.permute.xlu0 3
    %8076 = vperm.xlu0 %8075, %v7707
    %v8077 = vpop.permute.xlu0 %8076
    %8078 = vset.pattern.permute.xlu0 3
    %8079 = vperm.xlu0 %8078, %v7708
    %v8080 = vpop.permute.xlu0 %8079
    %8081 = vset.pattern.permute.xlu0 3
    %8082 = vperm.xlu0 %8081, %v7709
    %v8083 = vpop.permute.xlu0 %8082
    %8084 = vset.pattern.permute.xlu0 3
    %8085 = vperm.xlu0 %8084, %v7710
    %v8086 = vpop.permute.xlu0 %8085
    %8087 = vset.pattern.permute.xlu0 3
    %8088 = vperm.xlu0 %8087, %v7711
    %v8089 = vpop.permute.xlu0 %8088
    %8090 = vset.pattern.permute.xlu0 3
    %8091 = vperm.xlu0 %8090, %v7712
    %v8092 = vpop.permute.xlu0 %8091
    %8093 = vset.pattern.permute.xlu0 3
    %8094 = vperm.xlu0 %8093, %v7713
    %v8095 = vpop.permute.xlu0 %8094
    %8096 = vset.pattern.permute.xlu0 3
    %8097 = vperm.xlu0 %8096, %v7714
    %v8098 = vpop.permute.xlu0 %8097
    %8099 = vset.pattern.permute.xlu0 3
    %8100 = vperm.xlu0 %8099, %v7715
    %v8101 = vpop.permute.xlu0 %8100
    %8102 = vset.pattern.permute.xlu0 3
    %8103 = vperm.xlu0 %8102, %v7716
    %v8104 = vpop.permute.xlu0 %8103
    %8105 = vset.pattern.permute.xlu0 3
    %8106 = vperm.xlu0 %8105, %v7717
    %v8107 = vpop.permute.xlu0 %8106
    %8108 = vset.pattern.permute.xlu0 3
    %8109 = vperm.xlu0 %8108, %v7718
    %v8110 = vpop.permute.xlu0 %8109
    %8111 = vset.pattern.permute.xlu0 3
    %8112 = vperm.xlu0 %8111, %v7719
    %v8113 = vpop.permute.xlu0 %8112
    %8114 = vset.pattern.permute.xlu0 3
    %8115 = vperm.xlu0 %8114, %v7720
    %v8116 = vpop.permute.xlu0 %8115
    %8117 = vset.pattern.permute.xlu0 3
    %8118 = vperm.xlu0 %8117, %v7721
    %v8119 = vpop.permute.xlu0 %8118
    %8120 = vset.pattern.permute.xlu0 3
    %8121 = vperm.xlu0 %8120, %v7722
    %v8122 = vpop.permute.xlu0 %8121
    %8123 = vset.pattern.permute.xlu0 3
    %8124 = vperm.xlu0 %8123, %v7723
    %v8125 = vpop.permute.xlu0 %8124
    %8126 = vset.pattern.permute.xlu0 3
    %8127 = vperm.xlu0 %8126, %v7724
    %v8128 = vpop.permute.xlu0 %8127
    %8129 = vset.pattern.permute.xlu0 3
    %8130 = vperm.xlu0 %8129, %v7725
    %v8131 = vpop.permute.xlu0 %8130
    %8132 = vset.pattern.permute.xlu0 3
    %8133 = vperm.xlu0 %8132, %v7726
    %v8134 = vpop.permute.xlu0 %8133
    %8135 = vset.pattern.permute.xlu0 3
    %8136 = vperm.xlu0 %8135, %v7727
    %v8137 = vpop.permute.xlu0 %8136
    %8138 = vset.pattern.permute.xlu0 3
    %8139 = vperm.xlu0 %8138, %v7728
    %v8140 = vpop.permute.xlu0 %8139
    %8141 = vset.pattern.permute.xlu0 3
    %8142 = vperm.xlu0 %8141, %v7729
    %v8143 = vpop.permute.xlu0 %8142
    %8144 = vset.pattern.permute.xlu0 3
    %8145 = vperm.xlu0 %8144, %v7730
    %v8146 = vpop.permute.xlu0 %8145
    %8147 = vset.pattern.permute.xlu0 3
    %8148 = vperm.xlu0 %8147, %v7731
    %v8149 = vpop.permute.xlu0 %8148
    %8150 = vset.pattern.permute.xlu0 3
    %8151 = vperm.xlu0 %8150, %v7732
    %v8152 = vpop.permute.xlu0 %8151
    %8153 = vset.pattern.permute.xlu0 3
    %8154 = vperm.xlu0 %8153, %v7733
    %v8155 = vpop.permute.xlu0 %8154
    %8156 = vset.pattern.permute.xlu0 3
    %8157 = vperm.xlu0 %8156, %v7734
    %v8158 = vpop.permute.xlu0 %8157
    %8159 = vset.pattern.permute.xlu0 3
    %8160 = vperm.xlu0 %8159, %v7735
    %v8161 = vpop.permute.xlu0 %8160
    %8162 = vset.pattern.permute.xlu0 3
    %8163 = vperm.xlu0 %8162, %v7736
    %v8164 = vpop.permute.xlu0 %8163
    %8165 = vset.pattern.permute.xlu0 3
    %8166 = vperm.xlu0 %8165, %v7737
    %v8167 = vpop.permute.xlu0 %8166
    %8168 = vset.pattern.permute.xlu0 3
    %8169 = vperm.xlu0 %8168, %v7738
    %v8170 = vpop.permute.xlu0 %8169
    %8171 = vset.pattern.permute.xlu0 3
    %8172 = vperm.xlu0 %8171, %v7739
    %v8173 = vpop.permute.xlu0 %8172
    %8174 = vset.pattern.permute.xlu0 3
    %8175 = vperm.xlu0 %8174, %v7740
    %v8176 = vpop.permute.xlu0 %8175
    %8177 = vset.pattern.permute.xlu0 3
    %8178 = vperm.xlu0 %8177, %v7741
    %v8179 = vpop.permute.xlu0 %8178
    %8180 = vset.pattern.permute.xlu0 3
    %8181 = vperm.xlu0 %8180, %v7742
    %v8182 = vpop.permute.xlu0 %8181
    %8183 = vset.pattern.permute.xlu0 3
    %8184 = vperm.xlu0 %8183, %v7743
    %v8185 = vpop.permute.xlu0 %8184
    %8186 = vset.pattern.permute.xlu0 3
    %8187 = vperm.xlu0 %8186, %v7744
    %v8188 = vpop.permute.xlu0 %8187
    %8189 = vset.pattern.permute.xlu0 3
    %8190 = vperm.xlu0 %8189, %v7745
    %v8191 = vpop.permute.xlu0 %8190
    %8192 = vset.pattern.permute.xlu0 3
    %8193 = vperm.xlu0 %8192, %v7746
    %v8194 = vpop.permute.xlu0 %8193
    %8195 = vset.pattern.permute.xlu0 3
    %8196 = vperm.xlu0 %8195, %v7747
    %v8197 = vpop.permute.xlu0 %8196
    %8198 = vset.pattern.permute.xlu0 3
    %8199 = vperm.xlu0 %8198, %v7748
    %v8200 = vpop.permute.xlu0 %8199
    %8201 = vset.pattern.permute.xlu0 3
    %8202 = vperm.xlu0 %8201, %v7749
    %v8203 = vpop.permute.xlu0 %8202
    %8204 = vset.pattern.permute.xlu0 3
    %8205 = vperm.xlu0 %8204, %v7750
    %v8206 = vpop.permute.xlu0 %8205
    %8207 = vset.pattern.permute.xlu0 3
    %8208 = vperm.xlu0 %8207, %v7751
    %v8209 = vpop.permute.xlu0 %8208
    %8210 = vset.pattern.permute.xlu0 3
    %8211 = vperm.xlu0 %8210, %v7752
    %v8212 = vpop.permute.xlu0 %8211
    %8213 = vset.pattern.permute.xlu0 3
    %8214 = vperm.xlu0 %8213, %v7753
    %v8215 = vpop.permute.xlu0 %8214
    %8216 = vset.pattern.permute.xlu0 3
    %8217 = vperm.xlu0 %8216, %v7754
    %v8218 = vpop.permute.xlu0 %8217
    %8219 = vset.pattern.permute.xlu0 3
    %8220 = vperm.xlu0 %8219, %v7755
    %v8221 = vpop.permute.xlu0 %8220
    %8222 = vset.pattern.permute.xlu0 3
    %8223 = vperm.xlu0 %8222, %v7756
    %v8224 = vpop.permute.xlu0 %8223
    %8225 = vset.pattern.permute.xlu0 3
    %8226 = vperm.xlu0 %8225, %v7757
    %v8227 = vpop.permute.xlu0 %8226
    %8228 = vset.pattern.permute.xlu0 3
    %8229 = vperm.xlu0 %8228, %v7758
    %v8230 = vpop.permute.xlu0 %8229
    %8231 = vset.pattern.permute.xlu0 3
    %8232 = vperm.xlu0 %8231, %v7759
    %v8233 = vpop.permute.xlu0 %8232
    %8234 = vset.pattern.permute.xlu0 3
    %8235 = vperm.xlu0 %8234, %v7760
    %v8236 = vpop.permute.xlu0 %8235
    %8237 = vset.pattern.permute.xlu0 3
    %8238 = vperm.xlu0 %8237, %v7761
    %v8239 = vpop.permute.xlu0 %8238
    %8240 = vset.pattern.permute.xlu0 3
    %8241 = vperm.xlu0 %8240, %v7762
    %v8242 = vpop.permute.xlu0 %8241
    %8243 = vset.pattern.permute.xlu0 3
    %8244 = vperm.xlu0 %8243, %v7763
    %v8245 = vpop.permute.xlu0 %8244
    %8246 = vset.pattern.permute.xlu0 3
    %8247 = vperm.xlu0 %8246, %v7764
    %v8248 = vpop.permute.xlu0 %8247
    %8249 = vset.pattern.permute.xlu0 3
    %8250 = vperm.xlu0 %8249, %v7765
    %v8251 = vpop.permute.xlu0 %8250
    %8252 = vset.pattern.permute.xlu0 3
    %8253 = vperm.xlu0 %8252, %v7766
    %v8254 = vpop.permute.xlu0 %8253
    %8255 = vset.pattern.permute.xlu0 3
    %8256 = vperm.xlu0 %8255, %v7767
    %v8257 = vpop.permute.xlu0 %8256
    %8258 = vset.pattern.permute.xlu0 3
    %8259 = vperm.xlu0 %8258, %v7768
    %v8260 = vpop.permute.xlu0 %8259
    %8261 = vset.pattern.permute.xlu0 3
    %8262 = vperm.xlu0 %8261, %v7769
    %v8263 = vpop.permute.xlu0 %8262
    %8264 = vset.pattern.permute.xlu0 3
    %8265 = vperm.xlu0 %8264, %v7770
    %v8266 = vpop.permute.xlu0 %8265
    %8267 = vset.pattern.permute.xlu0 3
    %8268 = vperm.xlu0 %8267, %v7771
    %v8269 = vpop.permute.xlu0 %8268
    %8270 = vset.pattern.permute.xlu0 3
    %8271 = vperm.xlu0 %8270, %v7772
    %v8272 = vpop.permute.xlu0 %8271
    %8273 = vset.pattern.permute.xlu0 3
    %8274 = vperm.xlu0 %8273, %v7773
    %v8275 = vpop.permute.xlu0 %8274
    %8276 = vset.pattern.permute.xlu0 3
    %8277 = vperm.xlu0 %8276, %v7774
    %v8278 = vpop.permute.xlu0 %8277
    %8279 = vset.pattern.permute.xlu0 3
    %8280 = vperm.xlu0 %8279, %v7775
    %v8281 = vpop.permute.xlu0 %8280
    %8282 = vset.pattern.permute.xlu0 3
    %8283 = vperm.xlu0 %8282, %v7776
    %v8284 = vpop.permute.xlu0 %8283
    %8285 = vset.pattern.permute.xlu0 3
    %8286 = vperm.xlu0 %8285, %v7777
    %v8287 = vpop.permute.xlu0 %8286
    %8288 = vset.pattern.permute.xlu0 3
    %8289 = vperm.xlu0 %8288, %v7778
    %v8290 = vpop.permute.xlu0 %8289
    %v8291 = vlaneseq
    %v8292 = vand.u32 %v8291, 127
    %v8293 = vlaneseq
    %v8294 = vshrl.u32 %v8293, 7
    %v8295 = vsub.s32 %v8292, %v8294
    %v8296 = vrot.slane %v7909, %v8295
    %v8297 = vadd.s32 %v8292, 4294967288
    %v8298 = vlaneseq
    %v8299 = vshrl.u32 %v8298, 7
    %v8300 = vsub.s32 %v8297, %v8299
    %v8301 = vrot.slane %v7912, %v8300
    %vm8302 = vcmask 130112
    %v8303 = vsel %vm8302, %v8301, %v8296
    %v8304 = vadd.s32 %v8292, 4294967280
    %v8305 = vlaneseq
    %v8306 = vshrl.u32 %v8305, 7
    %v8307 = vsub.s32 %v8304, %v8306
    %v8308 = vrot.slane %v7915, %v8307
    %vm8309 = vcmask 195712
    %v8310 = vsel %vm8309, %v8308, %v8303
    %v8311 = vadd.s32 %v8292, 4294967272
    %v8312 = vlaneseq
    %v8313 = vshrl.u32 %v8312, 7
    %v8314 = vsub.s32 %v8311, %v8313
    %v8315 = vrot.slane %v7918, %v8314
    %vm8316 = vcmask 261312
    %v8317 = vsel %vm8316, %v8315, %v8310
    %v8318 = vadd.s32 %v8292, 4294967264
    %v8319 = vlaneseq
    %v8320 = vshrl.u32 %v8319, 7
    %v8321 = vsub.s32 %v8318, %v8320
    %v8322 = vrot.slane %v7921, %v8321
    %vm8323 = vcmask 326912
    %v8324 = vsel %vm8323, %v8322, %v8317
    %v8325 = vadd.s32 %v8292, 4294967256
    %v8326 = vlaneseq
    %v8327 = vshrl.u32 %v8326, 7
    %v8328 = vsub.s32 %v8325, %v8327
    %v8329 = vrot.slane %v7924, %v8328
    %vm8330 = vcmask 392512
    %v8331 = vsel %vm8330, %v8329, %v8324
    %v8332 = vadd.s32 %v8292, 4294967248
    %v8333 = vlaneseq
    %v8334 = vshrl.u32 %v8333, 7
    %v8335 = vsub.s32 %v8332, %v8334
    %v8336 = vrot.slane %v7927, %v8335
    %vm8337 = vcmask 458112
    %v8338 = vsel %vm8337, %v8336, %v8331
    %v8339 = vadd.s32 %v8292, 4294967240
    %v8340 = vlaneseq
    %v8341 = vshrl.u32 %v8340, 7
    %v8342 = vsub.s32 %v8339, %v8341
    %v8343 = vrot.slane %v7930, %v8342
    %vm8344 = vcmask 523712
    %v8345 = vsel %vm8344, %v8343, %v8338
    %v8346 = vadd.s32 %v8292, 4294967232
    %v8347 = vlaneseq
    %v8348 = vshrl.u32 %v8347, 7
    %v8349 = vsub.s32 %v8346, %v8348
    %v8350 = vrot.slane %v7933, %v8349
    %vm8351 = vcmask 589312
    %v8352 = vsel %vm8351, %v8350, %v8345
    %v8353 = vadd.s32 %v8292, 4294967224
    %v8354 = vlaneseq
    %v8355 = vshrl.u32 %v8354, 7
    %v8356 = vsub.s32 %v8353, %v8355
    %v8357 = vrot.slane %v7936, %v8356
    %vm8358 = vcmask 654912
    %v8359 = vsel %vm8358, %v8357, %v8352
    %v8360 = vadd.s32 %v8292, 4294967216
    %v8361 = vlaneseq
    %v8362 = vshrl.u32 %v8361, 7
    %v8363 = vsub.s32 %v8360, %v8362
    %v8364 = vrot.slane %v7939, %v8363
    %vm8365 = vcmask 720512
    %v8366 = vsel %vm8365, %v8364, %v8359
    %v8367 = vadd.s32 %v8292, 4294967208
    %v8368 = vlaneseq
    %v8369 = vshrl.u32 %v8368, 7
    %v8370 = vsub.s32 %v8367, %v8369
    %v8371 = vrot.slane %v7942, %v8370
    %vm8372 = vcmask 786112
    %v8373 = vsel %vm8372, %v8371, %v8366
    %v8374 = vadd.s32 %v8292, 4294967200
    %v8375 = vlaneseq
    %v8376 = vshrl.u32 %v8375, 7
    %v8377 = vsub.s32 %v8374, %v8376
    %v8378 = vrot.slane %v7945, %v8377
    %vm8379 = vcmask 851712
    %v8380 = vsel %vm8379, %v8378, %v8373
    %v8381 = vadd.s32 %v8292, 4294967192
    %v8382 = vlaneseq
    %v8383 = vshrl.u32 %v8382, 7
    %v8384 = vsub.s32 %v8381, %v8383
    %v8385 = vrot.slane %v7948, %v8384
    %vm8386 = vcmask 917312
    %v8387 = vsel %vm8386, %v8385, %v8380
    %v8388 = vadd.s32 %v8292, 4294967184
    %v8389 = vlaneseq
    %v8390 = vshrl.u32 %v8389, 7
    %v8391 = vsub.s32 %v8388, %v8390
    %v8392 = vrot.slane %v7951, %v8391
    %vm8393 = vcmask 982912
    %v8394 = vsel %vm8393, %v8392, %v8387
    %v8395 = vadd.s32 %v8292, 4294967176
    %v8396 = vlaneseq
    %v8397 = vshrl.u32 %v8396, 7
    %v8398 = vsub.s32 %v8395, %v8397
    %v8399 = vrot.slane %v7954, %v8398
    %vm8400 = vcmask 1048512
    %v8401 = vsel %vm8400, %v8399, %v8394
    %v8402 = vlaneseq
    %v8403 = vshrl.u32 %v8402, 7
    %v8404 = vsub.s32 %v8292, %v8403
    %v8405 = vrot.slane %v7957, %v8404
    %v8406 = vlaneseq
    %v8407 = vshrl.u32 %v8406, 7
    %v8408 = vsub.s32 %v8297, %v8407
    %v8409 = vrot.slane %v7960, %v8408
    %v8410 = vsel %vm8302, %v8409, %v8405
    %v8411 = vlaneseq
    %v8412 = vshrl.u32 %v8411, 7
    %v8413 = vsub.s32 %v8304, %v8412
    %v8414 = vrot.slane %v7963, %v8413
    %v8415 = vsel %vm8309, %v8414, %v8410
    %v8416 = vlaneseq
    %v8417 = vshrl.u32 %v8416, 7
    %v8418 = vsub.s32 %v8311, %v8417
    %v8419 = vrot.slane %v7966, %v8418
    %v8420 = vsel %vm8316, %v8419, %v8415
    %v8421 = vlaneseq
    %v8422 = vshrl.u32 %v8421, 7
    %v8423 = vsub.s32 %v8318, %v8422
    %v8424 = vrot.slane %v7969, %v8423
    %v8425 = vsel %vm8323, %v8424, %v8420
    %v8426 = vlaneseq
    %v8427 = vshrl.u32 %v8426, 7
    %v8428 = vsub.s32 %v8325, %v8427
    %v8429 = vrot.slane %v7972, %v8428
    %v8430 = vsel %vm8330, %v8429, %v8425
    %v8431 = vlaneseq
    %v8432 = vshrl.u32 %v8431, 7
    %v8433 = vsub.s32 %v8332, %v8432
    %v8434 = vrot.slane %v7975, %v8433
    %v8435 = vsel %vm8337, %v8434, %v8430
    %v8436 = vlaneseq
    %v8437 = vshrl.u32 %v8436, 7
    %v8438 = vsub.s32 %v8339, %v8437
    %v8439 = vrot.slane %v7978, %v8438
    %v8440 = vsel %vm8344, %v8439, %v8435
    %v8441 = vlaneseq
    %v8442 = vshrl.u32 %v8441, 7
    %v8443 = vsub.s32 %v8346, %v8442
    %v8444 = vrot.slane %v7981, %v8443
    %v8445 = vsel %vm8351, %v8444, %v8440
    %v8446 = vlaneseq
    %v8447 = vshrl.u32 %v8446, 7
    %v8448 = vsub.s32 %v8353, %v8447
    %v8449 = vrot.slane %v7984, %v8448
    %v8450 = vsel %vm8358, %v8449, %v8445
    %v8451 = vlaneseq
    %v8452 = vshrl.u32 %v8451, 7
    %v8453 = vsub.s32 %v8360, %v8452
    %v8454 = vrot.slane %v7987, %v8453
    %v8455 = vsel %vm8365, %v8454, %v8450
    %v8456 = vlaneseq
    %v8457 = vshrl.u32 %v8456, 7
    %v8458 = vsub.s32 %v8367, %v8457
    %v8459 = vrot.slane %v7990, %v8458
    %v8460 = vsel %vm8372, %v8459, %v8455
    %v8461 = vlaneseq
    %v8462 = vshrl.u32 %v8461, 7
    %v8463 = vsub.s32 %v8374, %v8462
    %v8464 = vrot.slane %v7993, %v8463
    %v8465 = vsel %vm8379, %v8464, %v8460
    %v8466 = vlaneseq
    %v8467 = vshrl.u32 %v8466, 7
    %v8468 = vsub.s32 %v8381, %v8467
    %v8469 = vrot.slane %v7996, %v8468
    %v8470 = vsel %vm8386, %v8469, %v8465
    %v8471 = vlaneseq
    %v8472 = vshrl.u32 %v8471, 7
    %v8473 = vsub.s32 %v8388, %v8472
    %v8474 = vrot.slane %v7999, %v8473
    %v8475 = vsel %vm8393, %v8474, %v8470
    %v8476 = vlaneseq
    %v8477 = vshrl.u32 %v8476, 7
    %v8478 = vsub.s32 %v8395, %v8477
    %v8479 = vrot.slane %v8002, %v8478
    %v8480 = vsel %vm8400, %v8479, %v8475
    %v8481 = vlaneseq
    %v8482 = vshrl.u32 %v8481, 7
    %v8483 = vsub.s32 %v8292, %v8482
    %v8484 = vrot.slane %v8005, %v8483
    %v8485 = vlaneseq
    %v8486 = vshrl.u32 %v8485, 7
    %v8487 = vsub.s32 %v8297, %v8486
    %v8488 = vrot.slane %v8008, %v8487
    %v8489 = vsel %vm8302, %v8488, %v8484
    %v8490 = vlaneseq
    %v8491 = vshrl.u32 %v8490, 7
    %v8492 = vsub.s32 %v8304, %v8491
    %v8493 = vrot.slane %v8011, %v8492
    %v8494 = vsel %vm8309, %v8493, %v8489
    %v8495 = vlaneseq
    %v8496 = vshrl.u32 %v8495, 7
    %v8497 = vsub.s32 %v8311, %v8496
    %v8498 = vrot.slane %v8014, %v8497
    %v8499 = vsel %vm8316, %v8498, %v8494
    %v8500 = vlaneseq
    %v8501 = vshrl.u32 %v8500, 7
    %v8502 = vsub.s32 %v8318, %v8501
    %v8503 = vrot.slane %v8017, %v8502
    %v8504 = vsel %vm8323, %v8503, %v8499
    %v8505 = vlaneseq
    %v8506 = vshrl.u32 %v8505, 7
    %v8507 = vsub.s32 %v8325, %v8506
    %v8508 = vrot.slane %v8020, %v8507
    %v8509 = vsel %vm8330, %v8508, %v8504
    %v8510 = vlaneseq
    %v8511 = vshrl.u32 %v8510, 7
    %v8512 = vsub.s32 %v8332, %v8511
    %v8513 = vrot.slane %v8023, %v8512
    %v8514 = vsel %vm8337, %v8513, %v8509
    %v8515 = vlaneseq
    %v8516 = vshrl.u32 %v8515, 7
    %v8517 = vsub.s32 %v8339, %v8516
    %v8518 = vrot.slane %v8026, %v8517
    %v8519 = vsel %vm8344, %v8518, %v8514
    %v8520 = vlaneseq
    %v8521 = vshrl.u32 %v8520, 7
    %v8522 = vsub.s32 %v8346, %v8521
    %v8523 = vrot.slane %v8029, %v8522
    %v8524 = vsel %vm8351, %v8523, %v8519
    %v8525 = vlaneseq
    %v8526 = vshrl.u32 %v8525, 7
    %v8527 = vsub.s32 %v8353, %v8526
    %v8528 = vrot.slane %v8032, %v8527
    %v8529 = vsel %vm8358, %v8528, %v8524
    %v8530 = vlaneseq
    %v8531 = vshrl.u32 %v8530, 7
    %v8532 = vsub.s32 %v8360, %v8531
    %v8533 = vrot.slane %v8035, %v8532
    %v8534 = vsel %vm8365, %v8533, %v8529
    %v8535 = vlaneseq
    %v8536 = vshrl.u32 %v8535, 7
    %v8537 = vsub.s32 %v8367, %v8536
    %v8538 = vrot.slane %v8038, %v8537
    %v8539 = vsel %vm8372, %v8538, %v8534
    %v8540 = vlaneseq
    %v8541 = vshrl.u32 %v8540, 7
    %v8542 = vsub.s32 %v8374, %v8541
    %v8543 = vrot.slane %v8041, %v8542
    %v8544 = vsel %vm8379, %v8543, %v8539
    %v8545 = vlaneseq
    %v8546 = vshrl.u32 %v8545, 7
    %v8547 = vsub.s32 %v8381, %v8546
    %v8548 = vrot.slane %v8044, %v8547
    %v8549 = vsel %vm8386, %v8548, %v8544
    %v8550 = vlaneseq
    %v8551 = vshrl.u32 %v8550, 7
    %v8552 = vsub.s32 %v8388, %v8551
    %v8553 = vrot.slane %v8047, %v8552
    %v8554 = vsel %vm8393, %v8553, %v8549
    %v8555 = vlaneseq
    %v8556 = vshrl.u32 %v8555, 7
    %v8557 = vsub.s32 %v8395, %v8556
    %v8558 = vrot.slane %v8050, %v8557
    %v8559 = vsel %vm8400, %v8558, %v8554
    %v8560 = vlaneseq
    %v8561 = vshrl.u32 %v8560, 7
    %v8562 = vsub.s32 %v8292, %v8561
    %v8563 = vrot.slane %v8053, %v8562
    %v8564 = vlaneseq
    %v8565 = vshrl.u32 %v8564, 7
    %v8566 = vsub.s32 %v8297, %v8565
    %v8567 = vrot.slane %v8056, %v8566
    %v8568 = vsel %vm8302, %v8567, %v8563
    %v8569 = vlaneseq
    %v8570 = vshrl.u32 %v8569, 7
    %v8571 = vsub.s32 %v8304, %v8570
    %v8572 = vrot.slane %v8059, %v8571
    %v8573 = vsel %vm8309, %v8572, %v8568
    %v8574 = vlaneseq
    %v8575 = vshrl.u32 %v8574, 7
    %v8576 = vsub.s32 %v8311, %v8575
    %v8577 = vrot.slane %v8062, %v8576
    %v8578 = vsel %vm8316, %v8577, %v8573
    %v8579 = vlaneseq
    %v8580 = vshrl.u32 %v8579, 7
    %v8581 = vsub.s32 %v8318, %v8580
    %v8582 = vrot.slane %v8065, %v8581
    %v8583 = vsel %vm8323, %v8582, %v8578
    %v8584 = vlaneseq
    %v8585 = vshrl.u32 %v8584, 7
    %v8586 = vsub.s32 %v8325, %v8585
    %v8587 = vrot.slane %v8068, %v8586
    %v8588 = vsel %vm8330, %v8587, %v8583
    %v8589 = vlaneseq
    %v8590 = vshrl.u32 %v8589, 7
    %v8591 = vsub.s32 %v8332, %v8590
    %v8592 = vrot.slane %v8071, %v8591
    %v8593 = vsel %vm8337, %v8592, %v8588
    %v8594 = vlaneseq
    %v8595 = vshrl.u32 %v8594, 7
    %v8596 = vsub.s32 %v8339, %v8595
    %v8597 = vrot.slane %v8074, %v8596
    %v8598 = vsel %vm8344, %v8597, %v8593
    %v8599 = vlaneseq
    %v8600 = vshrl.u32 %v8599, 7
    %v8601 = vsub.s32 %v8346, %v8600
    %v8602 = vrot.slane %v8077, %v8601
    %v8603 = vsel %vm8351, %v8602, %v8598
    %v8604 = vlaneseq
    %v8605 = vshrl.u32 %v8604, 7
    %v8606 = vsub.s32 %v8353, %v8605
    %v8607 = vrot.slane %v8080, %v8606
    %v8608 = vsel %vm8358, %v8607, %v8603
    %v8609 = vlaneseq
    %v8610 = vshrl.u32 %v8609, 7
    %v8611 = vsub.s32 %v8360, %v8610
    %v8612 = vrot.slane %v8083, %v8611
    %v8613 = vsel %vm8365, %v8612, %v8608
    %v8614 = vlaneseq
    %v8615 = vshrl.u32 %v8614, 7
    %v8616 = vsub.s32 %v8367, %v8615
    %v8617 = vrot.slane %v8086, %v8616
    %v8618 = vsel %vm8372, %v8617, %v8613
    %v8619 = vlaneseq
    %v8620 = vshrl.u32 %v8619, 7
    %v8621 = vsub.s32 %v8374, %v8620
    %v8622 = vrot.slane %v8089, %v8621
    %v8623 = vsel %vm8379, %v8622, %v8618
    %v8624 = vlaneseq
    %v8625 = vshrl.u32 %v8624, 7
    %v8626 = vsub.s32 %v8381, %v8625
    %v8627 = vrot.slane %v8092, %v8626
    %v8628 = vsel %vm8386, %v8627, %v8623
    %v8629 = vlaneseq
    %v8630 = vshrl.u32 %v8629, 7
    %v8631 = vsub.s32 %v8388, %v8630
    %v8632 = vrot.slane %v8095, %v8631
    %v8633 = vsel %vm8393, %v8632, %v8628
    %v8634 = vlaneseq
    %v8635 = vshrl.u32 %v8634, 7
    %v8636 = vsub.s32 %v8395, %v8635
    %v8637 = vrot.slane %v8098, %v8636
    %v8638 = vsel %vm8400, %v8637, %v8633
    %v8639 = vlaneseq
    %v8640 = vshrl.u32 %v8639, 7
    %v8641 = vsub.s32 %v8292, %v8640
    %v8642 = vrot.slane %v8101, %v8641
    %v8643 = vlaneseq
    %v8644 = vshrl.u32 %v8643, 7
    %v8645 = vsub.s32 %v8297, %v8644
    %v8646 = vrot.slane %v8104, %v8645
    %v8647 = vsel %vm8302, %v8646, %v8642
    %v8648 = vlaneseq
    %v8649 = vshrl.u32 %v8648, 7
    %v8650 = vsub.s32 %v8304, %v8649
    %v8651 = vrot.slane %v8107, %v8650
    %v8652 = vsel %vm8309, %v8651, %v8647
    %v8653 = vlaneseq
    %v8654 = vshrl.u32 %v8653, 7
    %v8655 = vsub.s32 %v8311, %v8654
    %v8656 = vrot.slane %v8110, %v8655
    %v8657 = vsel %vm8316, %v8656, %v8652
    %v8658 = vlaneseq
    %v8659 = vshrl.u32 %v8658, 7
    %v8660 = vsub.s32 %v8318, %v8659
    %v8661 = vrot.slane %v8113, %v8660
    %v8662 = vsel %vm8323, %v8661, %v8657
    %v8663 = vlaneseq
    %v8664 = vshrl.u32 %v8663, 7
    %v8665 = vsub.s32 %v8325, %v8664
    %v8666 = vrot.slane %v8116, %v8665
    %v8667 = vsel %vm8330, %v8666, %v8662
    %v8668 = vlaneseq
    %v8669 = vshrl.u32 %v8668, 7
    %v8670 = vsub.s32 %v8332, %v8669
    %v8671 = vrot.slane %v8119, %v8670
    %v8672 = vsel %vm8337, %v8671, %v8667
    %v8673 = vlaneseq
    %v8674 = vshrl.u32 %v8673, 7
    %v8675 = vsub.s32 %v8339, %v8674
    %v8676 = vrot.slane %v8122, %v8675
    %v8677 = vsel %vm8344, %v8676, %v8672
    %v8678 = vlaneseq
    %v8679 = vshrl.u32 %v8678, 7
    %v8680 = vsub.s32 %v8346, %v8679
    %v8681 = vrot.slane %v8125, %v8680
    %v8682 = vsel %vm8351, %v8681, %v8677
    %v8683 = vlaneseq
    %v8684 = vshrl.u32 %v8683, 7
    %v8685 = vsub.s32 %v8353, %v8684
    %v8686 = vrot.slane %v8128, %v8685
    %v8687 = vsel %vm8358, %v8686, %v8682
    %v8688 = vlaneseq
    %v8689 = vshrl.u32 %v8688, 7
    %v8690 = vsub.s32 %v8360, %v8689
    %v8691 = vrot.slane %v8131, %v8690
    %v8692 = vsel %vm8365, %v8691, %v8687
    %v8693 = vlaneseq
    %v8694 = vshrl.u32 %v8693, 7
    %v8695 = vsub.s32 %v8367, %v8694
    %v8696 = vrot.slane %v8134, %v8695
    %v8697 = vsel %vm8372, %v8696, %v8692
    %v8698 = vlaneseq
    %v8699 = vshrl.u32 %v8698, 7
    %v8700 = vsub.s32 %v8374, %v8699
    %v8701 = vrot.slane %v8137, %v8700
    %v8702 = vsel %vm8379, %v8701, %v8697
    %v8703 = vlaneseq
    %v8704 = vshrl.u32 %v8703, 7
    %v8705 = vsub.s32 %v8381, %v8704
    %v8706 = vrot.slane %v8140, %v8705
    %v8707 = vsel %vm8386, %v8706, %v8702
    %v8708 = vlaneseq
    %v8709 = vshrl.u32 %v8708, 7
    %v8710 = vsub.s32 %v8388, %v8709
    %v8711 = vrot.slane %v8143, %v8710
    %v8712 = vsel %vm8393, %v8711, %v8707
    %v8713 = vlaneseq
    %v8714 = vshrl.u32 %v8713, 7
    %v8715 = vsub.s32 %v8395, %v8714
    %v8716 = vrot.slane %v8146, %v8715
    %v8717 = vsel %vm8400, %v8716, %v8712
    %v8718 = vlaneseq
    %v8719 = vshrl.u32 %v8718, 7
    %v8720 = vsub.s32 %v8292, %v8719
    %v8721 = vrot.slane %v8149, %v8720
    %v8722 = vlaneseq
    %v8723 = vshrl.u32 %v8722, 7
    %v8724 = vsub.s32 %v8297, %v8723
    %v8725 = vrot.slane %v8152, %v8724
    %v8726 = vsel %vm8302, %v8725, %v8721
    %v8727 = vlaneseq
    %v8728 = vshrl.u32 %v8727, 7
    %v8729 = vsub.s32 %v8304, %v8728
    %v8730 = vrot.slane %v8155, %v8729
    %v8731 = vsel %vm8309, %v8730, %v8726
    %v8732 = vlaneseq
    %v8733 = vshrl.u32 %v8732, 7
    %v8734 = vsub.s32 %v8311, %v8733
    %v8735 = vrot.slane %v8158, %v8734
    %v8736 = vsel %vm8316, %v8735, %v8731
    %v8737 = vlaneseq
    %v8738 = vshrl.u32 %v8737, 7
    %v8739 = vsub.s32 %v8318, %v8738
    %v8740 = vrot.slane %v8161, %v8739
    %v8741 = vsel %vm8323, %v8740, %v8736
    %v8742 = vlaneseq
    %v8743 = vshrl.u32 %v8742, 7
    %v8744 = vsub.s32 %v8325, %v8743
    %v8745 = vrot.slane %v8164, %v8744
    %v8746 = vsel %vm8330, %v8745, %v8741
    %v8747 = vlaneseq
    %v8748 = vshrl.u32 %v8747, 7
    %v8749 = vsub.s32 %v8332, %v8748
    %v8750 = vrot.slane %v8167, %v8749
    %v8751 = vsel %vm8337, %v8750, %v8746
    %v8752 = vlaneseq
    %v8753 = vshrl.u32 %v8752, 7
    %v8754 = vsub.s32 %v8339, %v8753
    %v8755 = vrot.slane %v8170, %v8754
    %v8756 = vsel %vm8344, %v8755, %v8751
    %v8757 = vlaneseq
    %v8758 = vshrl.u32 %v8757, 7
    %v8759 = vsub.s32 %v8346, %v8758
    %v8760 = vrot.slane %v8173, %v8759
    %v8761 = vsel %vm8351, %v8760, %v8756
    %v8762 = vlaneseq
    %v8763 = vshrl.u32 %v8762, 7
    %v8764 = vsub.s32 %v8353, %v8763
    %v8765 = vrot.slane %v8176, %v8764
    %v8766 = vsel %vm8358, %v8765, %v8761
    %v8767 = vlaneseq
    %v8768 = vshrl.u32 %v8767, 7
    %v8769 = vsub.s32 %v8360, %v8768
    %v8770 = vrot.slane %v8179, %v8769
    %v8771 = vsel %vm8365, %v8770, %v8766
    %v8772 = vlaneseq
    %v8773 = vshrl.u32 %v8772, 7
    %v8774 = vsub.s32 %v8367, %v8773
    %v8775 = vrot.slane %v8182, %v8774
    %v8776 = vsel %vm8372, %v8775, %v8771
    %v8777 = vlaneseq
    %v8778 = vshrl.u32 %v8777, 7
    %v8779 = vsub.s32 %v8374, %v8778
    %v8780 = vrot.slane %v8185, %v8779
    %v8781 = vsel %vm8379, %v8780, %v8776
    %v8782 = vlaneseq
    %v8783 = vshrl.u32 %v8782, 7
    %v8784 = vsub.s32 %v8381, %v8783
    %v8785 = vrot.slane %v8188, %v8784
    %v8786 = vsel %vm8386, %v8785, %v8781
    %v8787 = vlaneseq
    %v8788 = vshrl.u32 %v8787, 7
    %v8789 = vsub.s32 %v8388, %v8788
    %v8790 = vrot.slane %v8191, %v8789
    %v8791 = vsel %vm8393, %v8790, %v8786
    %v8792 = vlaneseq
    %v8793 = vshrl.u32 %v8792, 7
    %v8794 = vsub.s32 %v8395, %v8793
    %v8795 = vrot.slane %v8194, %v8794
    %v8796 = vsel %vm8400, %v8795, %v8791
    %v8797 = vlaneseq
    %v8798 = vshrl.u32 %v8797, 7
    %v8799 = vsub.s32 %v8292, %v8798
    %v8800 = vrot.slane %v8197, %v8799
    %v8801 = vlaneseq
    %v8802 = vshrl.u32 %v8801, 7
    %v8803 = vsub.s32 %v8297, %v8802
    %v8804 = vrot.slane %v8200, %v8803
    %v8805 = vsel %vm8302, %v8804, %v8800
    %v8806 = vlaneseq
    %v8807 = vshrl.u32 %v8806, 7
    %v8808 = vsub.s32 %v8304, %v8807
    %v8809 = vrot.slane %v8203, %v8808
    %v8810 = vsel %vm8309, %v8809, %v8805
    %v8811 = vlaneseq
    %v8812 = vshrl.u32 %v8811, 7
    %v8813 = vsub.s32 %v8311, %v8812
    %v8814 = vrot.slane %v8206, %v8813
    %v8815 = vsel %vm8316, %v8814, %v8810
    %v8816 = vlaneseq
    %v8817 = vshrl.u32 %v8816, 7
    %v8818 = vsub.s32 %v8318, %v8817
    %v8819 = vrot.slane %v8209, %v8818
    %v8820 = vsel %vm8323, %v8819, %v8815
    %v8821 = vlaneseq
    %v8822 = vshrl.u32 %v8821, 7
    %v8823 = vsub.s32 %v8325, %v8822
    %v8824 = vrot.slane %v8212, %v8823
    %v8825 = vsel %vm8330, %v8824, %v8820
    %v8826 = vlaneseq
    %v8827 = vshrl.u32 %v8826, 7
    %v8828 = vsub.s32 %v8332, %v8827
    %v8829 = vrot.slane %v8215, %v8828
    %v8830 = vsel %vm8337, %v8829, %v8825
    %v8831 = vlaneseq
    %v8832 = vshrl.u32 %v8831, 7
    %v8833 = vsub.s32 %v8339, %v8832
    %v8834 = vrot.slane %v8218, %v8833
    %v8835 = vsel %vm8344, %v8834, %v8830
    %v8836 = vlaneseq
    %v8837 = vshrl.u32 %v8836, 7
    %v8838 = vsub.s32 %v8346, %v8837
    %v8839 = vrot.slane %v8221, %v8838
    %v8840 = vsel %vm8351, %v8839, %v8835
    %v8841 = vlaneseq
    %v8842 = vshrl.u32 %v8841, 7
    %v8843 = vsub.s32 %v8353, %v8842
    %v8844 = vrot.slane %v8224, %v8843
    %v8845 = vsel %vm8358, %v8844, %v8840
    %v8846 = vlaneseq
    %v8847 = vshrl.u32 %v8846, 7
    %v8848 = vsub.s32 %v8360, %v8847
    %v8849 = vrot.slane %v8227, %v8848
    %v8850 = vsel %vm8365, %v8849, %v8845
    %v8851 = vlaneseq
    %v8852 = vshrl.u32 %v8851, 7
    %v8853 = vsub.s32 %v8367, %v8852
    %v8854 = vrot.slane %v8230, %v8853
    %v8855 = vsel %vm8372, %v8854, %v8850
    %v8856 = vlaneseq
    %v8857 = vshrl.u32 %v8856, 7
    %v8858 = vsub.s32 %v8374, %v8857
    %v8859 = vrot.slane %v8233, %v8858
    %v8860 = vsel %vm8379, %v8859, %v8855
    %v8861 = vlaneseq
    %v8862 = vshrl.u32 %v8861, 7
    %v8863 = vsub.s32 %v8381, %v8862
    %v8864 = vrot.slane %v8236, %v8863
    %v8865 = vsel %vm8386, %v8864, %v8860
    %v8866 = vlaneseq
    %v8867 = vshrl.u32 %v8866, 7
    %v8868 = vsub.s32 %v8388, %v8867
    %v8869 = vrot.slane %v8239, %v8868
    %v8870 = vsel %vm8393, %v8869, %v8865
    %v8871 = vlaneseq
    %v8872 = vshrl.u32 %v8871, 7
    %v8873 = vsub.s32 %v8395, %v8872
    %v8874 = vrot.slane %v8242, %v8873
    %v8875 = vsel %vm8400, %v8874, %v8870
    %v8876 = vlaneseq
    %v8877 = vshrl.u32 %v8876, 7
    %v8878 = vsub.s32 %v8292, %v8877
    %v8879 = vrot.slane %v8245, %v8878
    %v8880 = vlaneseq
    %v8881 = vshrl.u32 %v8880, 7
    %v8882 = vsub.s32 %v8297, %v8881
    %v8883 = vrot.slane %v8248, %v8882
    %v8884 = vsel %vm8302, %v8883, %v8879
    %v8885 = vlaneseq
    %v8886 = vshrl.u32 %v8885, 7
    %v8887 = vsub.s32 %v8304, %v8886
    %v8888 = vrot.slane %v8251, %v8887
    %v8889 = vsel %vm8309, %v8888, %v8884
    %v8890 = vlaneseq
    %v8891 = vshrl.u32 %v8890, 7
    %v8892 = vsub.s32 %v8311, %v8891
    %v8893 = vrot.slane %v8254, %v8892
    %v8894 = vsel %vm8316, %v8893, %v8889
    %v8895 = vlaneseq
    %v8896 = vshrl.u32 %v8895, 7
    %v8897 = vsub.s32 %v8318, %v8896
    %v8898 = vrot.slane %v8257, %v8897
    %v8899 = vsel %vm8323, %v8898, %v8894
    %v8900 = vlaneseq
    %v8901 = vshrl.u32 %v8900, 7
    %v8902 = vsub.s32 %v8325, %v8901
    %v8903 = vrot.slane %v8260, %v8902
    %v8904 = vsel %vm8330, %v8903, %v8899
    %v8905 = vlaneseq
    %v8906 = vshrl.u32 %v8905, 7
    %v8907 = vsub.s32 %v8332, %v8906
    %v8908 = vrot.slane %v8263, %v8907
    %v8909 = vsel %vm8337, %v8908, %v8904
    %v8910 = vlaneseq
    %v8911 = vshrl.u32 %v8910, 7
    %v8912 = vsub.s32 %v8339, %v8911
    %v8913 = vrot.slane %v8266, %v8912
    %v8914 = vsel %vm8344, %v8913, %v8909
    %v8915 = vlaneseq
    %v8916 = vshrl.u32 %v8915, 7
    %v8917 = vsub.s32 %v8346, %v8916
    %v8918 = vrot.slane %v8269, %v8917
    %v8919 = vsel %vm8351, %v8918, %v8914
    %v8920 = vlaneseq
    %v8921 = vshrl.u32 %v8920, 7
    %v8922 = vsub.s32 %v8353, %v8921
    %v8923 = vrot.slane %v8272, %v8922
    %v8924 = vsel %vm8358, %v8923, %v8919
    %v8925 = vlaneseq
    %v8926 = vshrl.u32 %v8925, 7
    %v8927 = vsub.s32 %v8360, %v8926
    %v8928 = vrot.slane %v8275, %v8927
    %v8929 = vsel %vm8365, %v8928, %v8924
    %v8930 = vlaneseq
    %v8931 = vshrl.u32 %v8930, 7
    %v8932 = vsub.s32 %v8367, %v8931
    %v8933 = vrot.slane %v8278, %v8932
    %v8934 = vsel %vm8372, %v8933, %v8929
    %v8935 = vlaneseq
    %v8936 = vshrl.u32 %v8935, 7
    %v8937 = vsub.s32 %v8374, %v8936
    %v8938 = vrot.slane %v8281, %v8937
    %v8939 = vsel %vm8379, %v8938, %v8934
    %v8940 = vlaneseq
    %v8941 = vshrl.u32 %v8940, 7
    %v8942 = vsub.s32 %v8381, %v8941
    %v8943 = vrot.slane %v8284, %v8942
    %v8944 = vsel %vm8386, %v8943, %v8939
    %v8945 = vlaneseq
    %v8946 = vshrl.u32 %v8945, 7
    %v8947 = vsub.s32 %v8388, %v8946
    %v8948 = vrot.slane %v8287, %v8947
    %v8949 = vsel %vm8393, %v8948, %v8944
    %v8950 = vlaneseq
    %v8951 = vshrl.u32 %v8950, 7
    %v8952 = vsub.s32 %v8395, %v8951
    %v8953 = vrot.slane %v8290, %v8952
    %v8954 = vsel %vm8400, %v8953, %v8949
    %vm8955 = vcmask 1041409
    %v8956 = vsel %vm8955, %v8480, %v8401
    %vm8957 = vcmask 1042434
    %v8958 = vsel %vm8957, %v8559, %v8956
    %vm8959 = vcmask 1043459
    %v8960 = vsel %vm8959, %v8638, %v8958
    %vm8961 = vcmask 1044484
    %v8962 = vsel %vm8961, %v8717, %v8960
    %vm8963 = vcmask 1045509
    %v8964 = vsel %vm8963, %v8796, %v8962
    %vm8965 = vcmask 1046534
    %v8966 = vsel %vm8965, %v8875, %v8964
    %vm8967 = vcmask 1047559
    %v8968 = vsel %vm8967, %v8954, %v8966
    %8970 = vst [vmem:[#allocation3] sm:$0xff] %v8968
    // Predicated region
    $region46: #{tpu_custom_call.1} parent=1 // pred_check
      _
    $region47: #{tpu_custom_call.1} parent=1 // pred_check_branch
      %8972 = sbr.rel (0) target = $region49
    $region48: #{tpu_custom_call.1} parent=1 // pred_region
      %s8974 = ssub.s32 128, 128
      %8975 = vsyncadd [#allocation4], %s8974
      %s8977 = sshll.u32 [#allocation3], 4
      %s8978 = int_to_ptr.vmem [resolvable:$true] %s8977
      %8980 = dma.vmem_to_hbm [thread:$0]  %s8978, 128, %s11, [#allocation4]
    $region49: #{tpu_custom_call.1} parent=1 // pred_fallthru
      _
    // Predicated region
    $region50: #{tpu_custom_call.1} parent=1 // pred_check
      _
    $region51: #{tpu_custom_call.1} parent=1 // pred_check_branch
      %8982 = sbr.rel (0) target = $region53
    $region52: #{tpu_custom_call.1} parent=1 // pred_region
      %8983 = dma.done [#allocation4], 128
    $region53: #{tpu_custom_call.1} parent=1 // pred_fallthru
      _
    %8984 = vsyncpa [#allocation4], 1

</llo_original>
